<compile_context>
chip_gen: v5e
topology: v5e:2x2
jax: 0.10.0
libtpu: 0.0.40
codegen_flags: <defaults>
</compile_context>

<pallas_src>
import math
import functools

import jax
import jax.numpy as jnp
from jax.experimental import pallas as pl
from jax.experimental.pallas import tpu as pltpu

# ----------------------------- configuration (small, consistent with forward)
CFG = dict(
    n_tokens=16,
    max_len=8,      # must equal seq len (forward reuses the (S,S) causal mask as memory_mask)
    dim_emb=128,
    heads=4,
    dim_hidden=32,
    L_enc=2,
    L_dec=2,
    dim_ff=256,
    eps=0.6,        # layer_norm_eps default of the module
)
BATCH = 2
NEG_INF = -1e30     # masked-score fill (exp underflows to exactly 0)
LAT_PAD = 128       # lane-dense slab width for the latent (dim_hidden=32 real cols)
TOK_PAD = 128       # lane-dense slab width for the logits (n_tokens=16 real cols)

# order of stacked / pre-transposed weight operands fed to the fused kernel
WEIGHT_ORDER = [
    "e_wqkv", "e_bqkv", "e_wo", "e_bo", "e_ln1g", "e_ln1b",
    "e_w1", "e_b1", "e_w2", "e_b2", "e_ln2g", "e_ln2b",
    "d_swqkv", "d_sbqkv", "d_swo", "d_sbo", "d_ln1g", "d_ln1b",
    "d_cwqkv", "d_cbqkv", "d_cwo", "d_cbo", "d_ln2g", "d_ln2b",
    "d_w1", "d_b1", "d_w2", "d_b2", "d_ln3g", "d_ln3b",
    "lin_w", "lin_b", "samp_w", "samp_b", "out_w", "out_b",
]


# ----------------------------- fused Pallas kernel ---------------------------
def _fused_forward_kernel(B, S, E, H, eps, *refs):
    (emb_ref, bias_ref, pool_ref,
     e_wqkv, e_bqkv, e_wo, e_bo, e_ln1g, e_ln1b,
     e_w1, e_b1, e_w2, e_b2, e_ln2g, e_ln2b,
     d_swqkv, d_sbqkv, d_swo, d_sbo, d_ln1g, d_ln1b,
     d_cwqkv, d_cbqkv, d_cwo, d_cbo, d_ln2g, d_ln2b,
     d_w1, d_b1, d_w2, d_b2, d_ln3g, d_ln3b,
     lin_w, lin_b, samp_w, samp_b, out_w, out_b,
     latent_ref, logits_ref) = refs

    f32 = jnp.float32
    Dh = E // H
    scale = 1.0 / math.sqrt(Dh)
    bias = bias_ref[...]                       # (B*S, B*S) block-diag causal

    def layernorm(h, g, b):
        mean = jnp.mean(h, axis=-1, keepdims=True)
        c = h - mean
        var = jnp.mean(c * c, axis=-1, keepdims=True)
        return c * jax.lax.rsqrt(var + eps) * g + b

    def mha(xq, wqkv, bqkv, wo, bo, xkv=None):
        # xq: (B*S, E); xkv: (B*S, E) or None for self-attention
        qkv_q = jnp.dot(xq, wqkv, preferred_element_type=f32) + bqkv      # (M, 3E)
        if xkv is None:
            qkv_k = qkv_q
        else:
            qkv_k = jnp.dot(xkv, wqkv, preferred_element_type=f32) + bqkv
        q = qkv_q[:, 0:E]
        k = qkv_k[:, E:2 * E]
        v = qkv_k[:, 2 * E:3 * E]
        heads = []
        for h in range(H):                                   # heads = static lane slices
            qh = q[:, h * Dh:(h + 1) * Dh]
            kh = k[:, h * Dh:(h + 1) * Dh]
            vh = v[:, h * Dh:(h + 1) * Dh]
            s = jax.lax.dot_general(                          # q @ k^T without transpose
                qh, kh, (((1,), (1,)), ((), ())),
                preferred_element_type=f32) * scale + bias    # (M, M)
            m = jnp.max(s, axis=-1, keepdims=True)
            p = jnp.exp(s - m)
            denom = jnp.sum(p, axis=-1, keepdims=True)        # >= 1 (diag never masked)
            p = p * pl.reciprocal(denom, approx=True)
            heads.append(jnp.dot(p, vh, preferred_element_type=f32))
        o = jnp.concatenate(heads, axis=-1)                   # (M, E)
        return jnp.dot(o, wo, preferred_element_type=f32) + bo

    def ffn(x, w1, b1, w2, b2):
        h = jnp.maximum(jnp.dot(x, w1, preferred_element_type=f32) + b1, 0.0)
        return jnp.dot(h, w2, preferred_element_type=f32) + b2

    # ---------------- encoder stack (post-norm) ----------------
    x = emb_ref[...]
    for l in range(e_wqkv.shape[0]):
        a = mha(x, e_wqkv[l], e_bqkv[l], e_wo[l], e_bo[l])
        x = layernorm(x + a, e_ln1g[l], e_ln1b[l])
        f = ffn(x, e_w1[l], e_b1[l], e_w2[l], e_b2[l])
        x = layernorm(x + f, e_ln2g[l], e_ln2b[l])
    enc_out = x                                               # (B*S, E)

    # ---------------- bottleneck ----------------
    # avg_mask is all ones -> masked mean == per-batch mean; done as one matmul.
    enc_avg = jnp.dot(pool_ref[...], enc_out, preferred_element_type=f32)   # (B, E)
    latent = jnp.dot(enc_avg, lin_w[...], preferred_element_type=f32) + lin_b[...]  # (B, LAT_PAD)
    nrm = jnp.sqrt(jnp.sum(latent * latent, axis=-1, keepdims=True))
    latent = latent / jnp.maximum(nrm, 1e-12)                 # F.normalize (padded cols stay 0)
    latent_ref[...] = latent

    # samp_linear -> memory (B*S, E); assemble rows with static lane slices so no
    # lane->sublane reshape is required inside the kernel.
    rows = []
    for b in range(B):
        row = jnp.dot(latent[b:b + 1, :], samp_w[...],
                      preferred_element_type=f32) + samp_b[...]            # (1, S*E)
        for s in range(S):
            rows.append(row[:, s * E:(s + 1) * E])
    memory = jnp.concatenate(rows, axis=0)                    # (B*S, E)

    # ---------------- decoder stack (post-norm) ----------------
    y = emb_ref[...]
    for l in range(d_swqkv.shape[0]):
        a = mha(y, d_swqkv[l], d_sbqkv[l], d_swo[l], d_sbo[l])            # self-attn (causal)
        y = layernorm(y + a, d_ln1g[l], d_ln1b[l])
        a = mha(y, d_cwqkv[l], d_cbqkv[l], d_cwo[l], d_cbo[l], xkv=memory)  # cross-attn (mem_mask = causal)
        y = layernorm(y + a, d_ln2g[l], d_ln2b[l])
        f = ffn(y, d_w1[l], d_b1[l], d_w2[l], d_b2[l])
        y = layernorm(y + f, d_ln3g[l], d_ln3b[l])

    # ---------------- output projection (lane-dense padded slab) ----------------
    # out_mask defaults to zeros -> masked_fill is a no-op and is skipped.
    logits_ref[...] = jnp.dot(y, out_w[...], preferred_element_type=f32) + out_b[...]


# ----------------------------- wrapper ---------------------------------------
def _forward_impl(params, seq):
    cfg = CFG
    B, S = seq.shape
    E, H, eps = cfg["dim_emb"], cfg["heads"], cfg["eps"]
    n_tok, hlat = cfg["n_tokens"], cfg["dim_hidden"]

    # embedding + positional encoding (dropout inactive in eval)
    emb = jnp.take(params["embedder"], seq, axis=0) + params["pe"][:S]
    emb = emb.reshape(B * S, E).astype(jnp.float32)

    # block-diagonal causal additive bias over the flattened (B*S) token axis.
    # The module reuses the causal (S,S) mask as both tgt_mask and memory_mask,
    # and memory length == max_len == S, so one bias serves self- and cross-attn.
    row_b = jnp.repeat(jnp.arange(B), S)
    row_p = jnp.tile(jnp.arange(S), B)
    allowed = (row_b[:, None] == row_b[None, :]) & (row_p[None, :] <= row_p[:, None])
    bias = jnp.where(allowed, 0.0, NEG_INF).astype(jnp.float32)

    # per-batch mean pooling matrix (avg_mask = ones)
    pool = jnp.kron(jnp.eye(B, dtype=jnp.float32),
                    jnp.full((1, S), 1.0 / S, jnp.float32))              # (B, B*S)

    vmem = pl.BlockSpec(memory_space=pltpu.MemorySpace.VMEM)
    operands = [emb, bias, pool] + [params[k] for k in WEIGHT_ORDER]

    latent_pad, logits_pad = pl.pallas_call(
        functools.partial(_fused_forward_kernel, B, S, E, H, eps),
        out_shape=(
            jax.ShapeDtypeStruct((B, LAT_PAD), jnp.float32),
            jax.ShapeDtypeStruct((B * S, TOK_PAD), jnp.float32),
        ),
        in_specs=[vmem] * len(operands),
        out_specs=(vmem, vmem),
        compiler_params=pltpu.CompilerParams(vmem_limit_bytes=32 * 1024 * 1024),
    )(*operands)

    latent_vec = latent_pad[:, :hlat]
    logits = logits_pad[:, :n_tok].reshape(B, S, n_tok)
    prop_pred = None        # num_props is None -> prop_nn is None
    return latent_vec, logits, prop_pred


seq_autoencoder_forward = jax.jit(_forward_impl)


# ----------------------------- deterministic parameter init ------------------
def positional_encoding_table(max_len, d_model):
    position = jnp.arange(max_len, dtype=jnp.float32)[:, None]
    div_term = jnp.exp(jnp.arange(0, d_model, 2, dtype=jnp.float32)
                       * (-math.log(10000.0) / d_model))
    pe = jnp.zeros((max_len, d_model), jnp.float32)
    pe = pe.at[:, 0::2].set(jnp.sin(position * div_term))
    pe = pe.at[:, 1::2].set(jnp.cos(position * div_term))
    return pe


def _nrm(key, shape):
    return (jax.random.normal(key, shape, jnp.float32) * 0.02).astype(jnp.float32)


def init_params(key, cfg):
    """Weights generated directly in kernel layout: (K, N), QKV fused,
    stacked per layer, lane-padded where the true width is < 128."""
    E, FF, HLAT = cfg["dim_emb"], cfg["dim_ff"], cfg["dim_hidden"]
    n_tok, S = cfg["n_tokens"], cfg["max_len"]
    Le, Ld = cfg["L_enc"], cfg["L_dec"]

    keys = iter(jax.random.split(key, 64))

    def zeros(*shape):
        return jnp.zeros(shape, jnp.float32)

    def ones(*shape):
        return jnp.ones(shape, jnp.float32)

    p = {}
    p["embedder"] = _nrm(next(keys), (n_tok, E))
    p["pe"] = positional_encoding_table(200, E)

    def stacked_attn(L):
        wqkv = jnp.stack([_nrm(next(keys), (E, 3 * E)) for _ in range(L)])
        wo = jnp.stack([_nrm(next(keys), (E, E)) for _ in range(L)])
        return wqkv, zeros(L, 1, 3 * E), wo, zeros(L, 1, E)

    # encoder
    p["e_wqkv"], p["e_bqkv"], p["e_wo"], p["e_bo"] = stacked_attn(Le)
    p["e_ln1g"], p["e_ln1b"] = ones(Le, 1, E), zeros(Le, 1, E)
    p["e_w1"] = jnp.stack([_nrm(next(keys), (E, FF)) for _ in range(Le)])
    p["e_b1"] = zeros(Le, 1, FF)
    p["e_w2"] = jnp.stack([_nrm(next(keys), (FF, E)) for _ in range(Le)])
    p["e_b2"] = zeros(Le, 1, E)
    p["e_ln2g"], p["e_ln2b"] = ones(Le, 1, E), zeros(Le, 1, E)

    # decoder
    p["d_swqkv"], p["d_sbqkv"], p["d_swo"], p["d_sbo"] = stacked_attn(Ld)
    p["d_ln1g"], p["d_ln1b"] = ones(Ld, 1, E), zeros(Ld, 1, E)
    p["d_cwqkv"], p["d_cbqkv"], p["d_cwo"], p["d_cbo"] = stacked_attn(Ld)
    p["d_ln2g"], p["d_ln2b"] = ones(Ld, 1, E), zeros(Ld, 1, E)
    p["d_w1"] = jnp.stack([_nrm(next(keys), (E, FF)) for _ in range(Ld)])
    p["d_b1"] = zeros(Ld, 1, FF)
    p["d_w2"] = jnp.stack([_nrm(next(keys), (FF, E)) for _ in range(Ld)])
    p["d_b2"] = zeros(Ld, 1, E)
    p["d_ln3g"], p["d_ln3b"] = ones(Ld, 1, E), zeros(Ld, 1, E)

    # bottleneck + output projection, zero-padded to lane-dense widths
    lin_w = _nrm(next(keys), (E, HLAT))
    p["lin_w"] = jnp.pad(lin_w, ((0, 0), (0, LAT_PAD - HLAT)))
    p["lin_b"] = zeros(1, LAT_PAD)
    samp_w = _nrm(next(keys), (HLAT, E * S))
    p["samp_w"] = jnp.pad(samp_w, ((0, LAT_PAD - HLAT), (0, 0)))
    p["samp_b"] = zeros(1, E * S)
    out_w = _nrm(next(keys), (E, n_tok))
    p["out_w"] = jnp.pad(out_w, ((0, 0), (0, TOK_PAD - n_tok)))
    p["out_b"] = zeros(1, TOK_PAD)
    return p


# ----------------------------- main -------------------------------------------
if __name__ == "__main__":
    key = jax.random.PRNGKey(0)
    k_param, k_seq = jax.random.split(key)
    params = init_params(k_param, CFG)

    seq = jax.random.randint(k_seq, (BATCH, CFG["max_len"]), 0, CFG["n_tokens"],
                             dtype=jnp.int32)

    latent_vec, dec_out, prop_pred = seq_autoencoder_forward(params, seq)
    latent_vec = jax.block_until_ready(latent_vec)
    dec_out = jax.block_until_ready(dec_out)

    assert latent_vec.shape == (BATCH, CFG["dim_hidden"])
    assert dec_out.shape == (BATCH, CFG["max_len"], CFG["n_tokens"])
    assert prop_pred is None
    assert bool(jnp.all(jnp.isfinite(latent_vec))) and bool(jnp.all(jnp.isfinite(dec_out)))
    print("KERNEL_OK")
</pallas_src>

<mosaic_0001>
module attributes {stable_mosaic.version = 11 : i64} {
  func.func @_fused_forward_kernel(%arg0: memref<16x128xf32, #tpu.memory_space<vmem>>, %arg1: memref<16x16xf32, #tpu.memory_space<vmem>>, %arg2: memref<2x16xf32, #tpu.memory_space<vmem>>, %arg3: memref<2x128x384xf32, #tpu.memory_space<vmem>>, %arg4: memref<2x1x384xf32, #tpu.memory_space<vmem>>, %arg5: memref<2x128x128xf32, #tpu.memory_space<vmem>>, %arg6: memref<2x1x128xf32, #tpu.memory_space<vmem>>, %arg7: memref<2x1x128xf32, #tpu.memory_space<vmem>>, %arg8: memref<2x1x128xf32, #tpu.memory_space<vmem>>, %arg9: memref<2x128x256xf32, #tpu.memory_space<vmem>>, %arg10: memref<2x1x256xf32, #tpu.memory_space<vmem>>, %arg11: memref<2x256x128xf32, #tpu.memory_space<vmem>>, %arg12: memref<2x1x128xf32, #tpu.memory_space<vmem>>, %arg13: memref<2x1x128xf32, #tpu.memory_space<vmem>>, %arg14: memref<2x1x128xf32, #tpu.memory_space<vmem>>, %arg15: memref<2x128x384xf32, #tpu.memory_space<vmem>>, %arg16: memref<2x1x384xf32, #tpu.memory_space<vmem>>, %arg17: memref<2x128x128xf32, #tpu.memory_space<vmem>>, %arg18: memref<2x1x128xf32, #tpu.memory_space<vmem>>, %arg19: memref<2x1x128xf32, #tpu.memory_space<vmem>>, %arg20: memref<2x1x128xf32, #tpu.memory_space<vmem>>, %arg21: memref<2x128x384xf32, #tpu.memory_space<vmem>>, %arg22: memref<2x1x384xf32, #tpu.memory_space<vmem>>, %arg23: memref<2x128x128xf32, #tpu.memory_space<vmem>>, %arg24: memref<2x1x128xf32, #tpu.memory_space<vmem>>, %arg25: memref<2x1x128xf32, #tpu.memory_space<vmem>>, %arg26: memref<2x1x128xf32, #tpu.memory_space<vmem>>, %arg27: memref<2x128x256xf32, #tpu.memory_space<vmem>>, %arg28: memref<2x1x256xf32, #tpu.memory_space<vmem>>, %arg29: memref<2x256x128xf32, #tpu.memory_space<vmem>>, %arg30: memref<2x1x128xf32, #tpu.memory_space<vmem>>, %arg31: memref<2x1x128xf32, #tpu.memory_space<vmem>>, %arg32: memref<2x1x128xf32, #tpu.memory_space<vmem>>, %arg33: memref<128x128xf32, #tpu.memory_space<vmem>>, %arg34: memref<1x128xf32, #tpu.memory_space<vmem>>, %arg35: memref<128x1024xf32, #tpu.memory_space<vmem>>, %arg36: memref<1x1024xf32, #tpu.memory_space<vmem>>, %arg37: memref<128x128xf32, #tpu.memory_space<vmem>>, %arg38: memref<1x128xf32, #tpu.memory_space<vmem>>, %arg39: memref<2x128xf32, #tpu.memory_space<vmem>>, %arg40: memref<16x128xf32, #tpu.memory_space<vmem>>) attributes {dimension_semantics = [], scalar_prefetch = 0 : i64, scratch_operands = 0 : i64, tpu.core_type = #tpu.core_type<tc>} {
    %c0 = arith.constant 0 : index
    %c0_0 = arith.constant 0 : index
    %0 = vector.load %arg1[%c0, %c0_0] : memref<16x16xf32, #tpu.memory_space<vmem>>, vector<16x16xf32>
    %c0_1 = arith.constant 0 : index
    %c0_2 = arith.constant 0 : index
    %1 = vector.load %arg0[%c0_1, %c0_2] : memref<16x128xf32, #tpu.memory_space<vmem>>, vector<16x128xf32>
    %c0_3 = arith.constant 0 : index
    %c0_4 = arith.constant 0 : index
    %c0_5 = arith.constant 0 : index
    %2 = vector.load %arg3[%c0_3, %c0_4, %c0_5] : memref<2x128x384xf32, #tpu.memory_space<vmem>>, vector<1x128x384xf32>
    %3 = vector.shape_cast %2 : vector<1x128x384xf32> to vector<128x384xf32>
    %c0_6 = arith.constant 0 : index
    %c0_7 = arith.constant 0 : index
    %c0_8 = arith.constant 0 : index
    %4 = vector.load %arg4[%c0_6, %c0_7, %c0_8] : memref<2x1x384xf32, #tpu.memory_space<vmem>>, vector<1x1x384xf32>
    %5 = vector.shape_cast %4 : vector<1x1x384xf32> to vector<1x384xf32>
    %c0_9 = arith.constant 0 : index
    %c0_10 = arith.constant 0 : index
    %c0_11 = arith.constant 0 : index
    %6 = vector.load %arg5[%c0_9, %c0_10, %c0_11] : memref<2x128x128xf32, #tpu.memory_space<vmem>>, vector<1x128x128xf32>
    %7 = vector.shape_cast %6 : vector<1x128x128xf32> to vector<128x128xf32>
    %c0_12 = arith.constant 0 : index
    %c0_13 = arith.constant 0 : index
    %c0_14 = arith.constant 0 : index
    %8 = vector.load %arg6[%c0_12, %c0_13, %c0_14] : memref<2x1x128xf32, #tpu.memory_space<vmem>>, vector<1x1x128xf32>
    %9 = vector.shape_cast %8 : vector<1x1x128xf32> to vector<1x128xf32>
    %cst = arith.constant dense<0.000000e+00> : vector<16x384xf32>
    %10 = tpu.matmul %1, %3, %cst {dimension_numbers = #tpu.dot_dimension_numbers<[1], [0], [0], [1], [0, 0, 1, 1], [], []>} : vector<16x128xf32>, vector<128x384xf32>, vector<16x384xf32> -> vector<16x384xf32>
    %11 = vector.broadcast %5 : vector<1x384xf32> to vector<16x384xf32>
    %12 = arith.addf %10, %11 : vector<16x384xf32>
    %13 = vector.extract_strided_slice %12 {offsets = [0, 0], sizes = [16, 128], strides = [1, 1]} : vector<16x384xf32> to vector<16x128xf32>
    %14 = vector.extract_strided_slice %12 {offsets = [0, 128], sizes = [16, 128], strides = [1, 1]} : vector<16x384xf32> to vector<16x128xf32>
    %15 = vector.extract_strided_slice %12 {offsets = [0, 256], sizes = [16, 128], strides = [1, 1]} : vector<16x384xf32> to vector<16x128xf32>
    %16 = vector.extract_strided_slice %13 {offsets = [0, 0], sizes = [16, 32], strides = [1, 1]} : vector<16x128xf32> to vector<16x32xf32>
    %17 = vector.extract_strided_slice %14 {offsets = [0, 0], sizes = [16, 32], strides = [1, 1]} : vector<16x128xf32> to vector<16x32xf32>
    %18 = vector.extract_strided_slice %15 {offsets = [0, 0], sizes = [16, 32], strides = [1, 1]} : vector<16x128xf32> to vector<16x32xf32>
    %cst_15 = arith.constant dense<0.000000e+00> : vector<16x16xf32>
    %19 = tpu.matmul %16, %17, %cst_15 {dimension_numbers = #tpu.dot_dimension_numbers<[1], [1], [0], [0], [0, 0, 1, 0], [], []>} : vector<16x32xf32>, vector<16x32xf32>, vector<16x16xf32> -> vector<16x16xf32>
    %cst_16 = arith.constant 0.176776692 : f32
    %20 = vector.broadcast %cst_16 : f32 to vector<16x16xf32>
    %21 = arith.mulf %19, %20 : vector<16x16xf32>
    %22 = arith.addf %21, %0 : vector<16x16xf32>
    %cst_17 = arith.constant dense<0xFF800000> : vector<16xf32>
    %23 = vector.multi_reduction <maximumf>, %22, %cst_17 [1] : vector<16x16xf32> to vector<16xf32>
    %24 = vector.shape_cast %23 : vector<16xf32> to vector<16x1xf32>
    %25 = vector.broadcast %24 : vector<16x1xf32> to vector<16x16xf32>
    %26 = arith.subf %22, %25 : vector<16x16xf32>
    %27 = math.exp %26 : vector<16x16xf32>
    %cst_18 = arith.constant dense<0.000000e+00> : vector<16xf32>
    %28 = vector.multi_reduction <add>, %27, %cst_18 [1] : vector<16x16xf32> to vector<16xf32>
    %29 = vector.shape_cast %28 : vector<16xf32> to vector<16x1xf32>
    %30 = tpu.reciprocal %29 {approx = true} : vector<16x1xf32> -> vector<16x1xf32>
    %31 = vector.broadcast %30 : vector<16x1xf32> to vector<16x16xf32>
    %32 = arith.mulf %27, %31 : vector<16x16xf32>
    %cst_19 = arith.constant dense<0.000000e+00> : vector<16x32xf32>
    %33 = tpu.matmul %32, %18, %cst_19 {dimension_numbers = #tpu.dot_dimension_numbers<[1], [0], [0], [1], [0, 0, 1, 1], [], []>} : vector<16x16xf32>, vector<16x32xf32>, vector<16x32xf32> -> vector<16x32xf32>
    %34 = vector.extract_strided_slice %13 {offsets = [0, 32], sizes = [16, 32], strides = [1, 1]} : vector<16x128xf32> to vector<16x32xf32>
    %35 = vector.extract_strided_slice %14 {offsets = [0, 32], sizes = [16, 32], strides = [1, 1]} : vector<16x128xf32> to vector<16x32xf32>
    %36 = vector.extract_strided_slice %15 {offsets = [0, 32], sizes = [16, 32], strides = [1, 1]} : vector<16x128xf32> to vector<16x32xf32>
    %cst_20 = arith.constant dense<0.000000e+00> : vector<16x16xf32>
    %37 = tpu.matmul %34, %35, %cst_20 {dimension_numbers = #tpu.dot_dimension_numbers<[1], [1], [0], [0], [0, 0, 1, 0], [], []>} : vector<16x32xf32>, vector<16x32xf32>, vector<16x16xf32> -> vector<16x16xf32>
    %cst_21 = arith.constant 0.176776692 : f32
    %38 = vector.broadcast %cst_21 : f32 to vector<16x16xf32>
    %39 = arith.mulf %37, %38 : vector<16x16xf32>
    %40 = arith.addf %39, %0 : vector<16x16xf32>
    %cst_22 = arith.constant dense<0xFF800000> : vector<16xf32>
    %41 = vector.multi_reduction <maximumf>, %40, %cst_22 [1] : vector<16x16xf32> to vector<16xf32>
    %42 = vector.shape_cast %41 : vector<16xf32> to vector<16x1xf32>
    %43 = vector.broadcast %42 : vector<16x1xf32> to vector<16x16xf32>
    %44 = arith.subf %40, %43 : vector<16x16xf32>
    %45 = math.exp %44 : vector<16x16xf32>
    %cst_23 = arith.constant dense<0.000000e+00> : vector<16xf32>
    %46 = vector.multi_reduction <add>, %45, %cst_23 [1] : vector<16x16xf32> to vector<16xf32>
    %47 = vector.shape_cast %46 : vector<16xf32> to vector<16x1xf32>
    %48 = tpu.reciprocal %47 {approx = true} : vector<16x1xf32> -> vector<16x1xf32>
    %49 = vector.broadcast %48 : vector<16x1xf32> to vector<16x16xf32>
    %50 = arith.mulf %45, %49 : vector<16x16xf32>
    %cst_24 = arith.constant dense<0.000000e+00> : vector<16x32xf32>
    %51 = tpu.matmul %50, %36, %cst_24 {dimension_numbers = #tpu.dot_dimension_numbers<[1], [0], [0], [1], [0, 0, 1, 1], [], []>} : vector<16x16xf32>, vector<16x32xf32>, vector<16x32xf32> -> vector<16x32xf32>
    %52 = vector.extract_strided_slice %13 {offsets = [0, 64], sizes = [16, 32], strides = [1, 1]} : vector<16x128xf32> to vector<16x32xf32>
    %53 = vector.extract_strided_slice %14 {offsets = [0, 64], sizes = [16, 32], strides = [1, 1]} : vector<16x128xf32> to vector<16x32xf32>
    %54 = vector.extract_strided_slice %15 {offsets = [0, 64], sizes = [16, 32], strides = [1, 1]} : vector<16x128xf32> to vector<16x32xf32>
    %cst_25 = arith.constant dense<0.000000e+00> : vector<16x16xf32>
    %55 = tpu.matmul %52, %53, %cst_25 {dimension_numbers = #tpu.dot_dimension_numbers<[1], [1], [0], [0], [0, 0, 1, 0], [], []>} : vector<16x32xf32>, vector<16x32xf32>, vector<16x16xf32> -> vector<16x16xf32>
    %cst_26 = arith.constant 0.176776692 : f32
    %56 = vector.broadcast %cst_26 : f32 to vector<16x16xf32>
    %57 = arith.mulf %55, %56 : vector<16x16xf32>
    %58 = arith.addf %57, %0 : vector<16x16xf32>
    %cst_27 = arith.constant dense<0xFF800000> : vector<16xf32>
    %59 = vector.multi_reduction <maximumf>, %58, %cst_27 [1] : vector<16x16xf32> to vector<16xf32>
    %60 = vector.shape_cast %59 : vector<16xf32> to vector<16x1xf32>
    %61 = vector.broadcast %60 : vector<16x1xf32> to vector<16x16xf32>
    %62 = arith.subf %58, %61 : vector<16x16xf32>
    %63 = math.exp %62 : vector<16x16xf32>
    %cst_28 = arith.constant dense<0.000000e+00> : vector<16xf32>
    %64 = vector.multi_reduction <add>, %63, %cst_28 [1] : vector<16x16xf32> to vector<16xf32>
    %65 = vector.shape_cast %64 : vector<16xf32> to vector<16x1xf32>
    %66 = tpu.reciprocal %65 {approx = true} : vector<16x1xf32> -> vector<16x1xf32>
    %67 = vector.broadcast %66 : vector<16x1xf32> to vector<16x16xf32>
    %68 = arith.mulf %63, %67 : vector<16x16xf32>
    %cst_29 = arith.constant dense<0.000000e+00> : vector<16x32xf32>
    %69 = tpu.matmul %68, %54, %cst_29 {dimension_numbers = #tpu.dot_dimension_numbers<[1], [0], [0], [1], [0, 0, 1, 1], [], []>} : vector<16x16xf32>, vector<16x32xf32>, vector<16x32xf32> -> vector<16x32xf32>
    %70 = vector.extract_strided_slice %13 {offsets = [0, 96], sizes = [16, 32], strides = [1, 1]} : vector<16x128xf32> to vector<16x32xf32>
    %71 = vector.extract_strided_slice %14 {offsets = [0, 96], sizes = [16, 32], strides = [1, 1]} : vector<16x128xf32> to vector<16x32xf32>
    %72 = vector.extract_strided_slice %15 {offsets = [0, 96], sizes = [16, 32], strides = [1, 1]} : vector<16x128xf32> to vector<16x32xf32>
    %cst_30 = arith.constant dense<0.000000e+00> : vector<16x16xf32>
    %73 = tpu.matmul %70, %71, %cst_30 {dimension_numbers = #tpu.dot_dimension_numbers<[1], [1], [0], [0], [0, 0, 1, 0], [], []>} : vector<16x32xf32>, vector<16x32xf32>, vector<16x16xf32> -> vector<16x16xf32>
    %cst_31 = arith.constant 0.176776692 : f32
    %74 = vector.broadcast %cst_31 : f32 to vector<16x16xf32>
    %75 = arith.mulf %73, %74 : vector<16x16xf32>
    %76 = arith.addf %75, %0 : vector<16x16xf32>
    %cst_32 = arith.constant dense<0xFF800000> : vector<16xf32>
    %77 = vector.multi_reduction <maximumf>, %76, %cst_32 [1] : vector<16x16xf32> to vector<16xf32>
    %78 = vector.shape_cast %77 : vector<16xf32> to vector<16x1xf32>
    %79 = vector.broadcast %78 : vector<16x1xf32> to vector<16x16xf32>
    %80 = arith.subf %76, %79 : vector<16x16xf32>
    %81 = math.exp %80 : vector<16x16xf32>
    %cst_33 = arith.constant dense<0.000000e+00> : vector<16xf32>
    %82 = vector.multi_reduction <add>, %81, %cst_33 [1] : vector<16x16xf32> to vector<16xf32>
    %83 = vector.shape_cast %82 : vector<16xf32> to vector<16x1xf32>
    %84 = tpu.reciprocal %83 {approx = true} : vector<16x1xf32> -> vector<16x1xf32>
    %85 = vector.broadcast %84 : vector<16x1xf32> to vector<16x16xf32>
    %86 = arith.mulf %81, %85 : vector<16x16xf32>
    %cst_34 = arith.constant dense<0.000000e+00> : vector<16x32xf32>
    %87 = tpu.matmul %86, %72, %cst_34 {dimension_numbers = #tpu.dot_dimension_numbers<[1], [0], [0], [1], [0, 0, 1, 1], [], []>} : vector<16x16xf32>, vector<16x32xf32>, vector<16x32xf32> -> vector<16x32xf32>
    %88 = tpu.concatenate %33, %51, %69, %87 in 1 : vector<16x32xf32>, vector<16x32xf32>, vector<16x32xf32>, vector<16x32xf32> -> vector<16x128xf32>
    %cst_35 = arith.constant dense<0.000000e+00> : vector<16x128xf32>
    %89 = tpu.matmul %88, %7, %cst_35 {dimension_numbers = #tpu.dot_dimension_numbers<[1], [0], [0], [1], [0, 0, 1, 1], [], []>} : vector<16x128xf32>, vector<128x128xf32>, vector<16x128xf32> -> vector<16x128xf32>
    %90 = vector.broadcast %9 : vector<1x128xf32> to vector<16x128xf32>
    %91 = arith.addf %89, %90 : vector<16x128xf32>
    %92 = arith.addf %1, %91 : vector<16x128xf32>
    %c0_36 = arith.constant 0 : index
    %c0_37 = arith.constant 0 : index
    %c0_38 = arith.constant 0 : index
    %93 = vector.load %arg7[%c0_36, %c0_37, %c0_38] : memref<2x1x128xf32, #tpu.memory_space<vmem>>, vector<1x1x128xf32>
    %94 = vector.shape_cast %93 : vector<1x1x128xf32> to vector<1x128xf32>
    %c0_39 = arith.constant 0 : index
    %c0_40 = arith.constant 0 : index
    %c0_41 = arith.constant 0 : index
    %95 = vector.load %arg8[%c0_39, %c0_40, %c0_41] : memref<2x1x128xf32, #tpu.memory_space<vmem>>, vector<1x1x128xf32>
    %96 = vector.shape_cast %95 : vector<1x1x128xf32> to vector<1x128xf32>
    %cst_42 = arith.constant dense<0.000000e+00> : vector<16xf32>
    %97 = vector.multi_reduction <add>, %92, %cst_42 [1] : vector<16x128xf32> to vector<16xf32>
    %98 = vector.shape_cast %97 : vector<16xf32> to vector<16x1xf32>
    %cst_43 = arith.constant 1.280000e+02 : f32
    %99 = vector.broadcast %cst_43 : f32 to vector<16x1xf32>
    %100 = arith.divf %98, %99 : vector<16x1xf32>
    %101 = vector.broadcast %100 : vector<16x1xf32> to vector<16x128xf32>
    %102 = arith.subf %92, %101 : vector<16x128xf32>
    %103 = arith.mulf %102, %102 : vector<16x128xf32>
    %cst_44 = arith.constant dense<0.000000e+00> : vector<16xf32>
    %104 = vector.multi_reduction <add>, %103, %cst_44 [1] : vector<16x128xf32> to vector<16xf32>
    %105 = vector.shape_cast %104 : vector<16xf32> to vector<16x1xf32>
    %cst_45 = arith.constant 1.280000e+02 : f32
    %106 = vector.broadcast %cst_45 : f32 to vector<16x1xf32>
    %107 = arith.divf %105, %106 : vector<16x1xf32>
    %cst_46 = arith.constant 6.000000e-01 : f32
    %108 = vector.broadcast %cst_46 : f32 to vector<16x1xf32>
    %109 = arith.addf %107, %108 : vector<16x1xf32>
    %110 = math.rsqrt %109 : vector<16x1xf32>
    %111 = vector.broadcast %110 : vector<16x1xf32> to vector<16x128xf32>
    %112 = arith.mulf %102, %111 : vector<16x128xf32>
    %113 = vector.broadcast %94 : vector<1x128xf32> to vector<16x128xf32>
    %114 = arith.mulf %112, %113 : vector<16x128xf32>
    %115 = vector.broadcast %96 : vector<1x128xf32> to vector<16x128xf32>
    %116 = arith.addf %114, %115 : vector<16x128xf32>
    %c0_47 = arith.constant 0 : index
    %c0_48 = arith.constant 0 : index
    %c0_49 = arith.constant 0 : index
    %117 = vector.load %arg9[%c0_47, %c0_48, %c0_49] : memref<2x128x256xf32, #tpu.memory_space<vmem>>, vector<1x128x256xf32>
    %118 = vector.shape_cast %117 : vector<1x128x256xf32> to vector<128x256xf32>
    %c0_50 = arith.constant 0 : index
    %c0_51 = arith.constant 0 : index
    %c0_52 = arith.constant 0 : index
    %119 = vector.load %arg10[%c0_50, %c0_51, %c0_52] : memref<2x1x256xf32, #tpu.memory_space<vmem>>, vector<1x1x256xf32>
    %120 = vector.shape_cast %119 : vector<1x1x256xf32> to vector<1x256xf32>
    %c0_53 = arith.constant 0 : index
    %c0_54 = arith.constant 0 : index
    %c0_55 = arith.constant 0 : index
    %121 = vector.load %arg11[%c0_53, %c0_54, %c0_55] : memref<2x256x128xf32, #tpu.memory_space<vmem>>, vector<1x256x128xf32>
    %122 = vector.shape_cast %121 : vector<1x256x128xf32> to vector<256x128xf32>
    %c0_56 = arith.constant 0 : index
    %c0_57 = arith.constant 0 : index
    %c0_58 = arith.constant 0 : index
    %123 = vector.load %arg12[%c0_56, %c0_57, %c0_58] : memref<2x1x128xf32, #tpu.memory_space<vmem>>, vector<1x1x128xf32>
    %124 = vector.shape_cast %123 : vector<1x1x128xf32> to vector<1x128xf32>
    %cst_59 = arith.constant dense<0.000000e+00> : vector<16x256xf32>
    %125 = tpu.matmul %116, %118, %cst_59 {dimension_numbers = #tpu.dot_dimension_numbers<[1], [0], [0], [1], [0, 0, 1, 1], [], []>} : vector<16x128xf32>, vector<128x256xf32>, vector<16x256xf32> -> vector<16x256xf32>
    %126 = vector.broadcast %120 : vector<1x256xf32> to vector<16x256xf32>
    %127 = arith.addf %125, %126 : vector<16x256xf32>
    %cst_60 = arith.constant 0.000000e+00 : f32
    %128 = vector.broadcast %cst_60 : f32 to vector<16x256xf32>
    %129 = arith.maximumf %127, %128 : vector<16x256xf32>
    %cst_61 = arith.constant dense<0.000000e+00> : vector<16x128xf32>
    %130 = tpu.matmul %129, %122, %cst_61 {dimension_numbers = #tpu.dot_dimension_numbers<[1], [0], [0], [1], [0, 0, 1, 1], [], []>} : vector<16x256xf32>, vector<256x128xf32>, vector<16x128xf32> -> vector<16x128xf32>
    %131 = vector.broadcast %124 : vector<1x128xf32> to vector<16x128xf32>
    %132 = arith.addf %130, %131 : vector<16x128xf32>
    %133 = arith.addf %116, %132 : vector<16x128xf32>
    %c0_62 = arith.constant 0 : index
    %c0_63 = arith.constant 0 : index
    %c0_64 = arith.constant 0 : index
    %134 = vector.load %arg13[%c0_62, %c0_63, %c0_64] : memref<2x1x128xf32, #tpu.memory_space<vmem>>, vector<1x1x128xf32>
    %135 = vector.shape_cast %134 : vector<1x1x128xf32> to vector<1x128xf32>
    %c0_65 = arith.constant 0 : index
    %c0_66 = arith.constant 0 : index
    %c0_67 = arith.constant 0 : index
    %136 = vector.load %arg14[%c0_65, %c0_66, %c0_67] : memref<2x1x128xf32, #tpu.memory_space<vmem>>, vector<1x1x128xf32>
    %137 = vector.shape_cast %136 : vector<1x1x128xf32> to vector<1x128xf32>
    %cst_68 = arith.constant dense<0.000000e+00> : vector<16xf32>
    %138 = vector.multi_reduction <add>, %133, %cst_68 [1] : vector<16x128xf32> to vector<16xf32>
    %139 = vector.shape_cast %138 : vector<16xf32> to vector<16x1xf32>
    %cst_69 = arith.constant 1.280000e+02 : f32
    %140 = vector.broadcast %cst_69 : f32 to vector<16x1xf32>
    %141 = arith.divf %139, %140 : vector<16x1xf32>
    %142 = vector.broadcast %141 : vector<16x1xf32> to vector<16x128xf32>
    %143 = arith.subf %133, %142 : vector<16x128xf32>
    %144 = arith.mulf %143, %143 : vector<16x128xf32>
    %cst_70 = arith.constant dense<0.000000e+00> : vector<16xf32>
    %145 = vector.multi_reduction <add>, %144, %cst_70 [1] : vector<16x128xf32> to vector<16xf32>
    %146 = vector.shape_cast %145 : vector<16xf32> to vector<16x1xf32>
    %cst_71 = arith.constant 1.280000e+02 : f32
    %147 = vector.broadcast %cst_71 : f32 to vector<16x1xf32>
    %148 = arith.divf %146, %147 : vector<16x1xf32>
    %cst_72 = arith.constant 6.000000e-01 : f32
    %149 = vector.broadcast %cst_72 : f32 to vector<16x1xf32>
    %150 = arith.addf %148, %149 : vector<16x1xf32>
    %151 = math.rsqrt %150 : vector<16x1xf32>
    %152 = vector.broadcast %151 : vector<16x1xf32> to vector<16x128xf32>
    %153 = arith.mulf %143, %152 : vector<16x128xf32>
    %154 = vector.broadcast %135 : vector<1x128xf32> to vector<16x128xf32>
    %155 = arith.mulf %153, %154 : vector<16x128xf32>
    %156 = vector.broadcast %137 : vector<1x128xf32> to vector<16x128xf32>
    %157 = arith.addf %155, %156 : vector<16x128xf32>
    %c1 = arith.constant 1 : index
    %c0_73 = arith.constant 0 : index
    %c0_74 = arith.constant 0 : index
    %158 = vector.load %arg3[%c1, %c0_73, %c0_74] : memref<2x128x384xf32, #tpu.memory_space<vmem>>, vector<1x128x384xf32>
    %159 = vector.shape_cast %158 : vector<1x128x384xf32> to vector<128x384xf32>
    %c1_75 = arith.constant 1 : index
    %c0_76 = arith.constant 0 : index
    %c0_77 = arith.constant 0 : index
    %160 = vector.load %arg4[%c1_75, %c0_76, %c0_77] : memref<2x1x384xf32, #tpu.memory_space<vmem>>, vector<1x1x384xf32>
    %161 = vector.shape_cast %160 : vector<1x1x384xf32> to vector<1x384xf32>
    %c1_78 = arith.constant 1 : index
    %c0_79 = arith.constant 0 : index
    %c0_80 = arith.constant 0 : index
    %162 = vector.load %arg5[%c1_78, %c0_79, %c0_80] : memref<2x128x128xf32, #tpu.memory_space<vmem>>, vector<1x128x128xf32>
    %163 = vector.shape_cast %162 : vector<1x128x128xf32> to vector<128x128xf32>
    %c1_81 = arith.constant 1 : index
    %c0_82 = arith.constant 0 : index
    %c0_83 = arith.constant 0 : index
    %164 = vector.load %arg6[%c1_81, %c0_82, %c0_83] : memref<2x1x128xf32, #tpu.memory_space<vmem>>, vector<1x1x128xf32>
    %165 = vector.shape_cast %164 : vector<1x1x128xf32> to vector<1x128xf32>
    %cst_84 = arith.constant dense<0.000000e+00> : vector<16x384xf32>
    %166 = tpu.matmul %157, %159, %cst_84 {dimension_numbers = #tpu.dot_dimension_numbers<[1], [0], [0], [1], [0, 0, 1, 1], [], []>} : vector<16x128xf32>, vector<128x384xf32>, vector<16x384xf32> -> vector<16x384xf32>
    %167 = vector.broadcast %161 : vector<1x384xf32> to vector<16x384xf32>
    %168 = arith.addf %166, %167 : vector<16x384xf32>
    %169 = vector.extract_strided_slice %168 {offsets = [0, 0], sizes = [16, 128], strides = [1, 1]} : vector<16x384xf32> to vector<16x128xf32>
    %170 = vector.extract_strided_slice %168 {offsets = [0, 128], sizes = [16, 128], strides = [1, 1]} : vector<16x384xf32> to vector<16x128xf32>
    %171 = vector.extract_strided_slice %168 {offsets = [0, 256], sizes = [16, 128], strides = [1, 1]} : vector<16x384xf32> to vector<16x128xf32>
    %172 = vector.extract_strided_slice %169 {offsets = [0, 0], sizes = [16, 32], strides = [1, 1]} : vector<16x128xf32> to vector<16x32xf32>
    %173 = vector.extract_strided_slice %170 {offsets = [0, 0], sizes = [16, 32], strides = [1, 1]} : vector<16x128xf32> to vector<16x32xf32>
    %174 = vector.extract_strided_slice %171 {offsets = [0, 0], sizes = [16, 32], strides = [1, 1]} : vector<16x128xf32> to vector<16x32xf32>
    %cst_85 = arith.constant dense<0.000000e+00> : vector<16x16xf32>
    %175 = tpu.matmul %172, %173, %cst_85 {dimension_numbers = #tpu.dot_dimension_numbers<[1], [1], [0], [0], [0, 0, 1, 0], [], []>} : vector<16x32xf32>, vector<16x32xf32>, vector<16x16xf32> -> vector<16x16xf32>
    %cst_86 = arith.constant 0.176776692 : f32
    %176 = vector.broadcast %cst_86 : f32 to vector<16x16xf32>
    %177 = arith.mulf %175, %176 : vector<16x16xf32>
    %178 = arith.addf %177, %0 : vector<16x16xf32>
    %cst_87 = arith.constant dense<0xFF800000> : vector<16xf32>
    %179 = vector.multi_reduction <maximumf>, %178, %cst_87 [1] : vector<16x16xf32> to vector<16xf32>
    %180 = vector.shape_cast %179 : vector<16xf32> to vector<16x1xf32>
    %181 = vector.broadcast %180 : vector<16x1xf32> to vector<16x16xf32>
    %182 = arith.subf %178, %181 : vector<16x16xf32>
    %183 = math.exp %182 : vector<16x16xf32>
    %cst_88 = arith.constant dense<0.000000e+00> : vector<16xf32>
    %184 = vector.multi_reduction <add>, %183, %cst_88 [1] : vector<16x16xf32> to vector<16xf32>
    %185 = vector.shape_cast %184 : vector<16xf32> to vector<16x1xf32>
    %186 = tpu.reciprocal %185 {approx = true} : vector<16x1xf32> -> vector<16x1xf32>
    %187 = vector.broadcast %186 : vector<16x1xf32> to vector<16x16xf32>
    %188 = arith.mulf %183, %187 : vector<16x16xf32>
    %cst_89 = arith.constant dense<0.000000e+00> : vector<16x32xf32>
    %189 = tpu.matmul %188, %174, %cst_89 {dimension_numbers = #tpu.dot_dimension_numbers<[1], [0], [0], [1], [0, 0, 1, 1], [], []>} : vector<16x16xf32>, vector<16x32xf32>, vector<16x32xf32> -> vector<16x32xf32>
    %190 = vector.extract_strided_slice %169 {offsets = [0, 32], sizes = [16, 32], strides = [1, 1]} : vector<16x128xf32> to vector<16x32xf32>
    %191 = vector.extract_strided_slice %170 {offsets = [0, 32], sizes = [16, 32], strides = [1, 1]} : vector<16x128xf32> to vector<16x32xf32>
    %192 = vector.extract_strided_slice %171 {offsets = [0, 32], sizes = [16, 32], strides = [1, 1]} : vector<16x128xf32> to vector<16x32xf32>
    %cst_90 = arith.constant dense<0.000000e+00> : vector<16x16xf32>
    %193 = tpu.matmul %190, %191, %cst_90 {dimension_numbers = #tpu.dot_dimension_numbers<[1], [1], [0], [0], [0, 0, 1, 0], [], []>} : vector<16x32xf32>, vector<16x32xf32>, vector<16x16xf32> -> vector<16x16xf32>
    %cst_91 = arith.constant 0.176776692 : f32
    %194 = vector.broadcast %cst_91 : f32 to vector<16x16xf32>
    %195 = arith.mulf %193, %194 : vector<16x16xf32>
    %196 = arith.addf %195, %0 : vector<16x16xf32>
    %cst_92 = arith.constant dense<0xFF800000> : vector<16xf32>
    %197 = vector.multi_reduction <maximumf>, %196, %cst_92 [1] : vector<16x16xf32> to vector<16xf32>
    %198 = vector.shape_cast %197 : vector<16xf32> to vector<16x1xf32>
    %199 = vector.broadcast %198 : vector<16x1xf32> to vector<16x16xf32>
    %200 = arith.subf %196, %199 : vector<16x16xf32>
    %201 = math.exp %200 : vector<16x16xf32>
    %cst_93 = arith.constant dense<0.000000e+00> : vector<16xf32>
    %202 = vector.multi_reduction <add>, %201, %cst_93 [1] : vector<16x16xf32> to vector<16xf32>
    %203 = vector.shape_cast %202 : vector<16xf32> to vector<16x1xf32>
    %204 = tpu.reciprocal %203 {approx = true} : vector<16x1xf32> -> vector<16x1xf32>
    %205 = vector.broadcast %204 : vector<16x1xf32> to vector<16x16xf32>
    %206 = arith.mulf %201, %205 : vector<16x16xf32>
    %cst_94 = arith.constant dense<0.000000e+00> : vector<16x32xf32>
    %207 = tpu.matmul %206, %192, %cst_94 {dimension_numbers = #tpu.dot_dimension_numbers<[1], [0], [0], [1], [0, 0, 1, 1], [], []>} : vector<16x16xf32>, vector<16x32xf32>, vector<16x32xf32> -> vector<16x32xf32>
    %208 = vector.extract_strided_slice %169 {offsets = [0, 64], sizes = [16, 32], strides = [1, 1]} : vector<16x128xf32> to vector<16x32xf32>
    %209 = vector.extract_strided_slice %170 {offsets = [0, 64], sizes = [16, 32], strides = [1, 1]} : vector<16x128xf32> to vector<16x32xf32>
    %210 = vector.extract_strided_slice %171 {offsets = [0, 64], sizes = [16, 32], strides = [1, 1]} : vector<16x128xf32> to vector<16x32xf32>
    %cst_95 = arith.constant dense<0.000000e+00> : vector<16x16xf32>
    %211 = tpu.matmul %208, %209, %cst_95 {dimension_numbers = #tpu.dot_dimension_numbers<[1], [1], [0], [0], [0, 0, 1, 0], [], []>} : vector<16x32xf32>, vector<16x32xf32>, vector<16x16xf32> -> vector<16x16xf32>
    %cst_96 = arith.constant 0.176776692 : f32
    %212 = vector.broadcast %cst_96 : f32 to vector<16x16xf32>
    %213 = arith.mulf %211, %212 : vector<16x16xf32>
    %214 = arith.addf %213, %0 : vector<16x16xf32>
    %cst_97 = arith.constant dense<0xFF800000> : vector<16xf32>
    %215 = vector.multi_reduction <maximumf>, %214, %cst_97 [1] : vector<16x16xf32> to vector<16xf32>
    %216 = vector.shape_cast %215 : vector<16xf32> to vector<16x1xf32>
    %217 = vector.broadcast %216 : vector<16x1xf32> to vector<16x16xf32>
    %218 = arith.subf %214, %217 : vector<16x16xf32>
    %219 = math.exp %218 : vector<16x16xf32>
    %cst_98 = arith.constant dense<0.000000e+00> : vector<16xf32>
    %220 = vector.multi_reduction <add>, %219, %cst_98 [1] : vector<16x16xf32> to vector<16xf32>
    %221 = vector.shape_cast %220 : vector<16xf32> to vector<16x1xf32>
    %222 = tpu.reciprocal %221 {approx = true} : vector<16x1xf32> -> vector<16x1xf32>
    %223 = vector.broadcast %222 : vector<16x1xf32> to vector<16x16xf32>
    %224 = arith.mulf %219, %223 : vector<16x16xf32>
    %cst_99 = arith.constant dense<0.000000e+00> : vector<16x32xf32>
    %225 = tpu.matmul %224, %210, %cst_99 {dimension_numbers = #tpu.dot_dimension_numbers<[1], [0], [0], [1], [0, 0, 1, 1], [], []>} : vector<16x16xf32>, vector<16x32xf32>, vector<16x32xf32> -> vector<16x32xf32>
    %226 = vector.extract_strided_slice %169 {offsets = [0, 96], sizes = [16, 32], strides = [1, 1]} : vector<16x128xf32> to vector<16x32xf32>
    %227 = vector.extract_strided_slice %170 {offsets = [0, 96], sizes = [16, 32], strides = [1, 1]} : vector<16x128xf32> to vector<16x32xf32>
    %228 = vector.extract_strided_slice %171 {offsets = [0, 96], sizes = [16, 32], strides = [1, 1]} : vector<16x128xf32> to vector<16x32xf32>
    %cst_100 = arith.constant dense<0.000000e+00> : vector<16x16xf32>
    %229 = tpu.matmul %226, %227, %cst_100 {dimension_numbers = #tpu.dot_dimension_numbers<[1], [1], [0], [0], [0, 0, 1, 0], [], []>} : vector<16x32xf32>, vector<16x32xf32>, vector<16x16xf32> -> vector<16x16xf32>
    %cst_101 = arith.constant 0.176776692 : f32
    %230 = vector.broadcast %cst_101 : f32 to vector<16x16xf32>
    %231 = arith.mulf %229, %230 : vector<16x16xf32>
    %232 = arith.addf %231, %0 : vector<16x16xf32>
    %cst_102 = arith.constant dense<0xFF800000> : vector<16xf32>
    %233 = vector.multi_reduction <maximumf>, %232, %cst_102 [1] : vector<16x16xf32> to vector<16xf32>
    %234 = vector.shape_cast %233 : vector<16xf32> to vector<16x1xf32>
    %235 = vector.broadcast %234 : vector<16x1xf32> to vector<16x16xf32>
    %236 = arith.subf %232, %235 : vector<16x16xf32>
    %237 = math.exp %236 : vector<16x16xf32>
    %cst_103 = arith.constant dense<0.000000e+00> : vector<16xf32>
    %238 = vector.multi_reduction <add>, %237, %cst_103 [1] : vector<16x16xf32> to vector<16xf32>
    %239 = vector.shape_cast %238 : vector<16xf32> to vector<16x1xf32>
    %240 = tpu.reciprocal %239 {approx = true} : vector<16x1xf32> -> vector<16x1xf32>
    %241 = vector.broadcast %240 : vector<16x1xf32> to vector<16x16xf32>
    %242 = arith.mulf %237, %241 : vector<16x16xf32>
    %cst_104 = arith.constant dense<0.000000e+00> : vector<16x32xf32>
    %243 = tpu.matmul %242, %228, %cst_104 {dimension_numbers = #tpu.dot_dimension_numbers<[1], [0], [0], [1], [0, 0, 1, 1], [], []>} : vector<16x16xf32>, vector<16x32xf32>, vector<16x32xf32> -> vector<16x32xf32>
    %244 = tpu.concatenate %189, %207, %225, %243 in 1 : vector<16x32xf32>, vector<16x32xf32>, vector<16x32xf32>, vector<16x32xf32> -> vector<16x128xf32>
    %cst_105 = arith.constant dense<0.000000e+00> : vector<16x128xf32>
    %245 = tpu.matmul %244, %163, %cst_105 {dimension_numbers = #tpu.dot_dimension_numbers<[1], [0], [0], [1], [0, 0, 1, 1], [], []>} : vector<16x128xf32>, vector<128x128xf32>, vector<16x128xf32> -> vector<16x128xf32>
    %246 = vector.broadcast %165 : vector<1x128xf32> to vector<16x128xf32>
    %247 = arith.addf %245, %246 : vector<16x128xf32>
    %248 = arith.addf %157, %247 : vector<16x128xf32>
    %c1_106 = arith.constant 1 : index
    %c0_107 = arith.constant 0 : index
    %c0_108 = arith.constant 0 : index
    %249 = vector.load %arg7[%c1_106, %c0_107, %c0_108] : memref<2x1x128xf32, #tpu.memory_space<vmem>>, vector<1x1x128xf32>
    %250 = vector.shape_cast %249 : vector<1x1x128xf32> to vector<1x128xf32>
    %c1_109 = arith.constant 1 : index
    %c0_110 = arith.constant 0 : index
    %c0_111 = arith.constant 0 : index
    %251 = vector.load %arg8[%c1_109, %c0_110, %c0_111] : memref<2x1x128xf32, #tpu.memory_space<vmem>>, vector<1x1x128xf32>
    %252 = vector.shape_cast %251 : vector<1x1x128xf32> to vector<1x128xf32>
    %cst_112 = arith.constant dense<0.000000e+00> : vector<16xf32>
    %253 = vector.multi_reduction <add>, %248, %cst_112 [1] : vector<16x128xf32> to vector<16xf32>
    %254 = vector.shape_cast %253 : vector<16xf32> to vector<16x1xf32>
    %cst_113 = arith.constant 1.280000e+02 : f32
    %255 = vector.broadcast %cst_113 : f32 to vector<16x1xf32>
    %256 = arith.divf %254, %255 : vector<16x1xf32>
    %257 = vector.broadcast %256 : vector<16x1xf32> to vector<16x128xf32>
    %258 = arith.subf %248, %257 : vector<16x128xf32>
    %259 = arith.mulf %258, %258 : vector<16x128xf32>
    %cst_114 = arith.constant dense<0.000000e+00> : vector<16xf32>
    %260 = vector.multi_reduction <add>, %259, %cst_114 [1] : vector<16x128xf32> to vector<16xf32>
    %261 = vector.shape_cast %260 : vector<16xf32> to vector<16x1xf32>
    %cst_115 = arith.constant 1.280000e+02 : f32
    %262 = vector.broadcast %cst_115 : f32 to vector<16x1xf32>
    %263 = arith.divf %261, %262 : vector<16x1xf32>
    %cst_116 = arith.constant 6.000000e-01 : f32
    %264 = vector.broadcast %cst_116 : f32 to vector<16x1xf32>
    %265 = arith.addf %263, %264 : vector<16x1xf32>
    %266 = math.rsqrt %265 : vector<16x1xf32>
    %267 = vector.broadcast %266 : vector<16x1xf32> to vector<16x128xf32>
    %268 = arith.mulf %258, %267 : vector<16x128xf32>
    %269 = vector.broadcast %250 : vector<1x128xf32> to vector<16x128xf32>
    %270 = arith.mulf %268, %269 : vector<16x128xf32>
    %271 = vector.broadcast %252 : vector<1x128xf32> to vector<16x128xf32>
    %272 = arith.addf %270, %271 : vector<16x128xf32>
    %c1_117 = arith.constant 1 : index
    %c0_118 = arith.constant 0 : index
    %c0_119 = arith.constant 0 : index
    %273 = vector.load %arg9[%c1_117, %c0_118, %c0_119] : memref<2x128x256xf32, #tpu.memory_space<vmem>>, vector<1x128x256xf32>
    %274 = vector.shape_cast %273 : vector<1x128x256xf32> to vector<128x256xf32>
    %c1_120 = arith.constant 1 : index
    %c0_121 = arith.constant 0 : index
    %c0_122 = arith.constant 0 : index
    %275 = vector.load %arg10[%c1_120, %c0_121, %c0_122] : memref<2x1x256xf32, #tpu.memory_space<vmem>>, vector<1x1x256xf32>
    %276 = vector.shape_cast %275 : vector<1x1x256xf32> to vector<1x256xf32>
    %c1_123 = arith.constant 1 : index
    %c0_124 = arith.constant 0 : index
    %c0_125 = arith.constant 0 : index
    %277 = vector.load %arg11[%c1_123, %c0_124, %c0_125] : memref<2x256x128xf32, #tpu.memory_space<vmem>>, vector<1x256x128xf32>
    %278 = vector.shape_cast %277 : vector<1x256x128xf32> to vector<256x128xf32>
    %c1_126 = arith.constant 1 : index
    %c0_127 = arith.constant 0 : index
    %c0_128 = arith.constant 0 : index
    %279 = vector.load %arg12[%c1_126, %c0_127, %c0_128] : memref<2x1x128xf32, #tpu.memory_space<vmem>>, vector<1x1x128xf32>
    %280 = vector.shape_cast %279 : vector<1x1x128xf32> to vector<1x128xf32>
    %cst_129 = arith.constant dense<0.000000e+00> : vector<16x256xf32>
    %281 = tpu.matmul %272, %274, %cst_129 {dimension_numbers = #tpu.dot_dimension_numbers<[1], [0], [0], [1], [0, 0, 1, 1], [], []>} : vector<16x128xf32>, vector<128x256xf32>, vector<16x256xf32> -> vector<16x256xf32>
    %282 = vector.broadcast %276 : vector<1x256xf32> to vector<16x256xf32>
    %283 = arith.addf %281, %282 : vector<16x256xf32>
    %cst_130 = arith.constant 0.000000e+00 : f32
    %284 = vector.broadcast %cst_130 : f32 to vector<16x256xf32>
    %285 = arith.maximumf %283, %284 : vector<16x256xf32>
    %cst_131 = arith.constant dense<0.000000e+00> : vector<16x128xf32>
    %286 = tpu.matmul %285, %278, %cst_131 {dimension_numbers = #tpu.dot_dimension_numbers<[1], [0], [0], [1], [0, 0, 1, 1], [], []>} : vector<16x256xf32>, vector<256x128xf32>, vector<16x128xf32> -> vector<16x128xf32>
    %287 = vector.broadcast %280 : vector<1x128xf32> to vector<16x128xf32>
    %288 = arith.addf %286, %287 : vector<16x128xf32>
    %289 = arith.addf %272, %288 : vector<16x128xf32>
    %c1_132 = arith.constant 1 : index
    %c0_133 = arith.constant 0 : index
    %c0_134 = arith.constant 0 : index
    %290 = vector.load %arg13[%c1_132, %c0_133, %c0_134] : memref<2x1x128xf32, #tpu.memory_space<vmem>>, vector<1x1x128xf32>
    %291 = vector.shape_cast %290 : vector<1x1x128xf32> to vector<1x128xf32>
    %c1_135 = arith.constant 1 : index
    %c0_136 = arith.constant 0 : index
    %c0_137 = arith.constant 0 : index
    %292 = vector.load %arg14[%c1_135, %c0_136, %c0_137] : memref<2x1x128xf32, #tpu.memory_space<vmem>>, vector<1x1x128xf32>
    %293 = vector.shape_cast %292 : vector<1x1x128xf32> to vector<1x128xf32>
    %cst_138 = arith.constant dense<0.000000e+00> : vector<16xf32>
    %294 = vector.multi_reduction <add>, %289, %cst_138 [1] : vector<16x128xf32> to vector<16xf32>
    %295 = vector.shape_cast %294 : vector<16xf32> to vector<16x1xf32>
    %cst_139 = arith.constant 1.280000e+02 : f32
    %296 = vector.broadcast %cst_139 : f32 to vector<16x1xf32>
    %297 = arith.divf %295, %296 : vector<16x1xf32>
    %298 = vector.broadcast %297 : vector<16x1xf32> to vector<16x128xf32>
    %299 = arith.subf %289, %298 : vector<16x128xf32>
    %300 = arith.mulf %299, %299 : vector<16x128xf32>
    %cst_140 = arith.constant dense<0.000000e+00> : vector<16xf32>
    %301 = vector.multi_reduction <add>, %300, %cst_140 [1] : vector<16x128xf32> to vector<16xf32>
    %302 = vector.shape_cast %301 : vector<16xf32> to vector<16x1xf32>
    %cst_141 = arith.constant 1.280000e+02 : f32
    %303 = vector.broadcast %cst_141 : f32 to vector<16x1xf32>
    %304 = arith.divf %302, %303 : vector<16x1xf32>
    %cst_142 = arith.constant 6.000000e-01 : f32
    %305 = vector.broadcast %cst_142 : f32 to vector<16x1xf32>
    %306 = arith.addf %304, %305 : vector<16x1xf32>
    %307 = math.rsqrt %306 : vector<16x1xf32>
    %308 = vector.broadcast %307 : vector<16x1xf32> to vector<16x128xf32>
    %309 = arith.mulf %299, %308 : vector<16x128xf32>
    %310 = vector.broadcast %291 : vector<1x128xf32> to vector<16x128xf32>
    %311 = arith.mulf %309, %310 : vector<16x128xf32>
    %312 = vector.broadcast %293 : vector<1x128xf32> to vector<16x128xf32>
    %313 = arith.addf %311, %312 : vector<16x128xf32>
    %c0_143 = arith.constant 0 : index
    %c0_144 = arith.constant 0 : index
    %314 = vector.load %arg2[%c0_143, %c0_144] : memref<2x16xf32, #tpu.memory_space<vmem>>, vector<2x16xf32>
    %cst_145 = arith.constant dense<0.000000e+00> : vector<2x128xf32>
    %315 = tpu.matmul %314, %313, %cst_145 {dimension_numbers = #tpu.dot_dimension_numbers<[1], [0], [0], [1], [0, 0, 1, 1], [], []>} : vector<2x16xf32>, vector<16x128xf32>, vector<2x128xf32> -> vector<2x128xf32>
    %c0_146 = arith.constant 0 : index
    %c0_147 = arith.constant 0 : index
    %316 = vector.load %arg33[%c0_146, %c0_147] : memref<128x128xf32, #tpu.memory_space<vmem>>, vector<128x128xf32>
    %cst_148 = arith.constant dense<0.000000e+00> : vector<2x128xf32>
    %317 = tpu.matmul %315, %316, %cst_148 {dimension_numbers = #tpu.dot_dimension_numbers<[1], [0], [0], [1], [0, 0, 1, 1], [], []>} : vector<2x128xf32>, vector<128x128xf32>, vector<2x128xf32> -> vector<2x128xf32>
    %c0_149 = arith.constant 0 : index
    %c0_150 = arith.constant 0 : index
    %318 = vector.load %arg34[%c0_149, %c0_150] : memref<1x128xf32, #tpu.memory_space<vmem>>, vector<1x128xf32>
    %319 = vector.broadcast %318 : vector<1x128xf32> to vector<2x128xf32>
    %320 = arith.addf %317, %319 : vector<2x128xf32>
    %321 = arith.mulf %320, %320 : vector<2x128xf32>
    %cst_151 = arith.constant dense<0.000000e+00> : vector<2xf32>
    %322 = vector.multi_reduction <add>, %321, %cst_151 [1] : vector<2x128xf32> to vector<2xf32>
    %323 = vector.shape_cast %322 : vector<2xf32> to vector<2x1xf32>
    %324 = math.sqrt %323 : vector<2x1xf32>
    %cst_152 = arith.constant 9.99999996E-13 : f32
    %325 = vector.broadcast %cst_152 : f32 to vector<2x1xf32>
    %326 = arith.maximumf %324, %325 : vector<2x1xf32>
    %327 = vector.broadcast %326 : vector<2x1xf32> to vector<2x128xf32>
    %328 = arith.divf %320, %327 : vector<2x128xf32>
    %c0_153 = arith.constant 0 : index
    %c0_154 = arith.constant 0 : index
    %329 = vector.load %arg39[%c0_153, %c0_154] : memref<2x128xf32, #tpu.memory_space<vmem>>, vector<2x128xf32>
    tpu.vector_store %arg39[%c0_153, %c0_154], %328 {strides = array<i32>} : memref<2x128xf32, #tpu.memory_space<vmem>>, vector<2x128xf32>,
    %330 = vector.extract_strided_slice %328 {offsets = [0, 0], sizes = [1, 128], strides = [1, 1]} : vector<2x128xf32> to vector<1x128xf32>
    %c0_155 = arith.constant 0 : index
    %c0_156 = arith.constant 0 : index
    %331 = vector.load %arg35[%c0_155, %c0_156] : memref<128x1024xf32, #tpu.memory_space<vmem>>, vector<128x1024xf32>
    %cst_157 = arith.constant dense<0.000000e+00> : vector<1x1024xf32>
    %332 = tpu.matmul %330, %331, %cst_157 {dimension_numbers = #tpu.dot_dimension_numbers<[1], [0], [0], [1], [0, 0, 1, 1], [], []>} : vector<1x128xf32>, vector<128x1024xf32>, vector<1x1024xf32> -> vector<1x1024xf32>
    %c0_158 = arith.constant 0 : index
    %c0_159 = arith.constant 0 : index
    %333 = vector.load %arg36[%c0_158, %c0_159] : memref<1x1024xf32, #tpu.memory_space<vmem>>, vector<1x1024xf32>
    %334 = arith.addf %332, %333 : vector<1x1024xf32>
    %335 = vector.extract_strided_slice %334 {offsets = [0, 0], sizes = [1, 128], strides = [1, 1]} : vector<1x1024xf32> to vector<1x128xf32>
    %336 = vector.extract_strided_slice %334 {offsets = [0, 128], sizes = [1, 128], strides = [1, 1]} : vector<1x1024xf32> to vector<1x128xf32>
    %337 = vector.extract_strided_slice %334 {offsets = [0, 256], sizes = [1, 128], strides = [1, 1]} : vector<1x1024xf32> to vector<1x128xf32>
    %338 = vector.extract_strided_slice %334 {offsets = [0, 384], sizes = [1, 128], strides = [1, 1]} : vector<1x1024xf32> to vector<1x128xf32>
    %339 = vector.extract_strided_slice %334 {offsets = [0, 512], sizes = [1, 128], strides = [1, 1]} : vector<1x1024xf32> to vector<1x128xf32>
    %340 = vector.extract_strided_slice %334 {offsets = [0, 640], sizes = [1, 128], strides = [1, 1]} : vector<1x1024xf32> to vector<1x128xf32>
    %341 = vector.extract_strided_slice %334 {offsets = [0, 768], sizes = [1, 128], strides = [1, 1]} : vector<1x1024xf32> to vector<1x128xf32>
    %342 = vector.extract_strided_slice %334 {offsets = [0, 896], sizes = [1, 128], strides = [1, 1]} : vector<1x1024xf32> to vector<1x128xf32>
    %343 = vector.extract_strided_slice %328 {offsets = [1, 0], sizes = [1, 128], strides = [1, 1]} : vector<2x128xf32> to vector<1x128xf32>
    %c0_160 = arith.constant 0 : index
    %c0_161 = arith.constant 0 : index
    %344 = vector.load %arg35[%c0_160, %c0_161] : memref<128x1024xf32, #tpu.memory_space<vmem>>, vector<128x1024xf32>
    %cst_162 = arith.constant dense<0.000000e+00> : vector<1x1024xf32>
    %345 = tpu.matmul %343, %344, %cst_162 {dimension_numbers = #tpu.dot_dimension_numbers<[1], [0], [0], [1], [0, 0, 1, 1], [], []>} : vector<1x128xf32>, vector<128x1024xf32>, vector<1x1024xf32> -> vector<1x1024xf32>
    %c0_163 = arith.constant 0 : index
    %c0_164 = arith.constant 0 : index
    %346 = vector.load %arg36[%c0_163, %c0_164] : memref<1x1024xf32, #tpu.memory_space<vmem>>, vector<1x1024xf32>
    %347 = arith.addf %345, %346 : vector<1x1024xf32>
    %348 = vector.extract_strided_slice %347 {offsets = [0, 0], sizes = [1, 128], strides = [1, 1]} : vector<1x1024xf32> to vector<1x128xf32>
    %349 = vector.extract_strided_slice %347 {offsets = [0, 128], sizes = [1, 128], strides = [1, 1]} : vector<1x1024xf32> to vector<1x128xf32>
    %350 = vector.extract_strided_slice %347 {offsets = [0, 256], sizes = [1, 128], strides = [1, 1]} : vector<1x1024xf32> to vector<1x128xf32>
    %351 = vector.extract_strided_slice %347 {offsets = [0, 384], sizes = [1, 128], strides = [1, 1]} : vector<1x1024xf32> to vector<1x128xf32>
    %352 = vector.extract_strided_slice %347 {offsets = [0, 512], sizes = [1, 128], strides = [1, 1]} : vector<1x1024xf32> to vector<1x128xf32>
    %353 = vector.extract_strided_slice %347 {offsets = [0, 640], sizes = [1, 128], strides = [1, 1]} : vector<1x1024xf32> to vector<1x128xf32>
    %354 = vector.extract_strided_slice %347 {offsets = [0, 768], sizes = [1, 128], strides = [1, 1]} : vector<1x1024xf32> to vector<1x128xf32>
    %355 = vector.extract_strided_slice %347 {offsets = [0, 896], sizes = [1, 128], strides = [1, 1]} : vector<1x1024xf32> to vector<1x128xf32>
    %356 = tpu.concatenate %335, %336, %337, %338, %339, %340, %341, %342, %348, %349, %350, %351, %352, %353, %354, %355 in 0 : vector<1x128xf32>, vector<1x128xf32>, vector<1x128xf32>, vector<1x128xf32>, vector<1x128xf32>, vector<1x128xf32>, vector<1x128xf32>, vector<1x128xf32>, vector<1x128xf32>, vector<1x128xf32>, vector<1x128xf32>, vector<1x128xf32>, vector<1x128xf32>, vector<1x128xf32>, vector<1x128xf32>, vector<1x128xf32> -> vector<16x128xf32>
    %c0_165 = arith.constant 0 : index
    %c0_166 = arith.constant 0 : index
    %357 = vector.load %arg0[%c0_165, %c0_166] : memref<16x128xf32, #tpu.memory_space<vmem>>, vector<16x128xf32>
    %c0_167 = arith.constant 0 : index
    %c0_168 = arith.constant 0 : index
    %c0_169 = arith.constant 0 : index
    %358 = vector.load %arg15[%c0_167, %c0_168, %c0_169] : memref<2x128x384xf32, #tpu.memory_space<vmem>>, vector<1x128x384xf32>
    %359 = vector.shape_cast %358 : vector<1x128x384xf32> to vector<128x384xf32>
    %c0_170 = arith.constant 0 : index
    %c0_171 = arith.constant 0 : index
    %c0_172 = arith.constant 0 : index
    %360 = vector.load %arg16[%c0_170, %c0_171, %c0_172] : memref<2x1x384xf32, #tpu.memory_space<vmem>>, vector<1x1x384xf32>
    %361 = vector.shape_cast %360 : vector<1x1x384xf32> to vector<1x384xf32>
    %c0_173 = arith.constant 0 : index
    %c0_174 = arith.constant 0 : index
    %c0_175 = arith.constant 0 : index
    %362 = vector.load %arg17[%c0_173, %c0_174, %c0_175] : memref<2x128x128xf32, #tpu.memory_space<vmem>>, vector<1x128x128xf32>
    %363 = vector.shape_cast %362 : vector<1x128x128xf32> to vector<128x128xf32>
    %c0_176 = arith.constant 0 : index
    %c0_177 = arith.constant 0 : index
    %c0_178 = arith.constant 0 : index
    %364 = vector.load %arg18[%c0_176, %c0_177, %c0_178] : memref<2x1x128xf32, #tpu.memory_space<vmem>>, vector<1x1x128xf32>
    %365 = vector.shape_cast %364 : vector<1x1x128xf32> to vector<1x128xf32>
    %cst_179 = arith.constant dense<0.000000e+00> : vector<16x384xf32>
    %366 = tpu.matmul %357, %359, %cst_179 {dimension_numbers = #tpu.dot_dimension_numbers<[1], [0], [0], [1], [0, 0, 1, 1], [], []>} : vector<16x128xf32>, vector<128x384xf32>, vector<16x384xf32> -> vector<16x384xf32>
    %367 = vector.broadcast %361 : vector<1x384xf32> to vector<16x384xf32>
    %368 = arith.addf %366, %367 : vector<16x384xf32>
    %369 = vector.extract_strided_slice %368 {offsets = [0, 0], sizes = [16, 128], strides = [1, 1]} : vector<16x384xf32> to vector<16x128xf32>
    %370 = vector.extract_strided_slice %368 {offsets = [0, 128], sizes = [16, 128], strides = [1, 1]} : vector<16x384xf32> to vector<16x128xf32>
    %371 = vector.extract_strided_slice %368 {offsets = [0, 256], sizes = [16, 128], strides = [1, 1]} : vector<16x384xf32> to vector<16x128xf32>
    %372 = vector.extract_strided_slice %369 {offsets = [0, 0], sizes = [16, 32], strides = [1, 1]} : vector<16x128xf32> to vector<16x32xf32>
    %373 = vector.extract_strided_slice %370 {offsets = [0, 0], sizes = [16, 32], strides = [1, 1]} : vector<16x128xf32> to vector<16x32xf32>
    %374 = vector.extract_strided_slice %371 {offsets = [0, 0], sizes = [16, 32], strides = [1, 1]} : vector<16x128xf32> to vector<16x32xf32>
    %cst_180 = arith.constant dense<0.000000e+00> : vector<16x16xf32>
    %375 = tpu.matmul %372, %373, %cst_180 {dimension_numbers = #tpu.dot_dimension_numbers<[1], [1], [0], [0], [0, 0, 1, 0], [], []>} : vector<16x32xf32>, vector<16x32xf32>, vector<16x16xf32> -> vector<16x16xf32>
    %cst_181 = arith.constant 0.176776692 : f32
    %376 = vector.broadcast %cst_181 : f32 to vector<16x16xf32>
    %377 = arith.mulf %375, %376 : vector<16x16xf32>
    %378 = arith.addf %377, %0 : vector<16x16xf32>
    %cst_182 = arith.constant dense<0xFF800000> : vector<16xf32>
    %379 = vector.multi_reduction <maximumf>, %378, %cst_182 [1] : vector<16x16xf32> to vector<16xf32>
    %380 = vector.shape_cast %379 : vector<16xf32> to vector<16x1xf32>
    %381 = vector.broadcast %380 : vector<16x1xf32> to vector<16x16xf32>
    %382 = arith.subf %378, %381 : vector<16x16xf32>
    %383 = math.exp %382 : vector<16x16xf32>
    %cst_183 = arith.constant dense<0.000000e+00> : vector<16xf32>
    %384 = vector.multi_reduction <add>, %383, %cst_183 [1] : vector<16x16xf32> to vector<16xf32>
    %385 = vector.shape_cast %384 : vector<16xf32> to vector<16x1xf32>
    %386 = tpu.reciprocal %385 {approx = true} : vector<16x1xf32> -> vector<16x1xf32>
    %387 = vector.broadcast %386 : vector<16x1xf32> to vector<16x16xf32>
    %388 = arith.mulf %383, %387 : vector<16x16xf32>
    %cst_184 = arith.constant dense<0.000000e+00> : vector<16x32xf32>
    %389 = tpu.matmul %388, %374, %cst_184 {dimension_numbers = #tpu.dot_dimension_numbers<[1], [0], [0], [1], [0, 0, 1, 1], [], []>} : vector<16x16xf32>, vector<16x32xf32>, vector<16x32xf32> -> vector<16x32xf32>
    %390 = vector.extract_strided_slice %369 {offsets = [0, 32], sizes = [16, 32], strides = [1, 1]} : vector<16x128xf32> to vector<16x32xf32>
    %391 = vector.extract_strided_slice %370 {offsets = [0, 32], sizes = [16, 32], strides = [1, 1]} : vector<16x128xf32> to vector<16x32xf32>
    %392 = vector.extract_strided_slice %371 {offsets = [0, 32], sizes = [16, 32], strides = [1, 1]} : vector<16x128xf32> to vector<16x32xf32>
    %cst_185 = arith.constant dense<0.000000e+00> : vector<16x16xf32>
    %393 = tpu.matmul %390, %391, %cst_185 {dimension_numbers = #tpu.dot_dimension_numbers<[1], [1], [0], [0], [0, 0, 1, 0], [], []>} : vector<16x32xf32>, vector<16x32xf32>, vector<16x16xf32> -> vector<16x16xf32>
    %cst_186 = arith.constant 0.176776692 : f32
    %394 = vector.broadcast %cst_186 : f32 to vector<16x16xf32>
    %395 = arith.mulf %393, %394 : vector<16x16xf32>
    %396 = arith.addf %395, %0 : vector<16x16xf32>
    %cst_187 = arith.constant dense<0xFF800000> : vector<16xf32>
    %397 = vector.multi_reduction <maximumf>, %396, %cst_187 [1] : vector<16x16xf32> to vector<16xf32>
    %398 = vector.shape_cast %397 : vector<16xf32> to vector<16x1xf32>
    %399 = vector.broadcast %398 : vector<16x1xf32> to vector<16x16xf32>
    %400 = arith.subf %396, %399 : vector<16x16xf32>
    %401 = math.exp %400 : vector<16x16xf32>
    %cst_188 = arith.constant dense<0.000000e+00> : vector<16xf32>
    %402 = vector.multi_reduction <add>, %401, %cst_188 [1] : vector<16x16xf32> to vector<16xf32>
    %403 = vector.shape_cast %402 : vector<16xf32> to vector<16x1xf32>
    %404 = tpu.reciprocal %403 {approx = true} : vector<16x1xf32> -> vector<16x1xf32>
    %405 = vector.broadcast %404 : vector<16x1xf32> to vector<16x16xf32>
    %406 = arith.mulf %401, %405 : vector<16x16xf32>
    %cst_189 = arith.constant dense<0.000000e+00> : vector<16x32xf32>
    %407 = tpu.matmul %406, %392, %cst_189 {dimension_numbers = #tpu.dot_dimension_numbers<[1], [0], [0], [1], [0, 0, 1, 1], [], []>} : vector<16x16xf32>, vector<16x32xf32>, vector<16x32xf32> -> vector<16x32xf32>
    %408 = vector.extract_strided_slice %369 {offsets = [0, 64], sizes = [16, 32], strides = [1, 1]} : vector<16x128xf32> to vector<16x32xf32>
    %409 = vector.extract_strided_slice %370 {offsets = [0, 64], sizes = [16, 32], strides = [1, 1]} : vector<16x128xf32> to vector<16x32xf32>
    %410 = vector.extract_strided_slice %371 {offsets = [0, 64], sizes = [16, 32], strides = [1, 1]} : vector<16x128xf32> to vector<16x32xf32>
    %cst_190 = arith.constant dense<0.000000e+00> : vector<16x16xf32>
    %411 = tpu.matmul %408, %409, %cst_190 {dimension_numbers = #tpu.dot_dimension_numbers<[1], [1], [0], [0], [0, 0, 1, 0], [], []>} : vector<16x32xf32>, vector<16x32xf32>, vector<16x16xf32> -> vector<16x16xf32>
    %cst_191 = arith.constant 0.176776692 : f32
    %412 = vector.broadcast %cst_191 : f32 to vector<16x16xf32>
    %413 = arith.mulf %411, %412 : vector<16x16xf32>
    %414 = arith.addf %413, %0 : vector<16x16xf32>
    %cst_192 = arith.constant dense<0xFF800000> : vector<16xf32>
    %415 = vector.multi_reduction <maximumf>, %414, %cst_192 [1] : vector<16x16xf32> to vector<16xf32>
    %416 = vector.shape_cast %415 : vector<16xf32> to vector<16x1xf32>
    %417 = vector.broadcast %416 : vector<16x1xf32> to vector<16x16xf32>
    %418 = arith.subf %414, %417 : vector<16x16xf32>
    %419 = math.exp %418 : vector<16x16xf32>
    %cst_193 = arith.constant dense<0.000000e+00> : vector<16xf32>
    %420 = vector.multi_reduction <add>, %419, %cst_193 [1] : vector<16x16xf32> to vector<16xf32>
    %421 = vector.shape_cast %420 : vector<16xf32> to vector<16x1xf32>
    %422 = tpu.reciprocal %421 {approx = true} : vector<16x1xf32> -> vector<16x1xf32>
    %423 = vector.broadcast %422 : vector<16x1xf32> to vector<16x16xf32>
    %424 = arith.mulf %419, %423 : vector<16x16xf32>
    %cst_194 = arith.constant dense<0.000000e+00> : vector<16x32xf32>
    %425 = tpu.matmul %424, %410, %cst_194 {dimension_numbers = #tpu.dot_dimension_numbers<[1], [0], [0], [1], [0, 0, 1, 1], [], []>} : vector<16x16xf32>, vector<16x32xf32>, vector<16x32xf32> -> vector<16x32xf32>
    %426 = vector.extract_strided_slice %369 {offsets = [0, 96], sizes = [16, 32], strides = [1, 1]} : vector<16x128xf32> to vector<16x32xf32>
    %427 = vector.extract_strided_slice %370 {offsets = [0, 96], sizes = [16, 32], strides = [1, 1]} : vector<16x128xf32> to vector<16x32xf32>
    %428 = vector.extract_strided_slice %371 {offsets = [0, 96], sizes = [16, 32], strides = [1, 1]} : vector<16x128xf32> to vector<16x32xf32>
    %cst_195 = arith.constant dense<0.000000e+00> : vector<16x16xf32>
    %429 = tpu.matmul %426, %427, %cst_195 {dimension_numbers = #tpu.dot_dimension_numbers<[1], [1], [0], [0], [0, 0, 1, 0], [], []>} : vector<16x32xf32>, vector<16x32xf32>, vector<16x16xf32> -> vector<16x16xf32>
    %cst_196 = arith.constant 0.176776692 : f32
    %430 = vector.broadcast %cst_196 : f32 to vector<16x16xf32>
    %431 = arith.mulf %429, %430 : vector<16x16xf32>
    %432 = arith.addf %431, %0 : vector<16x16xf32>
    %cst_197 = arith.constant dense<0xFF800000> : vector<16xf32>
    %433 = vector.multi_reduction <maximumf>, %432, %cst_197 [1] : vector<16x16xf32> to vector<16xf32>
    %434 = vector.shape_cast %433 : vector<16xf32> to vector<16x1xf32>
    %435 = vector.broadcast %434 : vector<16x1xf32> to vector<16x16xf32>
    %436 = arith.subf %432, %435 : vector<16x16xf32>
    %437 = math.exp %436 : vector<16x16xf32>
    %cst_198 = arith.constant dense<0.000000e+00> : vector<16xf32>
    %438 = vector.multi_reduction <add>, %437, %cst_198 [1] : vector<16x16xf32> to vector<16xf32>
    %439 = vector.shape_cast %438 : vector<16xf32> to vector<16x1xf32>
    %440 = tpu.reciprocal %439 {approx = true} : vector<16x1xf32> -> vector<16x1xf32>
    %441 = vector.broadcast %440 : vector<16x1xf32> to vector<16x16xf32>
    %442 = arith.mulf %437, %441 : vector<16x16xf32>
    %cst_199 = arith.constant dense<0.000000e+00> : vector<16x32xf32>
    %443 = tpu.matmul %442, %428, %cst_199 {dimension_numbers = #tpu.dot_dimension_numbers<[1], [0], [0], [1], [0, 0, 1, 1], [], []>} : vector<16x16xf32>, vector<16x32xf32>, vector<16x32xf32> -> vector<16x32xf32>
    %444 = tpu.concatenate %389, %407, %425, %443 in 1 : vector<16x32xf32>, vector<16x32xf32>, vector<16x32xf32>, vector<16x32xf32> -> vector<16x128xf32>
    %cst_200 = arith.constant dense<0.000000e+00> : vector<16x128xf32>
    %445 = tpu.matmul %444, %363, %cst_200 {dimension_numbers = #tpu.dot_dimension_numbers<[1], [0], [0], [1], [0, 0, 1, 1], [], []>} : vector<16x128xf32>, vector<128x128xf32>, vector<16x128xf32> -> vector<16x128xf32>
    %446 = vector.broadcast %365 : vector<1x128xf32> to vector<16x128xf32>
    %447 = arith.addf %445, %446 : vector<16x128xf32>
    %448 = arith.addf %357, %447 : vector<16x128xf32>
    %c0_201 = arith.constant 0 : index
    %c0_202 = arith.constant 0 : index
    %c0_203 = arith.constant 0 : index
    %449 = vector.load %arg19[%c0_201, %c0_202, %c0_203] : memref<2x1x128xf32, #tpu.memory_space<vmem>>, vector<1x1x128xf32>
    %450 = vector.shape_cast %449 : vector<1x1x128xf32> to vector<1x128xf32>
    %c0_204 = arith.constant 0 : index
    %c0_205 = arith.constant 0 : index
    %c0_206 = arith.constant 0 : index
    %451 = vector.load %arg20[%c0_204, %c0_205, %c0_206] : memref<2x1x128xf32, #tpu.memory_space<vmem>>, vector<1x1x128xf32>
    %452 = vector.shape_cast %451 : vector<1x1x128xf32> to vector<1x128xf32>
    %cst_207 = arith.constant dense<0.000000e+00> : vector<16xf32>
    %453 = vector.multi_reduction <add>, %448, %cst_207 [1] : vector<16x128xf32> to vector<16xf32>
    %454 = vector.shape_cast %453 : vector<16xf32> to vector<16x1xf32>
    %cst_208 = arith.constant 1.280000e+02 : f32
    %455 = vector.broadcast %cst_208 : f32 to vector<16x1xf32>
    %456 = arith.divf %454, %455 : vector<16x1xf32>
    %457 = vector.broadcast %456 : vector<16x1xf32> to vector<16x128xf32>
    %458 = arith.subf %448, %457 : vector<16x128xf32>
    %459 = arith.mulf %458, %458 : vector<16x128xf32>
    %cst_209 = arith.constant dense<0.000000e+00> : vector<16xf32>
    %460 = vector.multi_reduction <add>, %459, %cst_209 [1] : vector<16x128xf32> to vector<16xf32>
    %461 = vector.shape_cast %460 : vector<16xf32> to vector<16x1xf32>
    %cst_210 = arith.constant 1.280000e+02 : f32
    %462 = vector.broadcast %cst_210 : f32 to vector<16x1xf32>
    %463 = arith.divf %461, %462 : vector<16x1xf32>
    %cst_211 = arith.constant 6.000000e-01 : f32
    %464 = vector.broadcast %cst_211 : f32 to vector<16x1xf32>
    %465 = arith.addf %463, %464 : vector<16x1xf32>
    %466 = math.rsqrt %465 : vector<16x1xf32>
    %467 = vector.broadcast %466 : vector<16x1xf32> to vector<16x128xf32>
    %468 = arith.mulf %458, %467 : vector<16x128xf32>
    %469 = vector.broadcast %450 : vector<1x128xf32> to vector<16x128xf32>
    %470 = arith.mulf %468, %469 : vector<16x128xf32>
    %471 = vector.broadcast %452 : vector<1x128xf32> to vector<16x128xf32>
    %472 = arith.addf %470, %471 : vector<16x128xf32>
    %c0_212 = arith.constant 0 : index
    %c0_213 = arith.constant 0 : index
    %c0_214 = arith.constant 0 : index
    %473 = vector.load %arg21[%c0_212, %c0_213, %c0_214] : memref<2x128x384xf32, #tpu.memory_space<vmem>>, vector<1x128x384xf32>
    %474 = vector.shape_cast %473 : vector<1x128x384xf32> to vector<128x384xf32>
    %c0_215 = arith.constant 0 : index
    %c0_216 = arith.constant 0 : index
    %c0_217 = arith.constant 0 : index
    %475 = vector.load %arg22[%c0_215, %c0_216, %c0_217] : memref<2x1x384xf32, #tpu.memory_space<vmem>>, vector<1x1x384xf32>
    %476 = vector.shape_cast %475 : vector<1x1x384xf32> to vector<1x384xf32>
    %c0_218 = arith.constant 0 : index
    %c0_219 = arith.constant 0 : index
    %c0_220 = arith.constant 0 : index
    %477 = vector.load %arg23[%c0_218, %c0_219, %c0_220] : memref<2x128x128xf32, #tpu.memory_space<vmem>>, vector<1x128x128xf32>
    %478 = vector.shape_cast %477 : vector<1x128x128xf32> to vector<128x128xf32>
    %c0_221 = arith.constant 0 : index
    %c0_222 = arith.constant 0 : index
    %c0_223 = arith.constant 0 : index
    %479 = vector.load %arg24[%c0_221, %c0_222, %c0_223] : memref<2x1x128xf32, #tpu.memory_space<vmem>>, vector<1x1x128xf32>
    %480 = vector.shape_cast %479 : vector<1x1x128xf32> to vector<1x128xf32>
    %cst_224 = arith.constant dense<0.000000e+00> : vector<16x384xf32>
    %481 = tpu.matmul %472, %474, %cst_224 {dimension_numbers = #tpu.dot_dimension_numbers<[1], [0], [0], [1], [0, 0, 1, 1], [], []>} : vector<16x128xf32>, vector<128x384xf32>, vector<16x384xf32> -> vector<16x384xf32>
    %482 = vector.broadcast %476 : vector<1x384xf32> to vector<16x384xf32>
    %483 = arith.addf %481, %482 : vector<16x384xf32>
    %cst_225 = arith.constant dense<0.000000e+00> : vector<16x384xf32>
    %484 = tpu.matmul %356, %474, %cst_225 {dimension_numbers = #tpu.dot_dimension_numbers<[1], [0], [0], [1], [0, 0, 1, 1], [], []>} : vector<16x128xf32>, vector<128x384xf32>, vector<16x384xf32> -> vector<16x384xf32>
    %485 = vector.broadcast %476 : vector<1x384xf32> to vector<16x384xf32>
    %486 = arith.addf %484, %485 : vector<16x384xf32>
    %487 = vector.extract_strided_slice %483 {offsets = [0, 0], sizes = [16, 128], strides = [1, 1]} : vector<16x384xf32> to vector<16x128xf32>
    %488 = vector.extract_strided_slice %486 {offsets = [0, 128], sizes = [16, 128], strides = [1, 1]} : vector<16x384xf32> to vector<16x128xf32>
    %489 = vector.extract_strided_slice %486 {offsets = [0, 256], sizes = [16, 128], strides = [1, 1]} : vector<16x384xf32> to vector<16x128xf32>
    %490 = vector.extract_strided_slice %487 {offsets = [0, 0], sizes = [16, 32], strides = [1, 1]} : vector<16x128xf32> to vector<16x32xf32>
    %491 = vector.extract_strided_slice %488 {offsets = [0, 0], sizes = [16, 32], strides = [1, 1]} : vector<16x128xf32> to vector<16x32xf32>
    %492 = vector.extract_strided_slice %489 {offsets = [0, 0], sizes = [16, 32], strides = [1, 1]} : vector<16x128xf32> to vector<16x32xf32>
    %cst_226 = arith.constant dense<0.000000e+00> : vector<16x16xf32>
    %493 = tpu.matmul %490, %491, %cst_226 {dimension_numbers = #tpu.dot_dimension_numbers<[1], [1], [0], [0], [0, 0, 1, 0], [], []>} : vector<16x32xf32>, vector<16x32xf32>, vector<16x16xf32> -> vector<16x16xf32>
    %cst_227 = arith.constant 0.176776692 : f32
    %494 = vector.broadcast %cst_227 : f32 to vector<16x16xf32>
    %495 = arith.mulf %493, %494 : vector<16x16xf32>
    %496 = arith.addf %495, %0 : vector<16x16xf32>
    %cst_228 = arith.constant dense<0xFF800000> : vector<16xf32>
    %497 = vector.multi_reduction <maximumf>, %496, %cst_228 [1] : vector<16x16xf32> to vector<16xf32>
    %498 = vector.shape_cast %497 : vector<16xf32> to vector<16x1xf32>
    %499 = vector.broadcast %498 : vector<16x1xf32> to vector<16x16xf32>
    %500 = arith.subf %496, %499 : vector<16x16xf32>
    %501 = math.exp %500 : vector<16x16xf32>
    %cst_229 = arith.constant dense<0.000000e+00> : vector<16xf32>
    %502 = vector.multi_reduction <add>, %501, %cst_229 [1] : vector<16x16xf32> to vector<16xf32>
    %503 = vector.shape_cast %502 : vector<16xf32> to vector<16x1xf32>
    %504 = tpu.reciprocal %503 {approx = true} : vector<16x1xf32> -> vector<16x1xf32>
    %505 = vector.broadcast %504 : vector<16x1xf32> to vector<16x16xf32>
    %506 = arith.mulf %501, %505 : vector<16x16xf32>
    %cst_230 = arith.constant dense<0.000000e+00> : vector<16x32xf32>
    %507 = tpu.matmul %506, %492, %cst_230 {dimension_numbers = #tpu.dot_dimension_numbers<[1], [0], [0], [1], [0, 0, 1, 1], [], []>} : vector<16x16xf32>, vector<16x32xf32>, vector<16x32xf32> -> vector<16x32xf32>
    %508 = vector.extract_strided_slice %487 {offsets = [0, 32], sizes = [16, 32], strides = [1, 1]} : vector<16x128xf32> to vector<16x32xf32>
    %509 = vector.extract_strided_slice %488 {offsets = [0, 32], sizes = [16, 32], strides = [1, 1]} : vector<16x128xf32> to vector<16x32xf32>
    %510 = vector.extract_strided_slice %489 {offsets = [0, 32], sizes = [16, 32], strides = [1, 1]} : vector<16x128xf32> to vector<16x32xf32>
    %cst_231 = arith.constant dense<0.000000e+00> : vector<16x16xf32>
    %511 = tpu.matmul %508, %509, %cst_231 {dimension_numbers = #tpu.dot_dimension_numbers<[1], [1], [0], [0], [0, 0, 1, 0], [], []>} : vector<16x32xf32>, vector<16x32xf32>, vector<16x16xf32> -> vector<16x16xf32>
    %cst_232 = arith.constant 0.176776692 : f32
    %512 = vector.broadcast %cst_232 : f32 to vector<16x16xf32>
    %513 = arith.mulf %511, %512 : vector<16x16xf32>
    %514 = arith.addf %513, %0 : vector<16x16xf32>
    %cst_233 = arith.constant dense<0xFF800000> : vector<16xf32>
    %515 = vector.multi_reduction <maximumf>, %514, %cst_233 [1] : vector<16x16xf32> to vector<16xf32>
    %516 = vector.shape_cast %515 : vector<16xf32> to vector<16x1xf32>
    %517 = vector.broadcast %516 : vector<16x1xf32> to vector<16x16xf32>
    %518 = arith.subf %514, %517 : vector<16x16xf32>
    %519 = math.exp %518 : vector<16x16xf32>
    %cst_234 = arith.constant dense<0.000000e+00> : vector<16xf32>
    %520 = vector.multi_reduction <add>, %519, %cst_234 [1] : vector<16x16xf32> to vector<16xf32>
    %521 = vector.shape_cast %520 : vector<16xf32> to vector<16x1xf32>
    %522 = tpu.reciprocal %521 {approx = true} : vector<16x1xf32> -> vector<16x1xf32>
    %523 = vector.broadcast %522 : vector<16x1xf32> to vector<16x16xf32>
    %524 = arith.mulf %519, %523 : vector<16x16xf32>
    %cst_235 = arith.constant dense<0.000000e+00> : vector<16x32xf32>
    %525 = tpu.matmul %524, %510, %cst_235 {dimension_numbers = #tpu.dot_dimension_numbers<[1], [0], [0], [1], [0, 0, 1, 1], [], []>} : vector<16x16xf32>, vector<16x32xf32>, vector<16x32xf32> -> vector<16x32xf32>
    %526 = vector.extract_strided_slice %487 {offsets = [0, 64], sizes = [16, 32], strides = [1, 1]} : vector<16x128xf32> to vector<16x32xf32>
    %527 = vector.extract_strided_slice %488 {offsets = [0, 64], sizes = [16, 32], strides = [1, 1]} : vector<16x128xf32> to vector<16x32xf32>
    %528 = vector.extract_strided_slice %489 {offsets = [0, 64], sizes = [16, 32], strides = [1, 1]} : vector<16x128xf32> to vector<16x32xf32>
    %cst_236 = arith.constant dense<0.000000e+00> : vector<16x16xf32>
    %529 = tpu.matmul %526, %527, %cst_236 {dimension_numbers = #tpu.dot_dimension_numbers<[1], [1], [0], [0], [0, 0, 1, 0], [], []>} : vector<16x32xf32>, vector<16x32xf32>, vector<16x16xf32> -> vector<16x16xf32>
    %cst_237 = arith.constant 0.176776692 : f32
    %530 = vector.broadcast %cst_237 : f32 to vector<16x16xf32>
    %531 = arith.mulf %529, %530 : vector<16x16xf32>
    %532 = arith.addf %531, %0 : vector<16x16xf32>
    %cst_238 = arith.constant dense<0xFF800000> : vector<16xf32>
    %533 = vector.multi_reduction <maximumf>, %532, %cst_238 [1] : vector<16x16xf32> to vector<16xf32>
    %534 = vector.shape_cast %533 : vector<16xf32> to vector<16x1xf32>
    %535 = vector.broadcast %534 : vector<16x1xf32> to vector<16x16xf32>
    %536 = arith.subf %532, %535 : vector<16x16xf32>
    %537 = math.exp %536 : vector<16x16xf32>
    %cst_239 = arith.constant dense<0.000000e+00> : vector<16xf32>
    %538 = vector.multi_reduction <add>, %537, %cst_239 [1] : vector<16x16xf32> to vector<16xf32>
    %539 = vector.shape_cast %538 : vector<16xf32> to vector<16x1xf32>
    %540 = tpu.reciprocal %539 {approx = true} : vector<16x1xf32> -> vector<16x1xf32>
    %541 = vector.broadcast %540 : vector<16x1xf32> to vector<16x16xf32>
    %542 = arith.mulf %537, %541 : vector<16x16xf32>
    %cst_240 = arith.constant dense<0.000000e+00> : vector<16x32xf32>
    %543 = tpu.matmul %542, %528, %cst_240 {dimension_numbers = #tpu.dot_dimension_numbers<[1], [0], [0], [1], [0, 0, 1, 1], [], []>} : vector<16x16xf32>, vector<16x32xf32>, vector<16x32xf32> -> vector<16x32xf32>
    %544 = vector.extract_strided_slice %487 {offsets = [0, 96], sizes = [16, 32], strides = [1, 1]} : vector<16x128xf32> to vector<16x32xf32>
    %545 = vector.extract_strided_slice %488 {offsets = [0, 96], sizes = [16, 32], strides = [1, 1]} : vector<16x128xf32> to vector<16x32xf32>
    %546 = vector.extract_strided_slice %489 {offsets = [0, 96], sizes = [16, 32], strides = [1, 1]} : vector<16x128xf32> to vector<16x32xf32>
    %cst_241 = arith.constant dense<0.000000e+00> : vector<16x16xf32>
    %547 = tpu.matmul %544, %545, %cst_241 {dimension_numbers = #tpu.dot_dimension_numbers<[1], [1], [0], [0], [0, 0, 1, 0], [], []>} : vector<16x32xf32>, vector<16x32xf32>, vector<16x16xf32> -> vector<16x16xf32>
    %cst_242 = arith.constant 0.176776692 : f32
    %548 = vector.broadcast %cst_242 : f32 to vector<16x16xf32>
    %549 = arith.mulf %547, %548 : vector<16x16xf32>
    %550 = arith.addf %549, %0 : vector<16x16xf32>
    %cst_243 = arith.constant dense<0xFF800000> : vector<16xf32>
    %551 = vector.multi_reduction <maximumf>, %550, %cst_243 [1] : vector<16x16xf32> to vector<16xf32>
    %552 = vector.shape_cast %551 : vector<16xf32> to vector<16x1xf32>
    %553 = vector.broadcast %552 : vector<16x1xf32> to vector<16x16xf32>
    %554 = arith.subf %550, %553 : vector<16x16xf32>
    %555 = math.exp %554 : vector<16x16xf32>
    %cst_244 = arith.constant dense<0.000000e+00> : vector<16xf32>
    %556 = vector.multi_reduction <add>, %555, %cst_244 [1] : vector<16x16xf32> to vector<16xf32>
    %557 = vector.shape_cast %556 : vector<16xf32> to vector<16x1xf32>
    %558 = tpu.reciprocal %557 {approx = true} : vector<16x1xf32> -> vector<16x1xf32>
    %559 = vector.broadcast %558 : vector<16x1xf32> to vector<16x16xf32>
    %560 = arith.mulf %555, %559 : vector<16x16xf32>
    %cst_245 = arith.constant dense<0.000000e+00> : vector<16x32xf32>
    %561 = tpu.matmul %560, %546, %cst_245 {dimension_numbers = #tpu.dot_dimension_numbers<[1], [0], [0], [1], [0, 0, 1, 1], [], []>} : vector<16x16xf32>, vector<16x32xf32>, vector<16x32xf32> -> vector<16x32xf32>
    %562 = tpu.concatenate %507, %525, %543, %561 in 1 : vector<16x32xf32>, vector<16x32xf32>, vector<16x32xf32>, vector<16x32xf32> -> vector<16x128xf32>
    %cst_246 = arith.constant dense<0.000000e+00> : vector<16x128xf32>
    %563 = tpu.matmul %562, %478, %cst_246 {dimension_numbers = #tpu.dot_dimension_numbers<[1], [0], [0], [1], [0, 0, 1, 1], [], []>} : vector<16x128xf32>, vector<128x128xf32>, vector<16x128xf32> -> vector<16x128xf32>
    %564 = vector.broadcast %480 : vector<1x128xf32> to vector<16x128xf32>
    %565 = arith.addf %563, %564 : vector<16x128xf32>
    %566 = arith.addf %472, %565 : vector<16x128xf32>
    %c0_247 = arith.constant 0 : index
    %c0_248 = arith.constant 0 : index
    %c0_249 = arith.constant 0 : index
    %567 = vector.load %arg25[%c0_247, %c0_248, %c0_249] : memref<2x1x128xf32, #tpu.memory_space<vmem>>, vector<1x1x128xf32>
    %568 = vector.shape_cast %567 : vector<1x1x128xf32> to vector<1x128xf32>
    %c0_250 = arith.constant 0 : index
    %c0_251 = arith.constant 0 : index
    %c0_252 = arith.constant 0 : index
    %569 = vector.load %arg26[%c0_250, %c0_251, %c0_252] : memref<2x1x128xf32, #tpu.memory_space<vmem>>, vector<1x1x128xf32>
    %570 = vector.shape_cast %569 : vector<1x1x128xf32> to vector<1x128xf32>
    %cst_253 = arith.constant dense<0.000000e+00> : vector<16xf32>
    %571 = vector.multi_reduction <add>, %566, %cst_253 [1] : vector<16x128xf32> to vector<16xf32>
    %572 = vector.shape_cast %571 : vector<16xf32> to vector<16x1xf32>
    %cst_254 = arith.constant 1.280000e+02 : f32
    %573 = vector.broadcast %cst_254 : f32 to vector<16x1xf32>
    %574 = arith.divf %572, %573 : vector<16x1xf32>
    %575 = vector.broadcast %574 : vector<16x1xf32> to vector<16x128xf32>
    %576 = arith.subf %566, %575 : vector<16x128xf32>
    %577 = arith.mulf %576, %576 : vector<16x128xf32>
    %cst_255 = arith.constant dense<0.000000e+00> : vector<16xf32>
    %578 = vector.multi_reduction <add>, %577, %cst_255 [1] : vector<16x128xf32> to vector<16xf32>
    %579 = vector.shape_cast %578 : vector<16xf32> to vector<16x1xf32>
    %cst_256 = arith.constant 1.280000e+02 : f32
    %580 = vector.broadcast %cst_256 : f32 to vector<16x1xf32>
    %581 = arith.divf %579, %580 : vector<16x1xf32>
    %cst_257 = arith.constant 6.000000e-01 : f32
    %582 = vector.broadcast %cst_257 : f32 to vector<16x1xf32>
    %583 = arith.addf %581, %582 : vector<16x1xf32>
    %584 = math.rsqrt %583 : vector<16x1xf32>
    %585 = vector.broadcast %584 : vector<16x1xf32> to vector<16x128xf32>
    %586 = arith.mulf %576, %585 : vector<16x128xf32>
    %587 = vector.broadcast %568 : vector<1x128xf32> to vector<16x128xf32>
    %588 = arith.mulf %586, %587 : vector<16x128xf32>
    %589 = vector.broadcast %570 : vector<1x128xf32> to vector<16x128xf32>
    %590 = arith.addf %588, %589 : vector<16x128xf32>
    %c0_258 = arith.constant 0 : index
    %c0_259 = arith.constant 0 : index
    %c0_260 = arith.constant 0 : index
    %591 = vector.load %arg27[%c0_258, %c0_259, %c0_260] : memref<2x128x256xf32, #tpu.memory_space<vmem>>, vector<1x128x256xf32>
    %592 = vector.shape_cast %591 : vector<1x128x256xf32> to vector<128x256xf32>
    %c0_261 = arith.constant 0 : index
    %c0_262 = arith.constant 0 : index
    %c0_263 = arith.constant 0 : index
    %593 = vector.load %arg28[%c0_261, %c0_262, %c0_263] : memref<2x1x256xf32, #tpu.memory_space<vmem>>, vector<1x1x256xf32>
    %594 = vector.shape_cast %593 : vector<1x1x256xf32> to vector<1x256xf32>
    %c0_264 = arith.constant 0 : index
    %c0_265 = arith.constant 0 : index
    %c0_266 = arith.constant 0 : index
    %595 = vector.load %arg29[%c0_264, %c0_265, %c0_266] : memref<2x256x128xf32, #tpu.memory_space<vmem>>, vector<1x256x128xf32>
    %596 = vector.shape_cast %595 : vector<1x256x128xf32> to vector<256x128xf32>
    %c0_267 = arith.constant 0 : index
    %c0_268 = arith.constant 0 : index
    %c0_269 = arith.constant 0 : index
    %597 = vector.load %arg30[%c0_267, %c0_268, %c0_269] : memref<2x1x128xf32, #tpu.memory_space<vmem>>, vector<1x1x128xf32>
    %598 = vector.shape_cast %597 : vector<1x1x128xf32> to vector<1x128xf32>
    %cst_270 = arith.constant dense<0.000000e+00> : vector<16x256xf32>
    %599 = tpu.matmul %590, %592, %cst_270 {dimension_numbers = #tpu.dot_dimension_numbers<[1], [0], [0], [1], [0, 0, 1, 1], [], []>} : vector<16x128xf32>, vector<128x256xf32>, vector<16x256xf32> -> vector<16x256xf32>
    %600 = vector.broadcast %594 : vector<1x256xf32> to vector<16x256xf32>
    %601 = arith.addf %599, %600 : vector<16x256xf32>
    %cst_271 = arith.constant 0.000000e+00 : f32
    %602 = vector.broadcast %cst_271 : f32 to vector<16x256xf32>
    %603 = arith.maximumf %601, %602 : vector<16x256xf32>
    %cst_272 = arith.constant dense<0.000000e+00> : vector<16x128xf32>
    %604 = tpu.matmul %603, %596, %cst_272 {dimension_numbers = #tpu.dot_dimension_numbers<[1], [0], [0], [1], [0, 0, 1, 1], [], []>} : vector<16x256xf32>, vector<256x128xf32>, vector<16x128xf32> -> vector<16x128xf32>
    %605 = vector.broadcast %598 : vector<1x128xf32> to vector<16x128xf32>
    %606 = arith.addf %604, %605 : vector<16x128xf32>
    %607 = arith.addf %590, %606 : vector<16x128xf32>
    %c0_273 = arith.constant 0 : index
    %c0_274 = arith.constant 0 : index
    %c0_275 = arith.constant 0 : index
    %608 = vector.load %arg31[%c0_273, %c0_274, %c0_275] : memref<2x1x128xf32, #tpu.memory_space<vmem>>, vector<1x1x128xf32>
    %609 = vector.shape_cast %608 : vector<1x1x128xf32> to vector<1x128xf32>
    %c0_276 = arith.constant 0 : index
    %c0_277 = arith.constant 0 : index
    %c0_278 = arith.constant 0 : index
    %610 = vector.load %arg32[%c0_276, %c0_277, %c0_278] : memref<2x1x128xf32, #tpu.memory_space<vmem>>, vector<1x1x128xf32>
    %611 = vector.shape_cast %610 : vector<1x1x128xf32> to vector<1x128xf32>
    %cst_279 = arith.constant dense<0.000000e+00> : vector<16xf32>
    %612 = vector.multi_reduction <add>, %607, %cst_279 [1] : vector<16x128xf32> to vector<16xf32>
    %613 = vector.shape_cast %612 : vector<16xf32> to vector<16x1xf32>
    %cst_280 = arith.constant 1.280000e+02 : f32
    %614 = vector.broadcast %cst_280 : f32 to vector<16x1xf32>
    %615 = arith.divf %613, %614 : vector<16x1xf32>
    %616 = vector.broadcast %615 : vector<16x1xf32> to vector<16x128xf32>
    %617 = arith.subf %607, %616 : vector<16x128xf32>
    %618 = arith.mulf %617, %617 : vector<16x128xf32>
    %cst_281 = arith.constant dense<0.000000e+00> : vector<16xf32>
    %619 = vector.multi_reduction <add>, %618, %cst_281 [1] : vector<16x128xf32> to vector<16xf32>
    %620 = vector.shape_cast %619 : vector<16xf32> to vector<16x1xf32>
    %cst_282 = arith.constant 1.280000e+02 : f32
    %621 = vector.broadcast %cst_282 : f32 to vector<16x1xf32>
    %622 = arith.divf %620, %621 : vector<16x1xf32>
    %cst_283 = arith.constant 6.000000e-01 : f32
    %623 = vector.broadcast %cst_283 : f32 to vector<16x1xf32>
    %624 = arith.addf %622, %623 : vector<16x1xf32>
    %625 = math.rsqrt %624 : vector<16x1xf32>
    %626 = vector.broadcast %625 : vector<16x1xf32> to vector<16x128xf32>
    %627 = arith.mulf %617, %626 : vector<16x128xf32>
    %628 = vector.broadcast %609 : vector<1x128xf32> to vector<16x128xf32>
    %629 = arith.mulf %627, %628 : vector<16x128xf32>
    %630 = vector.broadcast %611 : vector<1x128xf32> to vector<16x128xf32>
    %631 = arith.addf %629, %630 : vector<16x128xf32>
    %c1_284 = arith.constant 1 : index
    %c0_285 = arith.constant 0 : index
    %c0_286 = arith.constant 0 : index
    %632 = vector.load %arg15[%c1_284, %c0_285, %c0_286] : memref<2x128x384xf32, #tpu.memory_space<vmem>>, vector<1x128x384xf32>
    %633 = vector.shape_cast %632 : vector<1x128x384xf32> to vector<128x384xf32>
    %c1_287 = arith.constant 1 : index
    %c0_288 = arith.constant 0 : index
    %c0_289 = arith.constant 0 : index
    %634 = vector.load %arg16[%c1_287, %c0_288, %c0_289] : memref<2x1x384xf32, #tpu.memory_space<vmem>>, vector<1x1x384xf32>
    %635 = vector.shape_cast %634 : vector<1x1x384xf32> to vector<1x384xf32>
    %c1_290 = arith.constant 1 : index
    %c0_291 = arith.constant 0 : index
    %c0_292 = arith.constant 0 : index
    %636 = vector.load %arg17[%c1_290, %c0_291, %c0_292] : memref<2x128x128xf32, #tpu.memory_space<vmem>>, vector<1x128x128xf32>
    %637 = vector.shape_cast %636 : vector<1x128x128xf32> to vector<128x128xf32>
    %c1_293 = arith.constant 1 : index
    %c0_294 = arith.constant 0 : index
    %c0_295 = arith.constant 0 : index
    %638 = vector.load %arg18[%c1_293, %c0_294, %c0_295] : memref<2x1x128xf32, #tpu.memory_space<vmem>>, vector<1x1x128xf32>
    %639 = vector.shape_cast %638 : vector<1x1x128xf32> to vector<1x128xf32>
    %cst_296 = arith.constant dense<0.000000e+00> : vector<16x384xf32>
    %640 = tpu.matmul %631, %633, %cst_296 {dimension_numbers = #tpu.dot_dimension_numbers<[1], [0], [0], [1], [0, 0, 1, 1], [], []>} : vector<16x128xf32>, vector<128x384xf32>, vector<16x384xf32> -> vector<16x384xf32>
    %641 = vector.broadcast %635 : vector<1x384xf32> to vector<16x384xf32>
    %642 = arith.addf %640, %641 : vector<16x384xf32>
    %643 = vector.extract_strided_slice %642 {offsets = [0, 0], sizes = [16, 128], strides = [1, 1]} : vector<16x384xf32> to vector<16x128xf32>
    %644 = vector.extract_strided_slice %642 {offsets = [0, 128], sizes = [16, 128], strides = [1, 1]} : vector<16x384xf32> to vector<16x128xf32>
    %645 = vector.extract_strided_slice %642 {offsets = [0, 256], sizes = [16, 128], strides = [1, 1]} : vector<16x384xf32> to vector<16x128xf32>
    %646 = vector.extract_strided_slice %643 {offsets = [0, 0], sizes = [16, 32], strides = [1, 1]} : vector<16x128xf32> to vector<16x32xf32>
    %647 = vector.extract_strided_slice %644 {offsets = [0, 0], sizes = [16, 32], strides = [1, 1]} : vector<16x128xf32> to vector<16x32xf32>
    %648 = vector.extract_strided_slice %645 {offsets = [0, 0], sizes = [16, 32], strides = [1, 1]} : vector<16x128xf32> to vector<16x32xf32>
    %cst_297 = arith.constant dense<0.000000e+00> : vector<16x16xf32>
    %649 = tpu.matmul %646, %647, %cst_297 {dimension_numbers = #tpu.dot_dimension_numbers<[1], [1], [0], [0], [0, 0, 1, 0], [], []>} : vector<16x32xf32>, vector<16x32xf32>, vector<16x16xf32> -> vector<16x16xf32>
    %cst_298 = arith.constant 0.176776692 : f32
    %650 = vector.broadcast %cst_298 : f32 to vector<16x16xf32>
    %651 = arith.mulf %649, %650 : vector<16x16xf32>
    %652 = arith.addf %651, %0 : vector<16x16xf32>
    %cst_299 = arith.constant dense<0xFF800000> : vector<16xf32>
    %653 = vector.multi_reduction <maximumf>, %652, %cst_299 [1] : vector<16x16xf32> to vector<16xf32>
    %654 = vector.shape_cast %653 : vector<16xf32> to vector<16x1xf32>
    %655 = vector.broadcast %654 : vector<16x1xf32> to vector<16x16xf32>
    %656 = arith.subf %652, %655 : vector<16x16xf32>
    %657 = math.exp %656 : vector<16x16xf32>
    %cst_300 = arith.constant dense<0.000000e+00> : vector<16xf32>
    %658 = vector.multi_reduction <add>, %657, %cst_300 [1] : vector<16x16xf32> to vector<16xf32>
    %659 = vector.shape_cast %658 : vector<16xf32> to vector<16x1xf32>
    %660 = tpu.reciprocal %659 {approx = true} : vector<16x1xf32> -> vector<16x1xf32>
    %661 = vector.broadcast %660 : vector<16x1xf32> to vector<16x16xf32>
    %662 = arith.mulf %657, %661 : vector<16x16xf32>
    %cst_301 = arith.constant dense<0.000000e+00> : vector<16x32xf32>
    %663 = tpu.matmul %662, %648, %cst_301 {dimension_numbers = #tpu.dot_dimension_numbers<[1], [0], [0], [1], [0, 0, 1, 1], [], []>} : vector<16x16xf32>, vector<16x32xf32>, vector<16x32xf32> -> vector<16x32xf32>
    %664 = vector.extract_strided_slice %643 {offsets = [0, 32], sizes = [16, 32], strides = [1, 1]} : vector<16x128xf32> to vector<16x32xf32>
    %665 = vector.extract_strided_slice %644 {offsets = [0, 32], sizes = [16, 32], strides = [1, 1]} : vector<16x128xf32> to vector<16x32xf32>
    %666 = vector.extract_strided_slice %645 {offsets = [0, 32], sizes = [16, 32], strides = [1, 1]} : vector<16x128xf32> to vector<16x32xf32>
    %cst_302 = arith.constant dense<0.000000e+00> : vector<16x16xf32>
    %667 = tpu.matmul %664, %665, %cst_302 {dimension_numbers = #tpu.dot_dimension_numbers<[1], [1], [0], [0], [0, 0, 1, 0], [], []>} : vector<16x32xf32>, vector<16x32xf32>, vector<16x16xf32> -> vector<16x16xf32>
    %cst_303 = arith.constant 0.176776692 : f32
    %668 = vector.broadcast %cst_303 : f32 to vector<16x16xf32>
    %669 = arith.mulf %667, %668 : vector<16x16xf32>
    %670 = arith.addf %669, %0 : vector<16x16xf32>
    %cst_304 = arith.constant dense<0xFF800000> : vector<16xf32>
    %671 = vector.multi_reduction <maximumf>, %670, %cst_304 [1] : vector<16x16xf32> to vector<16xf32>
    %672 = vector.shape_cast %671 : vector<16xf32> to vector<16x1xf32>
    %673 = vector.broadcast %672 : vector<16x1xf32> to vector<16x16xf32>
    %674 = arith.subf %670, %673 : vector<16x16xf32>
    %675 = math.exp %674 : vector<16x16xf32>
    %cst_305 = arith.constant dense<0.000000e+00> : vector<16xf32>
    %676 = vector.multi_reduction <add>, %675, %cst_305 [1] : vector<16x16xf32> to vector<16xf32>
    %677 = vector.shape_cast %676 : vector<16xf32> to vector<16x1xf32>
    %678 = tpu.reciprocal %677 {approx = true} : vector<16x1xf32> -> vector<16x1xf32>
    %679 = vector.broadcast %678 : vector<16x1xf32> to vector<16x16xf32>
    %680 = arith.mulf %675, %679 : vector<16x16xf32>
    %cst_306 = arith.constant dense<0.000000e+00> : vector<16x32xf32>
    %681 = tpu.matmul %680, %666, %cst_306 {dimension_numbers = #tpu.dot_dimension_numbers<[1], [0], [0], [1], [0, 0, 1, 1], [], []>} : vector<16x16xf32>, vector<16x32xf32>, vector<16x32xf32> -> vector<16x32xf32>
    %682 = vector.extract_strided_slice %643 {offsets = [0, 64], sizes = [16, 32], strides = [1, 1]} : vector<16x128xf32> to vector<16x32xf32>
    %683 = vector.extract_strided_slice %644 {offsets = [0, 64], sizes = [16, 32], strides = [1, 1]} : vector<16x128xf32> to vector<16x32xf32>
    %684 = vector.extract_strided_slice %645 {offsets = [0, 64], sizes = [16, 32], strides = [1, 1]} : vector<16x128xf32> to vector<16x32xf32>
    %cst_307 = arith.constant dense<0.000000e+00> : vector<16x16xf32>
    %685 = tpu.matmul %682, %683, %cst_307 {dimension_numbers = #tpu.dot_dimension_numbers<[1], [1], [0], [0], [0, 0, 1, 0], [], []>} : vector<16x32xf32>, vector<16x32xf32>, vector<16x16xf32> -> vector<16x16xf32>
    %cst_308 = arith.constant 0.176776692 : f32
    %686 = vector.broadcast %cst_308 : f32 to vector<16x16xf32>
    %687 = arith.mulf %685, %686 : vector<16x16xf32>
    %688 = arith.addf %687, %0 : vector<16x16xf32>
    %cst_309 = arith.constant dense<0xFF800000> : vector<16xf32>
    %689 = vector.multi_reduction <maximumf>, %688, %cst_309 [1] : vector<16x16xf32> to vector<16xf32>
    %690 = vector.shape_cast %689 : vector<16xf32> to vector<16x1xf32>
    %691 = vector.broadcast %690 : vector<16x1xf32> to vector<16x16xf32>
    %692 = arith.subf %688, %691 : vector<16x16xf32>
    %693 = math.exp %692 : vector<16x16xf32>
    %cst_310 = arith.constant dense<0.000000e+00> : vector<16xf32>
    %694 = vector.multi_reduction <add>, %693, %cst_310 [1] : vector<16x16xf32> to vector<16xf32>
    %695 = vector.shape_cast %694 : vector<16xf32> to vector<16x1xf32>
    %696 = tpu.reciprocal %695 {approx = true} : vector<16x1xf32> -> vector<16x1xf32>
    %697 = vector.broadcast %696 : vector<16x1xf32> to vector<16x16xf32>
    %698 = arith.mulf %693, %697 : vector<16x16xf32>
    %cst_311 = arith.constant dense<0.000000e+00> : vector<16x32xf32>
    %699 = tpu.matmul %698, %684, %cst_311 {dimension_numbers = #tpu.dot_dimension_numbers<[1], [0], [0], [1], [0, 0, 1, 1], [], []>} : vector<16x16xf32>, vector<16x32xf32>, vector<16x32xf32> -> vector<16x32xf32>
    %700 = vector.extract_strided_slice %643 {offsets = [0, 96], sizes = [16, 32], strides = [1, 1]} : vector<16x128xf32> to vector<16x32xf32>
    %701 = vector.extract_strided_slice %644 {offsets = [0, 96], sizes = [16, 32], strides = [1, 1]} : vector<16x128xf32> to vector<16x32xf32>
    %702 = vector.extract_strided_slice %645 {offsets = [0, 96], sizes = [16, 32], strides = [1, 1]} : vector<16x128xf32> to vector<16x32xf32>
    %cst_312 = arith.constant dense<0.000000e+00> : vector<16x16xf32>
    %703 = tpu.matmul %700, %701, %cst_312 {dimension_numbers = #tpu.dot_dimension_numbers<[1], [1], [0], [0], [0, 0, 1, 0], [], []>} : vector<16x32xf32>, vector<16x32xf32>, vector<16x16xf32> -> vector<16x16xf32>
    %cst_313 = arith.constant 0.176776692 : f32
    %704 = vector.broadcast %cst_313 : f32 to vector<16x16xf32>
    %705 = arith.mulf %703, %704 : vector<16x16xf32>
    %706 = arith.addf %705, %0 : vector<16x16xf32>
    %cst_314 = arith.constant dense<0xFF800000> : vector<16xf32>
    %707 = vector.multi_reduction <maximumf>, %706, %cst_314 [1] : vector<16x16xf32> to vector<16xf32>
    %708 = vector.shape_cast %707 : vector<16xf32> to vector<16x1xf32>
    %709 = vector.broadcast %708 : vector<16x1xf32> to vector<16x16xf32>
    %710 = arith.subf %706, %709 : vector<16x16xf32>
    %711 = math.exp %710 : vector<16x16xf32>
    %cst_315 = arith.constant dense<0.000000e+00> : vector<16xf32>
    %712 = vector.multi_reduction <add>, %711, %cst_315 [1] : vector<16x16xf32> to vector<16xf32>
    %713 = vector.shape_cast %712 : vector<16xf32> to vector<16x1xf32>
    %714 = tpu.reciprocal %713 {approx = true} : vector<16x1xf32> -> vector<16x1xf32>
    %715 = vector.broadcast %714 : vector<16x1xf32> to vector<16x16xf32>
    %716 = arith.mulf %711, %715 : vector<16x16xf32>
    %cst_316 = arith.constant dense<0.000000e+00> : vector<16x32xf32>
    %717 = tpu.matmul %716, %702, %cst_316 {dimension_numbers = #tpu.dot_dimension_numbers<[1], [0], [0], [1], [0, 0, 1, 1], [], []>} : vector<16x16xf32>, vector<16x32xf32>, vector<16x32xf32> -> vector<16x32xf32>
    %718 = tpu.concatenate %663, %681, %699, %717 in 1 : vector<16x32xf32>, vector<16x32xf32>, vector<16x32xf32>, vector<16x32xf32> -> vector<16x128xf32>
    %cst_317 = arith.constant dense<0.000000e+00> : vector<16x128xf32>
    %719 = tpu.matmul %718, %637, %cst_317 {dimension_numbers = #tpu.dot_dimension_numbers<[1], [0], [0], [1], [0, 0, 1, 1], [], []>} : vector<16x128xf32>, vector<128x128xf32>, vector<16x128xf32> -> vector<16x128xf32>
    %720 = vector.broadcast %639 : vector<1x128xf32> to vector<16x128xf32>
    %721 = arith.addf %719, %720 : vector<16x128xf32>
    %722 = arith.addf %631, %721 : vector<16x128xf32>
    %c1_318 = arith.constant 1 : index
    %c0_319 = arith.constant 0 : index
    %c0_320 = arith.constant 0 : index
    %723 = vector.load %arg19[%c1_318, %c0_319, %c0_320] : memref<2x1x128xf32, #tpu.memory_space<vmem>>, vector<1x1x128xf32>
    %724 = vector.shape_cast %723 : vector<1x1x128xf32> to vector<1x128xf32>
    %c1_321 = arith.constant 1 : index
    %c0_322 = arith.constant 0 : index
    %c0_323 = arith.constant 0 : index
    %725 = vector.load %arg20[%c1_321, %c0_322, %c0_323] : memref<2x1x128xf32, #tpu.memory_space<vmem>>, vector<1x1x128xf32>
    %726 = vector.shape_cast %725 : vector<1x1x128xf32> to vector<1x128xf32>
    %cst_324 = arith.constant dense<0.000000e+00> : vector<16xf32>
    %727 = vector.multi_reduction <add>, %722, %cst_324 [1] : vector<16x128xf32> to vector<16xf32>
    %728 = vector.shape_cast %727 : vector<16xf32> to vector<16x1xf32>
    %cst_325 = arith.constant 1.280000e+02 : f32
    %729 = vector.broadcast %cst_325 : f32 to vector<16x1xf32>
    %730 = arith.divf %728, %729 : vector<16x1xf32>
    %731 = vector.broadcast %730 : vector<16x1xf32> to vector<16x128xf32>
    %732 = arith.subf %722, %731 : vector<16x128xf32>
    %733 = arith.mulf %732, %732 : vector<16x128xf32>
    %cst_326 = arith.constant dense<0.000000e+00> : vector<16xf32>
    %734 = vector.multi_reduction <add>, %733, %cst_326 [1] : vector<16x128xf32> to vector<16xf32>
    %735 = vector.shape_cast %734 : vector<16xf32> to vector<16x1xf32>
    %cst_327 = arith.constant 1.280000e+02 : f32
    %736 = vector.broadcast %cst_327 : f32 to vector<16x1xf32>
    %737 = arith.divf %735, %736 : vector<16x1xf32>
    %cst_328 = arith.constant 6.000000e-01 : f32
    %738 = vector.broadcast %cst_328 : f32 to vector<16x1xf32>
    %739 = arith.addf %737, %738 : vector<16x1xf32>
    %740 = math.rsqrt %739 : vector<16x1xf32>
    %741 = vector.broadcast %740 : vector<16x1xf32> to vector<16x128xf32>
    %742 = arith.mulf %732, %741 : vector<16x128xf32>
    %743 = vector.broadcast %724 : vector<1x128xf32> to vector<16x128xf32>
    %744 = arith.mulf %742, %743 : vector<16x128xf32>
    %745 = vector.broadcast %726 : vector<1x128xf32> to vector<16x128xf32>
    %746 = arith.addf %744, %745 : vector<16x128xf32>
    %c1_329 = arith.constant 1 : index
    %c0_330 = arith.constant 0 : index
    %c0_331 = arith.constant 0 : index
    %747 = vector.load %arg21[%c1_329, %c0_330, %c0_331] : memref<2x128x384xf32, #tpu.memory_space<vmem>>, vector<1x128x384xf32>
    %748 = vector.shape_cast %747 : vector<1x128x384xf32> to vector<128x384xf32>
    %c1_332 = arith.constant 1 : index
    %c0_333 = arith.constant 0 : index
    %c0_334 = arith.constant 0 : index
    %749 = vector.load %arg22[%c1_332, %c0_333, %c0_334] : memref<2x1x384xf32, #tpu.memory_space<vmem>>, vector<1x1x384xf32>
    %750 = vector.shape_cast %749 : vector<1x1x384xf32> to vector<1x384xf32>
    %c1_335 = arith.constant 1 : index
    %c0_336 = arith.constant 0 : index
    %c0_337 = arith.constant 0 : index
    %751 = vector.load %arg23[%c1_335, %c0_336, %c0_337] : memref<2x128x128xf32, #tpu.memory_space<vmem>>, vector<1x128x128xf32>
    %752 = vector.shape_cast %751 : vector<1x128x128xf32> to vector<128x128xf32>
    %c1_338 = arith.constant 1 : index
    %c0_339 = arith.constant 0 : index
    %c0_340 = arith.constant 0 : index
    %753 = vector.load %arg24[%c1_338, %c0_339, %c0_340] : memref<2x1x128xf32, #tpu.memory_space<vmem>>, vector<1x1x128xf32>
    %754 = vector.shape_cast %753 : vector<1x1x128xf32> to vector<1x128xf32>
    %cst_341 = arith.constant dense<0.000000e+00> : vector<16x384xf32>
    %755 = tpu.matmul %746, %748, %cst_341 {dimension_numbers = #tpu.dot_dimension_numbers<[1], [0], [0], [1], [0, 0, 1, 1], [], []>} : vector<16x128xf32>, vector<128x384xf32>, vector<16x384xf32> -> vector<16x384xf32>
    %756 = vector.broadcast %750 : vector<1x384xf32> to vector<16x384xf32>
    %757 = arith.addf %755, %756 : vector<16x384xf32>
    %cst_342 = arith.constant dense<0.000000e+00> : vector<16x384xf32>
    %758 = tpu.matmul %356, %748, %cst_342 {dimension_numbers = #tpu.dot_dimension_numbers<[1], [0], [0], [1], [0, 0, 1, 1], [], []>} : vector<16x128xf32>, vector<128x384xf32>, vector<16x384xf32> -> vector<16x384xf32>
    %759 = vector.broadcast %750 : vector<1x384xf32> to vector<16x384xf32>
    %760 = arith.addf %758, %759 : vector<16x384xf32>
    %761 = vector.extract_strided_slice %757 {offsets = [0, 0], sizes = [16, 128], strides = [1, 1]} : vector<16x384xf32> to vector<16x128xf32>
    %762 = vector.extract_strided_slice %760 {offsets = [0, 128], sizes = [16, 128], strides = [1, 1]} : vector<16x384xf32> to vector<16x128xf32>
    %763 = vector.extract_strided_slice %760 {offsets = [0, 256], sizes = [16, 128], strides = [1, 1]} : vector<16x384xf32> to vector<16x128xf32>
    %764 = vector.extract_strided_slice %761 {offsets = [0, 0], sizes = [16, 32], strides = [1, 1]} : vector<16x128xf32> to vector<16x32xf32>
    %765 = vector.extract_strided_slice %762 {offsets = [0, 0], sizes = [16, 32], strides = [1, 1]} : vector<16x128xf32> to vector<16x32xf32>
    %766 = vector.extract_strided_slice %763 {offsets = [0, 0], sizes = [16, 32], strides = [1, 1]} : vector<16x128xf32> to vector<16x32xf32>
    %cst_343 = arith.constant dense<0.000000e+00> : vector<16x16xf32>
    %767 = tpu.matmul %764, %765, %cst_343 {dimension_numbers = #tpu.dot_dimension_numbers<[1], [1], [0], [0], [0, 0, 1, 0], [], []>} : vector<16x32xf32>, vector<16x32xf32>, vector<16x16xf32> -> vector<16x16xf32>
    %cst_344 = arith.constant 0.176776692 : f32
    %768 = vector.broadcast %cst_344 : f32 to vector<16x16xf32>
    %769 = arith.mulf %767, %768 : vector<16x16xf32>
    %770 = arith.addf %769, %0 : vector<16x16xf32>
    %cst_345 = arith.constant dense<0xFF800000> : vector<16xf32>
    %771 = vector.multi_reduction <maximumf>, %770, %cst_345 [1] : vector<16x16xf32> to vector<16xf32>
    %772 = vector.shape_cast %771 : vector<16xf32> to vector<16x1xf32>
    %773 = vector.broadcast %772 : vector<16x1xf32> to vector<16x16xf32>
    %774 = arith.subf %770, %773 : vector<16x16xf32>
    %775 = math.exp %774 : vector<16x16xf32>
    %cst_346 = arith.constant dense<0.000000e+00> : vector<16xf32>
    %776 = vector.multi_reduction <add>, %775, %cst_346 [1] : vector<16x16xf32> to vector<16xf32>
    %777 = vector.shape_cast %776 : vector<16xf32> to vector<16x1xf32>
    %778 = tpu.reciprocal %777 {approx = true} : vector<16x1xf32> -> vector<16x1xf32>
    %779 = vector.broadcast %778 : vector<16x1xf32> to vector<16x16xf32>
    %780 = arith.mulf %775, %779 : vector<16x16xf32>
    %cst_347 = arith.constant dense<0.000000e+00> : vector<16x32xf32>
    %781 = tpu.matmul %780, %766, %cst_347 {dimension_numbers = #tpu.dot_dimension_numbers<[1], [0], [0], [1], [0, 0, 1, 1], [], []>} : vector<16x16xf32>, vector<16x32xf32>, vector<16x32xf32> -> vector<16x32xf32>
    %782 = vector.extract_strided_slice %761 {offsets = [0, 32], sizes = [16, 32], strides = [1, 1]} : vector<16x128xf32> to vector<16x32xf32>
    %783 = vector.extract_strided_slice %762 {offsets = [0, 32], sizes = [16, 32], strides = [1, 1]} : vector<16x128xf32> to vector<16x32xf32>
    %784 = vector.extract_strided_slice %763 {offsets = [0, 32], sizes = [16, 32], strides = [1, 1]} : vector<16x128xf32> to vector<16x32xf32>
    %cst_348 = arith.constant dense<0.000000e+00> : vector<16x16xf32>
    %785 = tpu.matmul %782, %783, %cst_348 {dimension_numbers = #tpu.dot_dimension_numbers<[1], [1], [0], [0], [0, 0, 1, 0], [], []>} : vector<16x32xf32>, vector<16x32xf32>, vector<16x16xf32> -> vector<16x16xf32>
    %cst_349 = arith.constant 0.176776692 : f32
    %786 = vector.broadcast %cst_349 : f32 to vector<16x16xf32>
    %787 = arith.mulf %785, %786 : vector<16x16xf32>
    %788 = arith.addf %787, %0 : vector<16x16xf32>
    %cst_350 = arith.constant dense<0xFF800000> : vector<16xf32>
    %789 = vector.multi_reduction <maximumf>, %788, %cst_350 [1] : vector<16x16xf32> to vector<16xf32>
    %790 = vector.shape_cast %789 : vector<16xf32> to vector<16x1xf32>
    %791 = vector.broadcast %790 : vector<16x1xf32> to vector<16x16xf32>
    %792 = arith.subf %788, %791 : vector<16x16xf32>
    %793 = math.exp %792 : vector<16x16xf32>
    %cst_351 = arith.constant dense<0.000000e+00> : vector<16xf32>
    %794 = vector.multi_reduction <add>, %793, %cst_351 [1] : vector<16x16xf32> to vector<16xf32>
    %795 = vector.shape_cast %794 : vector<16xf32> to vector<16x1xf32>
    %796 = tpu.reciprocal %795 {approx = true} : vector<16x1xf32> -> vector<16x1xf32>
    %797 = vector.broadcast %796 : vector<16x1xf32> to vector<16x16xf32>
    %798 = arith.mulf %793, %797 : vector<16x16xf32>
    %cst_352 = arith.constant dense<0.000000e+00> : vector<16x32xf32>
    %799 = tpu.matmul %798, %784, %cst_352 {dimension_numbers = #tpu.dot_dimension_numbers<[1], [0], [0], [1], [0, 0, 1, 1], [], []>} : vector<16x16xf32>, vector<16x32xf32>, vector<16x32xf32> -> vector<16x32xf32>
    %800 = vector.extract_strided_slice %761 {offsets = [0, 64], sizes = [16, 32], strides = [1, 1]} : vector<16x128xf32> to vector<16x32xf32>
    %801 = vector.extract_strided_slice %762 {offsets = [0, 64], sizes = [16, 32], strides = [1, 1]} : vector<16x128xf32> to vector<16x32xf32>
    %802 = vector.extract_strided_slice %763 {offsets = [0, 64], sizes = [16, 32], strides = [1, 1]} : vector<16x128xf32> to vector<16x32xf32>
    %cst_353 = arith.constant dense<0.000000e+00> : vector<16x16xf32>
    %803 = tpu.matmul %800, %801, %cst_353 {dimension_numbers = #tpu.dot_dimension_numbers<[1], [1], [0], [0], [0, 0, 1, 0], [], []>} : vector<16x32xf32>, vector<16x32xf32>, vector<16x16xf32> -> vector<16x16xf32>
    %cst_354 = arith.constant 0.176776692 : f32
    %804 = vector.broadcast %cst_354 : f32 to vector<16x16xf32>
    %805 = arith.mulf %803, %804 : vector<16x16xf32>
    %806 = arith.addf %805, %0 : vector<16x16xf32>
    %cst_355 = arith.constant dense<0xFF800000> : vector<16xf32>
    %807 = vector.multi_reduction <maximumf>, %806, %cst_355 [1] : vector<16x16xf32> to vector<16xf32>
    %808 = vector.shape_cast %807 : vector<16xf32> to vector<16x1xf32>
    %809 = vector.broadcast %808 : vector<16x1xf32> to vector<16x16xf32>
    %810 = arith.subf %806, %809 : vector<16x16xf32>
    %811 = math.exp %810 : vector<16x16xf32>
    %cst_356 = arith.constant dense<0.000000e+00> : vector<16xf32>
    %812 = vector.multi_reduction <add>, %811, %cst_356 [1] : vector<16x16xf32> to vector<16xf32>
    %813 = vector.shape_cast %812 : vector<16xf32> to vector<16x1xf32>
    %814 = tpu.reciprocal %813 {approx = true} : vector<16x1xf32> -> vector<16x1xf32>
    %815 = vector.broadcast %814 : vector<16x1xf32> to vector<16x16xf32>
    %816 = arith.mulf %811, %815 : vector<16x16xf32>
    %cst_357 = arith.constant dense<0.000000e+00> : vector<16x32xf32>
    %817 = tpu.matmul %816, %802, %cst_357 {dimension_numbers = #tpu.dot_dimension_numbers<[1], [0], [0], [1], [0, 0, 1, 1], [], []>} : vector<16x16xf32>, vector<16x32xf32>, vector<16x32xf32> -> vector<16x32xf32>
    %818 = vector.extract_strided_slice %761 {offsets = [0, 96], sizes = [16, 32], strides = [1, 1]} : vector<16x128xf32> to vector<16x32xf32>
    %819 = vector.extract_strided_slice %762 {offsets = [0, 96], sizes = [16, 32], strides = [1, 1]} : vector<16x128xf32> to vector<16x32xf32>
    %820 = vector.extract_strided_slice %763 {offsets = [0, 96], sizes = [16, 32], strides = [1, 1]} : vector<16x128xf32> to vector<16x32xf32>
    %cst_358 = arith.constant dense<0.000000e+00> : vector<16x16xf32>
    %821 = tpu.matmul %818, %819, %cst_358 {dimension_numbers = #tpu.dot_dimension_numbers<[1], [1], [0], [0], [0, 0, 1, 0], [], []>} : vector<16x32xf32>, vector<16x32xf32>, vector<16x16xf32> -> vector<16x16xf32>
    %cst_359 = arith.constant 0.176776692 : f32
    %822 = vector.broadcast %cst_359 : f32 to vector<16x16xf32>
    %823 = arith.mulf %821, %822 : vector<16x16xf32>
    %824 = arith.addf %823, %0 : vector<16x16xf32>
    %cst_360 = arith.constant dense<0xFF800000> : vector<16xf32>
    %825 = vector.multi_reduction <maximumf>, %824, %cst_360 [1] : vector<16x16xf32> to vector<16xf32>
    %826 = vector.shape_cast %825 : vector<16xf32> to vector<16x1xf32>
    %827 = vector.broadcast %826 : vector<16x1xf32> to vector<16x16xf32>
    %828 = arith.subf %824, %827 : vector<16x16xf32>
    %829 = math.exp %828 : vector<16x16xf32>
    %cst_361 = arith.constant dense<0.000000e+00> : vector<16xf32>
    %830 = vector.multi_reduction <add>, %829, %cst_361 [1] : vector<16x16xf32> to vector<16xf32>
    %831 = vector.shape_cast %830 : vector<16xf32> to vector<16x1xf32>
    %832 = tpu.reciprocal %831 {approx = true} : vector<16x1xf32> -> vector<16x1xf32>
    %833 = vector.broadcast %832 : vector<16x1xf32> to vector<16x16xf32>
    %834 = arith.mulf %829, %833 : vector<16x16xf32>
    %cst_362 = arith.constant dense<0.000000e+00> : vector<16x32xf32>
    %835 = tpu.matmul %834, %820, %cst_362 {dimension_numbers = #tpu.dot_dimension_numbers<[1], [0], [0], [1], [0, 0, 1, 1], [], []>} : vector<16x16xf32>, vector<16x32xf32>, vector<16x32xf32> -> vector<16x32xf32>
    %836 = tpu.concatenate %781, %799, %817, %835 in 1 : vector<16x32xf32>, vector<16x32xf32>, vector<16x32xf32>, vector<16x32xf32> -> vector<16x128xf32>
    %cst_363 = arith.constant dense<0.000000e+00> : vector<16x128xf32>
    %837 = tpu.matmul %836, %752, %cst_363 {dimension_numbers = #tpu.dot_dimension_numbers<[1], [0], [0], [1], [0, 0, 1, 1], [], []>} : vector<16x128xf32>, vector<128x128xf32>, vector<16x128xf32> -> vector<16x128xf32>
    %838 = vector.broadcast %754 : vector<1x128xf32> to vector<16x128xf32>
    %839 = arith.addf %837, %838 : vector<16x128xf32>
    %840 = arith.addf %746, %839 : vector<16x128xf32>
    %c1_364 = arith.constant 1 : index
    %c0_365 = arith.constant 0 : index
    %c0_366 = arith.constant 0 : index
    %841 = vector.load %arg25[%c1_364, %c0_365, %c0_366] : memref<2x1x128xf32, #tpu.memory_space<vmem>>, vector<1x1x128xf32>
    %842 = vector.shape_cast %841 : vector<1x1x128xf32> to vector<1x128xf32>
    %c1_367 = arith.constant 1 : index
    %c0_368 = arith.constant 0 : index
    %c0_369 = arith.constant 0 : index
    %843 = vector.load %arg26[%c1_367, %c0_368, %c0_369] : memref<2x1x128xf32, #tpu.memory_space<vmem>>, vector<1x1x128xf32>
    %844 = vector.shape_cast %843 : vector<1x1x128xf32> to vector<1x128xf32>
    %cst_370 = arith.constant dense<0.000000e+00> : vector<16xf32>
    %845 = vector.multi_reduction <add>, %840, %cst_370 [1] : vector<16x128xf32> to vector<16xf32>
    %846 = vector.shape_cast %845 : vector<16xf32> to vector<16x1xf32>
    %cst_371 = arith.constant 1.280000e+02 : f32
    %847 = vector.broadcast %cst_371 : f32 to vector<16x1xf32>
    %848 = arith.divf %846, %847 : vector<16x1xf32>
    %849 = vector.broadcast %848 : vector<16x1xf32> to vector<16x128xf32>
    %850 = arith.subf %840, %849 : vector<16x128xf32>
    %851 = arith.mulf %850, %850 : vector<16x128xf32>
    %cst_372 = arith.constant dense<0.000000e+00> : vector<16xf32>
    %852 = vector.multi_reduction <add>, %851, %cst_372 [1] : vector<16x128xf32> to vector<16xf32>
    %853 = vector.shape_cast %852 : vector<16xf32> to vector<16x1xf32>
    %cst_373 = arith.constant 1.280000e+02 : f32
    %854 = vector.broadcast %cst_373 : f32 to vector<16x1xf32>
    %855 = arith.divf %853, %854 : vector<16x1xf32>
    %cst_374 = arith.constant 6.000000e-01 : f32
    %856 = vector.broadcast %cst_374 : f32 to vector<16x1xf32>
    %857 = arith.addf %855, %856 : vector<16x1xf32>
    %858 = math.rsqrt %857 : vector<16x1xf32>
    %859 = vector.broadcast %858 : vector<16x1xf32> to vector<16x128xf32>
    %860 = arith.mulf %850, %859 : vector<16x128xf32>
    %861 = vector.broadcast %842 : vector<1x128xf32> to vector<16x128xf32>
    %862 = arith.mulf %860, %861 : vector<16x128xf32>
    %863 = vector.broadcast %844 : vector<1x128xf32> to vector<16x128xf32>
    %864 = arith.addf %862, %863 : vector<16x128xf32>
    %c1_375 = arith.constant 1 : index
    %c0_376 = arith.constant 0 : index
    %c0_377 = arith.constant 0 : index
    %865 = vector.load %arg27[%c1_375, %c0_376, %c0_377] : memref<2x128x256xf32, #tpu.memory_space<vmem>>, vector<1x128x256xf32>
    %866 = vector.shape_cast %865 : vector<1x128x256xf32> to vector<128x256xf32>
    %c1_378 = arith.constant 1 : index
    %c0_379 = arith.constant 0 : index
    %c0_380 = arith.constant 0 : index
    %867 = vector.load %arg28[%c1_378, %c0_379, %c0_380] : memref<2x1x256xf32, #tpu.memory_space<vmem>>, vector<1x1x256xf32>
    %868 = vector.shape_cast %867 : vector<1x1x256xf32> to vector<1x256xf32>
    %c1_381 = arith.constant 1 : index
    %c0_382 = arith.constant 0 : index
    %c0_383 = arith.constant 0 : index
    %869 = vector.load %arg29[%c1_381, %c0_382, %c0_383] : memref<2x256x128xf32, #tpu.memory_space<vmem>>, vector<1x256x128xf32>
    %870 = vector.shape_cast %869 : vector<1x256x128xf32> to vector<256x128xf32>
    %c1_384 = arith.constant 1 : index
    %c0_385 = arith.constant 0 : index
    %c0_386 = arith.constant 0 : index
    %871 = vector.load %arg30[%c1_384, %c0_385, %c0_386] : memref<2x1x128xf32, #tpu.memory_space<vmem>>, vector<1x1x128xf32>
    %872 = vector.shape_cast %871 : vector<1x1x128xf32> to vector<1x128xf32>
    %cst_387 = arith.constant dense<0.000000e+00> : vector<16x256xf32>
    %873 = tpu.matmul %864, %866, %cst_387 {dimension_numbers = #tpu.dot_dimension_numbers<[1], [0], [0], [1], [0, 0, 1, 1], [], []>} : vector<16x128xf32>, vector<128x256xf32>, vector<16x256xf32> -> vector<16x256xf32>
    %874 = vector.broadcast %868 : vector<1x256xf32> to vector<16x256xf32>
    %875 = arith.addf %873, %874 : vector<16x256xf32>
    %cst_388 = arith.constant 0.000000e+00 : f32
    %876 = vector.broadcast %cst_388 : f32 to vector<16x256xf32>
    %877 = arith.maximumf %875, %876 : vector<16x256xf32>
    %cst_389 = arith.constant dense<0.000000e+00> : vector<16x128xf32>
    %878 = tpu.matmul %877, %870, %cst_389 {dimension_numbers = #tpu.dot_dimension_numbers<[1], [0], [0], [1], [0, 0, 1, 1], [], []>} : vector<16x256xf32>, vector<256x128xf32>, vector<16x128xf32> -> vector<16x128xf32>
    %879 = vector.broadcast %872 : vector<1x128xf32> to vector<16x128xf32>
    %880 = arith.addf %878, %879 : vector<16x128xf32>
    %881 = arith.addf %864, %880 : vector<16x128xf32>
    %c1_390 = arith.constant 1 : index
    %c0_391 = arith.constant 0 : index
    %c0_392 = arith.constant 0 : index
    %882 = vector.load %arg31[%c1_390, %c0_391, %c0_392] : memref<2x1x128xf32, #tpu.memory_space<vmem>>, vector<1x1x128xf32>
    %883 = vector.shape_cast %882 : vector<1x1x128xf32> to vector<1x128xf32>
    %c1_393 = arith.constant 1 : index
    %c0_394 = arith.constant 0 : index
    %c0_395 = arith.constant 0 : index
    %884 = vector.load %arg32[%c1_393, %c0_394, %c0_395] : memref<2x1x128xf32, #tpu.memory_space<vmem>>, vector<1x1x128xf32>
    %885 = vector.shape_cast %884 : vector<1x1x128xf32> to vector<1x128xf32>
    %cst_396 = arith.constant dense<0.000000e+00> : vector<16xf32>
    %886 = vector.multi_reduction <add>, %881, %cst_396 [1] : vector<16x128xf32> to vector<16xf32>
    %887 = vector.shape_cast %886 : vector<16xf32> to vector<16x1xf32>
    %cst_397 = arith.constant 1.280000e+02 : f32
    %888 = vector.broadcast %cst_397 : f32 to vector<16x1xf32>
    %889 = arith.divf %887, %888 : vector<16x1xf32>
    %890 = vector.broadcast %889 : vector<16x1xf32> to vector<16x128xf32>
    %891 = arith.subf %881, %890 : vector<16x128xf32>
    %892 = arith.mulf %891, %891 : vector<16x128xf32>
    %cst_398 = arith.constant dense<0.000000e+00> : vector<16xf32>
    %893 = vector.multi_reduction <add>, %892, %cst_398 [1] : vector<16x128xf32> to vector<16xf32>
    %894 = vector.shape_cast %893 : vector<16xf32> to vector<16x1xf32>
    %cst_399 = arith.constant 1.280000e+02 : f32
    %895 = vector.broadcast %cst_399 : f32 to vector<16x1xf32>
    %896 = arith.divf %894, %895 : vector<16x1xf32>
    %cst_400 = arith.constant 6.000000e-01 : f32
    %897 = vector.broadcast %cst_400 : f32 to vector<16x1xf32>
    %898 = arith.addf %896, %897 : vector<16x1xf32>
    %899 = math.rsqrt %898 : vector<16x1xf32>
    %900 = vector.broadcast %899 : vector<16x1xf32> to vector<16x128xf32>
    %901 = arith.mulf %891, %900 : vector<16x128xf32>
    %902 = vector.broadcast %883 : vector<1x128xf32> to vector<16x128xf32>
    %903 = arith.mulf %901, %902 : vector<16x128xf32>
    %904 = vector.broadcast %885 : vector<1x128xf32> to vector<16x128xf32>
    %905 = arith.addf %903, %904 : vector<16x128xf32>
    %c0_401 = arith.constant 0 : index
    %c0_402 = arith.constant 0 : index
    %906 = vector.load %arg37[%c0_401, %c0_402] : memref<128x128xf32, #tpu.memory_space<vmem>>, vector<128x128xf32>
    %cst_403 = arith.constant dense<0.000000e+00> : vector<16x128xf32>
    %907 = tpu.matmul %905, %906, %cst_403 {dimension_numbers = #tpu.dot_dimension_numbers<[1], [0], [0], [1], [0, 0, 1, 1], [], []>} : vector<16x128xf32>, vector<128x128xf32>, vector<16x128xf32> -> vector<16x128xf32>
    %c0_404 = arith.constant 0 : index
    %c0_405 = arith.constant 0 : index
    %908 = vector.load %arg38[%c0_404, %c0_405] : memref<1x128xf32, #tpu.memory_space<vmem>>, vector<1x128xf32>
    %909 = vector.broadcast %908 : vector<1x128xf32> to vector<16x128xf32>
    %910 = arith.addf %907, %909 : vector<16x128xf32>
    %c0_406 = arith.constant 0 : index
    %c0_407 = arith.constant 0 : index
    %911 = vector.load %arg40[%c0_406, %c0_407] : memref<16x128xf32, #tpu.memory_space<vmem>>, vector<16x128xf32>
    tpu.vector_store %arg40[%c0_406, %c0_407], %910 {strides = array<i32>} : memref<16x128xf32, #tpu.memory_space<vmem>>, vector<16x128xf32>,
    return
  }
}

</mosaic_0001>

<llo_original>
// kernel: _forward_impl.1
$region0: #{_forward_impl.1}
  #allocation0 [shape = 'u32[]', space=smem, size = 0x4, offset = 0x4, fixed_abs, tag = 'smem constant byte address 0x4 - core index']
  #allocation1 [shape = 'u32[72,128]{1,0:T(1,128)}', space=vmem, size = 0x9000, scoped, tag = 'internal scratch']
  %s0 = inlined_call_operand.smem [shape: u32[41], index: -1, kind: input, shape index: {}]
  %s1 = sld [smem:[%s0]]
  %s2 = scalar_lea.smem %s0, 1
  %s3 = sld [smem:[%s2]]
  %s4 = scalar_lea.smem %s0, 2
  %s5 = sld [smem:[%s4]]
  %s6 = scalar_lea.smem %s0, 3
  %s7 = sld [smem:[%s6]]
  %s8 = scalar_lea.smem %s0, 4
  %s9 = sld [smem:[%s8]]
  %s10 = scalar_lea.smem %s0, 5
  %s11 = sld [smem:[%s10]]
  %s12 = scalar_lea.smem %s0, 6
  %s13 = sld [smem:[%s12]]
  %s14 = scalar_lea.smem %s0, 7
  %s15 = sld [smem:[%s14]]
  %s16 = scalar_lea.smem %s0, 8
  %s17 = sld [smem:[%s16]]
  %s18 = scalar_lea.smem %s0, 9
  %s19 = sld [smem:[%s18]]
  %s20 = scalar_lea.smem %s0, 10
  %s21 = sld [smem:[%s20]]
  %s22 = scalar_lea.smem %s0, 11
  %s23 = sld [smem:[%s22]]
  %s24 = scalar_lea.smem %s0, 12
  %s25 = sld [smem:[%s24]]
  %s26 = scalar_lea.smem %s0, 13
  %s27 = sld [smem:[%s26]]
  %s28 = scalar_lea.smem %s0, 14
  %s29 = sld [smem:[%s28]]
  %s30 = scalar_lea.smem %s0, 15
  %s31 = sld [smem:[%s30]]
  %s32 = scalar_lea.smem %s0, 16
  %s33 = sld [smem:[%s32]]
  %s34 = scalar_lea.smem %s0, 17
  %s35 = sld [smem:[%s34]]
  %s36 = scalar_lea.smem %s0, 18
  %s37 = sld [smem:[%s36]]
  %s38 = scalar_lea.smem %s0, 19
  %s39 = sld [smem:[%s38]]
  %s40 = scalar_lea.smem %s0, 20
  %s41 = sld [smem:[%s40]]
  %s42 = scalar_lea.smem %s0, 21
  %s43 = sld [smem:[%s42]]
  %s44 = scalar_lea.smem %s0, 22
  %s45 = sld [smem:[%s44]]
  %s46 = scalar_lea.smem %s0, 23
  %s47 = sld [smem:[%s46]]
  %s48 = scalar_lea.smem %s0, 24
  %s49 = sld [smem:[%s48]]
  %s50 = scalar_lea.smem %s0, 25
  %s51 = sld [smem:[%s50]]
  %s52 = scalar_lea.smem %s0, 26
  %s53 = sld [smem:[%s52]]
  %s54 = scalar_lea.smem %s0, 27
  %s55 = sld [smem:[%s54]]
  %s56 = scalar_lea.smem %s0, 28
  %s57 = sld [smem:[%s56]]
  %s58 = scalar_lea.smem %s0, 29
  %s59 = sld [smem:[%s58]]
  %s60 = scalar_lea.smem %s0, 30
  %s61 = sld [smem:[%s60]]
  %s62 = scalar_lea.smem %s0, 31
  %s63 = sld [smem:[%s62]]
  %s64 = scalar_lea.smem %s0, 32
  %s65 = sld [smem:[%s64]]
  %s66 = scalar_lea.smem %s0, 33
  %s67 = sld [smem:[%s66]]
  %s68 = scalar_lea.smem %s0, 34
  %s69 = sld [smem:[%s68]]
  %s70 = scalar_lea.smem %s0, 35
  %s71 = sld [smem:[%s70]]
  %s72 = scalar_lea.smem %s0, 36
  %s73 = sld [smem:[%s72]]
  %s74 = scalar_lea.smem %s0, 37
  %s75 = sld [smem:[%s74]]
  %s76 = scalar_lea.smem %s0, 38
  %s77 = sld [smem:[%s76]]
  %s78 = scalar_lea.smem %s0, 39
  %s79 = sld [smem:[%s78]]
  %s80 = scalar_lea.smem %s0, 40
  %s81 = sld [smem:[%s80]]
  %82 = xla_tuple %s79, %s81
  %s83 = sld [smem:[#allocation0]]
  $region222: #{_forward_impl.1} parent=0
    _
  %s85 = ssub.s32 1, %s83
  %s86 = scalar_select 0, %s85, %s83
  $region1: #{_forward_impl.1} parent=0
    #allocation2 [shape = 'u8[393216]{0}', space=vmem, size = 0x60000, scoped, tag = 'input window, operand 3, single buffered']
    #allocation3 [shape = 's32[1]{0}', space=sflag, size = 0x4, scoped, tag = 'scoped memory for _forward_impl.1']
    #allocation4 [shape = 's32[1]{0}', space=sflag, size = 0x4, scoped, tag = 'scoped memory for _forward_impl.1']
    #allocation5 [shape = 'u8[131072]{0}', space=vmem, size = 0x20000, scoped, tag = 'input window, operand 5, single buffered']
    #allocation6 [shape = 's32[1]{0}', space=sflag, size = 0x4, scoped, tag = 'scoped memory for _forward_impl.1']
    #allocation7 [shape = 'u8[262144]{0}', space=vmem, size = 0x40000, scoped, tag = 'input window, operand 9, single buffered']
    #allocation8 [shape = 'u8[262144]{0}', space=vmem, size = 0x40000, scoped, tag = 'input window, operand 11, single buffered']
    #allocation9 [shape = 's32[1]{0}', space=sflag, size = 0x4, scoped, tag = 'scoped memory for _forward_impl.1']
    #allocation10 [shape = 'u8[393216]{0}', space=vmem, size = 0x60000, scoped, tag = 'input window, operand 15, single buffered']
    #allocation11 [shape = 'u8[131072]{0}', space=vmem, size = 0x20000, scoped, tag = 'input window, operand 17, single buffered']
    #allocation12 [shape = 's32[1]{0}', space=sflag, size = 0x4, scoped, tag = 'scoped memory for _forward_impl.1']
    #allocation13 [shape = 'u8[393216]{0}', space=vmem, size = 0x60000, scoped, tag = 'input window, operand 21, single buffered']
    #allocation14 [shape = 'u8[131072]{0}', space=vmem, size = 0x20000, scoped, tag = 'input window, operand 23, single buffered']
    #allocation15 [shape = 's32[1]{0}', space=sflag, size = 0x4, scoped, tag = 'scoped memory for _forward_impl.1']
    #allocation16 [shape = 'u8[262144]{0}', space=vmem, size = 0x40000, scoped, tag = 'input window, operand 27, single buffered']
    #allocation17 [shape = 'u8[262144]{0}', space=vmem, size = 0x40000, scoped, tag = 'input window, operand 29, single buffered']
    #allocation18 [shape = 's32[1]{0}', space=sflag, size = 0x4, scoped, tag = 'scoped memory for _forward_impl.1']
    #allocation19 [shape = 'u8[524288]{0}', space=vmem, size = 0x80000, scoped, tag = 'input window, operand 35, single buffered']
    #allocation20 [shape = 'u8[65536]{0}', space=vmem, size = 0x10000, scoped, tag = 'input window, operand 37, single buffered']
    #allocation21 [shape = 's32[1]{0}', space=sflag, size = 0x4, scoped, tag = 'scoped memory for _forward_impl.1']
    #allocation22 [shape = 'u8[1024]{0}', space=vmem, size = 0x400, scoped, tag = 'output window, operand 0, single buffered']
    %87 = vsyncpa [#allocation3], 0
    %88 = vsyncpa [#allocation6], 0
    %89 = vsyncpa [#allocation9], 0
    %90 = vsyncpa [#allocation12], 0
    %91 = vsyncpa [#allocation15], 0
    %92 = vsyncpa [#allocation18], 0
    %93 = vsyncpa [#allocation21], 0
    %94 = vsyncpa [#allocation4], 0
    // Predicated region
    $region2: #{_forward_impl.1} parent=1 // pred_check
      _
    $region3: #{_forward_impl.1} parent=1 // pred_check_branch
      %96 = sbr.rel (0) target = $region5
    $region4: #{_forward_impl.1} parent=1 // pred_region
      _
    $region5: #{_forward_impl.1} parent=1 // pred_fallthru
      _
    // Predicated region
    $region6: #{_forward_impl.1} parent=1 // pred_check
      _
    $region7: #{_forward_impl.1} parent=1 // pred_check_branch
      %98 = sbr.rel (0) target = $region9
    $region8: #{_forward_impl.1} parent=1 // pred_region
      _
    $region9: #{_forward_impl.1} parent=1 // pred_fallthru
      _
    // Predicated region
    $region10: #{_forward_impl.1} parent=1 // pred_check
      _
    $region11: #{_forward_impl.1} parent=1 // pred_check_branch
      %100 = sbr.rel (0) target = $region13
    $region12: #{_forward_impl.1} parent=1 // pred_region
      _
    $region13: #{_forward_impl.1} parent=1 // pred_fallthru
      _
    // Predicated region
    $region14: #{_forward_impl.1} parent=1 // pred_check
      _
    $region15: #{_forward_impl.1} parent=1 // pred_check_branch
      %102 = sbr.rel (0) target = $region17
    $region16: #{_forward_impl.1} parent=1 // pred_region
      %104 = vsyncadd [#allocation3], 0
      %s105 = sshll.u32 %s7, 4
      %s106 = int_to_ptr.hbm [resolvable:$true] %s105
      %s107 = sshll.u32 [#allocation2], 4
      %s108 = int_to_ptr.vmem [resolvable:$true] %s107
      %113 = dma.hbm_to_vmem [thread:$0]  %s106, 12288, %s108, [#allocation3], 384, 384, 24
    $region17: #{_forward_impl.1} parent=1 // pred_fallthru
      _
    // Predicated region
    $region18: #{_forward_impl.1} parent=1 // pred_check
      _
    $region19: #{_forward_impl.1} parent=1 // pred_check_branch
      %115 = sbr.rel (0) target = $region21
    $region20: #{_forward_impl.1} parent=1 // pred_region
      _
    $region21: #{_forward_impl.1} parent=1 // pred_fallthru
      _
    // Predicated region
    $region22: #{_forward_impl.1} parent=1 // pred_check
      _
    $region23: #{_forward_impl.1} parent=1 // pred_check_branch
      %117 = sbr.rel (0) target = $region25
    $region24: #{_forward_impl.1} parent=1 // pred_region
      %119 = vsyncadd [#allocation6], 0
      %s120 = sshll.u32 %s11, 4
      %s121 = int_to_ptr.hbm [resolvable:$true] %s120
      %s122 = sshll.u32 [#allocation5], 4
      %s123 = int_to_ptr.vmem [resolvable:$true] %s122
      %128 = dma.hbm_to_vmem [thread:$0]  %s121, 4096, %s123, [#allocation6], 128, 128, 8
    $region25: #{_forward_impl.1} parent=1 // pred_fallthru
      _
    // Predicated region
    $region26: #{_forward_impl.1} parent=1 // pred_check
      _
    $region27: #{_forward_impl.1} parent=1 // pred_check_branch
      %130 = sbr.rel (0) target = $region29
    $region28: #{_forward_impl.1} parent=1 // pred_region
      _
    $region29: #{_forward_impl.1} parent=1 // pred_fallthru
      _
    // Predicated region
    $region30: #{_forward_impl.1} parent=1 // pred_check
      _
    $region31: #{_forward_impl.1} parent=1 // pred_check_branch
      %132 = sbr.rel (0) target = $region33
    $region32: #{_forward_impl.1} parent=1 // pred_region
      _
    $region33: #{_forward_impl.1} parent=1 // pred_fallthru
      _
    // Predicated region
    $region34: #{_forward_impl.1} parent=1 // pred_check
      _
    $region35: #{_forward_impl.1} parent=1 // pred_check_branch
      %134 = sbr.rel (0) target = $region37
    $region36: #{_forward_impl.1} parent=1 // pred_region
      _
    $region37: #{_forward_impl.1} parent=1 // pred_fallthru
      _
    // Predicated region
    $region38: #{_forward_impl.1} parent=1 // pred_check
      _
    $region39: #{_forward_impl.1} parent=1 // pred_check_branch
      %136 = sbr.rel (0) target = $region41
    $region40: #{_forward_impl.1} parent=1 // pred_region
      %138 = vsyncadd [#allocation6], 0
      %s139 = sshll.u32 %s19, 4
      %s140 = int_to_ptr.hbm [resolvable:$true] %s139
      %s141 = sshll.u32 [#allocation7], 4
      %s142 = int_to_ptr.vmem [resolvable:$true] %s141
      %147 = dma.hbm_to_vmem [thread:$0]  %s140, 8192, %s142, [#allocation6], 256, 256, 16
    $region41: #{_forward_impl.1} parent=1 // pred_fallthru
      _
    // Predicated region
    $region42: #{_forward_impl.1} parent=1 // pred_check
      _
    $region43: #{_forward_impl.1} parent=1 // pred_check_branch
      %149 = sbr.rel (0) target = $region45
    $region44: #{_forward_impl.1} parent=1 // pred_region
      _
    $region45: #{_forward_impl.1} parent=1 // pred_fallthru
      _
    // Predicated region
    $region46: #{_forward_impl.1} parent=1 // pred_check
      _
    $region47: #{_forward_impl.1} parent=1 // pred_check_branch
      %151 = sbr.rel (0) target = $region49
    $region48: #{_forward_impl.1} parent=1 // pred_region
      %153 = vsyncadd [#allocation9], 0
      %s154 = sshll.u32 %s23, 4
      %s155 = int_to_ptr.hbm [resolvable:$true] %s154
      %s156 = sshll.u32 [#allocation8], 4
      %s157 = int_to_ptr.vmem [resolvable:$true] %s156
      %162 = dma.hbm_to_vmem [thread:$0]  %s155, 8192, %s157, [#allocation9], 128, 128, 8
    $region49: #{_forward_impl.1} parent=1 // pred_fallthru
      _
    // Predicated region
    $region50: #{_forward_impl.1} parent=1 // pred_check
      _
    $region51: #{_forward_impl.1} parent=1 // pred_check_branch
      %164 = sbr.rel (0) target = $region53
    $region52: #{_forward_impl.1} parent=1 // pred_region
      _
    $region53: #{_forward_impl.1} parent=1 // pred_fallthru
      _
    // Predicated region
    $region54: #{_forward_impl.1} parent=1 // pred_check
      _
    $region55: #{_forward_impl.1} parent=1 // pred_check_branch
      %166 = sbr.rel (0) target = $region57
    $region56: #{_forward_impl.1} parent=1 // pred_region
      _
    $region57: #{_forward_impl.1} parent=1 // pred_fallthru
      _
    // Predicated region
    $region58: #{_forward_impl.1} parent=1 // pred_check
      _
    $region59: #{_forward_impl.1} parent=1 // pred_check_branch
      %168 = sbr.rel (0) target = $region61
    $region60: #{_forward_impl.1} parent=1 // pred_region
      _
    $region61: #{_forward_impl.1} parent=1 // pred_fallthru
      _
    // Predicated region
    $region62: #{_forward_impl.1} parent=1 // pred_check
      _
    $region63: #{_forward_impl.1} parent=1 // pred_check_branch
      %170 = sbr.rel (0) target = $region65
    $region64: #{_forward_impl.1} parent=1 // pred_region
      %172 = vsyncadd [#allocation9], 0
      %s173 = sshll.u32 %s31, 4
      %s174 = int_to_ptr.hbm [resolvable:$true] %s173
      %s175 = sshll.u32 [#allocation10], 4
      %s176 = int_to_ptr.vmem [resolvable:$true] %s175
      %181 = dma.hbm_to_vmem [thread:$0]  %s174, 12288, %s176, [#allocation9], 384, 384, 24
    $region65: #{_forward_impl.1} parent=1 // pred_fallthru
      _
    // Predicated region
    $region66: #{_forward_impl.1} parent=1 // pred_check
      _
    $region67: #{_forward_impl.1} parent=1 // pred_check_branch
      %183 = sbr.rel (0) target = $region69
    $region68: #{_forward_impl.1} parent=1 // pred_region
      _
    $region69: #{_forward_impl.1} parent=1 // pred_fallthru
      _
    // Predicated region
    $region70: #{_forward_impl.1} parent=1 // pred_check
      _
    $region71: #{_forward_impl.1} parent=1 // pred_check_branch
      %185 = sbr.rel (0) target = $region73
    $region72: #{_forward_impl.1} parent=1 // pred_region
      %187 = vsyncadd [#allocation12], 0
      %s188 = sshll.u32 %s35, 4
      %s189 = int_to_ptr.hbm [resolvable:$true] %s188
      %s190 = sshll.u32 [#allocation11], 4
      %s191 = int_to_ptr.vmem [resolvable:$true] %s190
      %196 = dma.hbm_to_vmem [thread:$0]  %s189, 4096, %s191, [#allocation12], 128, 128, 8
    $region73: #{_forward_impl.1} parent=1 // pred_fallthru
      _
    // Predicated region
    $region74: #{_forward_impl.1} parent=1 // pred_check
      _
    $region75: #{_forward_impl.1} parent=1 // pred_check_branch
      %198 = sbr.rel (0) target = $region77
    $region76: #{_forward_impl.1} parent=1 // pred_region
      _
    $region77: #{_forward_impl.1} parent=1 // pred_fallthru
      _
    // Predicated region
    $region78: #{_forward_impl.1} parent=1 // pred_check
      _
    $region79: #{_forward_impl.1} parent=1 // pred_check_branch
      %200 = sbr.rel (0) target = $region81
    $region80: #{_forward_impl.1} parent=1 // pred_region
      _
    $region81: #{_forward_impl.1} parent=1 // pred_fallthru
      _
    // Predicated region
    $region82: #{_forward_impl.1} parent=1 // pred_check
      _
    $region83: #{_forward_impl.1} parent=1 // pred_check_branch
      %202 = sbr.rel (0) target = $region85
    $region84: #{_forward_impl.1} parent=1 // pred_region
      _
    $region85: #{_forward_impl.1} parent=1 // pred_fallthru
      _
    // Predicated region
    $region86: #{_forward_impl.1} parent=1 // pred_check
      _
    $region87: #{_forward_impl.1} parent=1 // pred_check_branch
      %204 = sbr.rel (0) target = $region89
    $region88: #{_forward_impl.1} parent=1 // pred_region
      %206 = vsyncadd [#allocation12], 0
      %s207 = sshll.u32 %s43, 4
      %s208 = int_to_ptr.hbm [resolvable:$true] %s207
      %s209 = sshll.u32 [#allocation13], 4
      %s210 = int_to_ptr.vmem [resolvable:$true] %s209
      %215 = dma.hbm_to_vmem [thread:$0]  %s208, 12288, %s210, [#allocation12], 384, 384, 24
    $region89: #{_forward_impl.1} parent=1 // pred_fallthru
      _
    // Predicated region
    $region90: #{_forward_impl.1} parent=1 // pred_check
      _
    $region91: #{_forward_impl.1} parent=1 // pred_check_branch
      %217 = sbr.rel (0) target = $region93
    $region92: #{_forward_impl.1} parent=1 // pred_region
      _
    $region93: #{_forward_impl.1} parent=1 // pred_fallthru
      _
    // Predicated region
    $region94: #{_forward_impl.1} parent=1 // pred_check
      _
    $region95: #{_forward_impl.1} parent=1 // pred_check_branch
      %219 = sbr.rel (0) target = $region97
    $region96: #{_forward_impl.1} parent=1 // pred_region
      %221 = vsyncadd [#allocation15], 0
      %s222 = sshll.u32 %s47, 4
      %s223 = int_to_ptr.hbm [resolvable:$true] %s222
      %s224 = sshll.u32 [#allocation14], 4
      %s225 = int_to_ptr.vmem [resolvable:$true] %s224
      %230 = dma.hbm_to_vmem [thread:$0]  %s223, 4096, %s225, [#allocation15], 128, 128, 8
    $region97: #{_forward_impl.1} parent=1 // pred_fallthru
      _
    // Predicated region
    $region98: #{_forward_impl.1} parent=1 // pred_check
      _
    $region99: #{_forward_impl.1} parent=1 // pred_check_branch
      %232 = sbr.rel (0) target = $region101
    $region100: #{_forward_impl.1} parent=1 // pred_region
      _
    $region101: #{_forward_impl.1} parent=1 // pred_fallthru
      _
    // Predicated region
    $region102: #{_forward_impl.1} parent=1 // pred_check
      _
    $region103: #{_forward_impl.1} parent=1 // pred_check_branch
      %234 = sbr.rel (0) target = $region105
    $region104: #{_forward_impl.1} parent=1 // pred_region
      _
    $region105: #{_forward_impl.1} parent=1 // pred_fallthru
      _
    // Predicated region
    $region106: #{_forward_impl.1} parent=1 // pred_check
      _
    $region107: #{_forward_impl.1} parent=1 // pred_check_branch
      %236 = sbr.rel (0) target = $region109
    $region108: #{_forward_impl.1} parent=1 // pred_region
      _
    $region109: #{_forward_impl.1} parent=1 // pred_fallthru
      _
    // Predicated region
    $region110: #{_forward_impl.1} parent=1 // pred_check
      _
    $region111: #{_forward_impl.1} parent=1 // pred_check_branch
      %238 = sbr.rel (0) target = $region113
    $region112: #{_forward_impl.1} parent=1 // pred_region
      %240 = vsyncadd [#allocation15], 0
      %s241 = sshll.u32 %s55, 4
      %s242 = int_to_ptr.hbm [resolvable:$true] %s241
      %s243 = sshll.u32 [#allocation16], 4
      %s244 = int_to_ptr.vmem [resolvable:$true] %s243
      %249 = dma.hbm_to_vmem [thread:$0]  %s242, 8192, %s244, [#allocation15], 256, 256, 16
    $region113: #{_forward_impl.1} parent=1 // pred_fallthru
      _
    // Predicated region
    $region114: #{_forward_impl.1} parent=1 // pred_check
      _
    $region115: #{_forward_impl.1} parent=1 // pred_check_branch
      %251 = sbr.rel (0) target = $region117
    $region116: #{_forward_impl.1} parent=1 // pred_region
      _
    $region117: #{_forward_impl.1} parent=1 // pred_fallthru
      _
    // Predicated region
    $region118: #{_forward_impl.1} parent=1 // pred_check
      _
    $region119: #{_forward_impl.1} parent=1 // pred_check_branch
      %253 = sbr.rel (0) target = $region121
    $region120: #{_forward_impl.1} parent=1 // pred_region
      %255 = vsyncadd [#allocation18], 0
      %s256 = sshll.u32 %s59, 4
      %s257 = int_to_ptr.hbm [resolvable:$true] %s256
      %s258 = sshll.u32 [#allocation17], 4
      %s259 = int_to_ptr.vmem [resolvable:$true] %s258
      %264 = dma.hbm_to_vmem [thread:$0]  %s257, 8192, %s259, [#allocation18], 128, 128, 8
    $region121: #{_forward_impl.1} parent=1 // pred_fallthru
      _
    // Predicated region
    $region122: #{_forward_impl.1} parent=1 // pred_check
      _
    $region123: #{_forward_impl.1} parent=1 // pred_check_branch
      %266 = sbr.rel (0) target = $region125
    $region124: #{_forward_impl.1} parent=1 // pred_region
      _
    $region125: #{_forward_impl.1} parent=1 // pred_fallthru
      _
    // Predicated region
    $region126: #{_forward_impl.1} parent=1 // pred_check
      _
    $region127: #{_forward_impl.1} parent=1 // pred_check_branch
      %268 = sbr.rel (0) target = $region129
    $region128: #{_forward_impl.1} parent=1 // pred_region
      _
    $region129: #{_forward_impl.1} parent=1 // pred_fallthru
      _
    // Predicated region
    $region130: #{_forward_impl.1} parent=1 // pred_check
      _
    $region131: #{_forward_impl.1} parent=1 // pred_check_branch
      %270 = sbr.rel (0) target = $region133
    $region132: #{_forward_impl.1} parent=1 // pred_region
      _
    $region133: #{_forward_impl.1} parent=1 // pred_fallthru
      _
    // Predicated region
    $region134: #{_forward_impl.1} parent=1 // pred_check
      _
    $region135: #{_forward_impl.1} parent=1 // pred_check_branch
      %272 = sbr.rel (0) target = $region137
    $region136: #{_forward_impl.1} parent=1 // pred_region
      _
    $region137: #{_forward_impl.1} parent=1 // pred_fallthru
      _
    // Predicated region
    $region138: #{_forward_impl.1} parent=1 // pred_check
      _
    $region139: #{_forward_impl.1} parent=1 // pred_check_branch
      %274 = sbr.rel (0) target = $region141
    $region140: #{_forward_impl.1} parent=1 // pred_region
      _
    $region141: #{_forward_impl.1} parent=1 // pred_fallthru
      _
    // Predicated region
    $region142: #{_forward_impl.1} parent=1 // pred_check
      _
    $region143: #{_forward_impl.1} parent=1 // pred_check_branch
      %276 = sbr.rel (0) target = $region145
    $region144: #{_forward_impl.1} parent=1 // pred_region
      %278 = vsyncadd [#allocation18], 0
      %s279 = sshll.u32 %s71, 4
      %s280 = int_to_ptr.hbm [resolvable:$true] %s279
      %s281 = sshll.u32 [#allocation19], 4
      %s282 = int_to_ptr.vmem [resolvable:$true] %s281
      %287 = dma.hbm_to_vmem [thread:$0]  %s280, 16384, %s282, [#allocation18], 1024, 1024, 64
    $region145: #{_forward_impl.1} parent=1 // pred_fallthru
      _
    // Predicated region
    $region146: #{_forward_impl.1} parent=1 // pred_check
      _
    $region147: #{_forward_impl.1} parent=1 // pred_check_branch
      %289 = sbr.rel (0) target = $region149
    $region148: #{_forward_impl.1} parent=1 // pred_region
      _
    $region149: #{_forward_impl.1} parent=1 // pred_fallthru
      _
    // Predicated region
    $region150: #{_forward_impl.1} parent=1 // pred_check
      _
    $region151: #{_forward_impl.1} parent=1 // pred_check_branch
      %291 = sbr.rel (0) target = $region153
    $region152: #{_forward_impl.1} parent=1 // pred_region
      %293 = vsyncadd [#allocation21], 0
      %s294 = sshll.u32 %s75, 4
      %s295 = int_to_ptr.hbm [resolvable:$true] %s294
      %s296 = sshll.u32 [#allocation20], 4
      %s297 = int_to_ptr.vmem [resolvable:$true] %s296
      %302 = dma.hbm_to_vmem [thread:$0]  %s295, 2048, %s297, [#allocation21], 128, 128, 8
    $region153: #{_forward_impl.1} parent=1 // pred_fallthru
      _
    // Predicated region
    $region154: #{_forward_impl.1} parent=1 // pred_check
      _
    $region155: #{_forward_impl.1} parent=1 // pred_check_branch
      %304 = sbr.rel (0) target = $region157
    $region156: #{_forward_impl.1} parent=1 // pred_region
      _
    $region157: #{_forward_impl.1} parent=1 // pred_fallthru
      _
    // Predicated region
    $region158: #{_forward_impl.1} parent=1 // pred_check
      _
    $region159: #{_forward_impl.1} parent=1 // pred_check_branch
      %306 = sbr.rel (0) target = $region161
    $region160: #{_forward_impl.1} parent=1 // pred_region
      %308 = dma.done [#allocation3], 12288
    $region161: #{_forward_impl.1} parent=1 // pred_fallthru
      _
    // Predicated region
    $region162: #{_forward_impl.1} parent=1 // pred_check
      _
    $region163: #{_forward_impl.1} parent=1 // pred_check_branch
      %310 = sbr.rel (0) target = $region165
    $region164: #{_forward_impl.1} parent=1 // pred_region
      %312 = dma.done [#allocation6], 4096
    $region165: #{_forward_impl.1} parent=1 // pred_fallthru
      _
    // Predicated region
    $region166: #{_forward_impl.1} parent=1 // pred_check
      _
    $region167: #{_forward_impl.1} parent=1 // pred_check_branch
      %314 = sbr.rel (0) target = $region169
    $region168: #{_forward_impl.1} parent=1 // pred_region
      %316 = dma.done [#allocation6], 8192
    $region169: #{_forward_impl.1} parent=1 // pred_fallthru
      _
    // Predicated region
    $region170: #{_forward_impl.1} parent=1 // pred_check
      _
    $region171: #{_forward_impl.1} parent=1 // pred_check_branch
      %318 = sbr.rel (0) target = $region173
    $region172: #{_forward_impl.1} parent=1 // pred_region
      %320 = dma.done [#allocation9], 8192
    $region173: #{_forward_impl.1} parent=1 // pred_fallthru
      _
    // Predicated region
    $region174: #{_forward_impl.1} parent=1 // pred_check
      _
    $region175: #{_forward_impl.1} parent=1 // pred_check_branch
      %322 = sbr.rel (0) target = $region177
    $region176: #{_forward_impl.1} parent=1 // pred_region
      %324 = dma.done [#allocation9], 12288
    $region177: #{_forward_impl.1} parent=1 // pred_fallthru
      _
    // Predicated region
    $region178: #{_forward_impl.1} parent=1 // pred_check
      _
    $region179: #{_forward_impl.1} parent=1 // pred_check_branch
      %326 = sbr.rel (0) target = $region181
    $region180: #{_forward_impl.1} parent=1 // pred_region
      %328 = dma.done [#allocation12], 4096
    $region181: #{_forward_impl.1} parent=1 // pred_fallthru
      _
    // Predicated region
    $region182: #{_forward_impl.1} parent=1 // pred_check
      _
    $region183: #{_forward_impl.1} parent=1 // pred_check_branch
      %330 = sbr.rel (0) target = $region185
    $region184: #{_forward_impl.1} parent=1 // pred_region
      %332 = dma.done [#allocation12], 12288
    $region185: #{_forward_impl.1} parent=1 // pred_fallthru
      _
    // Predicated region
    $region186: #{_forward_impl.1} parent=1 // pred_check
      _
    $region187: #{_forward_impl.1} parent=1 // pred_check_branch
      %334 = sbr.rel (0) target = $region189
    $region188: #{_forward_impl.1} parent=1 // pred_region
      %336 = dma.done [#allocation15], 4096
    $region189: #{_forward_impl.1} parent=1 // pred_fallthru
      _
    // Predicated region
    $region190: #{_forward_impl.1} parent=1 // pred_check
      _
    $region191: #{_forward_impl.1} parent=1 // pred_check_branch
      %338 = sbr.rel (0) target = $region193
    $region192: #{_forward_impl.1} parent=1 // pred_region
      %340 = dma.done [#allocation15], 8192
    $region193: #{_forward_impl.1} parent=1 // pred_fallthru
      _
    // Predicated region
    $region194: #{_forward_impl.1} parent=1 // pred_check
      _
    $region195: #{_forward_impl.1} parent=1 // pred_check_branch
      %342 = sbr.rel (0) target = $region197
    $region196: #{_forward_impl.1} parent=1 // pred_region
      %344 = dma.done [#allocation18], 8192
    $region197: #{_forward_impl.1} parent=1 // pred_fallthru
      _
    // Predicated region
    $region198: #{_forward_impl.1} parent=1 // pred_check
      _
    $region199: #{_forward_impl.1} parent=1 // pred_check_branch
      %346 = sbr.rel (0) target = $region201
    $region200: #{_forward_impl.1} parent=1 // pred_region
      %348 = dma.done [#allocation18], 16384
    $region201: #{_forward_impl.1} parent=1 // pred_fallthru
      _
    // Predicated region
    $region202: #{_forward_impl.1} parent=1 // pred_check
      _
    $region203: #{_forward_impl.1} parent=1 // pred_check_branch
      %350 = sbr.rel (0) target = $region205
    $region204: #{_forward_impl.1} parent=1 // pred_region
      %352 = dma.done [#allocation21], 2048
    $region205: #{_forward_impl.1} parent=1 // pred_fallthru
      _
    %v353 = vld [vmem:[%s3] sm:$0xff]
    %v354 = vld [vmem:[%s3 + $0x8] sm:$0xff]
    %v355 = vld [vmem:[%s1] sm:$0xff]
    %v356 = vld [vmem:[%s1 + $0x8] sm:$0xff]
    %v357 = vld [vmem:[#allocation2] sm:$0xff]
    %v358 = vld [vmem:[#allocation2 + $0x8] sm:$0xff]
    %v359 = vld [vmem:[#allocation2 + $0x10] sm:$0xff]
    %v360 = vld [vmem:[#allocation2 + $0x18] sm:$0xff]
    %v361 = vld [vmem:[#allocation2 + $0x20] sm:$0xff]
    %v362 = vld [vmem:[#allocation2 + $0x28] sm:$0xff]
    %v363 = vld [vmem:[#allocation2 + $0x30] sm:$0xff]
    %v364 = vld [vmem:[#allocation2 + $0x38] sm:$0xff]
    %v365 = vld [vmem:[#allocation2 + $0x40] sm:$0xff]
    %v366 = vld [vmem:[#allocation2 + $0x48] sm:$0xff]
    %v367 = vld [vmem:[#allocation2 + $0x50] sm:$0xff]
    %v368 = vld [vmem:[#allocation2 + $0x58] sm:$0xff]
    %v369 = vld [vmem:[#allocation2 + $0x60] sm:$0xff]
    %v370 = vld [vmem:[#allocation2 + $0x68] sm:$0xff]
    %v371 = vld [vmem:[#allocation2 + $0x70] sm:$0xff]
    %v372 = vld [vmem:[#allocation2 + $0x78] sm:$0xff]
    %v373 = vld [vmem:[#allocation2 + $0x80] sm:$0xff]
    %v374 = vld [vmem:[#allocation2 + $0x88] sm:$0xff]
    %v375 = vld [vmem:[#allocation2 + $0x90] sm:$0xff]
    %v376 = vld [vmem:[#allocation2 + $0x98] sm:$0xff]
    %v377 = vld [vmem:[#allocation2 + $0xa0] sm:$0xff]
    %v378 = vld [vmem:[#allocation2 + $0xa8] sm:$0xff]
    %v379 = vld [vmem:[#allocation2 + $0xb0] sm:$0xff]
    %v380 = vld [vmem:[#allocation2 + $0xb8] sm:$0xff]
    %v381 = vld [vmem:[#allocation2 + $0xc0] sm:$0xff]
    %v382 = vld [vmem:[#allocation2 + $0xc8] sm:$0xff]
    %v383 = vld [vmem:[#allocation2 + $0xd0] sm:$0xff]
    %v384 = vld [vmem:[#allocation2 + $0xd8] sm:$0xff]
    %v385 = vld [vmem:[#allocation2 + $0xe0] sm:$0xff]
    %v386 = vld [vmem:[#allocation2 + $0xe8] sm:$0xff]
    %v387 = vld [vmem:[#allocation2 + $0xf0] sm:$0xff]
    %v388 = vld [vmem:[#allocation2 + $0xf8] sm:$0xff]
    %v389 = vld [vmem:[#allocation2 + $0x100] sm:$0xff]
    %v390 = vld [vmem:[#allocation2 + $0x108] sm:$0xff]
    %v391 = vld [vmem:[#allocation2 + $0x110] sm:$0xff]
    %v392 = vld [vmem:[#allocation2 + $0x118] sm:$0xff]
    %v393 = vld [vmem:[#allocation2 + $0x120] sm:$0xff]
    %v394 = vld [vmem:[#allocation2 + $0x128] sm:$0xff]
    %v395 = vld [vmem:[#allocation2 + $0x130] sm:$0xff]
    %v396 = vld [vmem:[#allocation2 + $0x138] sm:$0xff]
    %v397 = vld [vmem:[#allocation2 + $0x140] sm:$0xff]
    %v398 = vld [vmem:[#allocation2 + $0x148] sm:$0xff]
    %v399 = vld [vmem:[#allocation2 + $0x150] sm:$0xff]
    %v400 = vld [vmem:[#allocation2 + $0x158] sm:$0xff]
    %v401 = vld [vmem:[#allocation2 + $0x160] sm:$0xff]
    %v402 = vld [vmem:[#allocation2 + $0x168] sm:$0xff]
    %v403 = vld [vmem:[#allocation2 + $0x170] sm:$0xff]
    %v404 = vld [vmem:[#allocation2 + $0x178] sm:$0xff]
    %v405 = vld [vmem:[%s9] sm:$0x7]
    %v406 = vld [vmem:[#allocation5] sm:$0xff]
    %v407 = vld [vmem:[#allocation5 + $0x8] sm:$0xff]
    %v408 = vld [vmem:[#allocation5 + $0x10] sm:$0xff]
    %v409 = vld [vmem:[#allocation5 + $0x18] sm:$0xff]
    %v410 = vld [vmem:[#allocation5 + $0x20] sm:$0xff]
    %v411 = vld [vmem:[#allocation5 + $0x28] sm:$0xff]
    %v412 = vld [vmem:[#allocation5 + $0x30] sm:$0xff]
    %v413 = vld [vmem:[#allocation5 + $0x38] sm:$0xff]
    %v414 = vld [vmem:[#allocation5 + $0x40] sm:$0xff]
    %v415 = vld [vmem:[#allocation5 + $0x48] sm:$0xff]
    %v416 = vld [vmem:[#allocation5 + $0x50] sm:$0xff]
    %v417 = vld [vmem:[#allocation5 + $0x58] sm:$0xff]
    %v418 = vld [vmem:[#allocation5 + $0x60] sm:$0xff]
    %v419 = vld [vmem:[#allocation5 + $0x68] sm:$0xff]
    %v420 = vld [vmem:[#allocation5 + $0x70] sm:$0xff]
    %v421 = vld [vmem:[#allocation5 + $0x78] sm:$0xff]
    %v422 = vld [vmem:[%s13] sm:$0x1]
    %v424 = vperm.slane %v405, 0
    %v425 = vperm.slane %v405, 1
    %v426 = vperm.slane %v405, 2
    %430 = vmatpush.msra.mxu0 %v402
    %431 = vmatpush.msra.mxu0 %v399
    %432 = vmatpush.msra.mxu0 %v396
    %433 = vmatpush.msra.mxu0 %v393
    %434 = vmatpush.msra.mxu0 %v390
    %435 = vmatpush.msra.mxu0 %v387
    %436 = vmatpush.msra.mxu0 %v384
    %437 = vmatpush.msra.mxu0 %v381
    %438 = vmatpush.msra.mxu0 %v378
    %439 = vmatpush.msra.mxu0 %v375
    %440 = vmatpush.msra.mxu0 %v372
    %441 = vmatpush.msra.mxu0 %v369
    %442 = vmatpush.msra.mxu0 %v366
    %443 = vmatpush.msra.mxu0 %v363
    %444 = vmatpush.msra.mxu0 %v360
    %445 = vmatpush.msra.mxu0 %v357
    %446 = vmatmul.f32.gmra.mxu0 %v355
    %v447 = vpop.f32.mrf.mxu0
    %v448 = vadd.f32 %v424, %v447
    %449 = vmatmul.f32.gmra.mxu0 %v356
    %v450 = vpop.f32.mrf.mxu0
    %v451 = vadd.f32 %v424, %v450
    %452 = vdwg.mxu0
    %453 = vmatpush.msra.mxu0 %v403
    %454 = vmatpush.msra.mxu0 %v400
    %455 = vmatpush.msra.mxu0 %v397
    %456 = vmatpush.msra.mxu0 %v394
    %457 = vmatpush.msra.mxu0 %v391
    %458 = vmatpush.msra.mxu0 %v388
    %459 = vmatpush.msra.mxu0 %v385
    %460 = vmatpush.msra.mxu0 %v382
    %461 = vmatpush.msra.mxu0 %v379
    %462 = vmatpush.msra.mxu0 %v376
    %463 = vmatpush.msra.mxu0 %v373
    %464 = vmatpush.msra.mxu0 %v370
    %465 = vmatpush.msra.mxu0 %v367
    %466 = vmatpush.msra.mxu0 %v364
    %467 = vmatpush.msra.mxu0 %v361
    %468 = vmatpush.msra.mxu0 %v358
    %469 = vmatmul.f32.gmra.mxu0 %v355
    %v470 = vpop.f32.mrf.mxu0
    %v471 = vadd.f32 %v425, %v470
    %472 = vmatmul.f32.gmra.mxu0 %v356
    %v473 = vpop.f32.mrf.mxu0
    %v474 = vadd.f32 %v425, %v473
    %475 = vdwg.mxu0
    %476 = vmatpush.msra.mxu0 %v404
    %477 = vmatpush.msra.mxu0 %v401
    %478 = vmatpush.msra.mxu0 %v398
    %479 = vmatpush.msra.mxu0 %v395
    %480 = vmatpush.msra.mxu0 %v392
    %481 = vmatpush.msra.mxu0 %v389
    %482 = vmatpush.msra.mxu0 %v386
    %483 = vmatpush.msra.mxu0 %v383
    %484 = vmatpush.msra.mxu0 %v380
    %485 = vmatpush.msra.mxu0 %v377
    %486 = vmatpush.msra.mxu0 %v374
    %487 = vmatpush.msra.mxu0 %v371
    %488 = vmatpush.msra.mxu0 %v368
    %489 = vmatpush.msra.mxu0 %v365
    %490 = vmatpush.msra.mxu0 %v362
    %491 = vmatpush.msra.mxu0 %v359
    %492 = vmatmul.f32.gmra.mxu0 %v355
    %v493 = vpop.f32.mrf.mxu0
    %v494 = vadd.f32 %v426, %v493
    %495 = vmatmul.f32.gmra.mxu0 %v356
    %v496 = vpop.f32.mrf.mxu0
    %v497 = vadd.f32 %v426, %v496
    %498 = vdwg.mxu0
    %vm499 = vcmask 261120
    %v501 = vsel %vm499, %v448, 0
    %v504 = vsel %vm499, %v451, 0
    %v507 = vsel %vm499, %v471, 0
    %v510 = vsel %vm499, %v474, 0
    %512 = vmatpush.xpose.msra.mxu0 0.0
    %513 = vmatpush.xpose.msra.mxu0 0.0
    %514 = vmatpush.xpose.msra.mxu0 0.0
    %515 = vmatpush.xpose.msra.mxu0 0.0
    %516 = vmatpush.xpose.msra.mxu0 0.0
    %517 = vmatpush.xpose.msra.mxu0 0.0
    %518 = vmatpush.xpose.msra.mxu0 0.0
    %519 = vmatpush.xpose.msra.mxu0 0.0
    %520 = vmatpush.xpose.msra.mxu0 0.0
    %521 = vmatpush.xpose.msra.mxu0 0.0
    %522 = vmatpush.xpose.msra.mxu0 0.0
    %523 = vmatpush.xpose.msra.mxu0 0.0
    %524 = vmatpush.xpose.msra.mxu0 0.0
    %525 = vmatpush.xpose.msra.mxu0 0.0
    %526 = vmatpush.xpose.msra.mxu0 %v510
    %527 = vmatpush.xpose.msra.mxu0 %v507
    %528 = vmatmul.f32.gmra.mxu0 %v501
    %v529 = vpop.f32.mrf.mxu0
    %v530 = vadd.f32 0.0, %v529
    %531 = vmatmul.f32.gmra.mxu0 %v504
    %v532 = vpop.f32.mrf.mxu0
    %v533 = vadd.f32 0.0, %v532
    %534 = vdwg.mxu0
    %v535 = vmul.f32 %v530, 0.17677669
    %v536 = vmul.f32 %v533, 0.17677669
    %v537 = vadd.f32 %v535, %v353
    %v538 = vadd.f32 %v536, %v354
    %vm539 = vcmask 130048
    %v540 = vsel %vm539, %v537, -inf
    %541 = vmax.xlane.f32.xlu0 %v540
    %v542 = vpop.xlane.xlu0 %541
    %v543 = vsel %vm539, %v538, -inf
    %544 = vmax.xlane.f32.xlu0 %v543
    %v545 = vpop.xlane.xlu0 %544
    %v546 = vsub.f32 %v537, %v542
    %v547 = vsub.f32 %v538, %v545
    %v548 = vmul.f32 %v546, 1.442695
    %v549 = vpow.pop %v548
    %v550 = vmul.f32 %v547, 1.442695
    %v551 = vpow.pop %v550
    %v552 = vsel %vm539, %v549, 0.0
    %553 = vadd.xlane.f32.xlu0 %v552
    %v554 = vpop.xlane.xlu0 %553
    %v555 = vsel %vm539, %v551, 0.0
    %556 = vadd.xlane.f32.xlu0 %v555
    %v557 = vpop.xlane.xlu0 %556
    %v558 = vrcp.pop %v554
    %v559 = vrcp.pop %v557
    %v560 = vmul.f32 %v549, %v558
    %v561 = vmul.f32 %v551, %v559
    %v563 = vsel %vm539, %v560, 0
    %v566 = vsel %vm539, %v561, 0
    %568 = vmatpush.msra.mxu0 0.0
    %569 = vmatpush.msra.mxu0 0.0
    %570 = vmatpush.msra.mxu0 0.0
    %571 = vmatpush.msra.mxu0 0.0
    %572 = vmatpush.msra.mxu0 0.0
    %573 = vmatpush.msra.mxu0 0.0
    %574 = vmatpush.msra.mxu0 0.0
    %575 = vmatpush.msra.mxu0 0.0
    %576 = vmatpush.msra.mxu0 0.0
    %577 = vmatpush.msra.mxu0 0.0
    %578 = vmatpush.msra.mxu0 0.0
    %579 = vmatpush.msra.mxu0 0.0
    %580 = vmatpush.msra.mxu0 0.0
    %581 = vmatpush.msra.mxu0 0.0
    %582 = vmatpush.msra.mxu0 %v497
    %583 = vmatpush.msra.mxu0 %v494
    %584 = vmatmul.f32.gmra.mxu0 %v563
    %v585 = vpop.f32.mrf.mxu0
    %v586 = vadd.f32 0.0, %v585
    %587 = vmatmul.f32.gmra.mxu0 %v566
    %v588 = vpop.f32.mrf.mxu0
    %v589 = vadd.f32 0.0, %v588
    %590 = vdwg.mxu0
    %591 = vrot.lane.b32.xlu0 %v448, 96
    %v592 = vpop.permute.xlu0 %591
    %593 = vrot.lane.b32.xlu0 %v451, 96
    %v594 = vpop.permute.xlu0 %593
    %595 = vrot.lane.b32.xlu0 %v471, 96
    %v596 = vpop.permute.xlu0 %595
    %597 = vrot.lane.b32.xlu0 %v474, 96
    %v598 = vpop.permute.xlu0 %597
    %v599 = vsel %vm499, %v592, 0
    %v601 = vsel %vm499, %v594, 0
    %v603 = vsel %vm499, %v596, 0
    %v605 = vsel %vm499, %v598, 0
    %607 = vmatpush.xpose.msra.mxu0 0.0
    %608 = vmatpush.xpose.msra.mxu0 0.0
    %609 = vmatpush.xpose.msra.mxu0 0.0
    %610 = vmatpush.xpose.msra.mxu0 0.0
    %611 = vmatpush.xpose.msra.mxu0 0.0
    %612 = vmatpush.xpose.msra.mxu0 0.0
    %613 = vmatpush.xpose.msra.mxu0 0.0
    %614 = vmatpush.xpose.msra.mxu0 0.0
    %615 = vmatpush.xpose.msra.mxu0 0.0
    %616 = vmatpush.xpose.msra.mxu0 0.0
    %617 = vmatpush.xpose.msra.mxu0 0.0
    %618 = vmatpush.xpose.msra.mxu0 0.0
    %619 = vmatpush.xpose.msra.mxu0 0.0
    %620 = vmatpush.xpose.msra.mxu0 0.0
    %621 = vmatpush.xpose.msra.mxu0 %v605
    %622 = vmatpush.xpose.msra.mxu0 %v603
    %623 = vmatmul.f32.gmra.mxu0 %v599
    %v624 = vpop.f32.mrf.mxu0
    %v625 = vadd.f32 0.0, %v624
    %626 = vmatmul.f32.gmra.mxu0 %v601
    %v627 = vpop.f32.mrf.mxu0
    %v628 = vadd.f32 0.0, %v627
    %629 = vdwg.mxu0
    %v630 = vmul.f32 %v625, 0.17677669
    %v631 = vmul.f32 %v628, 0.17677669
    %v632 = vadd.f32 %v630, %v353
    %v633 = vadd.f32 %v631, %v354
    %v634 = vsel %vm539, %v632, -inf
    %635 = vmax.xlane.f32.xlu0 %v634
    %v636 = vpop.xlane.xlu0 %635
    %v637 = vsel %vm539, %v633, -inf
    %638 = vmax.xlane.f32.xlu0 %v637
    %v639 = vpop.xlane.xlu0 %638
    %v640 = vsub.f32 %v632, %v636
    %v641 = vsub.f32 %v633, %v639
    %v642 = vmul.f32 %v640, 1.442695
    %v643 = vpow.pop %v642
    %v644 = vmul.f32 %v641, 1.442695
    %v645 = vpow.pop %v644
    %v646 = vsel %vm539, %v643, 0.0
    %647 = vadd.xlane.f32.xlu0 %v646
    %v648 = vpop.xlane.xlu0 %647
    %v649 = vsel %vm539, %v645, 0.0
    %650 = vadd.xlane.f32.xlu0 %v649
    %v651 = vpop.xlane.xlu0 %650
    %v652 = vrcp.pop %v648
    %v653 = vrcp.pop %v651
    %v654 = vmul.f32 %v643, %v652
    %v655 = vmul.f32 %v645, %v653
    %658 = vrot.lane.b32.xlu0 %v494, 96
    %v659 = vpop.permute.xlu0 %658
    %660 = vrot.lane.b32.xlu0 %v497, 96
    %v661 = vpop.permute.xlu0 %660
    %v665 = vsel %vm539, %v654, 0
    %v668 = vsel %vm539, %v655, 0
    %670 = vmatpush.msra.mxu0 0.0
    %671 = vmatpush.msra.mxu0 0.0
    %672 = vmatpush.msra.mxu0 0.0
    %673 = vmatpush.msra.mxu0 0.0
    %674 = vmatpush.msra.mxu0 0.0
    %675 = vmatpush.msra.mxu0 0.0
    %676 = vmatpush.msra.mxu0 0.0
    %677 = vmatpush.msra.mxu0 0.0
    %678 = vmatpush.msra.mxu0 0.0
    %679 = vmatpush.msra.mxu0 0.0
    %680 = vmatpush.msra.mxu0 0.0
    %681 = vmatpush.msra.mxu0 0.0
    %682 = vmatpush.msra.mxu0 0.0
    %683 = vmatpush.msra.mxu0 0.0
    %684 = vmatpush.msra.mxu0 %v661
    %685 = vmatpush.msra.mxu0 %v659
    %686 = vmatmul.f32.gmra.mxu0 %v665
    %v687 = vpop.f32.mrf.mxu0
    %v688 = vadd.f32 0.0, %v687
    %689 = vmatmul.f32.gmra.mxu0 %v668
    %v690 = vpop.f32.mrf.mxu0
    %v691 = vadd.f32 0.0, %v690
    %692 = vdwg.mxu0
    %693 = vrot.lane.b32.xlu0 %v448, 64
    %v694 = vpop.permute.xlu0 %693
    %695 = vrot.lane.b32.xlu0 %v451, 64
    %v696 = vpop.permute.xlu0 %695
    %697 = vrot.lane.b32.xlu0 %v471, 64
    %v698 = vpop.permute.xlu0 %697
    %699 = vrot.lane.b32.xlu0 %v474, 64
    %v700 = vpop.permute.xlu0 %699
    %v701 = vsel %vm499, %v694, 0
    %v703 = vsel %vm499, %v696, 0
    %v705 = vsel %vm499, %v698, 0
    %v707 = vsel %vm499, %v700, 0
    %709 = vmatpush.xpose.msra.mxu0 0.0
    %710 = vmatpush.xpose.msra.mxu0 0.0
    %711 = vmatpush.xpose.msra.mxu0 0.0
    %712 = vmatpush.xpose.msra.mxu0 0.0
    %713 = vmatpush.xpose.msra.mxu0 0.0
    %714 = vmatpush.xpose.msra.mxu0 0.0
    %715 = vmatpush.xpose.msra.mxu0 0.0
    %716 = vmatpush.xpose.msra.mxu0 0.0
    %717 = vmatpush.xpose.msra.mxu0 0.0
    %718 = vmatpush.xpose.msra.mxu0 0.0
    %719 = vmatpush.xpose.msra.mxu0 0.0
    %720 = vmatpush.xpose.msra.mxu0 0.0
    %721 = vmatpush.xpose.msra.mxu0 0.0
    %722 = vmatpush.xpose.msra.mxu0 0.0
    %723 = vmatpush.xpose.msra.mxu0 %v707
    %724 = vmatpush.xpose.msra.mxu0 %v705
    %725 = vmatmul.f32.gmra.mxu0 %v701
    %v726 = vpop.f32.mrf.mxu0
    %v727 = vadd.f32 0.0, %v726
    %728 = vmatmul.f32.gmra.mxu0 %v703
    %v729 = vpop.f32.mrf.mxu0
    %v730 = vadd.f32 0.0, %v729
    %731 = vdwg.mxu0
    %v732 = vmul.f32 %v727, 0.17677669
    %v733 = vmul.f32 %v730, 0.17677669
    %v734 = vadd.f32 %v732, %v353
    %v735 = vadd.f32 %v733, %v354
    %v736 = vsel %vm539, %v734, -inf
    %737 = vmax.xlane.f32.xlu0 %v736
    %v738 = vpop.xlane.xlu0 %737
    %v739 = vsel %vm539, %v735, -inf
    %740 = vmax.xlane.f32.xlu0 %v739
    %v741 = vpop.xlane.xlu0 %740
    %v742 = vsub.f32 %v734, %v738
    %v743 = vsub.f32 %v735, %v741
    %v744 = vmul.f32 %v742, 1.442695
    %v745 = vpow.pop %v744
    %v746 = vmul.f32 %v743, 1.442695
    %v747 = vpow.pop %v746
    %v748 = vsel %vm539, %v745, 0.0
    %749 = vadd.xlane.f32.xlu0 %v748
    %v750 = vpop.xlane.xlu0 %749
    %v751 = vsel %vm539, %v747, 0.0
    %752 = vadd.xlane.f32.xlu0 %v751
    %v753 = vpop.xlane.xlu0 %752
    %v754 = vrcp.pop %v750
    %v755 = vrcp.pop %v753
    %v756 = vmul.f32 %v745, %v754
    %v757 = vmul.f32 %v747, %v755
    %758 = vrot.lane.b32.xlu0 %v494, 64
    %v759 = vpop.permute.xlu0 %758
    %760 = vrot.lane.b32.xlu0 %v497, 64
    %v761 = vpop.permute.xlu0 %760
    %v765 = vsel %vm539, %v756, 0
    %v768 = vsel %vm539, %v757, 0
    %770 = vmatpush.msra.mxu0 0.0
    %771 = vmatpush.msra.mxu0 0.0
    %772 = vmatpush.msra.mxu0 0.0
    %773 = vmatpush.msra.mxu0 0.0
    %774 = vmatpush.msra.mxu0 0.0
    %775 = vmatpush.msra.mxu0 0.0
    %776 = vmatpush.msra.mxu0 0.0
    %777 = vmatpush.msra.mxu0 0.0
    %778 = vmatpush.msra.mxu0 0.0
    %779 = vmatpush.msra.mxu0 0.0
    %780 = vmatpush.msra.mxu0 0.0
    %781 = vmatpush.msra.mxu0 0.0
    %782 = vmatpush.msra.mxu0 0.0
    %783 = vmatpush.msra.mxu0 0.0
    %784 = vmatpush.msra.mxu0 %v761
    %785 = vmatpush.msra.mxu0 %v759
    %786 = vmatmul.f32.gmra.mxu0 %v765
    %v787 = vpop.f32.mrf.mxu0
    %v788 = vadd.f32 0.0, %v787
    %789 = vmatmul.f32.gmra.mxu0 %v768
    %v790 = vpop.f32.mrf.mxu0
    %v791 = vadd.f32 0.0, %v790
    %792 = vdwg.mxu0
    %793 = vrot.lane.b32.xlu0 %v448, 32
    %v794 = vpop.permute.xlu0 %793
    %795 = vrot.lane.b32.xlu0 %v451, 32
    %v796 = vpop.permute.xlu0 %795
    %797 = vrot.lane.b32.xlu0 %v471, 32
    %v798 = vpop.permute.xlu0 %797
    %799 = vrot.lane.b32.xlu0 %v474, 32
    %v800 = vpop.permute.xlu0 %799
    %v801 = vsel %vm499, %v794, 0
    %v803 = vsel %vm499, %v796, 0
    %v805 = vsel %vm499, %v798, 0
    %v807 = vsel %vm499, %v800, 0
    %809 = vmatpush.xpose.msra.mxu0 0.0
    %810 = vmatpush.xpose.msra.mxu0 0.0
    %811 = vmatpush.xpose.msra.mxu0 0.0
    %812 = vmatpush.xpose.msra.mxu0 0.0
    %813 = vmatpush.xpose.msra.mxu0 0.0
    %814 = vmatpush.xpose.msra.mxu0 0.0
    %815 = vmatpush.xpose.msra.mxu0 0.0
    %816 = vmatpush.xpose.msra.mxu0 0.0
    %817 = vmatpush.xpose.msra.mxu0 0.0
    %818 = vmatpush.xpose.msra.mxu0 0.0
    %819 = vmatpush.xpose.msra.mxu0 0.0
    %820 = vmatpush.xpose.msra.mxu0 0.0
    %821 = vmatpush.xpose.msra.mxu0 0.0
    %822 = vmatpush.xpose.msra.mxu0 0.0
    %823 = vmatpush.xpose.msra.mxu0 %v807
    %824 = vmatpush.xpose.msra.mxu0 %v805
    %825 = vmatmul.f32.gmra.mxu0 %v801
    %v826 = vpop.f32.mrf.mxu0
    %v827 = vadd.f32 0.0, %v826
    %828 = vmatmul.f32.gmra.mxu0 %v803
    %v829 = vpop.f32.mrf.mxu0
    %v830 = vadd.f32 0.0, %v829
    %831 = vdwg.mxu0
    %v832 = vmul.f32 %v827, 0.17677669
    %v833 = vmul.f32 %v830, 0.17677669
    %v834 = vadd.f32 %v832, %v353
    %v835 = vadd.f32 %v833, %v354
    %v836 = vsel %vm539, %v834, -inf
    %837 = vmax.xlane.f32.xlu0 %v836
    %v838 = vpop.xlane.xlu0 %837
    %v839 = vsel %vm539, %v835, -inf
    %840 = vmax.xlane.f32.xlu0 %v839
    %v841 = vpop.xlane.xlu0 %840
    %v842 = vsub.f32 %v834, %v838
    %v843 = vsub.f32 %v835, %v841
    %v844 = vmul.f32 %v842, 1.442695
    %v845 = vpow.pop %v844
    %v846 = vmul.f32 %v843, 1.442695
    %v847 = vpow.pop %v846
    %v848 = vsel %vm539, %v845, 0.0
    %849 = vadd.xlane.f32.xlu0 %v848
    %v850 = vpop.xlane.xlu0 %849
    %v851 = vsel %vm539, %v847, 0.0
    %852 = vadd.xlane.f32.xlu0 %v851
    %v853 = vpop.xlane.xlu0 %852
    %v854 = vrcp.pop %v850
    %v855 = vrcp.pop %v853
    %v856 = vmul.f32 %v845, %v854
    %v857 = vmul.f32 %v847, %v855
    %858 = vrot.lane.b32.xlu0 %v494, 32
    %v859 = vpop.permute.xlu0 %858
    %860 = vrot.lane.b32.xlu0 %v497, 32
    %v861 = vpop.permute.xlu0 %860
    %v865 = vsel %vm539, %v856, 0
    %v868 = vsel %vm539, %v857, 0
    %870 = vmatpush.msra.mxu0 0.0
    %871 = vmatpush.msra.mxu0 0.0
    %872 = vmatpush.msra.mxu0 0.0
    %873 = vmatpush.msra.mxu0 0.0
    %874 = vmatpush.msra.mxu0 0.0
    %875 = vmatpush.msra.mxu0 0.0
    %876 = vmatpush.msra.mxu0 0.0
    %877 = vmatpush.msra.mxu0 0.0
    %878 = vmatpush.msra.mxu0 0.0
    %879 = vmatpush.msra.mxu0 0.0
    %880 = vmatpush.msra.mxu0 0.0
    %881 = vmatpush.msra.mxu0 0.0
    %882 = vmatpush.msra.mxu0 0.0
    %883 = vmatpush.msra.mxu0 0.0
    %884 = vmatpush.msra.mxu0 %v861
    %885 = vmatpush.msra.mxu0 %v859
    %886 = vmatmul.f32.gmra.mxu0 %v865
    %v887 = vpop.f32.mrf.mxu0
    %v888 = vadd.f32 0.0, %v887
    %889 = vmatmul.f32.gmra.mxu0 %v868
    %v890 = vpop.f32.mrf.mxu0
    %v891 = vadd.f32 0.0, %v890
    %892 = vdwg.mxu0
    %895 = vrot.lane.b32.xlu0 %v688, 32
    %v896 = vpop.permute.xlu0 %895
    %897 = vrot.lane.b32.xlu0 %v691, 32
    %v898 = vpop.permute.xlu0 %897
    %903 = vrot.lane.b32.xlu0 %v788, 64
    %v904 = vpop.permute.xlu0 %903
    %905 = vrot.lane.b32.xlu0 %v791, 64
    %v906 = vpop.permute.xlu0 %905
    %911 = vrot.lane.b32.xlu0 %v888, 96
    %v912 = vpop.permute.xlu0 %911
    %913 = vrot.lane.b32.xlu0 %v891, 96
    %v914 = vpop.permute.xlu0 %913
    %v917 = vsel %vm499, %v586, %v896
    %v918 = vsel %vm499, %v589, %v898
    %vm919 = vcmask 523264
    %v920 = vsel %vm919, %v917, %v904
    %v921 = vsel %vm919, %v918, %v906
    %vm922 = vcmask 785408
    %v923 = vsel %vm922, %v920, %v912
    %v924 = vsel %vm922, %v921, %v914
    %v926 = vperm.slane %v422, 0
    %928 = vmatpush.msra.mxu0 %v421
    %929 = vmatpush.msra.mxu0 %v420
    %930 = vmatpush.msra.mxu0 %v419
    %931 = vmatpush.msra.mxu0 %v418
    %932 = vmatpush.msra.mxu0 %v417
    %933 = vmatpush.msra.mxu0 %v416
    %934 = vmatpush.msra.mxu0 %v415
    %935 = vmatpush.msra.mxu0 %v414
    %936 = vmatpush.msra.mxu0 %v413
    %937 = vmatpush.msra.mxu0 %v412
    %938 = vmatpush.msra.mxu0 %v411
    %939 = vmatpush.msra.mxu0 %v410
    %940 = vmatpush.msra.mxu0 %v409
    %941 = vmatpush.msra.mxu0 %v408
    %942 = vmatpush.msra.mxu0 %v407
    %943 = vmatpush.msra.mxu0 %v406
    %944 = vmatmul.f32.gmra.mxu0 %v923
    %v945 = vpop.f32.mrf.mxu0
    %v946 = vadd.f32 %v926, %v945
    %947 = vmatmul.f32.gmra.mxu0 %v924
    %v948 = vpop.f32.mrf.mxu0
    %v949 = vadd.f32 %v926, %v948
    %950 = vdwg.mxu0
    %v951 = vadd.f32 %v355, %v946
    %v952 = vadd.f32 %v356, %v949
    %v953 = vld [vmem:[%s15] sm:$0x1]
    %v954 = vld [vmem:[%s17] sm:$0x1]
    %955 = vadd.xlane.f32.xlu0 %v951
    %v956 = vpop.xlane.xlu0 %955
    %957 = vadd.xlane.f32.xlu0 %v952
    %v958 = vpop.xlane.xlu0 %957
    %v959 = vrcp.pop 128.0
    %v960 = vmul.f32 128.0, %v959
    %v961 = vsub.f32 1.0, %v960
    %v962 = vmul.f32 %v959, %v961
    %v963 = vadd.f32 %v959, %v962
    %vm964 = vweird.f32 %v959
    %v965 = vsel %vm964, %v959, %v963
    %v966 = vmul.f32 %v956, %v965
    %v967 = vmul.f32 %v958, %v965
    %v968 = vsub.f32 %v951, %v966
    %v969 = vsub.f32 %v952, %v967
    %v970 = vmul.f32 %v968, %v968
    %v971 = vmul.f32 %v969, %v969
    %972 = vadd.xlane.f32.xlu0 %v970
    %v973 = vpop.xlane.xlu0 %972
    %974 = vadd.xlane.f32.xlu0 %v971
    %v975 = vpop.xlane.xlu0 %974
    %v976 = vmul.f32 %v973, %v965
    %v977 = vmul.f32 %v975, %v965
    %v978 = vadd.f32 %v976, 0.6
    %v979 = vadd.f32 %v977, 0.6
    %v980 = vrsqrt.pop %v978
    %v981 = vmul.f32 %v980, %v978
    %v982 = vmul.f32 %v981, %v980
    %v983 = vmul.f32 0.5, %v982
    %v984 = vsub.f32 1.5, %v983
    %v985 = vmul.f32 %v980, %v984
    %vm986 = vweird.f32 %v978
    %vm987 = vweird.f32 %v980
    %vm988 = vmor %vm986, %vm987
    %v989 = vsel %vm988, %v980, %v985
    %v990 = vrsqrt.pop %v979
    %v991 = vmul.f32 %v990, %v979
    %v992 = vmul.f32 %v991, %v990
    %v993 = vmul.f32 0.5, %v992
    %v994 = vsub.f32 1.5, %v993
    %v995 = vmul.f32 %v990, %v994
    %vm996 = vweird.f32 %v979
    %vm997 = vweird.f32 %v990
    %vm998 = vmor %vm996, %vm997
    %v999 = vsel %vm998, %v990, %v995
    %v1000 = vmul.f32 %v968, %v989
    %v1001 = vmul.f32 %v969, %v999
    %v1003 = vperm.slane %v953, 0
    %v1005 = vmul.f32 %v1000, %v1003
    %v1006 = vmul.f32 %v1001, %v1003
    %v1008 = vperm.slane %v954, 0
    %v1010 = vadd.f32 %v1005, %v1008
    %v1011 = vadd.f32 %v1006, %v1008
    %v1012 = vld [vmem:[#allocation7] sm:$0xff]
    %v1013 = vld [vmem:[#allocation7 + $0x8] sm:$0xff]
    %v1014 = vld [vmem:[#allocation7 + $0x10] sm:$0xff]
    %v1015 = vld [vmem:[#allocation7 + $0x18] sm:$0xff]
    %v1016 = vld [vmem:[#allocation7 + $0x20] sm:$0xff]
    %v1017 = vld [vmem:[#allocation7 + $0x28] sm:$0xff]
    %v1018 = vld [vmem:[#allocation7 + $0x30] sm:$0xff]
    %v1019 = vld [vmem:[#allocation7 + $0x38] sm:$0xff]
    %v1020 = vld [vmem:[#allocation7 + $0x40] sm:$0xff]
    %v1021 = vld [vmem:[#allocation7 + $0x48] sm:$0xff]
    %v1022 = vld [vmem:[#allocation7 + $0x50] sm:$0xff]
    %v1023 = vld [vmem:[#allocation7 + $0x58] sm:$0xff]
    %v1024 = vld [vmem:[#allocation7 + $0x60] sm:$0xff]
    %v1025 = vld [vmem:[#allocation7 + $0x68] sm:$0xff]
    %v1026 = vld [vmem:[#allocation7 + $0x70] sm:$0xff]
    %v1027 = vld [vmem:[#allocation7 + $0x78] sm:$0xff]
    %v1028 = vld [vmem:[#allocation7 + $0x80] sm:$0xff]
    %v1029 = vld [vmem:[#allocation7 + $0x88] sm:$0xff]
    %v1030 = vld [vmem:[#allocation7 + $0x90] sm:$0xff]
    %v1031 = vld [vmem:[#allocation7 + $0x98] sm:$0xff]
    %v1032 = vld [vmem:[#allocation7 + $0xa0] sm:$0xff]
    %v1033 = vld [vmem:[#allocation7 + $0xa8] sm:$0xff]
    %v1034 = vld [vmem:[#allocation7 + $0xb0] sm:$0xff]
    %v1035 = vld [vmem:[#allocation7 + $0xb8] sm:$0xff]
    %v1036 = vld [vmem:[#allocation7 + $0xc0] sm:$0xff]
    %v1037 = vld [vmem:[#allocation7 + $0xc8] sm:$0xff]
    %v1038 = vld [vmem:[#allocation7 + $0xd0] sm:$0xff]
    %v1039 = vld [vmem:[#allocation7 + $0xd8] sm:$0xff]
    %v1040 = vld [vmem:[#allocation7 + $0xe0] sm:$0xff]
    %v1041 = vld [vmem:[#allocation7 + $0xe8] sm:$0xff]
    %v1042 = vld [vmem:[#allocation7 + $0xf0] sm:$0xff]
    %v1043 = vld [vmem:[#allocation7 + $0xf8] sm:$0xff]
    %v1044 = vld [vmem:[%s21] sm:$0x3]
    %v1045 = vld [vmem:[#allocation8] sm:$0xff]
    %v1046 = vld [vmem:[#allocation8 + $0x8] sm:$0xff]
    %v1047 = vld [vmem:[#allocation8 + $0x10] sm:$0xff]
    %v1048 = vld [vmem:[#allocation8 + $0x18] sm:$0xff]
    %v1049 = vld [vmem:[#allocation8 + $0x20] sm:$0xff]
    %v1050 = vld [vmem:[#allocation8 + $0x28] sm:$0xff]
    %v1051 = vld [vmem:[#allocation8 + $0x30] sm:$0xff]
    %v1052 = vld [vmem:[#allocation8 + $0x38] sm:$0xff]
    %v1053 = vld [vmem:[#allocation8 + $0x40] sm:$0xff]
    %v1054 = vld [vmem:[#allocation8 + $0x48] sm:$0xff]
    %v1055 = vld [vmem:[#allocation8 + $0x50] sm:$0xff]
    %v1056 = vld [vmem:[#allocation8 + $0x58] sm:$0xff]
    %v1057 = vld [vmem:[#allocation8 + $0x60] sm:$0xff]
    %v1058 = vld [vmem:[#allocation8 + $0x68] sm:$0xff]
    %v1059 = vld [vmem:[#allocation8 + $0x70] sm:$0xff]
    %v1060 = vld [vmem:[#allocation8 + $0x78] sm:$0xff]
    %v1061 = vld [vmem:[#allocation8 + $0x80] sm:$0xff]
    %v1062 = vld [vmem:[#allocation8 + $0x88] sm:$0xff]
    %v1063 = vld [vmem:[#allocation8 + $0x90] sm:$0xff]
    %v1064 = vld [vmem:[#allocation8 + $0x98] sm:$0xff]
    %v1065 = vld [vmem:[#allocation8 + $0xa0] sm:$0xff]
    %v1066 = vld [vmem:[#allocation8 + $0xa8] sm:$0xff]
    %v1067 = vld [vmem:[#allocation8 + $0xb0] sm:$0xff]
    %v1068 = vld [vmem:[#allocation8 + $0xb8] sm:$0xff]
    %v1069 = vld [vmem:[#allocation8 + $0xc0] sm:$0xff]
    %v1070 = vld [vmem:[#allocation8 + $0xc8] sm:$0xff]
    %v1071 = vld [vmem:[#allocation8 + $0xd0] sm:$0xff]
    %v1072 = vld [vmem:[#allocation8 + $0xd8] sm:$0xff]
    %v1073 = vld [vmem:[#allocation8 + $0xe0] sm:$0xff]
    %v1074 = vld [vmem:[#allocation8 + $0xe8] sm:$0xff]
    %v1075 = vld [vmem:[#allocation8 + $0xf0] sm:$0xff]
    %v1076 = vld [vmem:[#allocation8 + $0xf8] sm:$0xff]
    %v1077 = vld [vmem:[%s25] sm:$0x1]
    %v1079 = vperm.slane %v1044, 0
    %v1080 = vperm.slane %v1044, 1
    %1083 = vmatpush.msra.mxu0 %v1042
    %1084 = vmatpush.msra.mxu0 %v1040
    %1085 = vmatpush.msra.mxu0 %v1038
    %1086 = vmatpush.msra.mxu0 %v1036
    %1087 = vmatpush.msra.mxu0 %v1034
    %1088 = vmatpush.msra.mxu0 %v1032
    %1089 = vmatpush.msra.mxu0 %v1030
    %1090 = vmatpush.msra.mxu0 %v1028
    %1091 = vmatpush.msra.mxu0 %v1026
    %1092 = vmatpush.msra.mxu0 %v1024
    %1093 = vmatpush.msra.mxu0 %v1022
    %1094 = vmatpush.msra.mxu0 %v1020
    %1095 = vmatpush.msra.mxu0 %v1018
    %1096 = vmatpush.msra.mxu0 %v1016
    %1097 = vmatpush.msra.mxu0 %v1014
    %1098 = vmatpush.msra.mxu0 %v1012
    %1099 = vmatmul.f32.gmra.mxu0 %v1010
    %v1100 = vpop.f32.mrf.mxu0
    %v1101 = vadd.f32 %v1079, %v1100
    %1102 = vmatmul.f32.gmra.mxu0 %v1011
    %v1103 = vpop.f32.mrf.mxu0
    %v1104 = vadd.f32 %v1079, %v1103
    %1105 = vdwg.mxu0
    %1106 = vmatpush.msra.mxu0 %v1043
    %1107 = vmatpush.msra.mxu0 %v1041
    %1108 = vmatpush.msra.mxu0 %v1039
    %1109 = vmatpush.msra.mxu0 %v1037
    %1110 = vmatpush.msra.mxu0 %v1035
    %1111 = vmatpush.msra.mxu0 %v1033
    %1112 = vmatpush.msra.mxu0 %v1031
    %1113 = vmatpush.msra.mxu0 %v1029
    %1114 = vmatpush.msra.mxu0 %v1027
    %1115 = vmatpush.msra.mxu0 %v1025
    %1116 = vmatpush.msra.mxu0 %v1023
    %1117 = vmatpush.msra.mxu0 %v1021
    %1118 = vmatpush.msra.mxu0 %v1019
    %1119 = vmatpush.msra.mxu0 %v1017
    %1120 = vmatpush.msra.mxu0 %v1015
    %1121 = vmatpush.msra.mxu0 %v1013
    %1122 = vmatmul.f32.gmra.mxu0 %v1010
    %v1123 = vpop.f32.mrf.mxu0
    %v1124 = vadd.f32 %v1080, %v1123
    %1125 = vmatmul.f32.gmra.mxu0 %v1011
    %v1126 = vpop.f32.mrf.mxu0
    %v1127 = vadd.f32 %v1080, %v1126
    %1128 = vdwg.mxu0
    %v1129 = vmax.f32 %v1101, 0.0
    %v1130 = vmax.f32 %v1124, 0.0
    %v1131 = vmax.f32 %v1104, 0.0
    %v1132 = vmax.f32 %v1127, 0.0
    %v1134 = vperm.slane %v1077, 0
    %1136 = vmatpush.msra.mxu0 %v1060
    %1137 = vmatpush.msra.mxu0 %v1059
    %1138 = vmatpush.msra.mxu0 %v1058
    %1139 = vmatpush.msra.mxu0 %v1057
    %1140 = vmatpush.msra.mxu0 %v1056
    %1141 = vmatpush.msra.mxu0 %v1055
    %1142 = vmatpush.msra.mxu0 %v1054
    %1143 = vmatpush.msra.mxu0 %v1053
    %1144 = vmatpush.msra.mxu0 %v1052
    %1145 = vmatpush.msra.mxu0 %v1051
    %1146 = vmatpush.msra.mxu0 %v1050
    %1147 = vmatpush.msra.mxu0 %v1049
    %1148 = vmatpush.msra.mxu0 %v1048
    %1149 = vmatpush.msra.mxu0 %v1047
    %1150 = vmatpush.msra.mxu0 %v1046
    %1151 = vmatpush.msra.mxu0 %v1045
    %1152 = vmatmul.f32.gmra.mxu0 %v1129
    %v1153 = vpop.f32.mrf.mxu0
    %v1154 = vadd.f32 %v1134, %v1153
    %1155 = vmatmul.f32.gmra.mxu0 %v1131
    %v1156 = vpop.f32.mrf.mxu0
    %v1157 = vadd.f32 %v1134, %v1156
    %1158 = vdwg.mxu0
    %1159 = vmatpush.msra.mxu0 %v1076
    %1160 = vmatpush.msra.mxu0 %v1075
    %1161 = vmatpush.msra.mxu0 %v1074
    %1162 = vmatpush.msra.mxu0 %v1073
    %1163 = vmatpush.msra.mxu0 %v1072
    %1164 = vmatpush.msra.mxu0 %v1071
    %1165 = vmatpush.msra.mxu0 %v1070
    %1166 = vmatpush.msra.mxu0 %v1069
    %1167 = vmatpush.msra.mxu0 %v1068
    %1168 = vmatpush.msra.mxu0 %v1067
    %1169 = vmatpush.msra.mxu0 %v1066
    %1170 = vmatpush.msra.mxu0 %v1065
    %1171 = vmatpush.msra.mxu0 %v1064
    %1172 = vmatpush.msra.mxu0 %v1063
    %1173 = vmatpush.msra.mxu0 %v1062
    %1174 = vmatpush.msra.mxu0 %v1061
    %1175 = vmatmul.f32.gmra.mxu0 %v1130
    %v1176 = vpop.f32.mrf.mxu0
    %v1177 = vadd.f32 %v1154, %v1176
    %1178 = vmatmul.f32.gmra.mxu0 %v1132
    %v1179 = vpop.f32.mrf.mxu0
    %v1180 = vadd.f32 %v1157, %v1179
    %1181 = vdwg.mxu0
    %v1182 = vadd.f32 %v1010, %v1177
    %v1183 = vadd.f32 %v1011, %v1180
    %v1184 = vld [vmem:[%s27] sm:$0x1]
    %v1185 = vld [vmem:[%s29] sm:$0x1]
    %1186 = vadd.xlane.f32.xlu0 %v1182
    %v1187 = vpop.xlane.xlu0 %1186
    %1188 = vadd.xlane.f32.xlu0 %v1183
    %v1189 = vpop.xlane.xlu0 %1188
    %v1190 = vmul.f32 %v1187, %v965
    %v1191 = vmul.f32 %v1189, %v965
    %v1192 = vsub.f32 %v1182, %v1190
    %v1193 = vsub.f32 %v1183, %v1191
    %v1194 = vmul.f32 %v1192, %v1192
    %v1195 = vmul.f32 %v1193, %v1193
    %1196 = vadd.xlane.f32.xlu0 %v1194
    %v1197 = vpop.xlane.xlu0 %1196
    %1198 = vadd.xlane.f32.xlu0 %v1195
    %v1199 = vpop.xlane.xlu0 %1198
    %v1200 = vmul.f32 %v1197, %v965
    %v1201 = vmul.f32 %v1199, %v965
    %v1202 = vadd.f32 %v1200, 0.6
    %v1203 = vadd.f32 %v1201, 0.6
    %v1204 = vrsqrt.pop %v1202
    %v1205 = vmul.f32 %v1204, %v1202
    %v1206 = vmul.f32 %v1205, %v1204
    %v1207 = vmul.f32 0.5, %v1206
    %v1208 = vsub.f32 1.5, %v1207
    %v1209 = vmul.f32 %v1204, %v1208
    %vm1210 = vweird.f32 %v1202
    %vm1211 = vweird.f32 %v1204
    %vm1212 = vmor %vm1210, %vm1211
    %v1213 = vsel %vm1212, %v1204, %v1209
    %v1214 = vrsqrt.pop %v1203
    %v1215 = vmul.f32 %v1214, %v1203
    %v1216 = vmul.f32 %v1215, %v1214
    %v1217 = vmul.f32 0.5, %v1216
    %v1218 = vsub.f32 1.5, %v1217
    %v1219 = vmul.f32 %v1214, %v1218
    %vm1220 = vweird.f32 %v1203
    %vm1221 = vweird.f32 %v1214
    %vm1222 = vmor %vm1220, %vm1221
    %v1223 = vsel %vm1222, %v1214, %v1219
    %v1224 = vmul.f32 %v1192, %v1213
    %v1225 = vmul.f32 %v1193, %v1223
    %v1227 = vperm.slane %v1184, 0
    %v1229 = vmul.f32 %v1224, %v1227
    %v1230 = vmul.f32 %v1225, %v1227
    %v1232 = vperm.slane %v1185, 0
    %v1234 = vadd.f32 %v1229, %v1232
    %v1235 = vadd.f32 %v1230, %v1232
    %s1236 = scalar_lea.vmem [#allocation2], 384
    %v1237 = vld [vmem:[%s1236] sm:$0xff]
    %v1238 = vld [vmem:[%s1236 + $0x8] sm:$0xff]
    %v1239 = vld [vmem:[%s1236 + $0x10] sm:$0xff]
    %v1240 = vld [vmem:[%s1236 + $0x18] sm:$0xff]
    %v1241 = vld [vmem:[%s1236 + $0x20] sm:$0xff]
    %v1242 = vld [vmem:[%s1236 + $0x28] sm:$0xff]
    %v1243 = vld [vmem:[%s1236 + $0x30] sm:$0xff]
    %v1244 = vld [vmem:[%s1236 + $0x38] sm:$0xff]
    %v1245 = vld [vmem:[%s1236 + $0x40] sm:$0xff]
    %v1246 = vld [vmem:[%s1236 + $0x48] sm:$0xff]
    %v1247 = vld [vmem:[%s1236 + $0x50] sm:$0xff]
    %v1248 = vld [vmem:[%s1236 + $0x58] sm:$0xff]
    %v1249 = vld [vmem:[%s1236 + $0x60] sm:$0xff]
    %v1250 = vld [vmem:[%s1236 + $0x68] sm:$0xff]
    %v1251 = vld [vmem:[%s1236 + $0x70] sm:$0xff]
    %v1252 = vld [vmem:[%s1236 + $0x78] sm:$0xff]
    %v1253 = vld [vmem:[%s1236 + $0x80] sm:$0xff]
    %v1254 = vld [vmem:[%s1236 + $0x88] sm:$0xff]
    %v1255 = vld [vmem:[%s1236 + $0x90] sm:$0xff]
    %v1256 = vld [vmem:[%s1236 + $0x98] sm:$0xff]
    %v1257 = vld [vmem:[%s1236 + $0xa0] sm:$0xff]
    %v1258 = vld [vmem:[%s1236 + $0xa8] sm:$0xff]
    %v1259 = vld [vmem:[%s1236 + $0xb0] sm:$0xff]
    %v1260 = vld [vmem:[%s1236 + $0xb8] sm:$0xff]
    %v1261 = vld [vmem:[%s1236 + $0xc0] sm:$0xff]
    %v1262 = vld [vmem:[%s1236 + $0xc8] sm:$0xff]
    %v1263 = vld [vmem:[%s1236 + $0xd0] sm:$0xff]
    %v1264 = vld [vmem:[%s1236 + $0xd8] sm:$0xff]
    %v1265 = vld [vmem:[%s1236 + $0xe0] sm:$0xff]
    %v1266 = vld [vmem:[%s1236 + $0xe8] sm:$0xff]
    %v1267 = vld [vmem:[%s1236 + $0xf0] sm:$0xff]
    %v1268 = vld [vmem:[%s1236 + $0xf8] sm:$0xff]
    %v1269 = vld [vmem:[%s1236 + $0x100] sm:$0xff]
    %v1270 = vld [vmem:[%s1236 + $0x108] sm:$0xff]
    %v1271 = vld [vmem:[%s1236 + $0x110] sm:$0xff]
    %v1272 = vld [vmem:[%s1236 + $0x118] sm:$0xff]
    %v1273 = vld [vmem:[%s1236 + $0x120] sm:$0xff]
    %v1274 = vld [vmem:[%s1236 + $0x128] sm:$0xff]
    %v1275 = vld [vmem:[%s1236 + $0x130] sm:$0xff]
    %v1276 = vld [vmem:[%s1236 + $0x138] sm:$0xff]
    %v1277 = vld [vmem:[%s1236 + $0x140] sm:$0xff]
    %v1278 = vld [vmem:[%s1236 + $0x148] sm:$0xff]
    %v1279 = vld [vmem:[%s1236 + $0x150] sm:$0xff]
    %v1280 = vld [vmem:[%s1236 + $0x158] sm:$0xff]
    %v1281 = vld [vmem:[%s1236 + $0x160] sm:$0xff]
    %v1282 = vld [vmem:[%s1236 + $0x168] sm:$0xff]
    %v1283 = vld [vmem:[%s1236 + $0x170] sm:$0xff]
    %v1284 = vld [vmem:[%s1236 + $0x178] sm:$0xff]
    %s1285 = scalar_lea.vmem %s9, 3
    %v1286 = vld [vmem:[%s1285] sm:$0x7]
    %s1287 = scalar_lea.vmem [#allocation5], 128
    %v1288 = vld [vmem:[%s1287] sm:$0xff]
    %v1289 = vld [vmem:[%s1287 + $0x8] sm:$0xff]
    %v1290 = vld [vmem:[%s1287 + $0x10] sm:$0xff]
    %v1291 = vld [vmem:[%s1287 + $0x18] sm:$0xff]
    %v1292 = vld [vmem:[%s1287 + $0x20] sm:$0xff]
    %v1293 = vld [vmem:[%s1287 + $0x28] sm:$0xff]
    %v1294 = vld [vmem:[%s1287 + $0x30] sm:$0xff]
    %v1295 = vld [vmem:[%s1287 + $0x38] sm:$0xff]
    %v1296 = vld [vmem:[%s1287 + $0x40] sm:$0xff]
    %v1297 = vld [vmem:[%s1287 + $0x48] sm:$0xff]
    %v1298 = vld [vmem:[%s1287 + $0x50] sm:$0xff]
    %v1299 = vld [vmem:[%s1287 + $0x58] sm:$0xff]
    %v1300 = vld [vmem:[%s1287 + $0x60] sm:$0xff]
    %v1301 = vld [vmem:[%s1287 + $0x68] sm:$0xff]
    %v1302 = vld [vmem:[%s1287 + $0x70] sm:$0xff]
    %v1303 = vld [vmem:[%s1287 + $0x78] sm:$0xff]
    %s1304 = scalar_lea.vmem %s13, 1
    %v1305 = vld [vmem:[%s1304] sm:$0x1]
    %v1307 = vperm.slane %v1286, 0
    %v1308 = vperm.slane %v1286, 1
    %v1309 = vperm.slane %v1286, 2
    %1313 = vmatpush.msra.mxu0 %v1282
    %1314 = vmatpush.msra.mxu0 %v1279
    %1315 = vmatpush.msra.mxu0 %v1276
    %1316 = vmatpush.msra.mxu0 %v1273
    %1317 = vmatpush.msra.mxu0 %v1270
    %1318 = vmatpush.msra.mxu0 %v1267
    %1319 = vmatpush.msra.mxu0 %v1264
    %1320 = vmatpush.msra.mxu0 %v1261
    %1321 = vmatpush.msra.mxu0 %v1258
    %1322 = vmatpush.msra.mxu0 %v1255
    %1323 = vmatpush.msra.mxu0 %v1252
    %1324 = vmatpush.msra.mxu0 %v1249
    %1325 = vmatpush.msra.mxu0 %v1246
    %1326 = vmatpush.msra.mxu0 %v1243
    %1327 = vmatpush.msra.mxu0 %v1240
    %1328 = vmatpush.msra.mxu0 %v1237
    %1329 = vmatmul.f32.gmra.mxu0 %v1234
    %v1330 = vpop.f32.mrf.mxu0
    %v1331 = vadd.f32 %v1307, %v1330
    %1332 = vmatmul.f32.gmra.mxu0 %v1235
    %v1333 = vpop.f32.mrf.mxu0
    %v1334 = vadd.f32 %v1307, %v1333
    %1335 = vdwg.mxu0
    %1336 = vmatpush.msra.mxu0 %v1283
    %1337 = vmatpush.msra.mxu0 %v1280
    %1338 = vmatpush.msra.mxu0 %v1277
    %1339 = vmatpush.msra.mxu0 %v1274
    %1340 = vmatpush.msra.mxu0 %v1271
    %1341 = vmatpush.msra.mxu0 %v1268
    %1342 = vmatpush.msra.mxu0 %v1265
    %1343 = vmatpush.msra.mxu0 %v1262
    %1344 = vmatpush.msra.mxu0 %v1259
    %1345 = vmatpush.msra.mxu0 %v1256
    %1346 = vmatpush.msra.mxu0 %v1253
    %1347 = vmatpush.msra.mxu0 %v1250
    %1348 = vmatpush.msra.mxu0 %v1247
    %1349 = vmatpush.msra.mxu0 %v1244
    %1350 = vmatpush.msra.mxu0 %v1241
    %1351 = vmatpush.msra.mxu0 %v1238
    %1352 = vmatmul.f32.gmra.mxu0 %v1234
    %v1353 = vpop.f32.mrf.mxu0
    %v1354 = vadd.f32 %v1308, %v1353
    %1355 = vmatmul.f32.gmra.mxu0 %v1235
    %v1356 = vpop.f32.mrf.mxu0
    %v1357 = vadd.f32 %v1308, %v1356
    %1358 = vdwg.mxu0
    %1359 = vmatpush.msra.mxu0 %v1284
    %1360 = vmatpush.msra.mxu0 %v1281
    %1361 = vmatpush.msra.mxu0 %v1278
    %1362 = vmatpush.msra.mxu0 %v1275
    %1363 = vmatpush.msra.mxu0 %v1272
    %1364 = vmatpush.msra.mxu0 %v1269
    %1365 = vmatpush.msra.mxu0 %v1266
    %1366 = vmatpush.msra.mxu0 %v1263
    %1367 = vmatpush.msra.mxu0 %v1260
    %1368 = vmatpush.msra.mxu0 %v1257
    %1369 = vmatpush.msra.mxu0 %v1254
    %1370 = vmatpush.msra.mxu0 %v1251
    %1371 = vmatpush.msra.mxu0 %v1248
    %1372 = vmatpush.msra.mxu0 %v1245
    %1373 = vmatpush.msra.mxu0 %v1242
    %1374 = vmatpush.msra.mxu0 %v1239
    %1375 = vmatmul.f32.gmra.mxu0 %v1234
    %v1376 = vpop.f32.mrf.mxu0
    %v1377 = vadd.f32 %v1309, %v1376
    %1378 = vmatmul.f32.gmra.mxu0 %v1235
    %v1379 = vpop.f32.mrf.mxu0
    %v1380 = vadd.f32 %v1309, %v1379
    %1381 = vdwg.mxu0
    %v1383 = vsel %vm499, %v1331, 0
    %v1386 = vsel %vm499, %v1334, 0
    %v1389 = vsel %vm499, %v1354, 0
    %v1392 = vsel %vm499, %v1357, 0
    %1394 = vmatpush.xpose.msra.mxu0 0.0
    %1395 = vmatpush.xpose.msra.mxu0 0.0
    %1396 = vmatpush.xpose.msra.mxu0 0.0
    %1397 = vmatpush.xpose.msra.mxu0 0.0
    %1398 = vmatpush.xpose.msra.mxu0 0.0
    %1399 = vmatpush.xpose.msra.mxu0 0.0
    %1400 = vmatpush.xpose.msra.mxu0 0.0
    %1401 = vmatpush.xpose.msra.mxu0 0.0
    %1402 = vmatpush.xpose.msra.mxu0 0.0
    %1403 = vmatpush.xpose.msra.mxu0 0.0
    %1404 = vmatpush.xpose.msra.mxu0 0.0
    %1405 = vmatpush.xpose.msra.mxu0 0.0
    %1406 = vmatpush.xpose.msra.mxu0 0.0
    %1407 = vmatpush.xpose.msra.mxu0 0.0
    %1408 = vmatpush.xpose.msra.mxu0 %v1392
    %1409 = vmatpush.xpose.msra.mxu0 %v1389
    %1410 = vmatmul.f32.gmra.mxu0 %v1383
    %v1411 = vpop.f32.mrf.mxu0
    %v1412 = vadd.f32 0.0, %v1411
    %1413 = vmatmul.f32.gmra.mxu0 %v1386
    %v1414 = vpop.f32.mrf.mxu0
    %v1415 = vadd.f32 0.0, %v1414
    %1416 = vdwg.mxu0
    %v1417 = vmul.f32 %v1412, 0.17677669
    %v1418 = vmul.f32 %v1415, 0.17677669
    %v1419 = vadd.f32 %v1417, %v353
    %v1420 = vadd.f32 %v1418, %v354
    %v1421 = vsel %vm539, %v1419, -inf
    %1422 = vmax.xlane.f32.xlu0 %v1421
    %v1423 = vpop.xlane.xlu0 %1422
    %v1424 = vsel %vm539, %v1420, -inf
    %1425 = vmax.xlane.f32.xlu0 %v1424
    %v1426 = vpop.xlane.xlu0 %1425
    %v1427 = vsub.f32 %v1419, %v1423
    %v1428 = vsub.f32 %v1420, %v1426
    %v1429 = vmul.f32 %v1427, 1.442695
    %v1430 = vpow.pop %v1429
    %v1431 = vmul.f32 %v1428, 1.442695
    %v1432 = vpow.pop %v1431
    %v1433 = vsel %vm539, %v1430, 0.0
    %1434 = vadd.xlane.f32.xlu0 %v1433
    %v1435 = vpop.xlane.xlu0 %1434
    %v1436 = vsel %vm539, %v1432, 0.0
    %1437 = vadd.xlane.f32.xlu0 %v1436
    %v1438 = vpop.xlane.xlu0 %1437
    %v1439 = vrcp.pop %v1435
    %v1440 = vrcp.pop %v1438
    %v1441 = vmul.f32 %v1430, %v1439
    %v1442 = vmul.f32 %v1432, %v1440
    %v1444 = vsel %vm539, %v1441, 0
    %v1447 = vsel %vm539, %v1442, 0
    %1449 = vmatpush.msra.mxu0 0.0
    %1450 = vmatpush.msra.mxu0 0.0
    %1451 = vmatpush.msra.mxu0 0.0
    %1452 = vmatpush.msra.mxu0 0.0
    %1453 = vmatpush.msra.mxu0 0.0
    %1454 = vmatpush.msra.mxu0 0.0
    %1455 = vmatpush.msra.mxu0 0.0
    %1456 = vmatpush.msra.mxu0 0.0
    %1457 = vmatpush.msra.mxu0 0.0
    %1458 = vmatpush.msra.mxu0 0.0
    %1459 = vmatpush.msra.mxu0 0.0
    %1460 = vmatpush.msra.mxu0 0.0
    %1461 = vmatpush.msra.mxu0 0.0
    %1462 = vmatpush.msra.mxu0 0.0
    %1463 = vmatpush.msra.mxu0 %v1380
    %1464 = vmatpush.msra.mxu0 %v1377
    %1465 = vmatmul.f32.gmra.mxu0 %v1444
    %v1466 = vpop.f32.mrf.mxu0
    %v1467 = vadd.f32 0.0, %v1466
    %1468 = vmatmul.f32.gmra.mxu0 %v1447
    %v1469 = vpop.f32.mrf.mxu0
    %v1470 = vadd.f32 0.0, %v1469
    %1471 = vdwg.mxu0
    %1472 = vrot.lane.b32.xlu0 %v1331, 96
    %v1473 = vpop.permute.xlu0 %1472
    %1474 = vrot.lane.b32.xlu0 %v1334, 96
    %v1475 = vpop.permute.xlu0 %1474
    %1476 = vrot.lane.b32.xlu0 %v1354, 96
    %v1477 = vpop.permute.xlu0 %1476
    %1478 = vrot.lane.b32.xlu0 %v1357, 96
    %v1479 = vpop.permute.xlu0 %1478
    %v1480 = vsel %vm499, %v1473, 0
    %v1482 = vsel %vm499, %v1475, 0
    %v1484 = vsel %vm499, %v1477, 0
    %v1486 = vsel %vm499, %v1479, 0
    %1488 = vmatpush.xpose.msra.mxu0 0.0
    %1489 = vmatpush.xpose.msra.mxu0 0.0
    %1490 = vmatpush.xpose.msra.mxu0 0.0
    %1491 = vmatpush.xpose.msra.mxu0 0.0
    %1492 = vmatpush.xpose.msra.mxu0 0.0
    %1493 = vmatpush.xpose.msra.mxu0 0.0
    %1494 = vmatpush.xpose.msra.mxu0 0.0
    %1495 = vmatpush.xpose.msra.mxu0 0.0
    %1496 = vmatpush.xpose.msra.mxu0 0.0
    %1497 = vmatpush.xpose.msra.mxu0 0.0
    %1498 = vmatpush.xpose.msra.mxu0 0.0
    %1499 = vmatpush.xpose.msra.mxu0 0.0
    %1500 = vmatpush.xpose.msra.mxu0 0.0
    %1501 = vmatpush.xpose.msra.mxu0 0.0
    %1502 = vmatpush.xpose.msra.mxu0 %v1486
    %1503 = vmatpush.xpose.msra.mxu0 %v1484
    %1504 = vmatmul.f32.gmra.mxu0 %v1480
    %v1505 = vpop.f32.mrf.mxu0
    %v1506 = vadd.f32 0.0, %v1505
    %1507 = vmatmul.f32.gmra.mxu0 %v1482
    %v1508 = vpop.f32.mrf.mxu0
    %v1509 = vadd.f32 0.0, %v1508
    %1510 = vdwg.mxu0
    %v1511 = vmul.f32 %v1506, 0.17677669
    %v1512 = vmul.f32 %v1509, 0.17677669
    %v1513 = vadd.f32 %v1511, %v353
    %v1514 = vadd.f32 %v1512, %v354
    %v1515 = vsel %vm539, %v1513, -inf
    %1516 = vmax.xlane.f32.xlu0 %v1515
    %v1517 = vpop.xlane.xlu0 %1516
    %v1518 = vsel %vm539, %v1514, -inf
    %1519 = vmax.xlane.f32.xlu0 %v1518
    %v1520 = vpop.xlane.xlu0 %1519
    %v1521 = vsub.f32 %v1513, %v1517
    %v1522 = vsub.f32 %v1514, %v1520
    %v1523 = vmul.f32 %v1521, 1.442695
    %v1524 = vpow.pop %v1523
    %v1525 = vmul.f32 %v1522, 1.442695
    %v1526 = vpow.pop %v1525
    %v1527 = vsel %vm539, %v1524, 0.0
    %1528 = vadd.xlane.f32.xlu0 %v1527
    %v1529 = vpop.xlane.xlu0 %1528
    %v1530 = vsel %vm539, %v1526, 0.0
    %1531 = vadd.xlane.f32.xlu0 %v1530
    %v1532 = vpop.xlane.xlu0 %1531
    %v1533 = vrcp.pop %v1529
    %v1534 = vrcp.pop %v1532
    %v1535 = vmul.f32 %v1524, %v1533
    %v1536 = vmul.f32 %v1526, %v1534
    %1539 = vrot.lane.b32.xlu0 %v1377, 96
    %v1540 = vpop.permute.xlu0 %1539
    %1541 = vrot.lane.b32.xlu0 %v1380, 96
    %v1542 = vpop.permute.xlu0 %1541
    %v1546 = vsel %vm539, %v1535, 0
    %v1549 = vsel %vm539, %v1536, 0
    %1551 = vmatpush.msra.mxu0 0.0
    %1552 = vmatpush.msra.mxu0 0.0
    %1553 = vmatpush.msra.mxu0 0.0
    %1554 = vmatpush.msra.mxu0 0.0
    %1555 = vmatpush.msra.mxu0 0.0
    %1556 = vmatpush.msra.mxu0 0.0
    %1557 = vmatpush.msra.mxu0 0.0
    %1558 = vmatpush.msra.mxu0 0.0
    %1559 = vmatpush.msra.mxu0 0.0
    %1560 = vmatpush.msra.mxu0 0.0
    %1561 = vmatpush.msra.mxu0 0.0
    %1562 = vmatpush.msra.mxu0 0.0
    %1563 = vmatpush.msra.mxu0 0.0
    %1564 = vmatpush.msra.mxu0 0.0
    %1565 = vmatpush.msra.mxu0 %v1542
    %1566 = vmatpush.msra.mxu0 %v1540
    %1567 = vmatmul.f32.gmra.mxu0 %v1546
    %v1568 = vpop.f32.mrf.mxu0
    %v1569 = vadd.f32 0.0, %v1568
    %1570 = vmatmul.f32.gmra.mxu0 %v1549
    %v1571 = vpop.f32.mrf.mxu0
    %v1572 = vadd.f32 0.0, %v1571
    %1573 = vdwg.mxu0
    %1574 = vrot.lane.b32.xlu0 %v1331, 64
    %v1575 = vpop.permute.xlu0 %1574
    %1576 = vrot.lane.b32.xlu0 %v1334, 64
    %v1577 = vpop.permute.xlu0 %1576
    %1578 = vrot.lane.b32.xlu0 %v1354, 64
    %v1579 = vpop.permute.xlu0 %1578
    %1580 = vrot.lane.b32.xlu0 %v1357, 64
    %v1581 = vpop.permute.xlu0 %1580
    %v1582 = vsel %vm499, %v1575, 0
    %v1584 = vsel %vm499, %v1577, 0
    %v1586 = vsel %vm499, %v1579, 0
    %v1588 = vsel %vm499, %v1581, 0
    %1590 = vmatpush.xpose.msra.mxu0 0.0
    %1591 = vmatpush.xpose.msra.mxu0 0.0
    %1592 = vmatpush.xpose.msra.mxu0 0.0
    %1593 = vmatpush.xpose.msra.mxu0 0.0
    %1594 = vmatpush.xpose.msra.mxu0 0.0
    %1595 = vmatpush.xpose.msra.mxu0 0.0
    %1596 = vmatpush.xpose.msra.mxu0 0.0
    %1597 = vmatpush.xpose.msra.mxu0 0.0
    %1598 = vmatpush.xpose.msra.mxu0 0.0
    %1599 = vmatpush.xpose.msra.mxu0 0.0
    %1600 = vmatpush.xpose.msra.mxu0 0.0
    %1601 = vmatpush.xpose.msra.mxu0 0.0
    %1602 = vmatpush.xpose.msra.mxu0 0.0
    %1603 = vmatpush.xpose.msra.mxu0 0.0
    %1604 = vmatpush.xpose.msra.mxu0 %v1588
    %1605 = vmatpush.xpose.msra.mxu0 %v1586
    %1606 = vmatmul.f32.gmra.mxu0 %v1582
    %v1607 = vpop.f32.mrf.mxu0
    %v1608 = vadd.f32 0.0, %v1607
    %1609 = vmatmul.f32.gmra.mxu0 %v1584
    %v1610 = vpop.f32.mrf.mxu0
    %v1611 = vadd.f32 0.0, %v1610
    %1612 = vdwg.mxu0
    %v1613 = vmul.f32 %v1608, 0.17677669
    %v1614 = vmul.f32 %v1611, 0.17677669
    %v1615 = vadd.f32 %v1613, %v353
    %v1616 = vadd.f32 %v1614, %v354
    %v1617 = vsel %vm539, %v1615, -inf
    %1618 = vmax.xlane.f32.xlu0 %v1617
    %v1619 = vpop.xlane.xlu0 %1618
    %v1620 = vsel %vm539, %v1616, -inf
    %1621 = vmax.xlane.f32.xlu0 %v1620
    %v1622 = vpop.xlane.xlu0 %1621
    %v1623 = vsub.f32 %v1615, %v1619
    %v1624 = vsub.f32 %v1616, %v1622
    %v1625 = vmul.f32 %v1623, 1.442695
    %v1626 = vpow.pop %v1625
    %v1627 = vmul.f32 %v1624, 1.442695
    %v1628 = vpow.pop %v1627
    %v1629 = vsel %vm539, %v1626, 0.0
    %1630 = vadd.xlane.f32.xlu0 %v1629
    %v1631 = vpop.xlane.xlu0 %1630
    %v1632 = vsel %vm539, %v1628, 0.0
    %1633 = vadd.xlane.f32.xlu0 %v1632
    %v1634 = vpop.xlane.xlu0 %1633
    %v1635 = vrcp.pop %v1631
    %v1636 = vrcp.pop %v1634
    %v1637 = vmul.f32 %v1626, %v1635
    %v1638 = vmul.f32 %v1628, %v1636
    %1639 = vrot.lane.b32.xlu0 %v1377, 64
    %v1640 = vpop.permute.xlu0 %1639
    %1641 = vrot.lane.b32.xlu0 %v1380, 64
    %v1642 = vpop.permute.xlu0 %1641
    %v1646 = vsel %vm539, %v1637, 0
    %v1649 = vsel %vm539, %v1638, 0
    %1651 = vmatpush.msra.mxu0 0.0
    %1652 = vmatpush.msra.mxu0 0.0
    %1653 = vmatpush.msra.mxu0 0.0
    %1654 = vmatpush.msra.mxu0 0.0
    %1655 = vmatpush.msra.mxu0 0.0
    %1656 = vmatpush.msra.mxu0 0.0
    %1657 = vmatpush.msra.mxu0 0.0
    %1658 = vmatpush.msra.mxu0 0.0
    %1659 = vmatpush.msra.mxu0 0.0
    %1660 = vmatpush.msra.mxu0 0.0
    %1661 = vmatpush.msra.mxu0 0.0
    %1662 = vmatpush.msra.mxu0 0.0
    %1663 = vmatpush.msra.mxu0 0.0
    %1664 = vmatpush.msra.mxu0 0.0
    %1665 = vmatpush.msra.mxu0 %v1642
    %1666 = vmatpush.msra.mxu0 %v1640
    %1667 = vmatmul.f32.gmra.mxu0 %v1646
    %v1668 = vpop.f32.mrf.mxu0
    %v1669 = vadd.f32 0.0, %v1668
    %1670 = vmatmul.f32.gmra.mxu0 %v1649
    %v1671 = vpop.f32.mrf.mxu0
    %v1672 = vadd.f32 0.0, %v1671
    %1673 = vdwg.mxu0
    %1674 = vrot.lane.b32.xlu0 %v1331, 32
    %v1675 = vpop.permute.xlu0 %1674
    %1676 = vrot.lane.b32.xlu0 %v1334, 32
    %v1677 = vpop.permute.xlu0 %1676
    %1678 = vrot.lane.b32.xlu0 %v1354, 32
    %v1679 = vpop.permute.xlu0 %1678
    %1680 = vrot.lane.b32.xlu0 %v1357, 32
    %v1681 = vpop.permute.xlu0 %1680
    %v1682 = vsel %vm499, %v1675, 0
    %v1684 = vsel %vm499, %v1677, 0
    %v1686 = vsel %vm499, %v1679, 0
    %v1688 = vsel %vm499, %v1681, 0
    %1690 = vmatpush.xpose.msra.mxu0 0.0
    %1691 = vmatpush.xpose.msra.mxu0 0.0
    %1692 = vmatpush.xpose.msra.mxu0 0.0
    %1693 = vmatpush.xpose.msra.mxu0 0.0
    %1694 = vmatpush.xpose.msra.mxu0 0.0
    %1695 = vmatpush.xpose.msra.mxu0 0.0
    %1696 = vmatpush.xpose.msra.mxu0 0.0
    %1697 = vmatpush.xpose.msra.mxu0 0.0
    %1698 = vmatpush.xpose.msra.mxu0 0.0
    %1699 = vmatpush.xpose.msra.mxu0 0.0
    %1700 = vmatpush.xpose.msra.mxu0 0.0
    %1701 = vmatpush.xpose.msra.mxu0 0.0
    %1702 = vmatpush.xpose.msra.mxu0 0.0
    %1703 = vmatpush.xpose.msra.mxu0 0.0
    %1704 = vmatpush.xpose.msra.mxu0 %v1688
    %1705 = vmatpush.xpose.msra.mxu0 %v1686
    %1706 = vmatmul.f32.gmra.mxu0 %v1682
    %v1707 = vpop.f32.mrf.mxu0
    %v1708 = vadd.f32 0.0, %v1707
    %1709 = vmatmul.f32.gmra.mxu0 %v1684
    %v1710 = vpop.f32.mrf.mxu0
    %v1711 = vadd.f32 0.0, %v1710
    %1712 = vdwg.mxu0
    %v1713 = vmul.f32 %v1708, 0.17677669
    %v1714 = vmul.f32 %v1711, 0.17677669
    %v1715 = vadd.f32 %v1713, %v353
    %v1716 = vadd.f32 %v1714, %v354
    %v1717 = vsel %vm539, %v1715, -inf
    %1718 = vmax.xlane.f32.xlu0 %v1717
    %v1719 = vpop.xlane.xlu0 %1718
    %v1720 = vsel %vm539, %v1716, -inf
    %1721 = vmax.xlane.f32.xlu0 %v1720
    %v1722 = vpop.xlane.xlu0 %1721
    %v1723 = vsub.f32 %v1715, %v1719
    %v1724 = vsub.f32 %v1716, %v1722
    %v1725 = vmul.f32 %v1723, 1.442695
    %v1726 = vpow.pop %v1725
    %v1727 = vmul.f32 %v1724, 1.442695
    %v1728 = vpow.pop %v1727
    %v1729 = vsel %vm539, %v1726, 0.0
    %1730 = vadd.xlane.f32.xlu0 %v1729
    %v1731 = vpop.xlane.xlu0 %1730
    %v1732 = vsel %vm539, %v1728, 0.0
    %1733 = vadd.xlane.f32.xlu0 %v1732
    %v1734 = vpop.xlane.xlu0 %1733
    %v1735 = vrcp.pop %v1731
    %v1736 = vrcp.pop %v1734
    %v1737 = vmul.f32 %v1726, %v1735
    %v1738 = vmul.f32 %v1728, %v1736
    %1739 = vrot.lane.b32.xlu0 %v1377, 32
    %v1740 = vpop.permute.xlu0 %1739
    %1741 = vrot.lane.b32.xlu0 %v1380, 32
    %v1742 = vpop.permute.xlu0 %1741
    %v1746 = vsel %vm539, %v1737, 0
    %v1749 = vsel %vm539, %v1738, 0
    %1751 = vmatpush.msra.mxu0 0.0
    %1752 = vmatpush.msra.mxu0 0.0
    %1753 = vmatpush.msra.mxu0 0.0
    %1754 = vmatpush.msra.mxu0 0.0
    %1755 = vmatpush.msra.mxu0 0.0
    %1756 = vmatpush.msra.mxu0 0.0
    %1757 = vmatpush.msra.mxu0 0.0
    %1758 = vmatpush.msra.mxu0 0.0
    %1759 = vmatpush.msra.mxu0 0.0
    %1760 = vmatpush.msra.mxu0 0.0
    %1761 = vmatpush.msra.mxu0 0.0
    %1762 = vmatpush.msra.mxu0 0.0
    %1763 = vmatpush.msra.mxu0 0.0
    %1764 = vmatpush.msra.mxu0 0.0
    %1765 = vmatpush.msra.mxu0 %v1742
    %1766 = vmatpush.msra.mxu0 %v1740
    %1767 = vmatmul.f32.gmra.mxu0 %v1746
    %v1768 = vpop.f32.mrf.mxu0
    %v1769 = vadd.f32 0.0, %v1768
    %1770 = vmatmul.f32.gmra.mxu0 %v1749
    %v1771 = vpop.f32.mrf.mxu0
    %v1772 = vadd.f32 0.0, %v1771
    %1773 = vdwg.mxu0
    %1776 = vrot.lane.b32.xlu0 %v1569, 32
    %v1777 = vpop.permute.xlu0 %1776
    %1778 = vrot.lane.b32.xlu0 %v1572, 32
    %v1779 = vpop.permute.xlu0 %1778
    %1784 = vrot.lane.b32.xlu0 %v1669, 64
    %v1785 = vpop.permute.xlu0 %1784
    %1786 = vrot.lane.b32.xlu0 %v1672, 64
    %v1787 = vpop.permute.xlu0 %1786
    %1792 = vrot.lane.b32.xlu0 %v1769, 96
    %v1793 = vpop.permute.xlu0 %1792
    %1794 = vrot.lane.b32.xlu0 %v1772, 96
    %v1795 = vpop.permute.xlu0 %1794
    %v1798 = vsel %vm499, %v1467, %v1777
    %v1799 = vsel %vm499, %v1470, %v1779
    %v1800 = vsel %vm919, %v1798, %v1785
    %v1801 = vsel %vm919, %v1799, %v1787
    %v1802 = vsel %vm922, %v1800, %v1793
    %v1803 = vsel %vm922, %v1801, %v1795
    %v1805 = vperm.slane %v1305, 0
    %1807 = vmatpush.msra.mxu0 %v1303
    %1808 = vmatpush.msra.mxu0 %v1302
    %1809 = vmatpush.msra.mxu0 %v1301
    %1810 = vmatpush.msra.mxu0 %v1300
    %1811 = vmatpush.msra.mxu0 %v1299
    %1812 = vmatpush.msra.mxu0 %v1298
    %1813 = vmatpush.msra.mxu0 %v1297
    %1814 = vmatpush.msra.mxu0 %v1296
    %1815 = vmatpush.msra.mxu0 %v1295
    %1816 = vmatpush.msra.mxu0 %v1294
    %1817 = vmatpush.msra.mxu0 %v1293
    %1818 = vmatpush.msra.mxu0 %v1292
    %1819 = vmatpush.msra.mxu0 %v1291
    %1820 = vmatpush.msra.mxu0 %v1290
    %1821 = vmatpush.msra.mxu0 %v1289
    %1822 = vmatpush.msra.mxu0 %v1288
    %1823 = vmatmul.f32.gmra.mxu0 %v1802
    %v1824 = vpop.f32.mrf.mxu0
    %v1825 = vadd.f32 %v1805, %v1824
    %1826 = vmatmul.f32.gmra.mxu0 %v1803
    %v1827 = vpop.f32.mrf.mxu0
    %v1828 = vadd.f32 %v1805, %v1827
    %1829 = vdwg.mxu0
    %v1830 = vadd.f32 %v1234, %v1825
    %v1831 = vadd.f32 %v1235, %v1828
    %s1832 = scalar_lea.vmem %s15, 1
    %v1833 = vld [vmem:[%s1832] sm:$0x1]
    %s1834 = scalar_lea.vmem %s17, 1
    %v1835 = vld [vmem:[%s1834] sm:$0x1]
    %1836 = vadd.xlane.f32.xlu0 %v1830
    %v1837 = vpop.xlane.xlu0 %1836
    %1838 = vadd.xlane.f32.xlu0 %v1831
    %v1839 = vpop.xlane.xlu0 %1838
    %v1840 = vmul.f32 %v1837, %v965
    %v1841 = vmul.f32 %v1839, %v965
    %v1842 = vsub.f32 %v1830, %v1840
    %v1843 = vsub.f32 %v1831, %v1841
    %v1844 = vmul.f32 %v1842, %v1842
    %v1845 = vmul.f32 %v1843, %v1843
    %1846 = vadd.xlane.f32.xlu0 %v1844
    %v1847 = vpop.xlane.xlu0 %1846
    %1848 = vadd.xlane.f32.xlu0 %v1845
    %v1849 = vpop.xlane.xlu0 %1848
    %v1850 = vmul.f32 %v1847, %v965
    %v1851 = vmul.f32 %v1849, %v965
    %v1852 = vadd.f32 %v1850, 0.6
    %v1853 = vadd.f32 %v1851, 0.6
    %v1854 = vrsqrt.pop %v1852
    %v1855 = vmul.f32 %v1854, %v1852
    %v1856 = vmul.f32 %v1855, %v1854
    %v1857 = vmul.f32 0.5, %v1856
    %v1858 = vsub.f32 1.5, %v1857
    %v1859 = vmul.f32 %v1854, %v1858
    %vm1860 = vweird.f32 %v1852
    %vm1861 = vweird.f32 %v1854
    %vm1862 = vmor %vm1860, %vm1861
    %v1863 = vsel %vm1862, %v1854, %v1859
    %v1864 = vrsqrt.pop %v1853
    %v1865 = vmul.f32 %v1864, %v1853
    %v1866 = vmul.f32 %v1865, %v1864
    %v1867 = vmul.f32 0.5, %v1866
    %v1868 = vsub.f32 1.5, %v1867
    %v1869 = vmul.f32 %v1864, %v1868
    %vm1870 = vweird.f32 %v1853
    %vm1871 = vweird.f32 %v1864
    %vm1872 = vmor %vm1870, %vm1871
    %v1873 = vsel %vm1872, %v1864, %v1869
    %v1874 = vmul.f32 %v1842, %v1863
    %v1875 = vmul.f32 %v1843, %v1873
    %v1877 = vperm.slane %v1833, 0
    %v1879 = vmul.f32 %v1874, %v1877
    %v1880 = vmul.f32 %v1875, %v1877
    %v1882 = vperm.slane %v1835, 0
    %v1884 = vadd.f32 %v1879, %v1882
    %v1885 = vadd.f32 %v1880, %v1882
    %s1886 = scalar_lea.vmem [#allocation7], 256
    %v1887 = vld [vmem:[%s1886] sm:$0xff]
    %v1888 = vld [vmem:[%s1886 + $0x8] sm:$0xff]
    %v1889 = vld [vmem:[%s1886 + $0x10] sm:$0xff]
    %v1890 = vld [vmem:[%s1886 + $0x18] sm:$0xff]
    %v1891 = vld [vmem:[%s1886 + $0x20] sm:$0xff]
    %v1892 = vld [vmem:[%s1886 + $0x28] sm:$0xff]
    %v1893 = vld [vmem:[%s1886 + $0x30] sm:$0xff]
    %v1894 = vld [vmem:[%s1886 + $0x38] sm:$0xff]
    %v1895 = vld [vmem:[%s1886 + $0x40] sm:$0xff]
    %v1896 = vld [vmem:[%s1886 + $0x48] sm:$0xff]
    %v1897 = vld [vmem:[%s1886 + $0x50] sm:$0xff]
    %v1898 = vld [vmem:[%s1886 + $0x58] sm:$0xff]
    %v1899 = vld [vmem:[%s1886 + $0x60] sm:$0xff]
    %v1900 = vld [vmem:[%s1886 + $0x68] sm:$0xff]
    %v1901 = vld [vmem:[%s1886 + $0x70] sm:$0xff]
    %v1902 = vld [vmem:[%s1886 + $0x78] sm:$0xff]
    %v1903 = vld [vmem:[%s1886 + $0x80] sm:$0xff]
    %v1904 = vld [vmem:[%s1886 + $0x88] sm:$0xff]
    %v1905 = vld [vmem:[%s1886 + $0x90] sm:$0xff]
    %v1906 = vld [vmem:[%s1886 + $0x98] sm:$0xff]
    %v1907 = vld [vmem:[%s1886 + $0xa0] sm:$0xff]
    %v1908 = vld [vmem:[%s1886 + $0xa8] sm:$0xff]
    %v1909 = vld [vmem:[%s1886 + $0xb0] sm:$0xff]
    %v1910 = vld [vmem:[%s1886 + $0xb8] sm:$0xff]
    %v1911 = vld [vmem:[%s1886 + $0xc0] sm:$0xff]
    %v1912 = vld [vmem:[%s1886 + $0xc8] sm:$0xff]
    %v1913 = vld [vmem:[%s1886 + $0xd0] sm:$0xff]
    %v1914 = vld [vmem:[%s1886 + $0xd8] sm:$0xff]
    %v1915 = vld [vmem:[%s1886 + $0xe0] sm:$0xff]
    %v1916 = vld [vmem:[%s1886 + $0xe8] sm:$0xff]
    %v1917 = vld [vmem:[%s1886 + $0xf0] sm:$0xff]
    %v1918 = vld [vmem:[%s1886 + $0xf8] sm:$0xff]
    %s1919 = scalar_lea.vmem %s21, 2
    %v1920 = vld [vmem:[%s1919] sm:$0x3]
    %s1921 = scalar_lea.vmem [#allocation8], 256
    %v1922 = vld [vmem:[%s1921] sm:$0xff]
    %v1923 = vld [vmem:[%s1921 + $0x8] sm:$0xff]
    %v1924 = vld [vmem:[%s1921 + $0x10] sm:$0xff]
    %v1925 = vld [vmem:[%s1921 + $0x18] sm:$0xff]
    %v1926 = vld [vmem:[%s1921 + $0x20] sm:$0xff]
    %v1927 = vld [vmem:[%s1921 + $0x28] sm:$0xff]
    %v1928 = vld [vmem:[%s1921 + $0x30] sm:$0xff]
    %v1929 = vld [vmem:[%s1921 + $0x38] sm:$0xff]
    %v1930 = vld [vmem:[%s1921 + $0x40] sm:$0xff]
    %v1931 = vld [vmem:[%s1921 + $0x48] sm:$0xff]
    %v1932 = vld [vmem:[%s1921 + $0x50] sm:$0xff]
    %v1933 = vld [vmem:[%s1921 + $0x58] sm:$0xff]
    %v1934 = vld [vmem:[%s1921 + $0x60] sm:$0xff]
    %v1935 = vld [vmem:[%s1921 + $0x68] sm:$0xff]
    %v1936 = vld [vmem:[%s1921 + $0x70] sm:$0xff]
    %v1937 = vld [vmem:[%s1921 + $0x78] sm:$0xff]
    %v1938 = vld [vmem:[%s1921 + $0x80] sm:$0xff]
    %v1939 = vld [vmem:[%s1921 + $0x88] sm:$0xff]
    %v1940 = vld [vmem:[%s1921 + $0x90] sm:$0xff]
    %v1941 = vld [vmem:[%s1921 + $0x98] sm:$0xff]
    %v1942 = vld [vmem:[%s1921 + $0xa0] sm:$0xff]
    %v1943 = vld [vmem:[%s1921 + $0xa8] sm:$0xff]
    %v1944 = vld [vmem:[%s1921 + $0xb0] sm:$0xff]
    %v1945 = vld [vmem:[%s1921 + $0xb8] sm:$0xff]
    %v1946 = vld [vmem:[%s1921 + $0xc0] sm:$0xff]
    %v1947 = vld [vmem:[%s1921 + $0xc8] sm:$0xff]
    %v1948 = vld [vmem:[%s1921 + $0xd0] sm:$0xff]
    %v1949 = vld [vmem:[%s1921 + $0xd8] sm:$0xff]
    %v1950 = vld [vmem:[%s1921 + $0xe0] sm:$0xff]
    %v1951 = vld [vmem:[%s1921 + $0xe8] sm:$0xff]
    %v1952 = vld [vmem:[%s1921 + $0xf0] sm:$0xff]
    %v1953 = vld [vmem:[%s1921 + $0xf8] sm:$0xff]
    %s1954 = scalar_lea.vmem %s25, 1
    %v1955 = vld [vmem:[%s1954] sm:$0x1]
    %v1957 = vperm.slane %v1920, 0
    %v1958 = vperm.slane %v1920, 1
    %1961 = vmatpush.msra.mxu0 %v1917
    %1962 = vmatpush.msra.mxu0 %v1915
    %1963 = vmatpush.msra.mxu0 %v1913
    %1964 = vmatpush.msra.mxu0 %v1911
    %1965 = vmatpush.msra.mxu0 %v1909
    %1966 = vmatpush.msra.mxu0 %v1907
    %1967 = vmatpush.msra.mxu0 %v1905
    %1968 = vmatpush.msra.mxu0 %v1903
    %1969 = vmatpush.msra.mxu0 %v1901
    %1970 = vmatpush.msra.mxu0 %v1899
    %1971 = vmatpush.msra.mxu0 %v1897
    %1972 = vmatpush.msra.mxu0 %v1895
    %1973 = vmatpush.msra.mxu0 %v1893
    %1974 = vmatpush.msra.mxu0 %v1891
    %1975 = vmatpush.msra.mxu0 %v1889
    %1976 = vmatpush.msra.mxu0 %v1887
    %1977 = vmatmul.f32.gmra.mxu0 %v1884
    %v1978 = vpop.f32.mrf.mxu0
    %v1979 = vadd.f32 %v1957, %v1978
    %1980 = vmatmul.f32.gmra.mxu0 %v1885
    %v1981 = vpop.f32.mrf.mxu0
    %v1982 = vadd.f32 %v1957, %v1981
    %1983 = vdwg.mxu0
    %1984 = vmatpush.msra.mxu0 %v1918
    %1985 = vmatpush.msra.mxu0 %v1916
    %1986 = vmatpush.msra.mxu0 %v1914
    %1987 = vmatpush.msra.mxu0 %v1912
    %1988 = vmatpush.msra.mxu0 %v1910
    %1989 = vmatpush.msra.mxu0 %v1908
    %1990 = vmatpush.msra.mxu0 %v1906
    %1991 = vmatpush.msra.mxu0 %v1904
    %1992 = vmatpush.msra.mxu0 %v1902
    %1993 = vmatpush.msra.mxu0 %v1900
    %1994 = vmatpush.msra.mxu0 %v1898
    %1995 = vmatpush.msra.mxu0 %v1896
    %1996 = vmatpush.msra.mxu0 %v1894
    %1997 = vmatpush.msra.mxu0 %v1892
    %1998 = vmatpush.msra.mxu0 %v1890
    %1999 = vmatpush.msra.mxu0 %v1888
    %2000 = vmatmul.f32.gmra.mxu0 %v1884
    %v2001 = vpop.f32.mrf.mxu0
    %v2002 = vadd.f32 %v1958, %v2001
    %2003 = vmatmul.f32.gmra.mxu0 %v1885
    %v2004 = vpop.f32.mrf.mxu0
    %v2005 = vadd.f32 %v1958, %v2004
    %2006 = vdwg.mxu0
    %v2007 = vmax.f32 %v1979, 0.0
    %v2008 = vmax.f32 %v2002, 0.0
    %v2009 = vmax.f32 %v1982, 0.0
    %v2010 = vmax.f32 %v2005, 0.0
    %v2012 = vperm.slane %v1955, 0
    %2014 = vmatpush.msra.mxu0 %v1937
    %2015 = vmatpush.msra.mxu0 %v1936
    %2016 = vmatpush.msra.mxu0 %v1935
    %2017 = vmatpush.msra.mxu0 %v1934
    %2018 = vmatpush.msra.mxu0 %v1933
    %2019 = vmatpush.msra.mxu0 %v1932
    %2020 = vmatpush.msra.mxu0 %v1931
    %2021 = vmatpush.msra.mxu0 %v1930
    %2022 = vmatpush.msra.mxu0 %v1929
    %2023 = vmatpush.msra.mxu0 %v1928
    %2024 = vmatpush.msra.mxu0 %v1927
    %2025 = vmatpush.msra.mxu0 %v1926
    %2026 = vmatpush.msra.mxu0 %v1925
    %2027 = vmatpush.msra.mxu0 %v1924
    %2028 = vmatpush.msra.mxu0 %v1923
    %2029 = vmatpush.msra.mxu0 %v1922
    %2030 = vmatmul.f32.gmra.mxu0 %v2007
    %v2031 = vpop.f32.mrf.mxu0
    %v2032 = vadd.f32 %v2012, %v2031
    %2033 = vmatmul.f32.gmra.mxu0 %v2009
    %v2034 = vpop.f32.mrf.mxu0
    %v2035 = vadd.f32 %v2012, %v2034
    %2036 = vdwg.mxu0
    %2037 = vmatpush.msra.mxu0 %v1953
    %2038 = vmatpush.msra.mxu0 %v1952
    %2039 = vmatpush.msra.mxu0 %v1951
    %2040 = vmatpush.msra.mxu0 %v1950
    %2041 = vmatpush.msra.mxu0 %v1949
    %2042 = vmatpush.msra.mxu0 %v1948
    %2043 = vmatpush.msra.mxu0 %v1947
    %2044 = vmatpush.msra.mxu0 %v1946
    %2045 = vmatpush.msra.mxu0 %v1945
    %2046 = vmatpush.msra.mxu0 %v1944
    %2047 = vmatpush.msra.mxu0 %v1943
    %2048 = vmatpush.msra.mxu0 %v1942
    %2049 = vmatpush.msra.mxu0 %v1941
    %2050 = vmatpush.msra.mxu0 %v1940
    %2051 = vmatpush.msra.mxu0 %v1939
    %2052 = vmatpush.msra.mxu0 %v1938
    %2053 = vmatmul.f32.gmra.mxu0 %v2008
    %v2054 = vpop.f32.mrf.mxu0
    %v2055 = vadd.f32 %v2032, %v2054
    %2056 = vmatmul.f32.gmra.mxu0 %v2010
    %v2057 = vpop.f32.mrf.mxu0
    %v2058 = vadd.f32 %v2035, %v2057
    %2059 = vdwg.mxu0
    %v2060 = vadd.f32 %v1884, %v2055
    %v2061 = vadd.f32 %v1885, %v2058
    %s2062 = scalar_lea.vmem %s27, 1
    %v2063 = vld [vmem:[%s2062] sm:$0x1]
    %s2064 = scalar_lea.vmem %s29, 1
    %v2065 = vld [vmem:[%s2064] sm:$0x1]
    %2066 = vadd.xlane.f32.xlu0 %v2060
    %v2067 = vpop.xlane.xlu0 %2066
    %2068 = vadd.xlane.f32.xlu0 %v2061
    %v2069 = vpop.xlane.xlu0 %2068
    %v2070 = vmul.f32 %v2067, %v965
    %v2071 = vmul.f32 %v2069, %v965
    %v2072 = vsub.f32 %v2060, %v2070
    %v2073 = vsub.f32 %v2061, %v2071
    %v2074 = vmul.f32 %v2072, %v2072
    %v2075 = vmul.f32 %v2073, %v2073
    %2076 = vadd.xlane.f32.xlu0 %v2074
    %v2077 = vpop.xlane.xlu0 %2076
    %2078 = vadd.xlane.f32.xlu0 %v2075
    %v2079 = vpop.xlane.xlu0 %2078
    %v2080 = vmul.f32 %v2077, %v965
    %v2081 = vmul.f32 %v2079, %v965
    %v2082 = vadd.f32 %v2080, 0.6
    %v2083 = vadd.f32 %v2081, 0.6
    %v2084 = vrsqrt.pop %v2082
    %v2085 = vmul.f32 %v2084, %v2082
    %v2086 = vmul.f32 %v2085, %v2084
    %v2087 = vmul.f32 0.5, %v2086
    %v2088 = vsub.f32 1.5, %v2087
    %v2089 = vmul.f32 %v2084, %v2088
    %vm2090 = vweird.f32 %v2082
    %vm2091 = vweird.f32 %v2084
    %vm2092 = vmor %vm2090, %vm2091
    %v2093 = vsel %vm2092, %v2084, %v2089
    %v2094 = vrsqrt.pop %v2083
    %v2095 = vmul.f32 %v2094, %v2083
    %v2096 = vmul.f32 %v2095, %v2094
    %v2097 = vmul.f32 0.5, %v2096
    %v2098 = vsub.f32 1.5, %v2097
    %v2099 = vmul.f32 %v2094, %v2098
    %vm2100 = vweird.f32 %v2083
    %vm2101 = vweird.f32 %v2094
    %vm2102 = vmor %vm2100, %vm2101
    %v2103 = vsel %vm2102, %v2094, %v2099
    %v2104 = vmul.f32 %v2072, %v2093
    %v2105 = vmul.f32 %v2073, %v2103
    %v2107 = vperm.slane %v2063, 0
    %v2109 = vmul.f32 %v2104, %v2107
    %v2110 = vmul.f32 %v2105, %v2107
    %v2112 = vperm.slane %v2065, 0
    %v2114 = vadd.f32 %v2109, %v2112
    %v2115 = vadd.f32 %v2110, %v2112
    %v2116 = vld [vmem:[%s5] sm:$0x3]
    %v2118 = vsel %vm539, %v2116, 0
    %2120 = vmatpush.msra.mxu0 0.0
    %2121 = vmatpush.msra.mxu0 0.0
    %2122 = vmatpush.msra.mxu0 0.0
    %2123 = vmatpush.msra.mxu0 0.0
    %2124 = vmatpush.msra.mxu0 0.0
    %2125 = vmatpush.msra.mxu0 0.0
    %2126 = vmatpush.msra.mxu0 0.0
    %2127 = vmatpush.msra.mxu0 0.0
    %2128 = vmatpush.msra.mxu0 0.0
    %2129 = vmatpush.msra.mxu0 0.0
    %2130 = vmatpush.msra.mxu0 0.0
    %2131 = vmatpush.msra.mxu0 0.0
    %2132 = vmatpush.msra.mxu0 0.0
    %2133 = vmatpush.msra.mxu0 0.0
    %2134 = vmatpush.msra.mxu0 %v2115
    %2135 = vmatpush.msra.mxu0 %v2114
    %2136 = vmatmul.f32.gmra.mxu0 %v2118
    %v2137 = vpop.f32.mrf.mxu0
    %v2138 = vadd.f32 0.0, %v2137
    %2139 = vdwg.mxu0
    %v2140 = vld [vmem:[%s67] sm:$0xff]
    %v2141 = vld [vmem:[%s67 + $0x8] sm:$0xff]
    %v2142 = vld [vmem:[%s67 + $0x10] sm:$0xff]
    %v2143 = vld [vmem:[%s67 + $0x18] sm:$0xff]
    %v2144 = vld [vmem:[%s67 + $0x20] sm:$0xff]
    %v2145 = vld [vmem:[%s67 + $0x28] sm:$0xff]
    %v2146 = vld [vmem:[%s67 + $0x30] sm:$0xff]
    %v2147 = vld [vmem:[%s67 + $0x38] sm:$0xff]
    %v2148 = vld [vmem:[%s67 + $0x40] sm:$0xff]
    %v2149 = vld [vmem:[%s67 + $0x48] sm:$0xff]
    %v2150 = vld [vmem:[%s67 + $0x50] sm:$0xff]
    %v2151 = vld [vmem:[%s67 + $0x58] sm:$0xff]
    %v2152 = vld [vmem:[%s67 + $0x60] sm:$0xff]
    %v2153 = vld [vmem:[%s67 + $0x68] sm:$0xff]
    %v2154 = vld [vmem:[%s67 + $0x70] sm:$0xff]
    %v2155 = vld [vmem:[%s67 + $0x78] sm:$0xff]
    %v2156 = vld [vmem:[%s69] sm:$0x1]
    %v2158 = vperm.slane %v2156, 0
    %2160 = vmatpush.msra.mxu0 %v2155
    %2161 = vmatpush.msra.mxu0 %v2154
    %2162 = vmatpush.msra.mxu0 %v2153
    %2163 = vmatpush.msra.mxu0 %v2152
    %2164 = vmatpush.msra.mxu0 %v2151
    %2165 = vmatpush.msra.mxu0 %v2150
    %2166 = vmatpush.msra.mxu0 %v2149
    %2167 = vmatpush.msra.mxu0 %v2148
    %2168 = vmatpush.msra.mxu0 %v2147
    %2169 = vmatpush.msra.mxu0 %v2146
    %2170 = vmatpush.msra.mxu0 %v2145
    %2171 = vmatpush.msra.mxu0 %v2144
    %2172 = vmatpush.msra.mxu0 %v2143
    %2173 = vmatpush.msra.mxu0 %v2142
    %2174 = vmatpush.msra.mxu0 %v2141
    %2175 = vmatpush.msra.mxu0 %v2140
    %2176 = vmatmul.f32.gmra.mxu0 %v2138
    %v2177 = vpop.f32.mrf.mxu0
    %v2178 = vadd.f32 %v2158, %v2177
    %2179 = vdwg.mxu0
    %v2180 = vmul.f32 %v2178, %v2178
    %vm2181 = vcmask 1041408
    %v2182 = vsel %vm2181, %v2180, 0.0
    %2183 = vadd.xlane.f32.xlu0 %v2182
    %v2184 = vpop.xlane.xlu0 %2183
    %v2185 = vrsqrt.pop %v2184
    %v2186 = vmul.f32 %v2185, %v2184
    %v2187 = vmul.f32 %v2186, %v2185
    %v2188 = vmul.f32 0.5, %v2187
    %v2189 = vsub.f32 1.5, %v2188
    %v2190 = vmul.f32 %v2185, %v2189
    %v2191 = vmul.f32 %v2184, %v2190
    %vm2192 = vcmp.eq.f32.partialorder %v2184, inf
    %v2193 = vsel %vm2192, %v2184, %v2191
    %vm2194 = vcmp.eq.f32.partialorder %v2184, 0.0
    %v2195 = vand.u32 %v2184, 2147483648
    %v2196 = vsel %vm2194, %v2195, %v2193
    %v2197 = vmax.f32 %v2196, 1e-12
    %v2198 = vrcp.pop %v2197
    %v2199 = vmul.f32 %v2197, %v2198
    %v2200 = vsub.f32 1.0, %v2199
    %v2201 = vmul.f32 %v2198, %v2200
    %v2202 = vadd.f32 %v2198, %v2201
    %vm2203 = vweird.f32 %v2197
    %vm2204 = vweird.f32 %v2198
    %vm2205 = vmor %vm2203, %vm2204
    %v2206 = vsel %vm2205, %v2198, %v2202
    %v2207 = vand.u32 2147483647, %v2197
    %vm2208 = vcmp.eq.f32.partialorder %v2207, 8.507059e+37
    %v2209 = vand.u32 %v2197, 2147483648
    %v2210 = vor.u32 1.1754944e-38, %v2209
    %v2211 = vsel %vm2208, %v2210, %v2206
    %v2212 = vmul.f32 %v2178, %v2211
    %2213 = vst [vmem:[#allocation22] sm:$0x3] %v2212
    %v2214 = vld [vmem:[#allocation19] sm:$0xff]
    %v2215 = vld [vmem:[#allocation19 + $0x8] sm:$0xff]
    %v2216 = vld [vmem:[#allocation19 + $0x10] sm:$0xff]
    %v2217 = vld [vmem:[#allocation19 + $0x18] sm:$0xff]
    %v2218 = vld [vmem:[#allocation19 + $0x20] sm:$0xff]
    %v2219 = vld [vmem:[#allocation19 + $0x28] sm:$0xff]
    %v2220 = vld [vmem:[#allocation19 + $0x30] sm:$0xff]
    %v2221 = vld [vmem:[#allocation19 + $0x38] sm:$0xff]
    %v2222 = vld [vmem:[#allocation19 + $0x40] sm:$0xff]
    %v2223 = vld [vmem:[#allocation19 + $0x48] sm:$0xff]
    %v2224 = vld [vmem:[#allocation19 + $0x50] sm:$0xff]
    %v2225 = vld [vmem:[#allocation19 + $0x58] sm:$0xff]
    %v2226 = vld [vmem:[#allocation19 + $0x60] sm:$0xff]
    %v2227 = vld [vmem:[#allocation19 + $0x68] sm:$0xff]
    %v2228 = vld [vmem:[#allocation19 + $0x70] sm:$0xff]
    %v2229 = vld [vmem:[#allocation19 + $0x78] sm:$0xff]
    %v2230 = vld [vmem:[#allocation19 + $0x80] sm:$0xff]
    %v2231 = vld [vmem:[#allocation19 + $0x88] sm:$0xff]
    %v2232 = vld [vmem:[#allocation19 + $0x90] sm:$0xff]
    %v2233 = vld [vmem:[#allocation19 + $0x98] sm:$0xff]
    %v2234 = vld [vmem:[#allocation19 + $0xa0] sm:$0xff]
    %v2235 = vld [vmem:[#allocation19 + $0xa8] sm:$0xff]
    %v2236 = vld [vmem:[#allocation19 + $0xb0] sm:$0xff]
    %v2237 = vld [vmem:[#allocation19 + $0xb8] sm:$0xff]
    %v2238 = vld [vmem:[#allocation19 + $0xc0] sm:$0xff]
    %v2239 = vld [vmem:[#allocation19 + $0xc8] sm:$0xff]
    %v2240 = vld [vmem:[#allocation19 + $0xd0] sm:$0xff]
    %v2241 = vld [vmem:[#allocation19 + $0xd8] sm:$0xff]
    %v2242 = vld [vmem:[#allocation19 + $0xe0] sm:$0xff]
    %v2243 = vld [vmem:[#allocation19 + $0xe8] sm:$0xff]
    %v2244 = vld [vmem:[#allocation19 + $0xf0] sm:$0xff]
    %v2245 = vld [vmem:[#allocation19 + $0xf8] sm:$0xff]
    %v2246 = vld [vmem:[#allocation19 + $0x100] sm:$0xff]
    %v2247 = vld [vmem:[#allocation19 + $0x108] sm:$0xff]
    %v2248 = vld [vmem:[#allocation19 + $0x110] sm:$0xff]
    %v2249 = vld [vmem:[#allocation19 + $0x118] sm:$0xff]
    %v2250 = vld [vmem:[#allocation19 + $0x120] sm:$0xff]
    %v2251 = vld [vmem:[#allocation19 + $0x128] sm:$0xff]
    %v2252 = vld [vmem:[#allocation19 + $0x130] sm:$0xff]
    %v2253 = vld [vmem:[#allocation19 + $0x138] sm:$0xff]
    %v2254 = vld [vmem:[#allocation19 + $0x140] sm:$0xff]
    %v2255 = vld [vmem:[#allocation19 + $0x148] sm:$0xff]
    %v2256 = vld [vmem:[#allocation19 + $0x150] sm:$0xff]
    %v2257 = vld [vmem:[#allocation19 + $0x158] sm:$0xff]
    %v2258 = vld [vmem:[#allocation19 + $0x160] sm:$0xff]
    %v2259 = vld [vmem:[#allocation19 + $0x168] sm:$0xff]
    %v2260 = vld [vmem:[#allocation19 + $0x170] sm:$0xff]
    %v2261 = vld [vmem:[#allocation19 + $0x178] sm:$0xff]
    %v2262 = vld [vmem:[#allocation19 + $0x180] sm:$0xff]
    %v2263 = vld [vmem:[#allocation19 + $0x188] sm:$0xff]
    %v2264 = vld [vmem:[#allocation19 + $0x190] sm:$0xff]
    %v2265 = vld [vmem:[#allocation19 + $0x198] sm:$0xff]
    %v2266 = vld [vmem:[#allocation19 + $0x1a0] sm:$0xff]
    %v2267 = vld [vmem:[#allocation19 + $0x1a8] sm:$0xff]
    %v2268 = vld [vmem:[#allocation19 + $0x1b0] sm:$0xff]
    %v2269 = vld [vmem:[#allocation19 + $0x1b8] sm:$0xff]
    %v2270 = vld [vmem:[#allocation19 + $0x1c0] sm:$0xff]
    %v2271 = vld [vmem:[#allocation19 + $0x1c8] sm:$0xff]
    %v2272 = vld [vmem:[#allocation19 + $0x1d0] sm:$0xff]
    %v2273 = vld [vmem:[#allocation19 + $0x1d8] sm:$0xff]
    %v2274 = vld [vmem:[#allocation19 + $0x1e0] sm:$0xff]
    %v2275 = vld [vmem:[#allocation19 + $0x1e8] sm:$0xff]
    %v2276 = vld [vmem:[#allocation19 + $0x1f0] sm:$0xff]
    %v2277 = vld [vmem:[#allocation19 + $0x1f8] sm:$0xff]
    %v2278 = vld [vmem:[#allocation19 + $0x200] sm:$0xff]
    %v2279 = vld [vmem:[#allocation19 + $0x208] sm:$0xff]
    %v2280 = vld [vmem:[#allocation19 + $0x210] sm:$0xff]
    %v2281 = vld [vmem:[#allocation19 + $0x218] sm:$0xff]
    %v2282 = vld [vmem:[#allocation19 + $0x220] sm:$0xff]
    %v2283 = vld [vmem:[#allocation19 + $0x228] sm:$0xff]
    %v2284 = vld [vmem:[#allocation19 + $0x230] sm:$0xff]
    %v2285 = vld [vmem:[#allocation19 + $0x238] sm:$0xff]
    %v2286 = vld [vmem:[#allocation19 + $0x240] sm:$0xff]
    %v2287 = vld [vmem:[#allocation19 + $0x248] sm:$0xff]
    %v2288 = vld [vmem:[#allocation19 + $0x250] sm:$0xff]
    %v2289 = vld [vmem:[#allocation19 + $0x258] sm:$0xff]
    %v2290 = vld [vmem:[#allocation19 + $0x260] sm:$0xff]
    %v2291 = vld [vmem:[#allocation19 + $0x268] sm:$0xff]
    %v2292 = vld [vmem:[#allocation19 + $0x270] sm:$0xff]
    %v2293 = vld [vmem:[#allocation19 + $0x278] sm:$0xff]
    %v2294 = vld [vmem:[#allocation19 + $0x280] sm:$0xff]
    %v2295 = vld [vmem:[#allocation19 + $0x288] sm:$0xff]
    %v2296 = vld [vmem:[#allocation19 + $0x290] sm:$0xff]
    %v2297 = vld [vmem:[#allocation19 + $0x298] sm:$0xff]
    %v2298 = vld [vmem:[#allocation19 + $0x2a0] sm:$0xff]
    %v2299 = vld [vmem:[#allocation19 + $0x2a8] sm:$0xff]
    %v2300 = vld [vmem:[#allocation19 + $0x2b0] sm:$0xff]
    %v2301 = vld [vmem:[#allocation19 + $0x2b8] sm:$0xff]
    %v2302 = vld [vmem:[#allocation19 + $0x2c0] sm:$0xff]
    %v2303 = vld [vmem:[#allocation19 + $0x2c8] sm:$0xff]
    %v2304 = vld [vmem:[#allocation19 + $0x2d0] sm:$0xff]
    %v2305 = vld [vmem:[#allocation19 + $0x2d8] sm:$0xff]
    %v2306 = vld [vmem:[#allocation19 + $0x2e0] sm:$0xff]
    %v2307 = vld [vmem:[#allocation19 + $0x2e8] sm:$0xff]
    %v2308 = vld [vmem:[#allocation19 + $0x2f0] sm:$0xff]
    %v2309 = vld [vmem:[#allocation19 + $0x2f8] sm:$0xff]
    %v2310 = vld [vmem:[#allocation19 + $0x300] sm:$0xff]
    %v2311 = vld [vmem:[#allocation19 + $0x308] sm:$0xff]
    %v2312 = vld [vmem:[#allocation19 + $0x310] sm:$0xff]
    %v2313 = vld [vmem:[#allocation19 + $0x318] sm:$0xff]
    %v2314 = vld [vmem:[#allocation19 + $0x320] sm:$0xff]
    %v2315 = vld [vmem:[#allocation19 + $0x328] sm:$0xff]
    %v2316 = vld [vmem:[#allocation19 + $0x330] sm:$0xff]
    %v2317 = vld [vmem:[#allocation19 + $0x338] sm:$0xff]
    %v2318 = vld [vmem:[#allocation19 + $0x340] sm:$0xff]
    %v2319 = vld [vmem:[#allocation19 + $0x348] sm:$0xff]
    %v2320 = vld [vmem:[#allocation19 + $0x350] sm:$0xff]
    %v2321 = vld [vmem:[#allocation19 + $0x358] sm:$0xff]
    %v2322 = vld [vmem:[#allocation19 + $0x360] sm:$0xff]
    %v2323 = vld [vmem:[#allocation19 + $0x368] sm:$0xff]
    %v2324 = vld [vmem:[#allocation19 + $0x370] sm:$0xff]
    %v2325 = vld [vmem:[#allocation19 + $0x378] sm:$0xff]
    %v2326 = vld [vmem:[#allocation19 + $0x380] sm:$0xff]
    %v2327 = vld [vmem:[#allocation19 + $0x388] sm:$0xff]
    %v2328 = vld [vmem:[#allocation19 + $0x390] sm:$0xff]
    %v2329 = vld [vmem:[#allocation19 + $0x398] sm:$0xff]
    %v2330 = vld [vmem:[#allocation19 + $0x3a0] sm:$0xff]
    %v2331 = vld [vmem:[#allocation19 + $0x3a8] sm:$0xff]
    %v2332 = vld [vmem:[#allocation19 + $0x3b0] sm:$0xff]
    %v2333 = vld [vmem:[#allocation19 + $0x3b8] sm:$0xff]
    %v2334 = vld [vmem:[#allocation19 + $0x3c0] sm:$0xff]
    %v2335 = vld [vmem:[#allocation19 + $0x3c8] sm:$0xff]
    %v2336 = vld [vmem:[#allocation19 + $0x3d0] sm:$0xff]
    %v2337 = vld [vmem:[#allocation19 + $0x3d8] sm:$0xff]
    %v2338 = vld [vmem:[#allocation19 + $0x3e0] sm:$0xff]
    %v2339 = vld [vmem:[#allocation19 + $0x3e8] sm:$0xff]
    %v2340 = vld [vmem:[#allocation19 + $0x3f0] sm:$0xff]
    %v2341 = vld [vmem:[#allocation19 + $0x3f8] sm:$0xff]
    %v2342 = vld [vmem:[%s73] sm:$0xff]
    %v2344 = vperm.slane %v2342, 0
    %v2345 = vperm.slane %v2342, 1
    %v2346 = vperm.slane %v2342, 2
    %v2347 = vperm.slane %v2342, 3
    %v2348 = vperm.slane %v2342, 4
    %v2349 = vperm.slane %v2342, 5
    %v2350 = vperm.slane %v2342, 6
    %v2351 = vperm.slane %v2342, 7
    %2360 = vmatpush.msra.mxu0 %v2334
    %2361 = vmatpush.msra.mxu0 %v2326
    %2362 = vmatpush.msra.mxu0 %v2318
    %2363 = vmatpush.msra.mxu0 %v2310
    %2364 = vmatpush.msra.mxu0 %v2302
    %2365 = vmatpush.msra.mxu0 %v2294
    %2366 = vmatpush.msra.mxu0 %v2286
    %2367 = vmatpush.msra.mxu0 %v2278
    %2368 = vmatpush.msra.mxu0 %v2270
    %2369 = vmatpush.msra.mxu0 %v2262
    %2370 = vmatpush.msra.mxu0 %v2254
    %2371 = vmatpush.msra.mxu0 %v2246
    %2372 = vmatpush.msra.mxu0 %v2238
    %2373 = vmatpush.msra.mxu0 %v2230
    %2374 = vmatpush.msra.mxu0 %v2222
    %2375 = vmatpush.msra.mxu0 %v2214
    %2376 = vmatmul.f32.gmra.mxu0 %v2212
    %v2377 = vpop.f32.mrf.mxu0
    %v2378 = vadd.f32 %v2344, %v2377
    %2379 = vdwg.mxu0
    %2380 = vmatpush.msra.mxu0 %v2335
    %2381 = vmatpush.msra.mxu0 %v2327
    %2382 = vmatpush.msra.mxu0 %v2319
    %2383 = vmatpush.msra.mxu0 %v2311
    %2384 = vmatpush.msra.mxu0 %v2303
    %2385 = vmatpush.msra.mxu0 %v2295
    %2386 = vmatpush.msra.mxu0 %v2287
    %2387 = vmatpush.msra.mxu0 %v2279
    %2388 = vmatpush.msra.mxu0 %v2271
    %2389 = vmatpush.msra.mxu0 %v2263
    %2390 = vmatpush.msra.mxu0 %v2255
    %2391 = vmatpush.msra.mxu0 %v2247
    %2392 = vmatpush.msra.mxu0 %v2239
    %2393 = vmatpush.msra.mxu0 %v2231
    %2394 = vmatpush.msra.mxu0 %v2223
    %2395 = vmatpush.msra.mxu0 %v2215
    %2396 = vmatmul.f32.gmra.mxu0 %v2212
    %v2397 = vpop.f32.mrf.mxu0
    %v2398 = vadd.f32 %v2345, %v2397
    %2399 = vdwg.mxu0
    %2400 = vmatpush.msra.mxu0 %v2336
    %2401 = vmatpush.msra.mxu0 %v2328
    %2402 = vmatpush.msra.mxu0 %v2320
    %2403 = vmatpush.msra.mxu0 %v2312
    %2404 = vmatpush.msra.mxu0 %v2304
    %2405 = vmatpush.msra.mxu0 %v2296
    %2406 = vmatpush.msra.mxu0 %v2288
    %2407 = vmatpush.msra.mxu0 %v2280
    %2408 = vmatpush.msra.mxu0 %v2272
    %2409 = vmatpush.msra.mxu0 %v2264
    %2410 = vmatpush.msra.mxu0 %v2256
    %2411 = vmatpush.msra.mxu0 %v2248
    %2412 = vmatpush.msra.mxu0 %v2240
    %2413 = vmatpush.msra.mxu0 %v2232
    %2414 = vmatpush.msra.mxu0 %v2224
    %2415 = vmatpush.msra.mxu0 %v2216
    %2416 = vmatmul.f32.gmra.mxu0 %v2212
    %v2417 = vpop.f32.mrf.mxu0
    %v2418 = vadd.f32 %v2346, %v2417
    %2419 = vdwg.mxu0
    %2420 = vmatpush.msra.mxu0 %v2337
    %2421 = vmatpush.msra.mxu0 %v2329
    %2422 = vmatpush.msra.mxu0 %v2321
    %2423 = vmatpush.msra.mxu0 %v2313
    %2424 = vmatpush.msra.mxu0 %v2305
    %2425 = vmatpush.msra.mxu0 %v2297
    %2426 = vmatpush.msra.mxu0 %v2289
    %2427 = vmatpush.msra.mxu0 %v2281
    %2428 = vmatpush.msra.mxu0 %v2273
    %2429 = vmatpush.msra.mxu0 %v2265
    %2430 = vmatpush.msra.mxu0 %v2257
    %2431 = vmatpush.msra.mxu0 %v2249
    %2432 = vmatpush.msra.mxu0 %v2241
    %2433 = vmatpush.msra.mxu0 %v2233
    %2434 = vmatpush.msra.mxu0 %v2225
    %2435 = vmatpush.msra.mxu0 %v2217
    %2436 = vmatmul.f32.gmra.mxu0 %v2212
    %v2437 = vpop.f32.mrf.mxu0
    %v2438 = vadd.f32 %v2347, %v2437
    %2439 = vdwg.mxu0
    %2440 = vmatpush.msra.mxu0 %v2338
    %2441 = vmatpush.msra.mxu0 %v2330
    %2442 = vmatpush.msra.mxu0 %v2322
    %2443 = vmatpush.msra.mxu0 %v2314
    %2444 = vmatpush.msra.mxu0 %v2306
    %2445 = vmatpush.msra.mxu0 %v2298
    %2446 = vmatpush.msra.mxu0 %v2290
    %2447 = vmatpush.msra.mxu0 %v2282
    %2448 = vmatpush.msra.mxu0 %v2274
    %2449 = vmatpush.msra.mxu0 %v2266
    %2450 = vmatpush.msra.mxu0 %v2258
    %2451 = vmatpush.msra.mxu0 %v2250
    %2452 = vmatpush.msra.mxu0 %v2242
    %2453 = vmatpush.msra.mxu0 %v2234
    %2454 = vmatpush.msra.mxu0 %v2226
    %2455 = vmatpush.msra.mxu0 %v2218
    %2456 = vmatmul.f32.gmra.mxu0 %v2212
    %v2457 = vpop.f32.mrf.mxu0
    %v2458 = vadd.f32 %v2348, %v2457
    %2459 = vdwg.mxu0
    %2460 = vmatpush.msra.mxu0 %v2339
    %2461 = vmatpush.msra.mxu0 %v2331
    %2462 = vmatpush.msra.mxu0 %v2323
    %2463 = vmatpush.msra.mxu0 %v2315
    %2464 = vmatpush.msra.mxu0 %v2307
    %2465 = vmatpush.msra.mxu0 %v2299
    %2466 = vmatpush.msra.mxu0 %v2291
    %2467 = vmatpush.msra.mxu0 %v2283
    %2468 = vmatpush.msra.mxu0 %v2275
    %2469 = vmatpush.msra.mxu0 %v2267
    %2470 = vmatpush.msra.mxu0 %v2259
    %2471 = vmatpush.msra.mxu0 %v2251
    %2472 = vmatpush.msra.mxu0 %v2243
    %2473 = vmatpush.msra.mxu0 %v2235
    %2474 = vmatpush.msra.mxu0 %v2227
    %2475 = vmatpush.msra.mxu0 %v2219
    %2476 = vmatmul.f32.gmra.mxu0 %v2212
    %v2477 = vpop.f32.mrf.mxu0
    %v2478 = vadd.f32 %v2349, %v2477
    %2479 = vdwg.mxu0
    %2480 = vmatpush.msra.mxu0 %v2340
    %2481 = vmatpush.msra.mxu0 %v2332
    %2482 = vmatpush.msra.mxu0 %v2324
    %2483 = vmatpush.msra.mxu0 %v2316
    %2484 = vmatpush.msra.mxu0 %v2308
    %2485 = vmatpush.msra.mxu0 %v2300
    %2486 = vmatpush.msra.mxu0 %v2292
    %2487 = vmatpush.msra.mxu0 %v2284
    %2488 = vmatpush.msra.mxu0 %v2276
    %2489 = vmatpush.msra.mxu0 %v2268
    %2490 = vmatpush.msra.mxu0 %v2260
    %2491 = vmatpush.msra.mxu0 %v2252
    %2492 = vmatpush.msra.mxu0 %v2244
    %2493 = vmatpush.msra.mxu0 %v2236
    %2494 = vmatpush.msra.mxu0 %v2228
    %2495 = vmatpush.msra.mxu0 %v2220
    %2496 = vmatmul.f32.gmra.mxu0 %v2212
    %v2497 = vpop.f32.mrf.mxu0
    %v2498 = vadd.f32 %v2350, %v2497
    %2499 = vdwg.mxu0
    %2500 = vmatpush.msra.mxu0 %v2341
    %2501 = vmatpush.msra.mxu0 %v2333
    %2502 = vmatpush.msra.mxu0 %v2325
    %2503 = vmatpush.msra.mxu0 %v2317
    %2504 = vmatpush.msra.mxu0 %v2309
    %2505 = vmatpush.msra.mxu0 %v2301
    %2506 = vmatpush.msra.mxu0 %v2293
    %2507 = vmatpush.msra.mxu0 %v2285
    %2508 = vmatpush.msra.mxu0 %v2277
    %2509 = vmatpush.msra.mxu0 %v2269
    %2510 = vmatpush.msra.mxu0 %v2261
    %2511 = vmatpush.msra.mxu0 %v2253
    %2512 = vmatpush.msra.mxu0 %v2245
    %2513 = vmatpush.msra.mxu0 %v2237
    %2514 = vmatpush.msra.mxu0 %v2229
    %2515 = vmatpush.msra.mxu0 %v2221
    %2516 = vmatmul.f32.gmra.mxu0 %v2212
    %v2517 = vpop.f32.mrf.mxu0
    %v2518 = vadd.f32 %v2351, %v2517
    %2519 = vdwg.mxu0
    %v2521 = vrot.slane %v2212, 1
    %2523 = vmatpush.msra.mxu0 %v2334
    %2524 = vmatpush.msra.mxu0 %v2326
    %2525 = vmatpush.msra.mxu0 %v2318
    %2526 = vmatpush.msra.mxu0 %v2310
    %2527 = vmatpush.msra.mxu0 %v2302
    %2528 = vmatpush.msra.mxu0 %v2294
    %2529 = vmatpush.msra.mxu0 %v2286
    %2530 = vmatpush.msra.mxu0 %v2278
    %2531 = vmatpush.msra.mxu0 %v2270
    %2532 = vmatpush.msra.mxu0 %v2262
    %2533 = vmatpush.msra.mxu0 %v2254
    %2534 = vmatpush.msra.mxu0 %v2246
    %2535 = vmatpush.msra.mxu0 %v2238
    %2536 = vmatpush.msra.mxu0 %v2230
    %2537 = vmatpush.msra.mxu0 %v2222
    %2538 = vmatpush.msra.mxu0 %v2214
    %2539 = vmatmul.f32.gmra.mxu0 %v2521
    %v2540 = vpop.f32.mrf.mxu0
    %v2541 = vadd.f32 %v2344, %v2540
    %2542 = vdwg.mxu0
    %2543 = vmatpush.msra.mxu0 %v2335
    %2544 = vmatpush.msra.mxu0 %v2327
    %2545 = vmatpush.msra.mxu0 %v2319
    %2546 = vmatpush.msra.mxu0 %v2311
    %2547 = vmatpush.msra.mxu0 %v2303
    %2548 = vmatpush.msra.mxu0 %v2295
    %2549 = vmatpush.msra.mxu0 %v2287
    %2550 = vmatpush.msra.mxu0 %v2279
    %2551 = vmatpush.msra.mxu0 %v2271
    %2552 = vmatpush.msra.mxu0 %v2263
    %2553 = vmatpush.msra.mxu0 %v2255
    %2554 = vmatpush.msra.mxu0 %v2247
    %2555 = vmatpush.msra.mxu0 %v2239
    %2556 = vmatpush.msra.mxu0 %v2231
    %2557 = vmatpush.msra.mxu0 %v2223
    %2558 = vmatpush.msra.mxu0 %v2215
    %2559 = vmatmul.f32.gmra.mxu0 %v2521
    %v2560 = vpop.f32.mrf.mxu0
    %v2561 = vadd.f32 %v2345, %v2560
    %2562 = vdwg.mxu0
    %2563 = vmatpush.msra.mxu0 %v2336
    %2564 = vmatpush.msra.mxu0 %v2328
    %2565 = vmatpush.msra.mxu0 %v2320
    %2566 = vmatpush.msra.mxu0 %v2312
    %2567 = vmatpush.msra.mxu0 %v2304
    %2568 = vmatpush.msra.mxu0 %v2296
    %2569 = vmatpush.msra.mxu0 %v2288
    %2570 = vmatpush.msra.mxu0 %v2280
    %2571 = vmatpush.msra.mxu0 %v2272
    %2572 = vmatpush.msra.mxu0 %v2264
    %2573 = vmatpush.msra.mxu0 %v2256
    %2574 = vmatpush.msra.mxu0 %v2248
    %2575 = vmatpush.msra.mxu0 %v2240
    %2576 = vmatpush.msra.mxu0 %v2232
    %2577 = vmatpush.msra.mxu0 %v2224
    %2578 = vmatpush.msra.mxu0 %v2216
    %2579 = vmatmul.f32.gmra.mxu0 %v2521
    %v2580 = vpop.f32.mrf.mxu0
    %v2581 = vadd.f32 %v2346, %v2580
    %2582 = vdwg.mxu0
    %2583 = vmatpush.msra.mxu0 %v2337
    %2584 = vmatpush.msra.mxu0 %v2329
    %2585 = vmatpush.msra.mxu0 %v2321
    %2586 = vmatpush.msra.mxu0 %v2313
    %2587 = vmatpush.msra.mxu0 %v2305
    %2588 = vmatpush.msra.mxu0 %v2297
    %2589 = vmatpush.msra.mxu0 %v2289
    %2590 = vmatpush.msra.mxu0 %v2281
    %2591 = vmatpush.msra.mxu0 %v2273
    %2592 = vmatpush.msra.mxu0 %v2265
    %2593 = vmatpush.msra.mxu0 %v2257
    %2594 = vmatpush.msra.mxu0 %v2249
    %2595 = vmatpush.msra.mxu0 %v2241
    %2596 = vmatpush.msra.mxu0 %v2233
    %2597 = vmatpush.msra.mxu0 %v2225
    %2598 = vmatpush.msra.mxu0 %v2217
    %2599 = vmatmul.f32.gmra.mxu0 %v2521
    %v2600 = vpop.f32.mrf.mxu0
    %v2601 = vadd.f32 %v2347, %v2600
    %2602 = vdwg.mxu0
    %2603 = vmatpush.msra.mxu0 %v2338
    %2604 = vmatpush.msra.mxu0 %v2330
    %2605 = vmatpush.msra.mxu0 %v2322
    %2606 = vmatpush.msra.mxu0 %v2314
    %2607 = vmatpush.msra.mxu0 %v2306
    %2608 = vmatpush.msra.mxu0 %v2298
    %2609 = vmatpush.msra.mxu0 %v2290
    %2610 = vmatpush.msra.mxu0 %v2282
    %2611 = vmatpush.msra.mxu0 %v2274
    %2612 = vmatpush.msra.mxu0 %v2266
    %2613 = vmatpush.msra.mxu0 %v2258
    %2614 = vmatpush.msra.mxu0 %v2250
    %2615 = vmatpush.msra.mxu0 %v2242
    %2616 = vmatpush.msra.mxu0 %v2234
    %2617 = vmatpush.msra.mxu0 %v2226
    %2618 = vmatpush.msra.mxu0 %v2218
    %2619 = vmatmul.f32.gmra.mxu0 %v2521
    %v2620 = vpop.f32.mrf.mxu0
    %v2621 = vadd.f32 %v2348, %v2620
    %2622 = vdwg.mxu0
    %2623 = vmatpush.msra.mxu0 %v2339
    %2624 = vmatpush.msra.mxu0 %v2331
    %2625 = vmatpush.msra.mxu0 %v2323
    %2626 = vmatpush.msra.mxu0 %v2315
    %2627 = vmatpush.msra.mxu0 %v2307
    %2628 = vmatpush.msra.mxu0 %v2299
    %2629 = vmatpush.msra.mxu0 %v2291
    %2630 = vmatpush.msra.mxu0 %v2283
    %2631 = vmatpush.msra.mxu0 %v2275
    %2632 = vmatpush.msra.mxu0 %v2267
    %2633 = vmatpush.msra.mxu0 %v2259
    %2634 = vmatpush.msra.mxu0 %v2251
    %2635 = vmatpush.msra.mxu0 %v2243
    %2636 = vmatpush.msra.mxu0 %v2235
    %2637 = vmatpush.msra.mxu0 %v2227
    %2638 = vmatpush.msra.mxu0 %v2219
    %2639 = vmatmul.f32.gmra.mxu0 %v2521
    %v2640 = vpop.f32.mrf.mxu0
    %v2641 = vadd.f32 %v2349, %v2640
    %2642 = vdwg.mxu0
    %2643 = vmatpush.msra.mxu0 %v2340
    %2644 = vmatpush.msra.mxu0 %v2332
    %2645 = vmatpush.msra.mxu0 %v2324
    %2646 = vmatpush.msra.mxu0 %v2316
    %2647 = vmatpush.msra.mxu0 %v2308
    %2648 = vmatpush.msra.mxu0 %v2300
    %2649 = vmatpush.msra.mxu0 %v2292
    %2650 = vmatpush.msra.mxu0 %v2284
    %2651 = vmatpush.msra.mxu0 %v2276
    %2652 = vmatpush.msra.mxu0 %v2268
    %2653 = vmatpush.msra.mxu0 %v2260
    %2654 = vmatpush.msra.mxu0 %v2252
    %2655 = vmatpush.msra.mxu0 %v2244
    %2656 = vmatpush.msra.mxu0 %v2236
    %2657 = vmatpush.msra.mxu0 %v2228
    %2658 = vmatpush.msra.mxu0 %v2220
    %2659 = vmatmul.f32.gmra.mxu0 %v2521
    %v2660 = vpop.f32.mrf.mxu0
    %v2661 = vadd.f32 %v2350, %v2660
    %2662 = vdwg.mxu0
    %2663 = vmatpush.msra.mxu0 %v2341
    %2664 = vmatpush.msra.mxu0 %v2333
    %2665 = vmatpush.msra.mxu0 %v2325
    %2666 = vmatpush.msra.mxu0 %v2317
    %2667 = vmatpush.msra.mxu0 %v2309
    %2668 = vmatpush.msra.mxu0 %v2301
    %2669 = vmatpush.msra.mxu0 %v2293
    %2670 = vmatpush.msra.mxu0 %v2285
    %2671 = vmatpush.msra.mxu0 %v2277
    %2672 = vmatpush.msra.mxu0 %v2269
    %2673 = vmatpush.msra.mxu0 %v2261
    %2674 = vmatpush.msra.mxu0 %v2253
    %2675 = vmatpush.msra.mxu0 %v2245
    %2676 = vmatpush.msra.mxu0 %v2237
    %2677 = vmatpush.msra.mxu0 %v2229
    %2678 = vmatpush.msra.mxu0 %v2221
    %2679 = vmatmul.f32.gmra.mxu0 %v2521
    %v2680 = vpop.f32.mrf.mxu0
    %v2681 = vadd.f32 %v2351, %v2680
    %2682 = vdwg.mxu0
    %v2684 = vrot.slane %v2398, 7
    %v2687 = vrot.slane %v2418, 6
    %v2690 = vrot.slane %v2438, 5
    %v2693 = vrot.slane %v2458, 4
    %v2696 = vrot.slane %v2478, 3
    %v2699 = vrot.slane %v2498, 2
    %v2702 = vrot.slane %v2518, 1
    %v2705 = vrot.slane %v2561, 7
    %v2708 = vrot.slane %v2581, 6
    %v2711 = vrot.slane %v2601, 5
    %v2714 = vrot.slane %v2621, 4
    %v2717 = vrot.slane %v2641, 3
    %v2720 = vrot.slane %v2661, 2
    %v2723 = vrot.slane %v2681, 1
    %vm2725 = vcmask 1040384
    %v2726 = vsel %vm2725, %v2378, %v2684
    %v2727 = vsel %vm2181, %v2726, %v2687
    %vm2728 = vcmask 1042432
    %v2729 = vsel %vm2728, %v2727, %v2690
    %vm2730 = vcmask 1043456
    %v2731 = vsel %vm2730, %v2729, %v2693
    %vm2732 = vcmask 1044480
    %v2733 = vsel %vm2732, %v2731, %v2696
    %vm2734 = vcmask 1045504
    %v2735 = vsel %vm2734, %v2733, %v2699
    %vm2736 = vcmask 1046528
    %v2737 = vsel %vm2736, %v2735, %v2702
    %v2738 = vsel %vm2725, %v2541, %v2705
    %v2739 = vsel %vm2181, %v2738, %v2708
    %v2740 = vsel %vm2728, %v2739, %v2711
    %v2741 = vsel %vm2730, %v2740, %v2714
    %v2742 = vsel %vm2732, %v2741, %v2717
    %v2743 = vsel %vm2734, %v2742, %v2720
    %v2744 = vsel %vm2736, %v2743, %v2723
    %v2745 = vld [vmem:[%s1] sm:$0xff]
    %v2746 = vld [vmem:[%s1 + $0x8] sm:$0xff]
    %v2747 = vld [vmem:[#allocation10] sm:$0xff]
    %v2748 = vld [vmem:[#allocation10 + $0x8] sm:$0xff]
    %v2749 = vld [vmem:[#allocation10 + $0x10] sm:$0xff]
    %v2750 = vld [vmem:[#allocation10 + $0x18] sm:$0xff]
    %v2751 = vld [vmem:[#allocation10 + $0x20] sm:$0xff]
    %v2752 = vld [vmem:[#allocation10 + $0x28] sm:$0xff]
    %v2753 = vld [vmem:[#allocation10 + $0x30] sm:$0xff]
    %v2754 = vld [vmem:[#allocation10 + $0x38] sm:$0xff]
    %v2755 = vld [vmem:[#allocation10 + $0x40] sm:$0xff]
    %v2756 = vld [vmem:[#allocation10 + $0x48] sm:$0xff]
    %v2757 = vld [vmem:[#allocation10 + $0x50] sm:$0xff]
    %v2758 = vld [vmem:[#allocation10 + $0x58] sm:$0xff]
    %v2759 = vld [vmem:[#allocation10 + $0x60] sm:$0xff]
    %v2760 = vld [vmem:[#allocation10 + $0x68] sm:$0xff]
    %v2761 = vld [vmem:[#allocation10 + $0x70] sm:$0xff]
    %v2762 = vld [vmem:[#allocation10 + $0x78] sm:$0xff]
    %v2763 = vld [vmem:[#allocation10 + $0x80] sm:$0xff]
    %v2764 = vld [vmem:[#allocation10 + $0x88] sm:$0xff]
    %v2765 = vld [vmem:[#allocation10 + $0x90] sm:$0xff]
    %v2766 = vld [vmem:[#allocation10 + $0x98] sm:$0xff]
    %v2767 = vld [vmem:[#allocation10 + $0xa0] sm:$0xff]
    %v2768 = vld [vmem:[#allocation10 + $0xa8] sm:$0xff]
    %v2769 = vld [vmem:[#allocation10 + $0xb0] sm:$0xff]
    %v2770 = vld [vmem:[#allocation10 + $0xb8] sm:$0xff]
    %v2771 = vld [vmem:[#allocation10 + $0xc0] sm:$0xff]
    %v2772 = vld [vmem:[#allocation10 + $0xc8] sm:$0xff]
    %v2773 = vld [vmem:[#allocation10 + $0xd0] sm:$0xff]
    %v2774 = vld [vmem:[#allocation10 + $0xd8] sm:$0xff]
    %v2775 = vld [vmem:[#allocation10 + $0xe0] sm:$0xff]
    %v2776 = vld [vmem:[#allocation10 + $0xe8] sm:$0xff]
    %v2777 = vld [vmem:[#allocation10 + $0xf0] sm:$0xff]
    %v2778 = vld [vmem:[#allocation10 + $0xf8] sm:$0xff]
    %v2779 = vld [vmem:[#allocation10 + $0x100] sm:$0xff]
    %v2780 = vld [vmem:[#allocation10 + $0x108] sm:$0xff]
    %v2781 = vld [vmem:[#allocation10 + $0x110] sm:$0xff]
    %v2782 = vld [vmem:[#allocation10 + $0x118] sm:$0xff]
    %v2783 = vld [vmem:[#allocation10 + $0x120] sm:$0xff]
    %v2784 = vld [vmem:[#allocation10 + $0x128] sm:$0xff]
    %v2785 = vld [vmem:[#allocation10 + $0x130] sm:$0xff]
    %v2786 = vld [vmem:[#allocation10 + $0x138] sm:$0xff]
    %v2787 = vld [vmem:[#allocation10 + $0x140] sm:$0xff]
    %v2788 = vld [vmem:[#allocation10 + $0x148] sm:$0xff]
    %v2789 = vld [vmem:[#allocation10 + $0x150] sm:$0xff]
    %v2790 = vld [vmem:[#allocation10 + $0x158] sm:$0xff]
    %v2791 = vld [vmem:[#allocation10 + $0x160] sm:$0xff]
    %v2792 = vld [vmem:[#allocation10 + $0x168] sm:$0xff]
    %v2793 = vld [vmem:[#allocation10 + $0x170] sm:$0xff]
    %v2794 = vld [vmem:[#allocation10 + $0x178] sm:$0xff]
    %v2795 = vld [vmem:[%s33] sm:$0x7]
    %v2796 = vld [vmem:[#allocation11] sm:$0xff]
    %v2797 = vld [vmem:[#allocation11 + $0x8] sm:$0xff]
    %v2798 = vld [vmem:[#allocation11 + $0x10] sm:$0xff]
    %v2799 = vld [vmem:[#allocation11 + $0x18] sm:$0xff]
    %v2800 = vld [vmem:[#allocation11 + $0x20] sm:$0xff]
    %v2801 = vld [vmem:[#allocation11 + $0x28] sm:$0xff]
    %v2802 = vld [vmem:[#allocation11 + $0x30] sm:$0xff]
    %v2803 = vld [vmem:[#allocation11 + $0x38] sm:$0xff]
    %v2804 = vld [vmem:[#allocation11 + $0x40] sm:$0xff]
    %v2805 = vld [vmem:[#allocation11 + $0x48] sm:$0xff]
    %v2806 = vld [vmem:[#allocation11 + $0x50] sm:$0xff]
    %v2807 = vld [vmem:[#allocation11 + $0x58] sm:$0xff]
    %v2808 = vld [vmem:[#allocation11 + $0x60] sm:$0xff]
    %v2809 = vld [vmem:[#allocation11 + $0x68] sm:$0xff]
    %v2810 = vld [vmem:[#allocation11 + $0x70] sm:$0xff]
    %v2811 = vld [vmem:[#allocation11 + $0x78] sm:$0xff]
    %v2812 = vld [vmem:[%s37] sm:$0x1]
    %v2814 = vperm.slane %v2795, 0
    %v2815 = vperm.slane %v2795, 1
    %v2816 = vperm.slane %v2795, 2
    %2820 = vmatpush.msra.mxu0 %v2792
    %2821 = vmatpush.msra.mxu0 %v2789
    %2822 = vmatpush.msra.mxu0 %v2786
    %2823 = vmatpush.msra.mxu0 %v2783
    %2824 = vmatpush.msra.mxu0 %v2780
    %2825 = vmatpush.msra.mxu0 %v2777
    %2826 = vmatpush.msra.mxu0 %v2774
    %2827 = vmatpush.msra.mxu0 %v2771
    %2828 = vmatpush.msra.mxu0 %v2768
    %2829 = vmatpush.msra.mxu0 %v2765
    %2830 = vmatpush.msra.mxu0 %v2762
    %2831 = vmatpush.msra.mxu0 %v2759
    %2832 = vmatpush.msra.mxu0 %v2756
    %2833 = vmatpush.msra.mxu0 %v2753
    %2834 = vmatpush.msra.mxu0 %v2750
    %2835 = vmatpush.msra.mxu0 %v2747
    %2836 = vmatmul.f32.gmra.mxu0 %v2745
    %v2837 = vpop.f32.mrf.mxu0
    %v2838 = vadd.f32 %v2814, %v2837
    %2839 = vmatmul.f32.gmra.mxu0 %v2746
    %v2840 = vpop.f32.mrf.mxu0
    %v2841 = vadd.f32 %v2814, %v2840
    %2842 = vdwg.mxu0
    %2843 = vmatpush.msra.mxu0 %v2793
    %2844 = vmatpush.msra.mxu0 %v2790
    %2845 = vmatpush.msra.mxu0 %v2787
    %2846 = vmatpush.msra.mxu0 %v2784
    %2847 = vmatpush.msra.mxu0 %v2781
    %2848 = vmatpush.msra.mxu0 %v2778
    %2849 = vmatpush.msra.mxu0 %v2775
    %2850 = vmatpush.msra.mxu0 %v2772
    %2851 = vmatpush.msra.mxu0 %v2769
    %2852 = vmatpush.msra.mxu0 %v2766
    %2853 = vmatpush.msra.mxu0 %v2763
    %2854 = vmatpush.msra.mxu0 %v2760
    %2855 = vmatpush.msra.mxu0 %v2757
    %2856 = vmatpush.msra.mxu0 %v2754
    %2857 = vmatpush.msra.mxu0 %v2751
    %2858 = vmatpush.msra.mxu0 %v2748
    %2859 = vmatmul.f32.gmra.mxu0 %v2745
    %v2860 = vpop.f32.mrf.mxu0
    %v2861 = vadd.f32 %v2815, %v2860
    %2862 = vmatmul.f32.gmra.mxu0 %v2746
    %v2863 = vpop.f32.mrf.mxu0
    %v2864 = vadd.f32 %v2815, %v2863
    %2865 = vdwg.mxu0
    %2866 = vmatpush.msra.mxu0 %v2794
    %2867 = vmatpush.msra.mxu0 %v2791
    %2868 = vmatpush.msra.mxu0 %v2788
    %2869 = vmatpush.msra.mxu0 %v2785
    %2870 = vmatpush.msra.mxu0 %v2782
    %2871 = vmatpush.msra.mxu0 %v2779
    %2872 = vmatpush.msra.mxu0 %v2776
    %2873 = vmatpush.msra.mxu0 %v2773
    %2874 = vmatpush.msra.mxu0 %v2770
    %2875 = vmatpush.msra.mxu0 %v2767
    %2876 = vmatpush.msra.mxu0 %v2764
    %2877 = vmatpush.msra.mxu0 %v2761
    %2878 = vmatpush.msra.mxu0 %v2758
    %2879 = vmatpush.msra.mxu0 %v2755
    %2880 = vmatpush.msra.mxu0 %v2752
    %2881 = vmatpush.msra.mxu0 %v2749
    %2882 = vmatmul.f32.gmra.mxu0 %v2745
    %v2883 = vpop.f32.mrf.mxu0
    %v2884 = vadd.f32 %v2816, %v2883
    %2885 = vmatmul.f32.gmra.mxu0 %v2746
    %v2886 = vpop.f32.mrf.mxu0
    %v2887 = vadd.f32 %v2816, %v2886
    %2888 = vdwg.mxu0
    %v2890 = vsel %vm499, %v2838, 0
    %v2893 = vsel %vm499, %v2841, 0
    %v2896 = vsel %vm499, %v2861, 0
    %v2899 = vsel %vm499, %v2864, 0
    %2901 = vmatpush.xpose.msra.mxu0 0.0
    %2902 = vmatpush.xpose.msra.mxu0 0.0
    %2903 = vmatpush.xpose.msra.mxu0 0.0
    %2904 = vmatpush.xpose.msra.mxu0 0.0
    %2905 = vmatpush.xpose.msra.mxu0 0.0
    %2906 = vmatpush.xpose.msra.mxu0 0.0
    %2907 = vmatpush.xpose.msra.mxu0 0.0
    %2908 = vmatpush.xpose.msra.mxu0 0.0
    %2909 = vmatpush.xpose.msra.mxu0 0.0
    %2910 = vmatpush.xpose.msra.mxu0 0.0
    %2911 = vmatpush.xpose.msra.mxu0 0.0
    %2912 = vmatpush.xpose.msra.mxu0 0.0
    %2913 = vmatpush.xpose.msra.mxu0 0.0
    %2914 = vmatpush.xpose.msra.mxu0 0.0
    %2915 = vmatpush.xpose.msra.mxu0 %v2899
    %2916 = vmatpush.xpose.msra.mxu0 %v2896
    %2917 = vmatmul.f32.gmra.mxu0 %v2890
    %v2918 = vpop.f32.mrf.mxu0
    %v2919 = vadd.f32 0.0, %v2918
    %2920 = vmatmul.f32.gmra.mxu0 %v2893
    %v2921 = vpop.f32.mrf.mxu0
    %v2922 = vadd.f32 0.0, %v2921
    %2923 = vdwg.mxu0
    %v2924 = vmul.f32 %v2919, 0.17677669
    %v2925 = vmul.f32 %v2922, 0.17677669
    %v2926 = vadd.f32 %v2924, %v353
    %v2927 = vadd.f32 %v2925, %v354
    %v2928 = vsel %vm539, %v2926, -inf
    %2929 = vmax.xlane.f32.xlu0 %v2928
    %v2930 = vpop.xlane.xlu0 %2929
    %v2931 = vsel %vm539, %v2927, -inf
    %2932 = vmax.xlane.f32.xlu0 %v2931
    %v2933 = vpop.xlane.xlu0 %2932
    %v2934 = vsub.f32 %v2926, %v2930
    %v2935 = vsub.f32 %v2927, %v2933
    %v2936 = vmul.f32 %v2934, 1.442695
    %v2937 = vpow.pop %v2936
    %v2938 = vmul.f32 %v2935, 1.442695
    %v2939 = vpow.pop %v2938
    %v2940 = vsel %vm539, %v2937, 0.0
    %2941 = vadd.xlane.f32.xlu0 %v2940
    %v2942 = vpop.xlane.xlu0 %2941
    %v2943 = vsel %vm539, %v2939, 0.0
    %2944 = vadd.xlane.f32.xlu0 %v2943
    %v2945 = vpop.xlane.xlu0 %2944
    %v2946 = vrcp.pop %v2942
    %v2947 = vrcp.pop %v2945
    %v2948 = vmul.f32 %v2937, %v2946
    %v2949 = vmul.f32 %v2939, %v2947
    %v2951 = vsel %vm539, %v2948, 0
    %v2954 = vsel %vm539, %v2949, 0
    %2956 = vmatpush.msra.mxu0 0.0
    %2957 = vmatpush.msra.mxu0 0.0
    %2958 = vmatpush.msra.mxu0 0.0
    %2959 = vmatpush.msra.mxu0 0.0
    %2960 = vmatpush.msra.mxu0 0.0
    %2961 = vmatpush.msra.mxu0 0.0
    %2962 = vmatpush.msra.mxu0 0.0
    %2963 = vmatpush.msra.mxu0 0.0
    %2964 = vmatpush.msra.mxu0 0.0
    %2965 = vmatpush.msra.mxu0 0.0
    %2966 = vmatpush.msra.mxu0 0.0
    %2967 = vmatpush.msra.mxu0 0.0
    %2968 = vmatpush.msra.mxu0 0.0
    %2969 = vmatpush.msra.mxu0 0.0
    %2970 = vmatpush.msra.mxu0 %v2887
    %2971 = vmatpush.msra.mxu0 %v2884
    %2972 = vmatmul.f32.gmra.mxu0 %v2951
    %v2973 = vpop.f32.mrf.mxu0
    %v2974 = vadd.f32 0.0, %v2973
    %2975 = vmatmul.f32.gmra.mxu0 %v2954
    %v2976 = vpop.f32.mrf.mxu0
    %v2977 = vadd.f32 0.0, %v2976
    %2978 = vdwg.mxu0
    %2979 = vrot.lane.b32.xlu0 %v2838, 96
    %v2980 = vpop.permute.xlu0 %2979
    %2981 = vrot.lane.b32.xlu0 %v2841, 96
    %v2982 = vpop.permute.xlu0 %2981
    %2983 = vrot.lane.b32.xlu0 %v2861, 96
    %v2984 = vpop.permute.xlu0 %2983
    %2985 = vrot.lane.b32.xlu0 %v2864, 96
    %v2986 = vpop.permute.xlu0 %2985
    %v2987 = vsel %vm499, %v2980, 0
    %v2989 = vsel %vm499, %v2982, 0
    %v2991 = vsel %vm499, %v2984, 0
    %v2993 = vsel %vm499, %v2986, 0
    %2995 = vmatpush.xpose.msra.mxu0 0.0
    %2996 = vmatpush.xpose.msra.mxu0 0.0
    %2997 = vmatpush.xpose.msra.mxu0 0.0
    %2998 = vmatpush.xpose.msra.mxu0 0.0
    %2999 = vmatpush.xpose.msra.mxu0 0.0
    %3000 = vmatpush.xpose.msra.mxu0 0.0
    %3001 = vmatpush.xpose.msra.mxu0 0.0
    %3002 = vmatpush.xpose.msra.mxu0 0.0
    %3003 = vmatpush.xpose.msra.mxu0 0.0
    %3004 = vmatpush.xpose.msra.mxu0 0.0
    %3005 = vmatpush.xpose.msra.mxu0 0.0
    %3006 = vmatpush.xpose.msra.mxu0 0.0
    %3007 = vmatpush.xpose.msra.mxu0 0.0
    %3008 = vmatpush.xpose.msra.mxu0 0.0
    %3009 = vmatpush.xpose.msra.mxu0 %v2993
    %3010 = vmatpush.xpose.msra.mxu0 %v2991
    %3011 = vmatmul.f32.gmra.mxu0 %v2987
    %v3012 = vpop.f32.mrf.mxu0
    %v3013 = vadd.f32 0.0, %v3012
    %3014 = vmatmul.f32.gmra.mxu0 %v2989
    %v3015 = vpop.f32.mrf.mxu0
    %v3016 = vadd.f32 0.0, %v3015
    %3017 = vdwg.mxu0
    %v3018 = vmul.f32 %v3013, 0.17677669
    %v3019 = vmul.f32 %v3016, 0.17677669
    %v3020 = vadd.f32 %v3018, %v353
    %v3021 = vadd.f32 %v3019, %v354
    %v3022 = vsel %vm539, %v3020, -inf
    %3023 = vmax.xlane.f32.xlu0 %v3022
    %v3024 = vpop.xlane.xlu0 %3023
    %v3025 = vsel %vm539, %v3021, -inf
    %3026 = vmax.xlane.f32.xlu0 %v3025
    %v3027 = vpop.xlane.xlu0 %3026
    %v3028 = vsub.f32 %v3020, %v3024
    %v3029 = vsub.f32 %v3021, %v3027
    %v3030 = vmul.f32 %v3028, 1.442695
    %v3031 = vpow.pop %v3030
    %v3032 = vmul.f32 %v3029, 1.442695
    %v3033 = vpow.pop %v3032
    %v3034 = vsel %vm539, %v3031, 0.0
    %3035 = vadd.xlane.f32.xlu0 %v3034
    %v3036 = vpop.xlane.xlu0 %3035
    %v3037 = vsel %vm539, %v3033, 0.0
    %3038 = vadd.xlane.f32.xlu0 %v3037
    %v3039 = vpop.xlane.xlu0 %3038
    %v3040 = vrcp.pop %v3036
    %v3041 = vrcp.pop %v3039
    %v3042 = vmul.f32 %v3031, %v3040
    %v3043 = vmul.f32 %v3033, %v3041
    %3046 = vrot.lane.b32.xlu0 %v2884, 96
    %v3047 = vpop.permute.xlu0 %3046
    %3048 = vrot.lane.b32.xlu0 %v2887, 96
    %v3049 = vpop.permute.xlu0 %3048
    %v3053 = vsel %vm539, %v3042, 0
    %v3056 = vsel %vm539, %v3043, 0
    %3058 = vmatpush.msra.mxu0 0.0
    %3059 = vmatpush.msra.mxu0 0.0
    %3060 = vmatpush.msra.mxu0 0.0
    %3061 = vmatpush.msra.mxu0 0.0
    %3062 = vmatpush.msra.mxu0 0.0
    %3063 = vmatpush.msra.mxu0 0.0
    %3064 = vmatpush.msra.mxu0 0.0
    %3065 = vmatpush.msra.mxu0 0.0
    %3066 = vmatpush.msra.mxu0 0.0
    %3067 = vmatpush.msra.mxu0 0.0
    %3068 = vmatpush.msra.mxu0 0.0
    %3069 = vmatpush.msra.mxu0 0.0
    %3070 = vmatpush.msra.mxu0 0.0
    %3071 = vmatpush.msra.mxu0 0.0
    %3072 = vmatpush.msra.mxu0 %v3049
    %3073 = vmatpush.msra.mxu0 %v3047
    %3074 = vmatmul.f32.gmra.mxu0 %v3053
    %v3075 = vpop.f32.mrf.mxu0
    %v3076 = vadd.f32 0.0, %v3075
    %3077 = vmatmul.f32.gmra.mxu0 %v3056
    %v3078 = vpop.f32.mrf.mxu0
    %v3079 = vadd.f32 0.0, %v3078
    %3080 = vdwg.mxu0
    %3081 = vrot.lane.b32.xlu0 %v2838, 64
    %v3082 = vpop.permute.xlu0 %3081
    %3083 = vrot.lane.b32.xlu0 %v2841, 64
    %v3084 = vpop.permute.xlu0 %3083
    %3085 = vrot.lane.b32.xlu0 %v2861, 64
    %v3086 = vpop.permute.xlu0 %3085
    %3087 = vrot.lane.b32.xlu0 %v2864, 64
    %v3088 = vpop.permute.xlu0 %3087
    %v3089 = vsel %vm499, %v3082, 0
    %v3091 = vsel %vm499, %v3084, 0
    %v3093 = vsel %vm499, %v3086, 0
    %v3095 = vsel %vm499, %v3088, 0
    %3097 = vmatpush.xpose.msra.mxu0 0.0
    %3098 = vmatpush.xpose.msra.mxu0 0.0
    %3099 = vmatpush.xpose.msra.mxu0 0.0
    %3100 = vmatpush.xpose.msra.mxu0 0.0
    %3101 = vmatpush.xpose.msra.mxu0 0.0
    %3102 = vmatpush.xpose.msra.mxu0 0.0
    %3103 = vmatpush.xpose.msra.mxu0 0.0
    %3104 = vmatpush.xpose.msra.mxu0 0.0
    %3105 = vmatpush.xpose.msra.mxu0 0.0
    %3106 = vmatpush.xpose.msra.mxu0 0.0
    %3107 = vmatpush.xpose.msra.mxu0 0.0
    %3108 = vmatpush.xpose.msra.mxu0 0.0
    %3109 = vmatpush.xpose.msra.mxu0 0.0
    %3110 = vmatpush.xpose.msra.mxu0 0.0
    %3111 = vmatpush.xpose.msra.mxu0 %v3095
    %3112 = vmatpush.xpose.msra.mxu0 %v3093
    %3113 = vmatmul.f32.gmra.mxu0 %v3089
    %v3114 = vpop.f32.mrf.mxu0
    %v3115 = vadd.f32 0.0, %v3114
    %3116 = vmatmul.f32.gmra.mxu0 %v3091
    %v3117 = vpop.f32.mrf.mxu0
    %v3118 = vadd.f32 0.0, %v3117
    %3119 = vdwg.mxu0
    %v3120 = vmul.f32 %v3115, 0.17677669
    %v3121 = vmul.f32 %v3118, 0.17677669
    %v3122 = vadd.f32 %v3120, %v353
    %v3123 = vadd.f32 %v3121, %v354
    %v3124 = vsel %vm539, %v3122, -inf
    %3125 = vmax.xlane.f32.xlu0 %v3124
    %v3126 = vpop.xlane.xlu0 %3125
    %v3127 = vsel %vm539, %v3123, -inf
    %3128 = vmax.xlane.f32.xlu0 %v3127
    %v3129 = vpop.xlane.xlu0 %3128
    %v3130 = vsub.f32 %v3122, %v3126
    %v3131 = vsub.f32 %v3123, %v3129
    %v3132 = vmul.f32 %v3130, 1.442695
    %v3133 = vpow.pop %v3132
    %v3134 = vmul.f32 %v3131, 1.442695
    %v3135 = vpow.pop %v3134
    %v3136 = vsel %vm539, %v3133, 0.0
    %3137 = vadd.xlane.f32.xlu0 %v3136
    %v3138 = vpop.xlane.xlu0 %3137
    %v3139 = vsel %vm539, %v3135, 0.0
    %3140 = vadd.xlane.f32.xlu0 %v3139
    %v3141 = vpop.xlane.xlu0 %3140
    %v3142 = vrcp.pop %v3138
    %v3143 = vrcp.pop %v3141
    %v3144 = vmul.f32 %v3133, %v3142
    %v3145 = vmul.f32 %v3135, %v3143
    %3146 = vrot.lane.b32.xlu0 %v2884, 64
    %v3147 = vpop.permute.xlu0 %3146
    %3148 = vrot.lane.b32.xlu0 %v2887, 64
    %v3149 = vpop.permute.xlu0 %3148
    %v3153 = vsel %vm539, %v3144, 0
    %v3156 = vsel %vm539, %v3145, 0
    %3158 = vmatpush.msra.mxu0 0.0
    %3159 = vmatpush.msra.mxu0 0.0
    %3160 = vmatpush.msra.mxu0 0.0
    %3161 = vmatpush.msra.mxu0 0.0
    %3162 = vmatpush.msra.mxu0 0.0
    %3163 = vmatpush.msra.mxu0 0.0
    %3164 = vmatpush.msra.mxu0 0.0
    %3165 = vmatpush.msra.mxu0 0.0
    %3166 = vmatpush.msra.mxu0 0.0
    %3167 = vmatpush.msra.mxu0 0.0
    %3168 = vmatpush.msra.mxu0 0.0
    %3169 = vmatpush.msra.mxu0 0.0
    %3170 = vmatpush.msra.mxu0 0.0
    %3171 = vmatpush.msra.mxu0 0.0
    %3172 = vmatpush.msra.mxu0 %v3149
    %3173 = vmatpush.msra.mxu0 %v3147
    %3174 = vmatmul.f32.gmra.mxu0 %v3153
    %v3175 = vpop.f32.mrf.mxu0
    %v3176 = vadd.f32 0.0, %v3175
    %3177 = vmatmul.f32.gmra.mxu0 %v3156
    %v3178 = vpop.f32.mrf.mxu0
    %v3179 = vadd.f32 0.0, %v3178
    %3180 = vdwg.mxu0
    %3181 = vrot.lane.b32.xlu0 %v2838, 32
    %v3182 = vpop.permute.xlu0 %3181
    %3183 = vrot.lane.b32.xlu0 %v2841, 32
    %v3184 = vpop.permute.xlu0 %3183
    %3185 = vrot.lane.b32.xlu0 %v2861, 32
    %v3186 = vpop.permute.xlu0 %3185
    %3187 = vrot.lane.b32.xlu0 %v2864, 32
    %v3188 = vpop.permute.xlu0 %3187
    %v3189 = vsel %vm499, %v3182, 0
    %v3191 = vsel %vm499, %v3184, 0
    %v3193 = vsel %vm499, %v3186, 0
    %v3195 = vsel %vm499, %v3188, 0
    %3197 = vmatpush.xpose.msra.mxu0 0.0
    %3198 = vmatpush.xpose.msra.mxu0 0.0
    %3199 = vmatpush.xpose.msra.mxu0 0.0
    %3200 = vmatpush.xpose.msra.mxu0 0.0
    %3201 = vmatpush.xpose.msra.mxu0 0.0
    %3202 = vmatpush.xpose.msra.mxu0 0.0
    %3203 = vmatpush.xpose.msra.mxu0 0.0
    %3204 = vmatpush.xpose.msra.mxu0 0.0
    %3205 = vmatpush.xpose.msra.mxu0 0.0
    %3206 = vmatpush.xpose.msra.mxu0 0.0
    %3207 = vmatpush.xpose.msra.mxu0 0.0
    %3208 = vmatpush.xpose.msra.mxu0 0.0
    %3209 = vmatpush.xpose.msra.mxu0 0.0
    %3210 = vmatpush.xpose.msra.mxu0 0.0
    %3211 = vmatpush.xpose.msra.mxu0 %v3195
    %3212 = vmatpush.xpose.msra.mxu0 %v3193
    %3213 = vmatmul.f32.gmra.mxu0 %v3189
    %v3214 = vpop.f32.mrf.mxu0
    %v3215 = vadd.f32 0.0, %v3214
    %3216 = vmatmul.f32.gmra.mxu0 %v3191
    %v3217 = vpop.f32.mrf.mxu0
    %v3218 = vadd.f32 0.0, %v3217
    %3219 = vdwg.mxu0
    %v3220 = vmul.f32 %v3215, 0.17677669
    %v3221 = vmul.f32 %v3218, 0.17677669
    %v3222 = vadd.f32 %v3220, %v353
    %v3223 = vadd.f32 %v3221, %v354
    %v3224 = vsel %vm539, %v3222, -inf
    %3225 = vmax.xlane.f32.xlu0 %v3224
    %v3226 = vpop.xlane.xlu0 %3225
    %v3227 = vsel %vm539, %v3223, -inf
    %3228 = vmax.xlane.f32.xlu0 %v3227
    %v3229 = vpop.xlane.xlu0 %3228
    %v3230 = vsub.f32 %v3222, %v3226
    %v3231 = vsub.f32 %v3223, %v3229
    %v3232 = vmul.f32 %v3230, 1.442695
    %v3233 = vpow.pop %v3232
    %v3234 = vmul.f32 %v3231, 1.442695
    %v3235 = vpow.pop %v3234
    %v3236 = vsel %vm539, %v3233, 0.0
    %3237 = vadd.xlane.f32.xlu0 %v3236
    %v3238 = vpop.xlane.xlu0 %3237
    %v3239 = vsel %vm539, %v3235, 0.0
    %3240 = vadd.xlane.f32.xlu0 %v3239
    %v3241 = vpop.xlane.xlu0 %3240
    %v3242 = vrcp.pop %v3238
    %v3243 = vrcp.pop %v3241
    %v3244 = vmul.f32 %v3233, %v3242
    %v3245 = vmul.f32 %v3235, %v3243
    %3246 = vrot.lane.b32.xlu0 %v2884, 32
    %v3247 = vpop.permute.xlu0 %3246
    %3248 = vrot.lane.b32.xlu0 %v2887, 32
    %v3249 = vpop.permute.xlu0 %3248
    %v3253 = vsel %vm539, %v3244, 0
    %v3256 = vsel %vm539, %v3245, 0
    %3258 = vmatpush.msra.mxu0 0.0
    %3259 = vmatpush.msra.mxu0 0.0
    %3260 = vmatpush.msra.mxu0 0.0
    %3261 = vmatpush.msra.mxu0 0.0
    %3262 = vmatpush.msra.mxu0 0.0
    %3263 = vmatpush.msra.mxu0 0.0
    %3264 = vmatpush.msra.mxu0 0.0
    %3265 = vmatpush.msra.mxu0 0.0
    %3266 = vmatpush.msra.mxu0 0.0
    %3267 = vmatpush.msra.mxu0 0.0
    %3268 = vmatpush.msra.mxu0 0.0
    %3269 = vmatpush.msra.mxu0 0.0
    %3270 = vmatpush.msra.mxu0 0.0
    %3271 = vmatpush.msra.mxu0 0.0
    %3272 = vmatpush.msra.mxu0 %v3249
    %3273 = vmatpush.msra.mxu0 %v3247
    %3274 = vmatmul.f32.gmra.mxu0 %v3253
    %v3275 = vpop.f32.mrf.mxu0
    %v3276 = vadd.f32 0.0, %v3275
    %3277 = vmatmul.f32.gmra.mxu0 %v3256
    %v3278 = vpop.f32.mrf.mxu0
    %v3279 = vadd.f32 0.0, %v3278
    %3280 = vdwg.mxu0
    %3283 = vrot.lane.b32.xlu0 %v3076, 32
    %v3284 = vpop.permute.xlu0 %3283
    %3285 = vrot.lane.b32.xlu0 %v3079, 32
    %v3286 = vpop.permute.xlu0 %3285
    %3291 = vrot.lane.b32.xlu0 %v3176, 64
    %v3292 = vpop.permute.xlu0 %3291
    %3293 = vrot.lane.b32.xlu0 %v3179, 64
    %v3294 = vpop.permute.xlu0 %3293
    %3299 = vrot.lane.b32.xlu0 %v3276, 96
    %v3300 = vpop.permute.xlu0 %3299
    %3301 = vrot.lane.b32.xlu0 %v3279, 96
    %v3302 = vpop.permute.xlu0 %3301
    %v3305 = vsel %vm499, %v2974, %v3284
    %v3306 = vsel %vm499, %v2977, %v3286
    %v3307 = vsel %vm919, %v3305, %v3292
    %v3308 = vsel %vm919, %v3306, %v3294
    %v3309 = vsel %vm922, %v3307, %v3300
    %v3310 = vsel %vm922, %v3308, %v3302
    %v3312 = vperm.slane %v2812, 0
    %3314 = vmatpush.msra.mxu0 %v2811
    %3315 = vmatpush.msra.mxu0 %v2810
    %3316 = vmatpush.msra.mxu0 %v2809
    %3317 = vmatpush.msra.mxu0 %v2808
    %3318 = vmatpush.msra.mxu0 %v2807
    %3319 = vmatpush.msra.mxu0 %v2806
    %3320 = vmatpush.msra.mxu0 %v2805
    %3321 = vmatpush.msra.mxu0 %v2804
    %3322 = vmatpush.msra.mxu0 %v2803
    %3323 = vmatpush.msra.mxu0 %v2802
    %3324 = vmatpush.msra.mxu0 %v2801
    %3325 = vmatpush.msra.mxu0 %v2800
    %3326 = vmatpush.msra.mxu0 %v2799
    %3327 = vmatpush.msra.mxu0 %v2798
    %3328 = vmatpush.msra.mxu0 %v2797
    %3329 = vmatpush.msra.mxu0 %v2796
    %3330 = vmatmul.f32.gmra.mxu0 %v3309
    %v3331 = vpop.f32.mrf.mxu0
    %v3332 = vadd.f32 %v3312, %v3331
    %3333 = vmatmul.f32.gmra.mxu0 %v3310
    %v3334 = vpop.f32.mrf.mxu0
    %v3335 = vadd.f32 %v3312, %v3334
    %3336 = vdwg.mxu0
    %v3337 = vadd.f32 %v2745, %v3332
    %v3338 = vadd.f32 %v2746, %v3335
    %v3339 = vld [vmem:[%s39] sm:$0x1]
    %v3340 = vld [vmem:[%s41] sm:$0x1]
    %3341 = vadd.xlane.f32.xlu0 %v3337
    %v3342 = vpop.xlane.xlu0 %3341
    %3343 = vadd.xlane.f32.xlu0 %v3338
    %v3344 = vpop.xlane.xlu0 %3343
    %v3345 = vmul.f32 %v3342, %v965
    %v3346 = vmul.f32 %v3344, %v965
    %v3347 = vsub.f32 %v3337, %v3345
    %v3348 = vsub.f32 %v3338, %v3346
    %v3349 = vmul.f32 %v3347, %v3347
    %v3350 = vmul.f32 %v3348, %v3348
    %3351 = vadd.xlane.f32.xlu0 %v3349
    %v3352 = vpop.xlane.xlu0 %3351
    %3353 = vadd.xlane.f32.xlu0 %v3350
    %v3354 = vpop.xlane.xlu0 %3353
    %v3355 = vmul.f32 %v3352, %v965
    %v3356 = vmul.f32 %v3354, %v965
    %v3357 = vadd.f32 %v3355, 0.6
    %v3358 = vadd.f32 %v3356, 0.6
    %v3359 = vrsqrt.pop %v3357
    %v3360 = vmul.f32 %v3359, %v3357
    %v3361 = vmul.f32 %v3360, %v3359
    %v3362 = vmul.f32 0.5, %v3361
    %v3363 = vsub.f32 1.5, %v3362
    %v3364 = vmul.f32 %v3359, %v3363
    %vm3365 = vweird.f32 %v3357
    %vm3366 = vweird.f32 %v3359
    %vm3367 = vmor %vm3365, %vm3366
    %v3368 = vsel %vm3367, %v3359, %v3364
    %v3369 = vrsqrt.pop %v3358
    %v3370 = vmul.f32 %v3369, %v3358
    %v3371 = vmul.f32 %v3370, %v3369
    %v3372 = vmul.f32 0.5, %v3371
    %v3373 = vsub.f32 1.5, %v3372
    %v3374 = vmul.f32 %v3369, %v3373
    %vm3375 = vweird.f32 %v3358
    %vm3376 = vweird.f32 %v3369
    %vm3377 = vmor %vm3375, %vm3376
    %v3378 = vsel %vm3377, %v3369, %v3374
    %v3379 = vmul.f32 %v3347, %v3368
    %v3380 = vmul.f32 %v3348, %v3378
    %v3382 = vperm.slane %v3339, 0
    %v3384 = vmul.f32 %v3379, %v3382
    %v3385 = vmul.f32 %v3380, %v3382
    %v3387 = vperm.slane %v3340, 0
    %v3389 = vadd.f32 %v3384, %v3387
    %v3390 = vadd.f32 %v3385, %v3387
    %v3391 = vld [vmem:[#allocation13] sm:$0xff]
    %v3392 = vld [vmem:[#allocation13 + $0x8] sm:$0xff]
    %v3393 = vld [vmem:[#allocation13 + $0x10] sm:$0xff]
    %v3394 = vld [vmem:[#allocation13 + $0x18] sm:$0xff]
    %v3395 = vld [vmem:[#allocation13 + $0x20] sm:$0xff]
    %v3396 = vld [vmem:[#allocation13 + $0x28] sm:$0xff]
    %v3397 = vld [vmem:[#allocation13 + $0x30] sm:$0xff]
    %v3398 = vld [vmem:[#allocation13 + $0x38] sm:$0xff]
    %v3399 = vld [vmem:[#allocation13 + $0x40] sm:$0xff]
    %v3400 = vld [vmem:[#allocation13 + $0x48] sm:$0xff]
    %v3401 = vld [vmem:[#allocation13 + $0x50] sm:$0xff]
    %v3402 = vld [vmem:[#allocation13 + $0x58] sm:$0xff]
    %v3403 = vld [vmem:[#allocation13 + $0x60] sm:$0xff]
    %v3404 = vld [vmem:[#allocation13 + $0x68] sm:$0xff]
    %v3405 = vld [vmem:[#allocation13 + $0x70] sm:$0xff]
    %v3406 = vld [vmem:[#allocation13 + $0x78] sm:$0xff]
    %v3407 = vld [vmem:[#allocation13 + $0x80] sm:$0xff]
    %v3408 = vld [vmem:[#allocation13 + $0x88] sm:$0xff]
    %v3409 = vld [vmem:[#allocation13 + $0x90] sm:$0xff]
    %v3410 = vld [vmem:[#allocation13 + $0x98] sm:$0xff]
    %v3411 = vld [vmem:[#allocation13 + $0xa0] sm:$0xff]
    %v3412 = vld [vmem:[#allocation13 + $0xa8] sm:$0xff]
    %v3413 = vld [vmem:[#allocation13 + $0xb0] sm:$0xff]
    %v3414 = vld [vmem:[#allocation13 + $0xb8] sm:$0xff]
    %v3415 = vld [vmem:[#allocation13 + $0xc0] sm:$0xff]
    %v3416 = vld [vmem:[#allocation13 + $0xc8] sm:$0xff]
    %v3417 = vld [vmem:[#allocation13 + $0xd0] sm:$0xff]
    %v3418 = vld [vmem:[#allocation13 + $0xd8] sm:$0xff]
    %v3419 = vld [vmem:[#allocation13 + $0xe0] sm:$0xff]
    %v3420 = vld [vmem:[#allocation13 + $0xe8] sm:$0xff]
    %v3421 = vld [vmem:[#allocation13 + $0xf0] sm:$0xff]
    %v3422 = vld [vmem:[#allocation13 + $0xf8] sm:$0xff]
    %v3423 = vld [vmem:[#allocation13 + $0x100] sm:$0xff]
    %v3424 = vld [vmem:[#allocation13 + $0x108] sm:$0xff]
    %v3425 = vld [vmem:[#allocation13 + $0x110] sm:$0xff]
    %v3426 = vld [vmem:[#allocation13 + $0x118] sm:$0xff]
    %v3427 = vld [vmem:[#allocation13 + $0x120] sm:$0xff]
    %v3428 = vld [vmem:[#allocation13 + $0x128] sm:$0xff]
    %v3429 = vld [vmem:[#allocation13 + $0x130] sm:$0xff]
    %v3430 = vld [vmem:[#allocation13 + $0x138] sm:$0xff]
    %v3431 = vld [vmem:[#allocation13 + $0x140] sm:$0xff]
    %v3432 = vld [vmem:[#allocation13 + $0x148] sm:$0xff]
    %v3433 = vld [vmem:[#allocation13 + $0x150] sm:$0xff]
    %v3434 = vld [vmem:[#allocation13 + $0x158] sm:$0xff]
    %v3435 = vld [vmem:[#allocation13 + $0x160] sm:$0xff]
    %v3436 = vld [vmem:[#allocation13 + $0x168] sm:$0xff]
    %v3437 = vld [vmem:[#allocation13 + $0x170] sm:$0xff]
    %v3438 = vld [vmem:[#allocation13 + $0x178] sm:$0xff]
    %v3439 = vld [vmem:[%s45] sm:$0x7]
    %v3440 = vld [vmem:[#allocation14] sm:$0xff]
    %v3441 = vld [vmem:[#allocation14 + $0x8] sm:$0xff]
    %v3442 = vld [vmem:[#allocation14 + $0x10] sm:$0xff]
    %v3443 = vld [vmem:[#allocation14 + $0x18] sm:$0xff]
    %v3444 = vld [vmem:[#allocation14 + $0x20] sm:$0xff]
    %v3445 = vld [vmem:[#allocation14 + $0x28] sm:$0xff]
    %v3446 = vld [vmem:[#allocation14 + $0x30] sm:$0xff]
    %v3447 = vld [vmem:[#allocation14 + $0x38] sm:$0xff]
    %v3448 = vld [vmem:[#allocation14 + $0x40] sm:$0xff]
    %v3449 = vld [vmem:[#allocation14 + $0x48] sm:$0xff]
    %v3450 = vld [vmem:[#allocation14 + $0x50] sm:$0xff]
    %v3451 = vld [vmem:[#allocation14 + $0x58] sm:$0xff]
    %v3452 = vld [vmem:[#allocation14 + $0x60] sm:$0xff]
    %v3453 = vld [vmem:[#allocation14 + $0x68] sm:$0xff]
    %v3454 = vld [vmem:[#allocation14 + $0x70] sm:$0xff]
    %v3455 = vld [vmem:[#allocation14 + $0x78] sm:$0xff]
    %v3456 = vld [vmem:[%s49] sm:$0x1]
    %v3458 = vperm.slane %v3439, 0
    %v3459 = vperm.slane %v3439, 1
    %v3460 = vperm.slane %v3439, 2
    %3464 = vmatpush.msra.mxu0 %v3436
    %3465 = vmatpush.msra.mxu0 %v3433
    %3466 = vmatpush.msra.mxu0 %v3430
    %3467 = vmatpush.msra.mxu0 %v3427
    %3468 = vmatpush.msra.mxu0 %v3424
    %3469 = vmatpush.msra.mxu0 %v3421
    %3470 = vmatpush.msra.mxu0 %v3418
    %3471 = vmatpush.msra.mxu0 %v3415
    %3472 = vmatpush.msra.mxu0 %v3412
    %3473 = vmatpush.msra.mxu0 %v3409
    %3474 = vmatpush.msra.mxu0 %v3406
    %3475 = vmatpush.msra.mxu0 %v3403
    %3476 = vmatpush.msra.mxu0 %v3400
    %3477 = vmatpush.msra.mxu0 %v3397
    %3478 = vmatpush.msra.mxu0 %v3394
    %3479 = vmatpush.msra.mxu0 %v3391
    %3480 = vmatmul.f32.gmra.mxu0 %v3389
    %v3481 = vpop.f32.mrf.mxu0
    %v3482 = vadd.f32 %v3458, %v3481
    %3483 = vmatmul.f32.gmra.mxu0 %v3390
    %v3484 = vpop.f32.mrf.mxu0
    %v3485 = vadd.f32 %v3458, %v3484
    %3486 = vdwg.mxu0
    %3487 = vmatpush.msra.mxu0 %v3437
    %3488 = vmatpush.msra.mxu0 %v3434
    %3489 = vmatpush.msra.mxu0 %v3431
    %3490 = vmatpush.msra.mxu0 %v3428
    %3491 = vmatpush.msra.mxu0 %v3425
    %3492 = vmatpush.msra.mxu0 %v3422
    %3493 = vmatpush.msra.mxu0 %v3419
    %3494 = vmatpush.msra.mxu0 %v3416
    %3495 = vmatpush.msra.mxu0 %v3413
    %3496 = vmatpush.msra.mxu0 %v3410
    %3497 = vmatpush.msra.mxu0 %v3407
    %3498 = vmatpush.msra.mxu0 %v3404
    %3499 = vmatpush.msra.mxu0 %v3401
    %3500 = vmatpush.msra.mxu0 %v3398
    %3501 = vmatpush.msra.mxu0 %v3395
    %3502 = vmatpush.msra.mxu0 %v3392
    %3503 = vmatmul.f32.gmra.mxu0 %v2737
    %v3504 = vpop.f32.mrf.mxu0
    %v3505 = vadd.f32 %v3459, %v3504
    %3506 = vmatmul.f32.gmra.mxu0 %v2744
    %v3507 = vpop.f32.mrf.mxu0
    %v3508 = vadd.f32 %v3459, %v3507
    %3509 = vdwg.mxu0
    %3510 = vmatpush.msra.mxu0 %v3438
    %3511 = vmatpush.msra.mxu0 %v3435
    %3512 = vmatpush.msra.mxu0 %v3432
    %3513 = vmatpush.msra.mxu0 %v3429
    %3514 = vmatpush.msra.mxu0 %v3426
    %3515 = vmatpush.msra.mxu0 %v3423
    %3516 = vmatpush.msra.mxu0 %v3420
    %3517 = vmatpush.msra.mxu0 %v3417
    %3518 = vmatpush.msra.mxu0 %v3414
    %3519 = vmatpush.msra.mxu0 %v3411
    %3520 = vmatpush.msra.mxu0 %v3408
    %3521 = vmatpush.msra.mxu0 %v3405
    %3522 = vmatpush.msra.mxu0 %v3402
    %3523 = vmatpush.msra.mxu0 %v3399
    %3524 = vmatpush.msra.mxu0 %v3396
    %3525 = vmatpush.msra.mxu0 %v3393
    %3526 = vmatmul.f32.gmra.mxu0 %v2737
    %v3527 = vpop.f32.mrf.mxu0
    %v3528 = vadd.f32 %v3460, %v3527
    %3529 = vmatmul.f32.gmra.mxu0 %v2744
    %v3530 = vpop.f32.mrf.mxu0
    %v3531 = vadd.f32 %v3460, %v3530
    %3532 = vdwg.mxu0
    %v3534 = vsel %vm499, %v3482, 0
    %v3537 = vsel %vm499, %v3485, 0
    %v3540 = vsel %vm499, %v3505, 0
    %v3543 = vsel %vm499, %v3508, 0
    %3545 = vmatpush.xpose.msra.mxu0 0.0
    %3546 = vmatpush.xpose.msra.mxu0 0.0
    %3547 = vmatpush.xpose.msra.mxu0 0.0
    %3548 = vmatpush.xpose.msra.mxu0 0.0
    %3549 = vmatpush.xpose.msra.mxu0 0.0
    %3550 = vmatpush.xpose.msra.mxu0 0.0
    %3551 = vmatpush.xpose.msra.mxu0 0.0
    %3552 = vmatpush.xpose.msra.mxu0 0.0
    %3553 = vmatpush.xpose.msra.mxu0 0.0
    %3554 = vmatpush.xpose.msra.mxu0 0.0
    %3555 = vmatpush.xpose.msra.mxu0 0.0
    %3556 = vmatpush.xpose.msra.mxu0 0.0
    %3557 = vmatpush.xpose.msra.mxu0 0.0
    %3558 = vmatpush.xpose.msra.mxu0 0.0
    %3559 = vmatpush.xpose.msra.mxu0 %v3543
    %3560 = vmatpush.xpose.msra.mxu0 %v3540
    %3561 = vmatmul.f32.gmra.mxu0 %v3534
    %v3562 = vpop.f32.mrf.mxu0
    %v3563 = vadd.f32 0.0, %v3562
    %3564 = vmatmul.f32.gmra.mxu0 %v3537
    %v3565 = vpop.f32.mrf.mxu0
    %v3566 = vadd.f32 0.0, %v3565
    %3567 = vdwg.mxu0
    %v3568 = vmul.f32 %v3563, 0.17677669
    %v3569 = vmul.f32 %v3566, 0.17677669
    %v3570 = vadd.f32 %v3568, %v353
    %v3571 = vadd.f32 %v3569, %v354
    %v3572 = vsel %vm539, %v3570, -inf
    %3573 = vmax.xlane.f32.xlu0 %v3572
    %v3574 = vpop.xlane.xlu0 %3573
    %v3575 = vsel %vm539, %v3571, -inf
    %3576 = vmax.xlane.f32.xlu0 %v3575
    %v3577 = vpop.xlane.xlu0 %3576
    %v3578 = vsub.f32 %v3570, %v3574
    %v3579 = vsub.f32 %v3571, %v3577
    %v3580 = vmul.f32 %v3578, 1.442695
    %v3581 = vpow.pop %v3580
    %v3582 = vmul.f32 %v3579, 1.442695
    %v3583 = vpow.pop %v3582
    %v3584 = vsel %vm539, %v3581, 0.0
    %3585 = vadd.xlane.f32.xlu0 %v3584
    %v3586 = vpop.xlane.xlu0 %3585
    %v3587 = vsel %vm539, %v3583, 0.0
    %3588 = vadd.xlane.f32.xlu0 %v3587
    %v3589 = vpop.xlane.xlu0 %3588
    %v3590 = vrcp.pop %v3586
    %v3591 = vrcp.pop %v3589
    %v3592 = vmul.f32 %v3581, %v3590
    %v3593 = vmul.f32 %v3583, %v3591
    %v3595 = vsel %vm539, %v3592, 0
    %v3598 = vsel %vm539, %v3593, 0
    %3600 = vmatpush.msra.mxu0 0.0
    %3601 = vmatpush.msra.mxu0 0.0
    %3602 = vmatpush.msra.mxu0 0.0
    %3603 = vmatpush.msra.mxu0 0.0
    %3604 = vmatpush.msra.mxu0 0.0
    %3605 = vmatpush.msra.mxu0 0.0
    %3606 = vmatpush.msra.mxu0 0.0
    %3607 = vmatpush.msra.mxu0 0.0
    %3608 = vmatpush.msra.mxu0 0.0
    %3609 = vmatpush.msra.mxu0 0.0
    %3610 = vmatpush.msra.mxu0 0.0
    %3611 = vmatpush.msra.mxu0 0.0
    %3612 = vmatpush.msra.mxu0 0.0
    %3613 = vmatpush.msra.mxu0 0.0
    %3614 = vmatpush.msra.mxu0 %v3531
    %3615 = vmatpush.msra.mxu0 %v3528
    %3616 = vmatmul.f32.gmra.mxu0 %v3595
    %v3617 = vpop.f32.mrf.mxu0
    %v3618 = vadd.f32 0.0, %v3617
    %3619 = vmatmul.f32.gmra.mxu0 %v3598
    %v3620 = vpop.f32.mrf.mxu0
    %v3621 = vadd.f32 0.0, %v3620
    %3622 = vdwg.mxu0
    %3623 = vrot.lane.b32.xlu0 %v3482, 96
    %v3624 = vpop.permute.xlu0 %3623
    %3625 = vrot.lane.b32.xlu0 %v3485, 96
    %v3626 = vpop.permute.xlu0 %3625
    %3627 = vrot.lane.b32.xlu0 %v3505, 96
    %v3628 = vpop.permute.xlu0 %3627
    %3629 = vrot.lane.b32.xlu0 %v3508, 96
    %v3630 = vpop.permute.xlu0 %3629
    %v3631 = vsel %vm499, %v3624, 0
    %v3633 = vsel %vm499, %v3626, 0
    %v3635 = vsel %vm499, %v3628, 0
    %v3637 = vsel %vm499, %v3630, 0
    %3639 = vmatpush.xpose.msra.mxu0 0.0
    %3640 = vmatpush.xpose.msra.mxu0 0.0
    %3641 = vmatpush.xpose.msra.mxu0 0.0
    %3642 = vmatpush.xpose.msra.mxu0 0.0
    %3643 = vmatpush.xpose.msra.mxu0 0.0
    %3644 = vmatpush.xpose.msra.mxu0 0.0
    %3645 = vmatpush.xpose.msra.mxu0 0.0
    %3646 = vmatpush.xpose.msra.mxu0 0.0
    %3647 = vmatpush.xpose.msra.mxu0 0.0
    %3648 = vmatpush.xpose.msra.mxu0 0.0
    %3649 = vmatpush.xpose.msra.mxu0 0.0
    %3650 = vmatpush.xpose.msra.mxu0 0.0
    %3651 = vmatpush.xpose.msra.mxu0 0.0
    %3652 = vmatpush.xpose.msra.mxu0 0.0
    %3653 = vmatpush.xpose.msra.mxu0 %v3637
    %3654 = vmatpush.xpose.msra.mxu0 %v3635
    %3655 = vmatmul.f32.gmra.mxu0 %v3631
    %v3656 = vpop.f32.mrf.mxu0
    %v3657 = vadd.f32 0.0, %v3656
    %3658 = vmatmul.f32.gmra.mxu0 %v3633
    %v3659 = vpop.f32.mrf.mxu0
    %v3660 = vadd.f32 0.0, %v3659
    %3661 = vdwg.mxu0
    %v3662 = vmul.f32 %v3657, 0.17677669
    %v3663 = vmul.f32 %v3660, 0.17677669
    %v3664 = vadd.f32 %v3662, %v353
    %v3665 = vadd.f32 %v3663, %v354
    %v3666 = vsel %vm539, %v3664, -inf
    %3667 = vmax.xlane.f32.xlu0 %v3666
    %v3668 = vpop.xlane.xlu0 %3667
    %v3669 = vsel %vm539, %v3665, -inf
    %3670 = vmax.xlane.f32.xlu0 %v3669
    %v3671 = vpop.xlane.xlu0 %3670
    %v3672 = vsub.f32 %v3664, %v3668
    %v3673 = vsub.f32 %v3665, %v3671
    %v3674 = vmul.f32 %v3672, 1.442695
    %v3675 = vpow.pop %v3674
    %v3676 = vmul.f32 %v3673, 1.442695
    %v3677 = vpow.pop %v3676
    %v3678 = vsel %vm539, %v3675, 0.0
    %3679 = vadd.xlane.f32.xlu0 %v3678
    %v3680 = vpop.xlane.xlu0 %3679
    %v3681 = vsel %vm539, %v3677, 0.0
    %3682 = vadd.xlane.f32.xlu0 %v3681
    %v3683 = vpop.xlane.xlu0 %3682
    %v3684 = vrcp.pop %v3680
    %v3685 = vrcp.pop %v3683
    %v3686 = vmul.f32 %v3675, %v3684
    %v3687 = vmul.f32 %v3677, %v3685
    %3690 = vrot.lane.b32.xlu0 %v3528, 96
    %v3691 = vpop.permute.xlu0 %3690
    %3692 = vrot.lane.b32.xlu0 %v3531, 96
    %v3693 = vpop.permute.xlu0 %3692
    %v3697 = vsel %vm539, %v3686, 0
    %v3700 = vsel %vm539, %v3687, 0
    %3702 = vmatpush.msra.mxu0 0.0
    %3703 = vmatpush.msra.mxu0 0.0
    %3704 = vmatpush.msra.mxu0 0.0
    %3705 = vmatpush.msra.mxu0 0.0
    %3706 = vmatpush.msra.mxu0 0.0
    %3707 = vmatpush.msra.mxu0 0.0
    %3708 = vmatpush.msra.mxu0 0.0
    %3709 = vmatpush.msra.mxu0 0.0
    %3710 = vmatpush.msra.mxu0 0.0
    %3711 = vmatpush.msra.mxu0 0.0
    %3712 = vmatpush.msra.mxu0 0.0
    %3713 = vmatpush.msra.mxu0 0.0
    %3714 = vmatpush.msra.mxu0 0.0
    %3715 = vmatpush.msra.mxu0 0.0
    %3716 = vmatpush.msra.mxu0 %v3693
    %3717 = vmatpush.msra.mxu0 %v3691
    %3718 = vmatmul.f32.gmra.mxu0 %v3697
    %v3719 = vpop.f32.mrf.mxu0
    %v3720 = vadd.f32 0.0, %v3719
    %3721 = vmatmul.f32.gmra.mxu0 %v3700
    %v3722 = vpop.f32.mrf.mxu0
    %v3723 = vadd.f32 0.0, %v3722
    %3724 = vdwg.mxu0
    %3725 = vrot.lane.b32.xlu0 %v3482, 64
    %v3726 = vpop.permute.xlu0 %3725
    %3727 = vrot.lane.b32.xlu0 %v3485, 64
    %v3728 = vpop.permute.xlu0 %3727
    %3729 = vrot.lane.b32.xlu0 %v3505, 64
    %v3730 = vpop.permute.xlu0 %3729
    %3731 = vrot.lane.b32.xlu0 %v3508, 64
    %v3732 = vpop.permute.xlu0 %3731
    %v3733 = vsel %vm499, %v3726, 0
    %v3735 = vsel %vm499, %v3728, 0
    %v3737 = vsel %vm499, %v3730, 0
    %v3739 = vsel %vm499, %v3732, 0
    %3741 = vmatpush.xpose.msra.mxu0 0.0
    %3742 = vmatpush.xpose.msra.mxu0 0.0
    %3743 = vmatpush.xpose.msra.mxu0 0.0
    %3744 = vmatpush.xpose.msra.mxu0 0.0
    %3745 = vmatpush.xpose.msra.mxu0 0.0
    %3746 = vmatpush.xpose.msra.mxu0 0.0
    %3747 = vmatpush.xpose.msra.mxu0 0.0
    %3748 = vmatpush.xpose.msra.mxu0 0.0
    %3749 = vmatpush.xpose.msra.mxu0 0.0
    %3750 = vmatpush.xpose.msra.mxu0 0.0
    %3751 = vmatpush.xpose.msra.mxu0 0.0
    %3752 = vmatpush.xpose.msra.mxu0 0.0
    %3753 = vmatpush.xpose.msra.mxu0 0.0
    %3754 = vmatpush.xpose.msra.mxu0 0.0
    %3755 = vmatpush.xpose.msra.mxu0 %v3739
    %3756 = vmatpush.xpose.msra.mxu0 %v3737
    %3757 = vmatmul.f32.gmra.mxu0 %v3733
    %v3758 = vpop.f32.mrf.mxu0
    %v3759 = vadd.f32 0.0, %v3758
    %3760 = vmatmul.f32.gmra.mxu0 %v3735
    %v3761 = vpop.f32.mrf.mxu0
    %v3762 = vadd.f32 0.0, %v3761
    %3763 = vdwg.mxu0
    %v3764 = vmul.f32 %v3759, 0.17677669
    %v3765 = vmul.f32 %v3762, 0.17677669
    %v3766 = vadd.f32 %v3764, %v353
    %v3767 = vadd.f32 %v3765, %v354
    %v3768 = vsel %vm539, %v3766, -inf
    %3769 = vmax.xlane.f32.xlu0 %v3768
    %v3770 = vpop.xlane.xlu0 %3769
    %v3771 = vsel %vm539, %v3767, -inf
    %3772 = vmax.xlane.f32.xlu0 %v3771
    %v3773 = vpop.xlane.xlu0 %3772
    %v3774 = vsub.f32 %v3766, %v3770
    %v3775 = vsub.f32 %v3767, %v3773
    %v3776 = vmul.f32 %v3774, 1.442695
    %v3777 = vpow.pop %v3776
    %v3778 = vmul.f32 %v3775, 1.442695
    %v3779 = vpow.pop %v3778
    %v3780 = vsel %vm539, %v3777, 0.0
    %3781 = vadd.xlane.f32.xlu0 %v3780
    %v3782 = vpop.xlane.xlu0 %3781
    %v3783 = vsel %vm539, %v3779, 0.0
    %3784 = vadd.xlane.f32.xlu0 %v3783
    %v3785 = vpop.xlane.xlu0 %3784
    %v3786 = vrcp.pop %v3782
    %v3787 = vrcp.pop %v3785
    %v3788 = vmul.f32 %v3777, %v3786
    %v3789 = vmul.f32 %v3779, %v3787
    %3790 = vrot.lane.b32.xlu0 %v3528, 64
    %v3791 = vpop.permute.xlu0 %3790
    %3792 = vrot.lane.b32.xlu0 %v3531, 64
    %v3793 = vpop.permute.xlu0 %3792
    %v3797 = vsel %vm539, %v3788, 0
    %v3800 = vsel %vm539, %v3789, 0
    %3802 = vmatpush.msra.mxu0 0.0
    %3803 = vmatpush.msra.mxu0 0.0
    %3804 = vmatpush.msra.mxu0 0.0
    %3805 = vmatpush.msra.mxu0 0.0
    %3806 = vmatpush.msra.mxu0 0.0
    %3807 = vmatpush.msra.mxu0 0.0
    %3808 = vmatpush.msra.mxu0 0.0
    %3809 = vmatpush.msra.mxu0 0.0
    %3810 = vmatpush.msra.mxu0 0.0
    %3811 = vmatpush.msra.mxu0 0.0
    %3812 = vmatpush.msra.mxu0 0.0
    %3813 = vmatpush.msra.mxu0 0.0
    %3814 = vmatpush.msra.mxu0 0.0
    %3815 = vmatpush.msra.mxu0 0.0
    %3816 = vmatpush.msra.mxu0 %v3793
    %3817 = vmatpush.msra.mxu0 %v3791
    %3818 = vmatmul.f32.gmra.mxu0 %v3797
    %v3819 = vpop.f32.mrf.mxu0
    %v3820 = vadd.f32 0.0, %v3819
    %3821 = vmatmul.f32.gmra.mxu0 %v3800
    %v3822 = vpop.f32.mrf.mxu0
    %v3823 = vadd.f32 0.0, %v3822
    %3824 = vdwg.mxu0
    %3825 = vrot.lane.b32.xlu0 %v3482, 32
    %v3826 = vpop.permute.xlu0 %3825
    %3827 = vrot.lane.b32.xlu0 %v3485, 32
    %v3828 = vpop.permute.xlu0 %3827
    %3829 = vrot.lane.b32.xlu0 %v3505, 32
    %v3830 = vpop.permute.xlu0 %3829
    %3831 = vrot.lane.b32.xlu0 %v3508, 32
    %v3832 = vpop.permute.xlu0 %3831
    %v3833 = vsel %vm499, %v3826, 0
    %v3835 = vsel %vm499, %v3828, 0
    %v3837 = vsel %vm499, %v3830, 0
    %v3839 = vsel %vm499, %v3832, 0
    %3841 = vmatpush.xpose.msra.mxu0 0.0
    %3842 = vmatpush.xpose.msra.mxu0 0.0
    %3843 = vmatpush.xpose.msra.mxu0 0.0
    %3844 = vmatpush.xpose.msra.mxu0 0.0
    %3845 = vmatpush.xpose.msra.mxu0 0.0
    %3846 = vmatpush.xpose.msra.mxu0 0.0
    %3847 = vmatpush.xpose.msra.mxu0 0.0
    %3848 = vmatpush.xpose.msra.mxu0 0.0
    %3849 = vmatpush.xpose.msra.mxu0 0.0
    %3850 = vmatpush.xpose.msra.mxu0 0.0
    %3851 = vmatpush.xpose.msra.mxu0 0.0
    %3852 = vmatpush.xpose.msra.mxu0 0.0
    %3853 = vmatpush.xpose.msra.mxu0 0.0
    %3854 = vmatpush.xpose.msra.mxu0 0.0
    %3855 = vmatpush.xpose.msra.mxu0 %v3839
    %3856 = vmatpush.xpose.msra.mxu0 %v3837
    %3857 = vmatmul.f32.gmra.mxu0 %v3833
    %v3858 = vpop.f32.mrf.mxu0
    %v3859 = vadd.f32 0.0, %v3858
    %3860 = vmatmul.f32.gmra.mxu0 %v3835
    %v3861 = vpop.f32.mrf.mxu0
    %v3862 = vadd.f32 0.0, %v3861
    %3863 = vdwg.mxu0
    %v3864 = vmul.f32 %v3859, 0.17677669
    %v3865 = vmul.f32 %v3862, 0.17677669
    %v3866 = vadd.f32 %v3864, %v353
    %v3867 = vadd.f32 %v3865, %v354
    %v3868 = vsel %vm539, %v3866, -inf
    %3869 = vmax.xlane.f32.xlu0 %v3868
    %v3870 = vpop.xlane.xlu0 %3869
    %v3871 = vsel %vm539, %v3867, -inf
    %3872 = vmax.xlane.f32.xlu0 %v3871
    %v3873 = vpop.xlane.xlu0 %3872
    %v3874 = vsub.f32 %v3866, %v3870
    %v3875 = vsub.f32 %v3867, %v3873
    %v3876 = vmul.f32 %v3874, 1.442695
    %v3877 = vpow.pop %v3876
    %v3878 = vmul.f32 %v3875, 1.442695
    %v3879 = vpow.pop %v3878
    %v3880 = vsel %vm539, %v3877, 0.0
    %3881 = vadd.xlane.f32.xlu0 %v3880
    %v3882 = vpop.xlane.xlu0 %3881
    %v3883 = vsel %vm539, %v3879, 0.0
    %3884 = vadd.xlane.f32.xlu0 %v3883
    %v3885 = vpop.xlane.xlu0 %3884
    %v3886 = vrcp.pop %v3882
    %v3887 = vrcp.pop %v3885
    %v3888 = vmul.f32 %v3877, %v3886
    %v3889 = vmul.f32 %v3879, %v3887
    %3890 = vrot.lane.b32.xlu0 %v3528, 32
    %v3891 = vpop.permute.xlu0 %3890
    %3892 = vrot.lane.b32.xlu0 %v3531, 32
    %v3893 = vpop.permute.xlu0 %3892
    %v3897 = vsel %vm539, %v3888, 0
    %v3900 = vsel %vm539, %v3889, 0
    %3902 = vmatpush.msra.mxu0 0.0
    %3903 = vmatpush.msra.mxu0 0.0
    %3904 = vmatpush.msra.mxu0 0.0
    %3905 = vmatpush.msra.mxu0 0.0
    %3906 = vmatpush.msra.mxu0 0.0
    %3907 = vmatpush.msra.mxu0 0.0
    %3908 = vmatpush.msra.mxu0 0.0
    %3909 = vmatpush.msra.mxu0 0.0
    %3910 = vmatpush.msra.mxu0 0.0
    %3911 = vmatpush.msra.mxu0 0.0
    %3912 = vmatpush.msra.mxu0 0.0
    %3913 = vmatpush.msra.mxu0 0.0
    %3914 = vmatpush.msra.mxu0 0.0
    %3915 = vmatpush.msra.mxu0 0.0
    %3916 = vmatpush.msra.mxu0 %v3893
    %3917 = vmatpush.msra.mxu0 %v3891
    %3918 = vmatmul.f32.gmra.mxu0 %v3897
    %v3919 = vpop.f32.mrf.mxu0
    %v3920 = vadd.f32 0.0, %v3919
    %3921 = vmatmul.f32.gmra.mxu0 %v3900
    %v3922 = vpop.f32.mrf.mxu0
    %v3923 = vadd.f32 0.0, %v3922
    %3924 = vdwg.mxu0
    %3927 = vrot.lane.b32.xlu0 %v3720, 32
    %v3928 = vpop.permute.xlu0 %3927
    %3929 = vrot.lane.b32.xlu0 %v3723, 32
    %v3930 = vpop.permute.xlu0 %3929
    %3935 = vrot.lane.b32.xlu0 %v3820, 64
    %v3936 = vpop.permute.xlu0 %3935
    %3937 = vrot.lane.b32.xlu0 %v3823, 64
    %v3938 = vpop.permute.xlu0 %3937
    %3943 = vrot.lane.b32.xlu0 %v3920, 96
    %v3944 = vpop.permute.xlu0 %3943
    %3945 = vrot.lane.b32.xlu0 %v3923, 96
    %v3946 = vpop.permute.xlu0 %3945
    %v3949 = vsel %vm499, %v3618, %v3928
    %v3950 = vsel %vm499, %v3621, %v3930
    %v3951 = vsel %vm919, %v3949, %v3936
    %v3952 = vsel %vm919, %v3950, %v3938
    %v3953 = vsel %vm922, %v3951, %v3944
    %v3954 = vsel %vm922, %v3952, %v3946
    %v3956 = vperm.slane %v3456, 0
    %3958 = vmatpush.msra.mxu0 %v3455
    %3959 = vmatpush.msra.mxu0 %v3454
    %3960 = vmatpush.msra.mxu0 %v3453
    %3961 = vmatpush.msra.mxu0 %v3452
    %3962 = vmatpush.msra.mxu0 %v3451
    %3963 = vmatpush.msra.mxu0 %v3450
    %3964 = vmatpush.msra.mxu0 %v3449
    %3965 = vmatpush.msra.mxu0 %v3448
    %3966 = vmatpush.msra.mxu0 %v3447
    %3967 = vmatpush.msra.mxu0 %v3446
    %3968 = vmatpush.msra.mxu0 %v3445
    %3969 = vmatpush.msra.mxu0 %v3444
    %3970 = vmatpush.msra.mxu0 %v3443
    %3971 = vmatpush.msra.mxu0 %v3442
    %3972 = vmatpush.msra.mxu0 %v3441
    %3973 = vmatpush.msra.mxu0 %v3440
    %3974 = vmatmul.f32.gmra.mxu0 %v3953
    %v3975 = vpop.f32.mrf.mxu0
    %v3976 = vadd.f32 %v3956, %v3975
    %3977 = vmatmul.f32.gmra.mxu0 %v3954
    %v3978 = vpop.f32.mrf.mxu0
    %v3979 = vadd.f32 %v3956, %v3978
    %3980 = vdwg.mxu0
    %v3981 = vadd.f32 %v3389, %v3976
    %v3982 = vadd.f32 %v3390, %v3979
    %v3983 = vld [vmem:[%s51] sm:$0x1]
    %v3984 = vld [vmem:[%s53] sm:$0x1]
    %3985 = vadd.xlane.f32.xlu0 %v3981
    %v3986 = vpop.xlane.xlu0 %3985
    %3987 = vadd.xlane.f32.xlu0 %v3982
    %v3988 = vpop.xlane.xlu0 %3987
    %v3989 = vmul.f32 %v3986, %v965
    %v3990 = vmul.f32 %v3988, %v965
    %v3991 = vsub.f32 %v3981, %v3989
    %v3992 = vsub.f32 %v3982, %v3990
    %v3993 = vmul.f32 %v3991, %v3991
    %v3994 = vmul.f32 %v3992, %v3992
    %3995 = vadd.xlane.f32.xlu0 %v3993
    %v3996 = vpop.xlane.xlu0 %3995
    %3997 = vadd.xlane.f32.xlu0 %v3994
    %v3998 = vpop.xlane.xlu0 %3997
    %v3999 = vmul.f32 %v3996, %v965
    %v4000 = vmul.f32 %v3998, %v965
    %v4001 = vadd.f32 %v3999, 0.6
    %v4002 = vadd.f32 %v4000, 0.6
    %v4003 = vrsqrt.pop %v4001
    %v4004 = vmul.f32 %v4003, %v4001
    %v4005 = vmul.f32 %v4004, %v4003
    %v4006 = vmul.f32 0.5, %v4005
    %v4007 = vsub.f32 1.5, %v4006
    %v4008 = vmul.f32 %v4003, %v4007
    %vm4009 = vweird.f32 %v4001
    %vm4010 = vweird.f32 %v4003
    %vm4011 = vmor %vm4009, %vm4010
    %v4012 = vsel %vm4011, %v4003, %v4008
    %v4013 = vrsqrt.pop %v4002
    %v4014 = vmul.f32 %v4013, %v4002
    %v4015 = vmul.f32 %v4014, %v4013
    %v4016 = vmul.f32 0.5, %v4015
    %v4017 = vsub.f32 1.5, %v4016
    %v4018 = vmul.f32 %v4013, %v4017
    %vm4019 = vweird.f32 %v4002
    %vm4020 = vweird.f32 %v4013
    %vm4021 = vmor %vm4019, %vm4020
    %v4022 = vsel %vm4021, %v4013, %v4018
    %v4023 = vmul.f32 %v3991, %v4012
    %v4024 = vmul.f32 %v3992, %v4022
    %v4026 = vperm.slane %v3983, 0
    %v4028 = vmul.f32 %v4023, %v4026
    %v4029 = vmul.f32 %v4024, %v4026
    %v4031 = vperm.slane %v3984, 0
    %v4033 = vadd.f32 %v4028, %v4031
    %v4034 = vadd.f32 %v4029, %v4031
    %v4035 = vld [vmem:[#allocation16] sm:$0xff]
    %v4036 = vld [vmem:[#allocation16 + $0x8] sm:$0xff]
    %v4037 = vld [vmem:[#allocation16 + $0x10] sm:$0xff]
    %v4038 = vld [vmem:[#allocation16 + $0x18] sm:$0xff]
    %v4039 = vld [vmem:[#allocation16 + $0x20] sm:$0xff]
    %v4040 = vld [vmem:[#allocation16 + $0x28] sm:$0xff]
    %v4041 = vld [vmem:[#allocation16 + $0x30] sm:$0xff]
    %v4042 = vld [vmem:[#allocation16 + $0x38] sm:$0xff]
    %v4043 = vld [vmem:[#allocation16 + $0x40] sm:$0xff]
    %v4044 = vld [vmem:[#allocation16 + $0x48] sm:$0xff]
    %v4045 = vld [vmem:[#allocation16 + $0x50] sm:$0xff]
    %v4046 = vld [vmem:[#allocation16 + $0x58] sm:$0xff]
    %v4047 = vld [vmem:[#allocation16 + $0x60] sm:$0xff]
    %v4048 = vld [vmem:[#allocation16 + $0x68] sm:$0xff]
    %v4049 = vld [vmem:[#allocation16 + $0x70] sm:$0xff]
    %v4050 = vld [vmem:[#allocation16 + $0x78] sm:$0xff]
    %v4051 = vld [vmem:[#allocation16 + $0x80] sm:$0xff]
    %v4052 = vld [vmem:[#allocation16 + $0x88] sm:$0xff]
    %v4053 = vld [vmem:[#allocation16 + $0x90] sm:$0xff]
    %v4054 = vld [vmem:[#allocation16 + $0x98] sm:$0xff]
    %v4055 = vld [vmem:[#allocation16 + $0xa0] sm:$0xff]
    %v4056 = vld [vmem:[#allocation16 + $0xa8] sm:$0xff]
    %v4057 = vld [vmem:[#allocation16 + $0xb0] sm:$0xff]
    %v4058 = vld [vmem:[#allocation16 + $0xb8] sm:$0xff]
    %v4059 = vld [vmem:[#allocation16 + $0xc0] sm:$0xff]
    %v4060 = vld [vmem:[#allocation16 + $0xc8] sm:$0xff]
    %v4061 = vld [vmem:[#allocation16 + $0xd0] sm:$0xff]
    %v4062 = vld [vmem:[#allocation16 + $0xd8] sm:$0xff]
    %v4063 = vld [vmem:[#allocation16 + $0xe0] sm:$0xff]
    %v4064 = vld [vmem:[#allocation16 + $0xe8] sm:$0xff]
    %v4065 = vld [vmem:[#allocation16 + $0xf0] sm:$0xff]
    %v4066 = vld [vmem:[#allocation16 + $0xf8] sm:$0xff]
    %v4067 = vld [vmem:[%s57] sm:$0x3]
    %v4068 = vld [vmem:[#allocation17] sm:$0xff]
    %v4069 = vld [vmem:[#allocation17 + $0x8] sm:$0xff]
    %v4070 = vld [vmem:[#allocation17 + $0x10] sm:$0xff]
    %v4071 = vld [vmem:[#allocation17 + $0x18] sm:$0xff]
    %v4072 = vld [vmem:[#allocation17 + $0x20] sm:$0xff]
    %v4073 = vld [vmem:[#allocation17 + $0x28] sm:$0xff]
    %v4074 = vld [vmem:[#allocation17 + $0x30] sm:$0xff]
    %v4075 = vld [vmem:[#allocation17 + $0x38] sm:$0xff]
    %v4076 = vld [vmem:[#allocation17 + $0x40] sm:$0xff]
    %v4077 = vld [vmem:[#allocation17 + $0x48] sm:$0xff]
    %v4078 = vld [vmem:[#allocation17 + $0x50] sm:$0xff]
    %v4079 = vld [vmem:[#allocation17 + $0x58] sm:$0xff]
    %v4080 = vld [vmem:[#allocation17 + $0x60] sm:$0xff]
    %v4081 = vld [vmem:[#allocation17 + $0x68] sm:$0xff]
    %v4082 = vld [vmem:[#allocation17 + $0x70] sm:$0xff]
    %v4083 = vld [vmem:[#allocation17 + $0x78] sm:$0xff]
    %v4084 = vld [vmem:[#allocation17 + $0x80] sm:$0xff]
    %v4085 = vld [vmem:[#allocation17 + $0x88] sm:$0xff]
    %v4086 = vld [vmem:[#allocation17 + $0x90] sm:$0xff]
    %v4087 = vld [vmem:[#allocation17 + $0x98] sm:$0xff]
    %v4088 = vld [vmem:[#allocation17 + $0xa0] sm:$0xff]
    %v4089 = vld [vmem:[#allocation17 + $0xa8] sm:$0xff]
    %v4090 = vld [vmem:[#allocation17 + $0xb0] sm:$0xff]
    %v4091 = vld [vmem:[#allocation17 + $0xb8] sm:$0xff]
    %v4092 = vld [vmem:[#allocation17 + $0xc0] sm:$0xff]
    %v4093 = vld [vmem:[#allocation17 + $0xc8] sm:$0xff]
    %v4094 = vld [vmem:[#allocation17 + $0xd0] sm:$0xff]
    %v4095 = vld [vmem:[#allocation17 + $0xd8] sm:$0xff]
    %v4096 = vld [vmem:[#allocation17 + $0xe0] sm:$0xff]
    %v4097 = vld [vmem:[#allocation17 + $0xe8] sm:$0xff]
    %v4098 = vld [vmem:[#allocation17 + $0xf0] sm:$0xff]
    %v4099 = vld [vmem:[#allocation17 + $0xf8] sm:$0xff]
    %v4100 = vld [vmem:[%s61] sm:$0x1]
    %v4102 = vperm.slane %v4067, 0
    %v4103 = vperm.slane %v4067, 1
    %4106 = vmatpush.msra.mxu0 %v4065
    %4107 = vmatpush.msra.mxu0 %v4063
    %4108 = vmatpush.msra.mxu0 %v4061
    %4109 = vmatpush.msra.mxu0 %v4059
    %4110 = vmatpush.msra.mxu0 %v4057
    %4111 = vmatpush.msra.mxu0 %v4055
    %4112 = vmatpush.msra.mxu0 %v4053
    %4113 = vmatpush.msra.mxu0 %v4051
    %4114 = vmatpush.msra.mxu0 %v4049
    %4115 = vmatpush.msra.mxu0 %v4047
    %4116 = vmatpush.msra.mxu0 %v4045
    %4117 = vmatpush.msra.mxu0 %v4043
    %4118 = vmatpush.msra.mxu0 %v4041
    %4119 = vmatpush.msra.mxu0 %v4039
    %4120 = vmatpush.msra.mxu0 %v4037
    %4121 = vmatpush.msra.mxu0 %v4035
    %4122 = vmatmul.f32.gmra.mxu0 %v4033
    %v4123 = vpop.f32.mrf.mxu0
    %v4124 = vadd.f32 %v4102, %v4123
    %4125 = vmatmul.f32.gmra.mxu0 %v4034
    %v4126 = vpop.f32.mrf.mxu0
    %v4127 = vadd.f32 %v4102, %v4126
    %4128 = vdwg.mxu0
    %4129 = vmatpush.msra.mxu0 %v4066
    %4130 = vmatpush.msra.mxu0 %v4064
    %4131 = vmatpush.msra.mxu0 %v4062
    %4132 = vmatpush.msra.mxu0 %v4060
    %4133 = vmatpush.msra.mxu0 %v4058
    %4134 = vmatpush.msra.mxu0 %v4056
    %4135 = vmatpush.msra.mxu0 %v4054
    %4136 = vmatpush.msra.mxu0 %v4052
    %4137 = vmatpush.msra.mxu0 %v4050
    %4138 = vmatpush.msra.mxu0 %v4048
    %4139 = vmatpush.msra.mxu0 %v4046
    %4140 = vmatpush.msra.mxu0 %v4044
    %4141 = vmatpush.msra.mxu0 %v4042
    %4142 = vmatpush.msra.mxu0 %v4040
    %4143 = vmatpush.msra.mxu0 %v4038
    %4144 = vmatpush.msra.mxu0 %v4036
    %4145 = vmatmul.f32.gmra.mxu0 %v4033
    %v4146 = vpop.f32.mrf.mxu0
    %v4147 = vadd.f32 %v4103, %v4146
    %4148 = vmatmul.f32.gmra.mxu0 %v4034
    %v4149 = vpop.f32.mrf.mxu0
    %v4150 = vadd.f32 %v4103, %v4149
    %4151 = vdwg.mxu0
    %v4152 = vmax.f32 %v4124, 0.0
    %v4153 = vmax.f32 %v4147, 0.0
    %v4154 = vmax.f32 %v4127, 0.0
    %v4155 = vmax.f32 %v4150, 0.0
    %v4157 = vperm.slane %v4100, 0
    %4159 = vmatpush.msra.mxu0 %v4083
    %4160 = vmatpush.msra.mxu0 %v4082
    %4161 = vmatpush.msra.mxu0 %v4081
    %4162 = vmatpush.msra.mxu0 %v4080
    %4163 = vmatpush.msra.mxu0 %v4079
    %4164 = vmatpush.msra.mxu0 %v4078
    %4165 = vmatpush.msra.mxu0 %v4077
    %4166 = vmatpush.msra.mxu0 %v4076
    %4167 = vmatpush.msra.mxu0 %v4075
    %4168 = vmatpush.msra.mxu0 %v4074
    %4169 = vmatpush.msra.mxu0 %v4073
    %4170 = vmatpush.msra.mxu0 %v4072
    %4171 = vmatpush.msra.mxu0 %v4071
    %4172 = vmatpush.msra.mxu0 %v4070
    %4173 = vmatpush.msra.mxu0 %v4069
    %4174 = vmatpush.msra.mxu0 %v4068
    %4175 = vmatmul.f32.gmra.mxu0 %v4152
    %v4176 = vpop.f32.mrf.mxu0
    %v4177 = vadd.f32 %v4157, %v4176
    %4178 = vmatmul.f32.gmra.mxu0 %v4154
    %v4179 = vpop.f32.mrf.mxu0
    %v4180 = vadd.f32 %v4157, %v4179
    %4181 = vdwg.mxu0
    %4182 = vmatpush.msra.mxu0 %v4099
    %4183 = vmatpush.msra.mxu0 %v4098
    %4184 = vmatpush.msra.mxu0 %v4097
    %4185 = vmatpush.msra.mxu0 %v4096
    %4186 = vmatpush.msra.mxu0 %v4095
    %4187 = vmatpush.msra.mxu0 %v4094
    %4188 = vmatpush.msra.mxu0 %v4093
    %4189 = vmatpush.msra.mxu0 %v4092
    %4190 = vmatpush.msra.mxu0 %v4091
    %4191 = vmatpush.msra.mxu0 %v4090
    %4192 = vmatpush.msra.mxu0 %v4089
    %4193 = vmatpush.msra.mxu0 %v4088
    %4194 = vmatpush.msra.mxu0 %v4087
    %4195 = vmatpush.msra.mxu0 %v4086
    %4196 = vmatpush.msra.mxu0 %v4085
    %4197 = vmatpush.msra.mxu0 %v4084
    %4198 = vmatmul.f32.gmra.mxu0 %v4153
    %v4199 = vpop.f32.mrf.mxu0
    %v4200 = vadd.f32 %v4177, %v4199
    %4201 = vmatmul.f32.gmra.mxu0 %v4155
    %v4202 = vpop.f32.mrf.mxu0
    %v4203 = vadd.f32 %v4180, %v4202
    %4204 = vdwg.mxu0
    %v4205 = vadd.f32 %v4033, %v4200
    %v4206 = vadd.f32 %v4034, %v4203
    %v4207 = vld [vmem:[%s63] sm:$0x1]
    %v4208 = vld [vmem:[%s65] sm:$0x1]
    %4209 = vadd.xlane.f32.xlu0 %v4205
    %v4210 = vpop.xlane.xlu0 %4209
    %4211 = vadd.xlane.f32.xlu0 %v4206
    %v4212 = vpop.xlane.xlu0 %4211
    %v4213 = vmul.f32 %v4210, %v965
    %v4214 = vmul.f32 %v4212, %v965
    %v4215 = vsub.f32 %v4205, %v4213
    %v4216 = vsub.f32 %v4206, %v4214
    %v4217 = vmul.f32 %v4215, %v4215
    %v4218 = vmul.f32 %v4216, %v4216
    %4219 = vadd.xlane.f32.xlu0 %v4217
    %v4220 = vpop.xlane.xlu0 %4219
    %4221 = vadd.xlane.f32.xlu0 %v4218
    %v4222 = vpop.xlane.xlu0 %4221
    %v4223 = vmul.f32 %v4220, %v965
    %v4224 = vmul.f32 %v4222, %v965
    %v4225 = vadd.f32 %v4223, 0.6
    %v4226 = vadd.f32 %v4224, 0.6
    %v4227 = vrsqrt.pop %v4225
    %v4228 = vmul.f32 %v4227, %v4225
    %v4229 = vmul.f32 %v4228, %v4227
    %v4230 = vmul.f32 0.5, %v4229
    %v4231 = vsub.f32 1.5, %v4230
    %v4232 = vmul.f32 %v4227, %v4231
    %vm4233 = vweird.f32 %v4225
    %vm4234 = vweird.f32 %v4227
    %vm4235 = vmor %vm4233, %vm4234
    %v4236 = vsel %vm4235, %v4227, %v4232
    %v4237 = vrsqrt.pop %v4226
    %v4238 = vmul.f32 %v4237, %v4226
    %v4239 = vmul.f32 %v4238, %v4237
    %v4240 = vmul.f32 0.5, %v4239
    %v4241 = vsub.f32 1.5, %v4240
    %v4242 = vmul.f32 %v4237, %v4241
    %vm4243 = vweird.f32 %v4226
    %vm4244 = vweird.f32 %v4237
    %vm4245 = vmor %vm4243, %vm4244
    %v4246 = vsel %vm4245, %v4237, %v4242
    %v4247 = vmul.f32 %v4215, %v4236
    %v4248 = vmul.f32 %v4216, %v4246
    %v4250 = vperm.slane %v4207, 0
    %v4252 = vmul.f32 %v4247, %v4250
    %v4253 = vmul.f32 %v4248, %v4250
    %v4255 = vperm.slane %v4208, 0
    %v4257 = vadd.f32 %v4252, %v4255
    %v4258 = vadd.f32 %v4253, %v4255
    %s4259 = scalar_lea.vmem [#allocation10], 384
    %v4260 = vld [vmem:[%s4259] sm:$0xff]
    %v4261 = vld [vmem:[%s4259 + $0x8] sm:$0xff]
    %v4262 = vld [vmem:[%s4259 + $0x10] sm:$0xff]
    %v4263 = vld [vmem:[%s4259 + $0x18] sm:$0xff]
    %v4264 = vld [vmem:[%s4259 + $0x20] sm:$0xff]
    %v4265 = vld [vmem:[%s4259 + $0x28] sm:$0xff]
    %v4266 = vld [vmem:[%s4259 + $0x30] sm:$0xff]
    %v4267 = vld [vmem:[%s4259 + $0x38] sm:$0xff]
    %v4268 = vld [vmem:[%s4259 + $0x40] sm:$0xff]
    %v4269 = vld [vmem:[%s4259 + $0x48] sm:$0xff]
    %v4270 = vld [vmem:[%s4259 + $0x50] sm:$0xff]
    %v4271 = vld [vmem:[%s4259 + $0x58] sm:$0xff]
    %v4272 = vld [vmem:[%s4259 + $0x60] sm:$0xff]
    %v4273 = vld [vmem:[%s4259 + $0x68] sm:$0xff]
    %v4274 = vld [vmem:[%s4259 + $0x70] sm:$0xff]
    %v4275 = vld [vmem:[%s4259 + $0x78] sm:$0xff]
    %v4276 = vld [vmem:[%s4259 + $0x80] sm:$0xff]
    %v4277 = vld [vmem:[%s4259 + $0x88] sm:$0xff]
    %v4278 = vld [vmem:[%s4259 + $0x90] sm:$0xff]
    %v4279 = vld [vmem:[%s4259 + $0x98] sm:$0xff]
    %v4280 = vld [vmem:[%s4259 + $0xa0] sm:$0xff]
    %v4281 = vld [vmem:[%s4259 + $0xa8] sm:$0xff]
    %v4282 = vld [vmem:[%s4259 + $0xb0] sm:$0xff]
    %v4283 = vld [vmem:[%s4259 + $0xb8] sm:$0xff]
    %v4284 = vld [vmem:[%s4259 + $0xc0] sm:$0xff]
    %v4285 = vld [vmem:[%s4259 + $0xc8] sm:$0xff]
    %v4286 = vld [vmem:[%s4259 + $0xd0] sm:$0xff]
    %v4287 = vld [vmem:[%s4259 + $0xd8] sm:$0xff]
    %v4288 = vld [vmem:[%s4259 + $0xe0] sm:$0xff]
    %v4289 = vld [vmem:[%s4259 + $0xe8] sm:$0xff]
    %v4290 = vld [vmem:[%s4259 + $0xf0] sm:$0xff]
    %v4291 = vld [vmem:[%s4259 + $0xf8] sm:$0xff]
    %v4292 = vld [vmem:[%s4259 + $0x100] sm:$0xff]
    %v4293 = vld [vmem:[%s4259 + $0x108] sm:$0xff]
    %v4294 = vld [vmem:[%s4259 + $0x110] sm:$0xff]
    %v4295 = vld [vmem:[%s4259 + $0x118] sm:$0xff]
    %v4296 = vld [vmem:[%s4259 + $0x120] sm:$0xff]
    %v4297 = vld [vmem:[%s4259 + $0x128] sm:$0xff]
    %v4298 = vld [vmem:[%s4259 + $0x130] sm:$0xff]
    %v4299 = vld [vmem:[%s4259 + $0x138] sm:$0xff]
    %v4300 = vld [vmem:[%s4259 + $0x140] sm:$0xff]
    %v4301 = vld [vmem:[%s4259 + $0x148] sm:$0xff]
    %v4302 = vld [vmem:[%s4259 + $0x150] sm:$0xff]
    %v4303 = vld [vmem:[%s4259 + $0x158] sm:$0xff]
    %v4304 = vld [vmem:[%s4259 + $0x160] sm:$0xff]
    %v4305 = vld [vmem:[%s4259 + $0x168] sm:$0xff]
    %v4306 = vld [vmem:[%s4259 + $0x170] sm:$0xff]
    %v4307 = vld [vmem:[%s4259 + $0x178] sm:$0xff]
    %s4308 = scalar_lea.vmem %s33, 3
    %v4309 = vld [vmem:[%s4308] sm:$0x7]
    %s4310 = scalar_lea.vmem [#allocation11], 128
    %v4311 = vld [vmem:[%s4310] sm:$0xff]
    %v4312 = vld [vmem:[%s4310 + $0x8] sm:$0xff]
    %v4313 = vld [vmem:[%s4310 + $0x10] sm:$0xff]
    %v4314 = vld [vmem:[%s4310 + $0x18] sm:$0xff]
    %v4315 = vld [vmem:[%s4310 + $0x20] sm:$0xff]
    %v4316 = vld [vmem:[%s4310 + $0x28] sm:$0xff]
    %v4317 = vld [vmem:[%s4310 + $0x30] sm:$0xff]
    %v4318 = vld [vmem:[%s4310 + $0x38] sm:$0xff]
    %v4319 = vld [vmem:[%s4310 + $0x40] sm:$0xff]
    %v4320 = vld [vmem:[%s4310 + $0x48] sm:$0xff]
    %v4321 = vld [vmem:[%s4310 + $0x50] sm:$0xff]
    %v4322 = vld [vmem:[%s4310 + $0x58] sm:$0xff]
    %v4323 = vld [vmem:[%s4310 + $0x60] sm:$0xff]
    %v4324 = vld [vmem:[%s4310 + $0x68] sm:$0xff]
    %v4325 = vld [vmem:[%s4310 + $0x70] sm:$0xff]
    %v4326 = vld [vmem:[%s4310 + $0x78] sm:$0xff]
    %s4327 = scalar_lea.vmem %s37, 1
    %v4328 = vld [vmem:[%s4327] sm:$0x1]
    %v4330 = vperm.slane %v4309, 0
    %v4331 = vperm.slane %v4309, 1
    %v4332 = vperm.slane %v4309, 2
    %4336 = vmatpush.msra.mxu0 %v4305
    %4337 = vmatpush.msra.mxu0 %v4302
    %4338 = vmatpush.msra.mxu0 %v4299
    %4339 = vmatpush.msra.mxu0 %v4296
    %4340 = vmatpush.msra.mxu0 %v4293
    %4341 = vmatpush.msra.mxu0 %v4290
    %4342 = vmatpush.msra.mxu0 %v4287
    %4343 = vmatpush.msra.mxu0 %v4284
    %4344 = vmatpush.msra.mxu0 %v4281
    %4345 = vmatpush.msra.mxu0 %v4278
    %4346 = vmatpush.msra.mxu0 %v4275
    %4347 = vmatpush.msra.mxu0 %v4272
    %4348 = vmatpush.msra.mxu0 %v4269
    %4349 = vmatpush.msra.mxu0 %v4266
    %4350 = vmatpush.msra.mxu0 %v4263
    %4351 = vmatpush.msra.mxu0 %v4260
    %4352 = vmatmul.f32.gmra.mxu0 %v4257
    %v4353 = vpop.f32.mrf.mxu0
    %v4354 = vadd.f32 %v4330, %v4353
    %4355 = vmatmul.f32.gmra.mxu0 %v4258
    %v4356 = vpop.f32.mrf.mxu0
    %v4357 = vadd.f32 %v4330, %v4356
    %4358 = vdwg.mxu0
    %4359 = vmatpush.msra.mxu0 %v4306
    %4360 = vmatpush.msra.mxu0 %v4303
    %4361 = vmatpush.msra.mxu0 %v4300
    %4362 = vmatpush.msra.mxu0 %v4297
    %4363 = vmatpush.msra.mxu0 %v4294
    %4364 = vmatpush.msra.mxu0 %v4291
    %4365 = vmatpush.msra.mxu0 %v4288
    %4366 = vmatpush.msra.mxu0 %v4285
    %4367 = vmatpush.msra.mxu0 %v4282
    %4368 = vmatpush.msra.mxu0 %v4279
    %4369 = vmatpush.msra.mxu0 %v4276
    %4370 = vmatpush.msra.mxu0 %v4273
    %4371 = vmatpush.msra.mxu0 %v4270
    %4372 = vmatpush.msra.mxu0 %v4267
    %4373 = vmatpush.msra.mxu0 %v4264
    %4374 = vmatpush.msra.mxu0 %v4261
    %4375 = vmatmul.f32.gmra.mxu0 %v4257
    %v4376 = vpop.f32.mrf.mxu0
    %v4377 = vadd.f32 %v4331, %v4376
    %4378 = vmatmul.f32.gmra.mxu0 %v4258
    %v4379 = vpop.f32.mrf.mxu0
    %v4380 = vadd.f32 %v4331, %v4379
    %4381 = vdwg.mxu0
    %4382 = vmatpush.msra.mxu0 %v4307
    %4383 = vmatpush.msra.mxu0 %v4304
    %4384 = vmatpush.msra.mxu0 %v4301
    %4385 = vmatpush.msra.mxu0 %v4298
    %4386 = vmatpush.msra.mxu0 %v4295
    %4387 = vmatpush.msra.mxu0 %v4292
    %4388 = vmatpush.msra.mxu0 %v4289
    %4389 = vmatpush.msra.mxu0 %v4286
    %4390 = vmatpush.msra.mxu0 %v4283
    %4391 = vmatpush.msra.mxu0 %v4280
    %4392 = vmatpush.msra.mxu0 %v4277
    %4393 = vmatpush.msra.mxu0 %v4274
    %4394 = vmatpush.msra.mxu0 %v4271
    %4395 = vmatpush.msra.mxu0 %v4268
    %4396 = vmatpush.msra.mxu0 %v4265
    %4397 = vmatpush.msra.mxu0 %v4262
    %4398 = vmatmul.f32.gmra.mxu0 %v4257
    %v4399 = vpop.f32.mrf.mxu0
    %v4400 = vadd.f32 %v4332, %v4399
    %4401 = vmatmul.f32.gmra.mxu0 %v4258
    %v4402 = vpop.f32.mrf.mxu0
    %v4403 = vadd.f32 %v4332, %v4402
    %4404 = vdwg.mxu0
    %v4406 = vsel %vm499, %v4354, 0
    %v4409 = vsel %vm499, %v4357, 0
    %v4412 = vsel %vm499, %v4377, 0
    %v4415 = vsel %vm499, %v4380, 0
    %4417 = vmatpush.xpose.msra.mxu0 0.0
    %4418 = vmatpush.xpose.msra.mxu0 0.0
    %4419 = vmatpush.xpose.msra.mxu0 0.0
    %4420 = vmatpush.xpose.msra.mxu0 0.0
    %4421 = vmatpush.xpose.msra.mxu0 0.0
    %4422 = vmatpush.xpose.msra.mxu0 0.0
    %4423 = vmatpush.xpose.msra.mxu0 0.0
    %4424 = vmatpush.xpose.msra.mxu0 0.0
    %4425 = vmatpush.xpose.msra.mxu0 0.0
    %4426 = vmatpush.xpose.msra.mxu0 0.0
    %4427 = vmatpush.xpose.msra.mxu0 0.0
    %4428 = vmatpush.xpose.msra.mxu0 0.0
    %4429 = vmatpush.xpose.msra.mxu0 0.0
    %4430 = vmatpush.xpose.msra.mxu0 0.0
    %4431 = vmatpush.xpose.msra.mxu0 %v4415
    %4432 = vmatpush.xpose.msra.mxu0 %v4412
    %4433 = vmatmul.f32.gmra.mxu0 %v4406
    %v4434 = vpop.f32.mrf.mxu0
    %v4435 = vadd.f32 0.0, %v4434
    %4436 = vmatmul.f32.gmra.mxu0 %v4409
    %v4437 = vpop.f32.mrf.mxu0
    %v4438 = vadd.f32 0.0, %v4437
    %4439 = vdwg.mxu0
    %v4440 = vmul.f32 %v4435, 0.17677669
    %v4441 = vmul.f32 %v4438, 0.17677669
    %v4442 = vadd.f32 %v4440, %v353
    %v4443 = vadd.f32 %v4441, %v354
    %v4444 = vsel %vm539, %v4442, -inf
    %4445 = vmax.xlane.f32.xlu0 %v4444
    %v4446 = vpop.xlane.xlu0 %4445
    %v4447 = vsel %vm539, %v4443, -inf
    %4448 = vmax.xlane.f32.xlu0 %v4447
    %v4449 = vpop.xlane.xlu0 %4448
    %v4450 = vsub.f32 %v4442, %v4446
    %v4451 = vsub.f32 %v4443, %v4449
    %v4452 = vmul.f32 %v4450, 1.442695
    %v4453 = vpow.pop %v4452
    %v4454 = vmul.f32 %v4451, 1.442695
    %v4455 = vpow.pop %v4454
    %v4456 = vsel %vm539, %v4453, 0.0
    %4457 = vadd.xlane.f32.xlu0 %v4456
    %v4458 = vpop.xlane.xlu0 %4457
    %v4459 = vsel %vm539, %v4455, 0.0
    %4460 = vadd.xlane.f32.xlu0 %v4459
    %v4461 = vpop.xlane.xlu0 %4460
    %v4462 = vrcp.pop %v4458
    %v4463 = vrcp.pop %v4461
    %v4464 = vmul.f32 %v4453, %v4462
    %v4465 = vmul.f32 %v4455, %v4463
    %v4467 = vsel %vm539, %v4464, 0
    %v4470 = vsel %vm539, %v4465, 0
    %4472 = vmatpush.msra.mxu0 0.0
    %4473 = vmatpush.msra.mxu0 0.0
    %4474 = vmatpush.msra.mxu0 0.0
    %4475 = vmatpush.msra.mxu0 0.0
    %4476 = vmatpush.msra.mxu0 0.0
    %4477 = vmatpush.msra.mxu0 0.0
    %4478 = vmatpush.msra.mxu0 0.0
    %4479 = vmatpush.msra.mxu0 0.0
    %4480 = vmatpush.msra.mxu0 0.0
    %4481 = vmatpush.msra.mxu0 0.0
    %4482 = vmatpush.msra.mxu0 0.0
    %4483 = vmatpush.msra.mxu0 0.0
    %4484 = vmatpush.msra.mxu0 0.0
    %4485 = vmatpush.msra.mxu0 0.0
    %4486 = vmatpush.msra.mxu0 %v4403
    %4487 = vmatpush.msra.mxu0 %v4400
    %4488 = vmatmul.f32.gmra.mxu0 %v4467
    %v4489 = vpop.f32.mrf.mxu0
    %v4490 = vadd.f32 0.0, %v4489
    %4491 = vmatmul.f32.gmra.mxu0 %v4470
    %v4492 = vpop.f32.mrf.mxu0
    %v4493 = vadd.f32 0.0, %v4492
    %4494 = vdwg.mxu0
    %4495 = vrot.lane.b32.xlu0 %v4354, 96
    %v4496 = vpop.permute.xlu0 %4495
    %4497 = vrot.lane.b32.xlu0 %v4357, 96
    %v4498 = vpop.permute.xlu0 %4497
    %4499 = vrot.lane.b32.xlu0 %v4377, 96
    %v4500 = vpop.permute.xlu0 %4499
    %4501 = vrot.lane.b32.xlu0 %v4380, 96
    %v4502 = vpop.permute.xlu0 %4501
    %v4503 = vsel %vm499, %v4496, 0
    %v4505 = vsel %vm499, %v4498, 0
    %v4507 = vsel %vm499, %v4500, 0
    %v4509 = vsel %vm499, %v4502, 0
    %4511 = vmatpush.xpose.msra.mxu0 0.0
    %4512 = vmatpush.xpose.msra.mxu0 0.0
    %4513 = vmatpush.xpose.msra.mxu0 0.0
    %4514 = vmatpush.xpose.msra.mxu0 0.0
    %4515 = vmatpush.xpose.msra.mxu0 0.0
    %4516 = vmatpush.xpose.msra.mxu0 0.0
    %4517 = vmatpush.xpose.msra.mxu0 0.0
    %4518 = vmatpush.xpose.msra.mxu0 0.0
    %4519 = vmatpush.xpose.msra.mxu0 0.0
    %4520 = vmatpush.xpose.msra.mxu0 0.0
    %4521 = vmatpush.xpose.msra.mxu0 0.0
    %4522 = vmatpush.xpose.msra.mxu0 0.0
    %4523 = vmatpush.xpose.msra.mxu0 0.0
    %4524 = vmatpush.xpose.msra.mxu0 0.0
    %4525 = vmatpush.xpose.msra.mxu0 %v4509
    %4526 = vmatpush.xpose.msra.mxu0 %v4507
    %4527 = vmatmul.f32.gmra.mxu0 %v4503
    %v4528 = vpop.f32.mrf.mxu0
    %v4529 = vadd.f32 0.0, %v4528
    %4530 = vmatmul.f32.gmra.mxu0 %v4505
    %v4531 = vpop.f32.mrf.mxu0
    %v4532 = vadd.f32 0.0, %v4531
    %4533 = vdwg.mxu0
    %v4534 = vmul.f32 %v4529, 0.17677669
    %v4535 = vmul.f32 %v4532, 0.17677669
    %v4536 = vadd.f32 %v4534, %v353
    %v4537 = vadd.f32 %v4535, %v354
    %v4538 = vsel %vm539, %v4536, -inf
    %4539 = vmax.xlane.f32.xlu0 %v4538
    %v4540 = vpop.xlane.xlu0 %4539
    %v4541 = vsel %vm539, %v4537, -inf
    %4542 = vmax.xlane.f32.xlu0 %v4541
    %v4543 = vpop.xlane.xlu0 %4542
    %v4544 = vsub.f32 %v4536, %v4540
    %v4545 = vsub.f32 %v4537, %v4543
    %v4546 = vmul.f32 %v4544, 1.442695
    %v4547 = vpow.pop %v4546
    %v4548 = vmul.f32 %v4545, 1.442695
    %v4549 = vpow.pop %v4548
    %v4550 = vsel %vm539, %v4547, 0.0
    %4551 = vadd.xlane.f32.xlu0 %v4550
    %v4552 = vpop.xlane.xlu0 %4551
    %v4553 = vsel %vm539, %v4549, 0.0
    %4554 = vadd.xlane.f32.xlu0 %v4553
    %v4555 = vpop.xlane.xlu0 %4554
    %v4556 = vrcp.pop %v4552
    %v4557 = vrcp.pop %v4555
    %v4558 = vmul.f32 %v4547, %v4556
    %v4559 = vmul.f32 %v4549, %v4557
    %4562 = vrot.lane.b32.xlu0 %v4400, 96
    %v4563 = vpop.permute.xlu0 %4562
    %4564 = vrot.lane.b32.xlu0 %v4403, 96
    %v4565 = vpop.permute.xlu0 %4564
    %v4569 = vsel %vm539, %v4558, 0
    %v4572 = vsel %vm539, %v4559, 0
    %4574 = vmatpush.msra.mxu0 0.0
    %4575 = vmatpush.msra.mxu0 0.0
    %4576 = vmatpush.msra.mxu0 0.0
    %4577 = vmatpush.msra.mxu0 0.0
    %4578 = vmatpush.msra.mxu0 0.0
    %4579 = vmatpush.msra.mxu0 0.0
    %4580 = vmatpush.msra.mxu0 0.0
    %4581 = vmatpush.msra.mxu0 0.0
    %4582 = vmatpush.msra.mxu0 0.0
    %4583 = vmatpush.msra.mxu0 0.0
    %4584 = vmatpush.msra.mxu0 0.0
    %4585 = vmatpush.msra.mxu0 0.0
    %4586 = vmatpush.msra.mxu0 0.0
    %4587 = vmatpush.msra.mxu0 0.0
    %4588 = vmatpush.msra.mxu0 %v4565
    %4589 = vmatpush.msra.mxu0 %v4563
    %4590 = vmatmul.f32.gmra.mxu0 %v4569
    %v4591 = vpop.f32.mrf.mxu0
    %v4592 = vadd.f32 0.0, %v4591
    %4593 = vmatmul.f32.gmra.mxu0 %v4572
    %v4594 = vpop.f32.mrf.mxu0
    %v4595 = vadd.f32 0.0, %v4594
    %4596 = vdwg.mxu0
    %4597 = vrot.lane.b32.xlu0 %v4354, 64
    %v4598 = vpop.permute.xlu0 %4597
    %4599 = vrot.lane.b32.xlu0 %v4357, 64
    %v4600 = vpop.permute.xlu0 %4599
    %4601 = vrot.lane.b32.xlu0 %v4377, 64
    %v4602 = vpop.permute.xlu0 %4601
    %4603 = vrot.lane.b32.xlu0 %v4380, 64
    %v4604 = vpop.permute.xlu0 %4603
    %v4605 = vsel %vm499, %v4598, 0
    %v4607 = vsel %vm499, %v4600, 0
    %v4609 = vsel %vm499, %v4602, 0
    %v4611 = vsel %vm499, %v4604, 0
    %4613 = vmatpush.xpose.msra.mxu0 0.0
    %4614 = vmatpush.xpose.msra.mxu0 0.0
    %4615 = vmatpush.xpose.msra.mxu0 0.0
    %4616 = vmatpush.xpose.msra.mxu0 0.0
    %4617 = vmatpush.xpose.msra.mxu0 0.0
    %4618 = vmatpush.xpose.msra.mxu0 0.0
    %4619 = vmatpush.xpose.msra.mxu0 0.0
    %4620 = vmatpush.xpose.msra.mxu0 0.0
    %4621 = vmatpush.xpose.msra.mxu0 0.0
    %4622 = vmatpush.xpose.msra.mxu0 0.0
    %4623 = vmatpush.xpose.msra.mxu0 0.0
    %4624 = vmatpush.xpose.msra.mxu0 0.0
    %4625 = vmatpush.xpose.msra.mxu0 0.0
    %4626 = vmatpush.xpose.msra.mxu0 0.0
    %4627 = vmatpush.xpose.msra.mxu0 %v4611
    %4628 = vmatpush.xpose.msra.mxu0 %v4609
    %4629 = vmatmul.f32.gmra.mxu0 %v4605
    %v4630 = vpop.f32.mrf.mxu0
    %v4631 = vadd.f32 0.0, %v4630
    %4632 = vmatmul.f32.gmra.mxu0 %v4607
    %v4633 = vpop.f32.mrf.mxu0
    %v4634 = vadd.f32 0.0, %v4633
    %4635 = vdwg.mxu0
    %v4636 = vmul.f32 %v4631, 0.17677669
    %v4637 = vmul.f32 %v4634, 0.17677669
    %v4638 = vadd.f32 %v4636, %v353
    %v4639 = vadd.f32 %v4637, %v354
    %v4640 = vsel %vm539, %v4638, -inf
    %4641 = vmax.xlane.f32.xlu0 %v4640
    %v4642 = vpop.xlane.xlu0 %4641
    %v4643 = vsel %vm539, %v4639, -inf
    %4644 = vmax.xlane.f32.xlu0 %v4643
    %v4645 = vpop.xlane.xlu0 %4644
    %v4646 = vsub.f32 %v4638, %v4642
    %v4647 = vsub.f32 %v4639, %v4645
    %v4648 = vmul.f32 %v4646, 1.442695
    %v4649 = vpow.pop %v4648
    %v4650 = vmul.f32 %v4647, 1.442695
    %v4651 = vpow.pop %v4650
    %v4652 = vsel %vm539, %v4649, 0.0
    %4653 = vadd.xlane.f32.xlu0 %v4652
    %v4654 = vpop.xlane.xlu0 %4653
    %v4655 = vsel %vm539, %v4651, 0.0
    %4656 = vadd.xlane.f32.xlu0 %v4655
    %v4657 = vpop.xlane.xlu0 %4656
    %v4658 = vrcp.pop %v4654
    %v4659 = vrcp.pop %v4657
    %v4660 = vmul.f32 %v4649, %v4658
    %v4661 = vmul.f32 %v4651, %v4659
    %4662 = vrot.lane.b32.xlu0 %v4400, 64
    %v4663 = vpop.permute.xlu0 %4662
    %4664 = vrot.lane.b32.xlu0 %v4403, 64
    %v4665 = vpop.permute.xlu0 %4664
    %v4669 = vsel %vm539, %v4660, 0
    %v4672 = vsel %vm539, %v4661, 0
    %4674 = vmatpush.msra.mxu0 0.0
    %4675 = vmatpush.msra.mxu0 0.0
    %4676 = vmatpush.msra.mxu0 0.0
    %4677 = vmatpush.msra.mxu0 0.0
    %4678 = vmatpush.msra.mxu0 0.0
    %4679 = vmatpush.msra.mxu0 0.0
    %4680 = vmatpush.msra.mxu0 0.0
    %4681 = vmatpush.msra.mxu0 0.0
    %4682 = vmatpush.msra.mxu0 0.0
    %4683 = vmatpush.msra.mxu0 0.0
    %4684 = vmatpush.msra.mxu0 0.0
    %4685 = vmatpush.msra.mxu0 0.0
    %4686 = vmatpush.msra.mxu0 0.0
    %4687 = vmatpush.msra.mxu0 0.0
    %4688 = vmatpush.msra.mxu0 %v4665
    %4689 = vmatpush.msra.mxu0 %v4663
    %4690 = vmatmul.f32.gmra.mxu0 %v4669
    %v4691 = vpop.f32.mrf.mxu0
    %v4692 = vadd.f32 0.0, %v4691
    %4693 = vmatmul.f32.gmra.mxu0 %v4672
    %v4694 = vpop.f32.mrf.mxu0
    %v4695 = vadd.f32 0.0, %v4694
    %4696 = vdwg.mxu0
    %4697 = vrot.lane.b32.xlu0 %v4354, 32
    %v4698 = vpop.permute.xlu0 %4697
    %4699 = vrot.lane.b32.xlu0 %v4357, 32
    %v4700 = vpop.permute.xlu0 %4699
    %4701 = vrot.lane.b32.xlu0 %v4377, 32
    %v4702 = vpop.permute.xlu0 %4701
    %4703 = vrot.lane.b32.xlu0 %v4380, 32
    %v4704 = vpop.permute.xlu0 %4703
    %v4705 = vsel %vm499, %v4698, 0
    %v4707 = vsel %vm499, %v4700, 0
    %v4709 = vsel %vm499, %v4702, 0
    %v4711 = vsel %vm499, %v4704, 0
    %4713 = vmatpush.xpose.msra.mxu0 0.0
    %4714 = vmatpush.xpose.msra.mxu0 0.0
    %4715 = vmatpush.xpose.msra.mxu0 0.0
    %4716 = vmatpush.xpose.msra.mxu0 0.0
    %4717 = vmatpush.xpose.msra.mxu0 0.0
    %4718 = vmatpush.xpose.msra.mxu0 0.0
    %4719 = vmatpush.xpose.msra.mxu0 0.0
    %4720 = vmatpush.xpose.msra.mxu0 0.0
    %4721 = vmatpush.xpose.msra.mxu0 0.0
    %4722 = vmatpush.xpose.msra.mxu0 0.0
    %4723 = vmatpush.xpose.msra.mxu0 0.0
    %4724 = vmatpush.xpose.msra.mxu0 0.0
    %4725 = vmatpush.xpose.msra.mxu0 0.0
    %4726 = vmatpush.xpose.msra.mxu0 0.0
    %4727 = vmatpush.xpose.msra.mxu0 %v4711
    %4728 = vmatpush.xpose.msra.mxu0 %v4709
    %4729 = vmatmul.f32.gmra.mxu0 %v4705
    %v4730 = vpop.f32.mrf.mxu0
    %v4731 = vadd.f32 0.0, %v4730
    %4732 = vmatmul.f32.gmra.mxu0 %v4707
    %v4733 = vpop.f32.mrf.mxu0
    %v4734 = vadd.f32 0.0, %v4733
    %4735 = vdwg.mxu0
    %v4736 = vmul.f32 %v4731, 0.17677669
    %v4737 = vmul.f32 %v4734, 0.17677669
    %v4738 = vadd.f32 %v4736, %v353
    %v4739 = vadd.f32 %v4737, %v354
    %v4740 = vsel %vm539, %v4738, -inf
    %4741 = vmax.xlane.f32.xlu0 %v4740
    %v4742 = vpop.xlane.xlu0 %4741
    %v4743 = vsel %vm539, %v4739, -inf
    %4744 = vmax.xlane.f32.xlu0 %v4743
    %v4745 = vpop.xlane.xlu0 %4744
    %v4746 = vsub.f32 %v4738, %v4742
    %v4747 = vsub.f32 %v4739, %v4745
    %v4748 = vmul.f32 %v4746, 1.442695
    %v4749 = vpow.pop %v4748
    %v4750 = vmul.f32 %v4747, 1.442695
    %v4751 = vpow.pop %v4750
    %v4752 = vsel %vm539, %v4749, 0.0
    %4753 = vadd.xlane.f32.xlu0 %v4752
    %v4754 = vpop.xlane.xlu0 %4753
    %v4755 = vsel %vm539, %v4751, 0.0
    %4756 = vadd.xlane.f32.xlu0 %v4755
    %v4757 = vpop.xlane.xlu0 %4756
    %v4758 = vrcp.pop %v4754
    %v4759 = vrcp.pop %v4757
    %v4760 = vmul.f32 %v4749, %v4758
    %v4761 = vmul.f32 %v4751, %v4759
    %4762 = vrot.lane.b32.xlu0 %v4400, 32
    %v4763 = vpop.permute.xlu0 %4762
    %4764 = vrot.lane.b32.xlu0 %v4403, 32
    %v4765 = vpop.permute.xlu0 %4764
    %v4769 = vsel %vm539, %v4760, 0
    %v4772 = vsel %vm539, %v4761, 0
    %4774 = vmatpush.msra.mxu0 0.0
    %4775 = vmatpush.msra.mxu0 0.0
    %4776 = vmatpush.msra.mxu0 0.0
    %4777 = vmatpush.msra.mxu0 0.0
    %4778 = vmatpush.msra.mxu0 0.0
    %4779 = vmatpush.msra.mxu0 0.0
    %4780 = vmatpush.msra.mxu0 0.0
    %4781 = vmatpush.msra.mxu0 0.0
    %4782 = vmatpush.msra.mxu0 0.0
    %4783 = vmatpush.msra.mxu0 0.0
    %4784 = vmatpush.msra.mxu0 0.0
    %4785 = vmatpush.msra.mxu0 0.0
    %4786 = vmatpush.msra.mxu0 0.0
    %4787 = vmatpush.msra.mxu0 0.0
    %4788 = vmatpush.msra.mxu0 %v4765
    %4789 = vmatpush.msra.mxu0 %v4763
    %4790 = vmatmul.f32.gmra.mxu0 %v4769
    %v4791 = vpop.f32.mrf.mxu0
    %v4792 = vadd.f32 0.0, %v4791
    %4793 = vmatmul.f32.gmra.mxu0 %v4772
    %v4794 = vpop.f32.mrf.mxu0
    %v4795 = vadd.f32 0.0, %v4794
    %4796 = vdwg.mxu0
    %4799 = vrot.lane.b32.xlu0 %v4592, 32
    %v4800 = vpop.permute.xlu0 %4799
    %4801 = vrot.lane.b32.xlu0 %v4595, 32
    %v4802 = vpop.permute.xlu0 %4801
    %4807 = vrot.lane.b32.xlu0 %v4692, 64
    %v4808 = vpop.permute.xlu0 %4807
    %4809 = vrot.lane.b32.xlu0 %v4695, 64
    %v4810 = vpop.permute.xlu0 %4809
    %4815 = vrot.lane.b32.xlu0 %v4792, 96
    %v4816 = vpop.permute.xlu0 %4815
    %4817 = vrot.lane.b32.xlu0 %v4795, 96
    %v4818 = vpop.permute.xlu0 %4817
    %v4821 = vsel %vm499, %v4490, %v4800
    %v4822 = vsel %vm499, %v4493, %v4802
    %v4823 = vsel %vm919, %v4821, %v4808
    %v4824 = vsel %vm919, %v4822, %v4810
    %v4825 = vsel %vm922, %v4823, %v4816
    %v4826 = vsel %vm922, %v4824, %v4818
    %v4828 = vperm.slane %v4328, 0
    %4830 = vmatpush.msra.mxu0 %v4326
    %4831 = vmatpush.msra.mxu0 %v4325
    %4832 = vmatpush.msra.mxu0 %v4324
    %4833 = vmatpush.msra.mxu0 %v4323
    %4834 = vmatpush.msra.mxu0 %v4322
    %4835 = vmatpush.msra.mxu0 %v4321
    %4836 = vmatpush.msra.mxu0 %v4320
    %4837 = vmatpush.msra.mxu0 %v4319
    %4838 = vmatpush.msra.mxu0 %v4318
    %4839 = vmatpush.msra.mxu0 %v4317
    %4840 = vmatpush.msra.mxu0 %v4316
    %4841 = vmatpush.msra.mxu0 %v4315
    %4842 = vmatpush.msra.mxu0 %v4314
    %4843 = vmatpush.msra.mxu0 %v4313
    %4844 = vmatpush.msra.mxu0 %v4312
    %4845 = vmatpush.msra.mxu0 %v4311
    %4846 = vmatmul.f32.gmra.mxu0 %v4825
    %v4847 = vpop.f32.mrf.mxu0
    %v4848 = vadd.f32 %v4828, %v4847
    %4849 = vmatmul.f32.gmra.mxu0 %v4826
    %v4850 = vpop.f32.mrf.mxu0
    %v4851 = vadd.f32 %v4828, %v4850
    %4852 = vdwg.mxu0
    %v4853 = vadd.f32 %v4257, %v4848
    %v4854 = vadd.f32 %v4258, %v4851
    %s4855 = scalar_lea.vmem %s39, 1
    %v4856 = vld [vmem:[%s4855] sm:$0x1]
    %s4857 = scalar_lea.vmem %s41, 1
    %v4858 = vld [vmem:[%s4857] sm:$0x1]
    %4859 = vadd.xlane.f32.xlu0 %v4853
    %v4860 = vpop.xlane.xlu0 %4859
    %4861 = vadd.xlane.f32.xlu0 %v4854
    %v4862 = vpop.xlane.xlu0 %4861
    %v4863 = vmul.f32 %v4860, %v965
    %v4864 = vmul.f32 %v4862, %v965
    %v4865 = vsub.f32 %v4853, %v4863
    %v4866 = vsub.f32 %v4854, %v4864
    %v4867 = vmul.f32 %v4865, %v4865
    %v4868 = vmul.f32 %v4866, %v4866
    %4869 = vadd.xlane.f32.xlu0 %v4867
    %v4870 = vpop.xlane.xlu0 %4869
    %4871 = vadd.xlane.f32.xlu0 %v4868
    %v4872 = vpop.xlane.xlu0 %4871
    %v4873 = vmul.f32 %v4870, %v965
    %v4874 = vmul.f32 %v4872, %v965
    %v4875 = vadd.f32 %v4873, 0.6
    %v4876 = vadd.f32 %v4874, 0.6
    %v4877 = vrsqrt.pop %v4875
    %v4878 = vmul.f32 %v4877, %v4875
    %v4879 = vmul.f32 %v4878, %v4877
    %v4880 = vmul.f32 0.5, %v4879
    %v4881 = vsub.f32 1.5, %v4880
    %v4882 = vmul.f32 %v4877, %v4881
    %vm4883 = vweird.f32 %v4875
    %vm4884 = vweird.f32 %v4877
    %vm4885 = vmor %vm4883, %vm4884
    %v4886 = vsel %vm4885, %v4877, %v4882
    %v4887 = vrsqrt.pop %v4876
    %v4888 = vmul.f32 %v4887, %v4876
    %v4889 = vmul.f32 %v4888, %v4887
    %v4890 = vmul.f32 0.5, %v4889
    %v4891 = vsub.f32 1.5, %v4890
    %v4892 = vmul.f32 %v4887, %v4891
    %vm4893 = vweird.f32 %v4876
    %vm4894 = vweird.f32 %v4887
    %vm4895 = vmor %vm4893, %vm4894
    %v4896 = vsel %vm4895, %v4887, %v4892
    %v4897 = vmul.f32 %v4865, %v4886
    %v4898 = vmul.f32 %v4866, %v4896
    %v4900 = vperm.slane %v4856, 0
    %v4902 = vmul.f32 %v4897, %v4900
    %v4903 = vmul.f32 %v4898, %v4900
    %v4905 = vperm.slane %v4858, 0
    %v4907 = vadd.f32 %v4902, %v4905
    %v4908 = vadd.f32 %v4903, %v4905
    %s4909 = scalar_lea.vmem [#allocation13], 384
    %v4910 = vld [vmem:[%s4909] sm:$0xff]
    %v4911 = vld [vmem:[%s4909 + $0x8] sm:$0xff]
    %v4912 = vld [vmem:[%s4909 + $0x10] sm:$0xff]
    %v4913 = vld [vmem:[%s4909 + $0x18] sm:$0xff]
    %v4914 = vld [vmem:[%s4909 + $0x20] sm:$0xff]
    %v4915 = vld [vmem:[%s4909 + $0x28] sm:$0xff]
    %v4916 = vld [vmem:[%s4909 + $0x30] sm:$0xff]
    %v4917 = vld [vmem:[%s4909 + $0x38] sm:$0xff]
    %v4918 = vld [vmem:[%s4909 + $0x40] sm:$0xff]
    %v4919 = vld [vmem:[%s4909 + $0x48] sm:$0xff]
    %v4920 = vld [vmem:[%s4909 + $0x50] sm:$0xff]
    %v4921 = vld [vmem:[%s4909 + $0x58] sm:$0xff]
    %v4922 = vld [vmem:[%s4909 + $0x60] sm:$0xff]
    %v4923 = vld [vmem:[%s4909 + $0x68] sm:$0xff]
    %v4924 = vld [vmem:[%s4909 + $0x70] sm:$0xff]
    %v4925 = vld [vmem:[%s4909 + $0x78] sm:$0xff]
    %v4926 = vld [vmem:[%s4909 + $0x80] sm:$0xff]
    %v4927 = vld [vmem:[%s4909 + $0x88] sm:$0xff]
    %v4928 = vld [vmem:[%s4909 + $0x90] sm:$0xff]
    %v4929 = vld [vmem:[%s4909 + $0x98] sm:$0xff]
    %v4930 = vld [vmem:[%s4909 + $0xa0] sm:$0xff]
    %v4931 = vld [vmem:[%s4909 + $0xa8] sm:$0xff]
    %v4932 = vld [vmem:[%s4909 + $0xb0] sm:$0xff]
    %v4933 = vld [vmem:[%s4909 + $0xb8] sm:$0xff]
    %v4934 = vld [vmem:[%s4909 + $0xc0] sm:$0xff]
    %v4935 = vld [vmem:[%s4909 + $0xc8] sm:$0xff]
    %v4936 = vld [vmem:[%s4909 + $0xd0] sm:$0xff]
    %v4937 = vld [vmem:[%s4909 + $0xd8] sm:$0xff]
    %v4938 = vld [vmem:[%s4909 + $0xe0] sm:$0xff]
    %v4939 = vld [vmem:[%s4909 + $0xe8] sm:$0xff]
    %v4940 = vld [vmem:[%s4909 + $0xf0] sm:$0xff]
    %v4941 = vld [vmem:[%s4909 + $0xf8] sm:$0xff]
    %v4942 = vld [vmem:[%s4909 + $0x100] sm:$0xff]
    %v4943 = vld [vmem:[%s4909 + $0x108] sm:$0xff]
    %v4944 = vld [vmem:[%s4909 + $0x110] sm:$0xff]
    %v4945 = vld [vmem:[%s4909 + $0x118] sm:$0xff]
    %v4946 = vld [vmem:[%s4909 + $0x120] sm:$0xff]
    %v4947 = vld [vmem:[%s4909 + $0x128] sm:$0xff]
    %v4948 = vld [vmem:[%s4909 + $0x130] sm:$0xff]
    %v4949 = vld [vmem:[%s4909 + $0x138] sm:$0xff]
    %v4950 = vld [vmem:[%s4909 + $0x140] sm:$0xff]
    %v4951 = vld [vmem:[%s4909 + $0x148] sm:$0xff]
    %v4952 = vld [vmem:[%s4909 + $0x150] sm:$0xff]
    %v4953 = vld [vmem:[%s4909 + $0x158] sm:$0xff]
    %v4954 = vld [vmem:[%s4909 + $0x160] sm:$0xff]
    %v4955 = vld [vmem:[%s4909 + $0x168] sm:$0xff]
    %v4956 = vld [vmem:[%s4909 + $0x170] sm:$0xff]
    %v4957 = vld [vmem:[%s4909 + $0x178] sm:$0xff]
    %s4958 = scalar_lea.vmem %s45, 3
    %v4959 = vld [vmem:[%s4958] sm:$0x7]
    %s4960 = scalar_lea.vmem [#allocation14], 128
    %v4961 = vld [vmem:[%s4960] sm:$0xff]
    %v4962 = vld [vmem:[%s4960 + $0x8] sm:$0xff]
    %v4963 = vld [vmem:[%s4960 + $0x10] sm:$0xff]
    %v4964 = vld [vmem:[%s4960 + $0x18] sm:$0xff]
    %v4965 = vld [vmem:[%s4960 + $0x20] sm:$0xff]
    %v4966 = vld [vmem:[%s4960 + $0x28] sm:$0xff]
    %v4967 = vld [vmem:[%s4960 + $0x30] sm:$0xff]
    %v4968 = vld [vmem:[%s4960 + $0x38] sm:$0xff]
    %v4969 = vld [vmem:[%s4960 + $0x40] sm:$0xff]
    %v4970 = vld [vmem:[%s4960 + $0x48] sm:$0xff]
    %v4971 = vld [vmem:[%s4960 + $0x50] sm:$0xff]
    %v4972 = vld [vmem:[%s4960 + $0x58] sm:$0xff]
    %v4973 = vld [vmem:[%s4960 + $0x60] sm:$0xff]
    %v4974 = vld [vmem:[%s4960 + $0x68] sm:$0xff]
    %v4975 = vld [vmem:[%s4960 + $0x70] sm:$0xff]
    %v4976 = vld [vmem:[%s4960 + $0x78] sm:$0xff]
    %s4977 = scalar_lea.vmem %s49, 1
    %v4978 = vld [vmem:[%s4977] sm:$0x1]
    %v4980 = vperm.slane %v4959, 0
    %v4981 = vperm.slane %v4959, 1
    %v4982 = vperm.slane %v4959, 2
    %4986 = vmatpush.msra.mxu0 %v4955
    %4987 = vmatpush.msra.mxu0 %v4952
    %4988 = vmatpush.msra.mxu0 %v4949
    %4989 = vmatpush.msra.mxu0 %v4946
    %4990 = vmatpush.msra.mxu0 %v4943
    %4991 = vmatpush.msra.mxu0 %v4940
    %4992 = vmatpush.msra.mxu0 %v4937
    %4993 = vmatpush.msra.mxu0 %v4934
    %4994 = vmatpush.msra.mxu0 %v4931
    %4995 = vmatpush.msra.mxu0 %v4928
    %4996 = vmatpush.msra.mxu0 %v4925
    %4997 = vmatpush.msra.mxu0 %v4922
    %4998 = vmatpush.msra.mxu0 %v4919
    %4999 = vmatpush.msra.mxu0 %v4916
    %5000 = vmatpush.msra.mxu0 %v4913
    %5001 = vmatpush.msra.mxu0 %v4910
    %5002 = vmatmul.f32.gmra.mxu0 %v4907
    %v5003 = vpop.f32.mrf.mxu0
    %v5004 = vadd.f32 %v4980, %v5003
    %5005 = vmatmul.f32.gmra.mxu0 %v4908
    %v5006 = vpop.f32.mrf.mxu0
    %v5007 = vadd.f32 %v4980, %v5006
    %5008 = vdwg.mxu0
    %5009 = vmatpush.msra.mxu0 %v4956
    %5010 = vmatpush.msra.mxu0 %v4953
    %5011 = vmatpush.msra.mxu0 %v4950
    %5012 = vmatpush.msra.mxu0 %v4947
    %5013 = vmatpush.msra.mxu0 %v4944
    %5014 = vmatpush.msra.mxu0 %v4941
    %5015 = vmatpush.msra.mxu0 %v4938
    %5016 = vmatpush.msra.mxu0 %v4935
    %5017 = vmatpush.msra.mxu0 %v4932
    %5018 = vmatpush.msra.mxu0 %v4929
    %5019 = vmatpush.msra.mxu0 %v4926
    %5020 = vmatpush.msra.mxu0 %v4923
    %5021 = vmatpush.msra.mxu0 %v4920
    %5022 = vmatpush.msra.mxu0 %v4917
    %5023 = vmatpush.msra.mxu0 %v4914
    %5024 = vmatpush.msra.mxu0 %v4911
    %5025 = vmatmul.f32.gmra.mxu0 %v2737
    %v5026 = vpop.f32.mrf.mxu0
    %v5027 = vadd.f32 %v4981, %v5026
    %5028 = vmatmul.f32.gmra.mxu0 %v2744
    %v5029 = vpop.f32.mrf.mxu0
    %v5030 = vadd.f32 %v4981, %v5029
    %5031 = vdwg.mxu0
    %5032 = vmatpush.msra.mxu0 %v4957
    %5033 = vmatpush.msra.mxu0 %v4954
    %5034 = vmatpush.msra.mxu0 %v4951
    %5035 = vmatpush.msra.mxu0 %v4948
    %5036 = vmatpush.msra.mxu0 %v4945
    %5037 = vmatpush.msra.mxu0 %v4942
    %5038 = vmatpush.msra.mxu0 %v4939
    %5039 = vmatpush.msra.mxu0 %v4936
    %5040 = vmatpush.msra.mxu0 %v4933
    %5041 = vmatpush.msra.mxu0 %v4930
    %5042 = vmatpush.msra.mxu0 %v4927
    %5043 = vmatpush.msra.mxu0 %v4924
    %5044 = vmatpush.msra.mxu0 %v4921
    %5045 = vmatpush.msra.mxu0 %v4918
    %5046 = vmatpush.msra.mxu0 %v4915
    %5047 = vmatpush.msra.mxu0 %v4912
    %5048 = vmatmul.f32.gmra.mxu0 %v2737
    %v5049 = vpop.f32.mrf.mxu0
    %v5050 = vadd.f32 %v4982, %v5049
    %5051 = vmatmul.f32.gmra.mxu0 %v2744
    %v5052 = vpop.f32.mrf.mxu0
    %v5053 = vadd.f32 %v4982, %v5052
    %5054 = vdwg.mxu0
    %v5056 = vsel %vm499, %v5004, 0
    %v5059 = vsel %vm499, %v5007, 0
    %v5062 = vsel %vm499, %v5027, 0
    %v5065 = vsel %vm499, %v5030, 0
    %5067 = vmatpush.xpose.msra.mxu0 0.0
    %5068 = vmatpush.xpose.msra.mxu0 0.0
    %5069 = vmatpush.xpose.msra.mxu0 0.0
    %5070 = vmatpush.xpose.msra.mxu0 0.0
    %5071 = vmatpush.xpose.msra.mxu0 0.0
    %5072 = vmatpush.xpose.msra.mxu0 0.0
    %5073 = vmatpush.xpose.msra.mxu0 0.0
    %5074 = vmatpush.xpose.msra.mxu0 0.0
    %5075 = vmatpush.xpose.msra.mxu0 0.0
    %5076 = vmatpush.xpose.msra.mxu0 0.0
    %5077 = vmatpush.xpose.msra.mxu0 0.0
    %5078 = vmatpush.xpose.msra.mxu0 0.0
    %5079 = vmatpush.xpose.msra.mxu0 0.0
    %5080 = vmatpush.xpose.msra.mxu0 0.0
    %5081 = vmatpush.xpose.msra.mxu0 %v5065
    %5082 = vmatpush.xpose.msra.mxu0 %v5062
    %5083 = vmatmul.f32.gmra.mxu0 %v5056
    %v5084 = vpop.f32.mrf.mxu0
    %v5085 = vadd.f32 0.0, %v5084
    %5086 = vmatmul.f32.gmra.mxu0 %v5059
    %v5087 = vpop.f32.mrf.mxu0
    %v5088 = vadd.f32 0.0, %v5087
    %5089 = vdwg.mxu0
    %v5090 = vmul.f32 %v5085, 0.17677669
    %v5091 = vmul.f32 %v5088, 0.17677669
    %v5092 = vadd.f32 %v5090, %v353
    %v5093 = vadd.f32 %v5091, %v354
    %v5094 = vsel %vm539, %v5092, -inf
    %5095 = vmax.xlane.f32.xlu0 %v5094
    %v5096 = vpop.xlane.xlu0 %5095
    %v5097 = vsel %vm539, %v5093, -inf
    %5098 = vmax.xlane.f32.xlu0 %v5097
    %v5099 = vpop.xlane.xlu0 %5098
    %v5100 = vsub.f32 %v5092, %v5096
    %v5101 = vsub.f32 %v5093, %v5099
    %v5102 = vmul.f32 %v5100, 1.442695
    %v5103 = vpow.pop %v5102
    %v5104 = vmul.f32 %v5101, 1.442695
    %v5105 = vpow.pop %v5104
    %v5106 = vsel %vm539, %v5103, 0.0
    %5107 = vadd.xlane.f32.xlu0 %v5106
    %v5108 = vpop.xlane.xlu0 %5107
    %v5109 = vsel %vm539, %v5105, 0.0
    %5110 = vadd.xlane.f32.xlu0 %v5109
    %v5111 = vpop.xlane.xlu0 %5110
    %v5112 = vrcp.pop %v5108
    %v5113 = vrcp.pop %v5111
    %v5114 = vmul.f32 %v5103, %v5112
    %v5115 = vmul.f32 %v5105, %v5113
    %v5117 = vsel %vm539, %v5114, 0
    %v5120 = vsel %vm539, %v5115, 0
    %5122 = vmatpush.msra.mxu0 0.0
    %5123 = vmatpush.msra.mxu0 0.0
    %5124 = vmatpush.msra.mxu0 0.0
    %5125 = vmatpush.msra.mxu0 0.0
    %5126 = vmatpush.msra.mxu0 0.0
    %5127 = vmatpush.msra.mxu0 0.0
    %5128 = vmatpush.msra.mxu0 0.0
    %5129 = vmatpush.msra.mxu0 0.0
    %5130 = vmatpush.msra.mxu0 0.0
    %5131 = vmatpush.msra.mxu0 0.0
    %5132 = vmatpush.msra.mxu0 0.0
    %5133 = vmatpush.msra.mxu0 0.0
    %5134 = vmatpush.msra.mxu0 0.0
    %5135 = vmatpush.msra.mxu0 0.0
    %5136 = vmatpush.msra.mxu0 %v5053
    %5137 = vmatpush.msra.mxu0 %v5050
    %5138 = vmatmul.f32.gmra.mxu0 %v5117
    %v5139 = vpop.f32.mrf.mxu0
    %v5140 = vadd.f32 0.0, %v5139
    %5141 = vmatmul.f32.gmra.mxu0 %v5120
    %v5142 = vpop.f32.mrf.mxu0
    %v5143 = vadd.f32 0.0, %v5142
    %5144 = vdwg.mxu0
    %5145 = vrot.lane.b32.xlu0 %v5004, 96
    %v5146 = vpop.permute.xlu0 %5145
    %5147 = vrot.lane.b32.xlu0 %v5007, 96
    %v5148 = vpop.permute.xlu0 %5147
    %5149 = vrot.lane.b32.xlu0 %v5027, 96
    %v5150 = vpop.permute.xlu0 %5149
    %5151 = vrot.lane.b32.xlu0 %v5030, 96
    %v5152 = vpop.permute.xlu0 %5151
    %v5153 = vsel %vm499, %v5146, 0
    %v5155 = vsel %vm499, %v5148, 0
    %v5157 = vsel %vm499, %v5150, 0
    %v5159 = vsel %vm499, %v5152, 0
    %5161 = vmatpush.xpose.msra.mxu0 0.0
    %5162 = vmatpush.xpose.msra.mxu0 0.0
    %5163 = vmatpush.xpose.msra.mxu0 0.0
    %5164 = vmatpush.xpose.msra.mxu0 0.0
    %5165 = vmatpush.xpose.msra.mxu0 0.0
    %5166 = vmatpush.xpose.msra.mxu0 0.0
    %5167 = vmatpush.xpose.msra.mxu0 0.0
    %5168 = vmatpush.xpose.msra.mxu0 0.0
    %5169 = vmatpush.xpose.msra.mxu0 0.0
    %5170 = vmatpush.xpose.msra.mxu0 0.0
    %5171 = vmatpush.xpose.msra.mxu0 0.0
    %5172 = vmatpush.xpose.msra.mxu0 0.0
    %5173 = vmatpush.xpose.msra.mxu0 0.0
    %5174 = vmatpush.xpose.msra.mxu0 0.0
    %5175 = vmatpush.xpose.msra.mxu0 %v5159
    %5176 = vmatpush.xpose.msra.mxu0 %v5157
    %5177 = vmatmul.f32.gmra.mxu0 %v5153
    %v5178 = vpop.f32.mrf.mxu0
    %v5179 = vadd.f32 0.0, %v5178
    %5180 = vmatmul.f32.gmra.mxu0 %v5155
    %v5181 = vpop.f32.mrf.mxu0
    %v5182 = vadd.f32 0.0, %v5181
    %5183 = vdwg.mxu0
    %v5184 = vmul.f32 %v5179, 0.17677669
    %v5185 = vmul.f32 %v5182, 0.17677669
    %v5186 = vadd.f32 %v5184, %v353
    %v5187 = vadd.f32 %v5185, %v354
    %v5188 = vsel %vm539, %v5186, -inf
    %5189 = vmax.xlane.f32.xlu0 %v5188
    %v5190 = vpop.xlane.xlu0 %5189
    %v5191 = vsel %vm539, %v5187, -inf
    %5192 = vmax.xlane.f32.xlu0 %v5191
    %v5193 = vpop.xlane.xlu0 %5192
    %v5194 = vsub.f32 %v5186, %v5190
    %v5195 = vsub.f32 %v5187, %v5193
    %v5196 = vmul.f32 %v5194, 1.442695
    %v5197 = vpow.pop %v5196
    %v5198 = vmul.f32 %v5195, 1.442695
    %v5199 = vpow.pop %v5198
    %v5200 = vsel %vm539, %v5197, 0.0
    %5201 = vadd.xlane.f32.xlu0 %v5200
    %v5202 = vpop.xlane.xlu0 %5201
    %v5203 = vsel %vm539, %v5199, 0.0
    %5204 = vadd.xlane.f32.xlu0 %v5203
    %v5205 = vpop.xlane.xlu0 %5204
    %v5206 = vrcp.pop %v5202
    %v5207 = vrcp.pop %v5205
    %v5208 = vmul.f32 %v5197, %v5206
    %v5209 = vmul.f32 %v5199, %v5207
    %5212 = vrot.lane.b32.xlu0 %v5050, 96
    %v5213 = vpop.permute.xlu0 %5212
    %5214 = vrot.lane.b32.xlu0 %v5053, 96
    %v5215 = vpop.permute.xlu0 %5214
    %v5219 = vsel %vm539, %v5208, 0
    %v5222 = vsel %vm539, %v5209, 0
    %5224 = vmatpush.msra.mxu0 0.0
    %5225 = vmatpush.msra.mxu0 0.0
    %5226 = vmatpush.msra.mxu0 0.0
    %5227 = vmatpush.msra.mxu0 0.0
    %5228 = vmatpush.msra.mxu0 0.0
    %5229 = vmatpush.msra.mxu0 0.0
    %5230 = vmatpush.msra.mxu0 0.0
    %5231 = vmatpush.msra.mxu0 0.0
    %5232 = vmatpush.msra.mxu0 0.0
    %5233 = vmatpush.msra.mxu0 0.0
    %5234 = vmatpush.msra.mxu0 0.0
    %5235 = vmatpush.msra.mxu0 0.0
    %5236 = vmatpush.msra.mxu0 0.0
    %5237 = vmatpush.msra.mxu0 0.0
    %5238 = vmatpush.msra.mxu0 %v5215
    %5239 = vmatpush.msra.mxu0 %v5213
    %5240 = vmatmul.f32.gmra.mxu0 %v5219
    %v5241 = vpop.f32.mrf.mxu0
    %v5242 = vadd.f32 0.0, %v5241
    %5243 = vmatmul.f32.gmra.mxu0 %v5222
    %v5244 = vpop.f32.mrf.mxu0
    %v5245 = vadd.f32 0.0, %v5244
    %5246 = vdwg.mxu0
    %5247 = vrot.lane.b32.xlu0 %v5004, 64
    %v5248 = vpop.permute.xlu0 %5247
    %5249 = vrot.lane.b32.xlu0 %v5007, 64
    %v5250 = vpop.permute.xlu0 %5249
    %5251 = vrot.lane.b32.xlu0 %v5027, 64
    %v5252 = vpop.permute.xlu0 %5251
    %5253 = vrot.lane.b32.xlu0 %v5030, 64
    %v5254 = vpop.permute.xlu0 %5253
    %v5255 = vsel %vm499, %v5248, 0
    %v5257 = vsel %vm499, %v5250, 0
    %v5259 = vsel %vm499, %v5252, 0
    %v5261 = vsel %vm499, %v5254, 0
    %5263 = vmatpush.xpose.msra.mxu0 0.0
    %5264 = vmatpush.xpose.msra.mxu0 0.0
    %5265 = vmatpush.xpose.msra.mxu0 0.0
    %5266 = vmatpush.xpose.msra.mxu0 0.0
    %5267 = vmatpush.xpose.msra.mxu0 0.0
    %5268 = vmatpush.xpose.msra.mxu0 0.0
    %5269 = vmatpush.xpose.msra.mxu0 0.0
    %5270 = vmatpush.xpose.msra.mxu0 0.0
    %5271 = vmatpush.xpose.msra.mxu0 0.0
    %5272 = vmatpush.xpose.msra.mxu0 0.0
    %5273 = vmatpush.xpose.msra.mxu0 0.0
    %5274 = vmatpush.xpose.msra.mxu0 0.0
    %5275 = vmatpush.xpose.msra.mxu0 0.0
    %5276 = vmatpush.xpose.msra.mxu0 0.0
    %5277 = vmatpush.xpose.msra.mxu0 %v5261
    %5278 = vmatpush.xpose.msra.mxu0 %v5259
    %5279 = vmatmul.f32.gmra.mxu0 %v5255
    %v5280 = vpop.f32.mrf.mxu0
    %v5281 = vadd.f32 0.0, %v5280
    %5282 = vmatmul.f32.gmra.mxu0 %v5257
    %v5283 = vpop.f32.mrf.mxu0
    %v5284 = vadd.f32 0.0, %v5283
    %5285 = vdwg.mxu0
    %v5286 = vmul.f32 %v5281, 0.17677669
    %v5287 = vmul.f32 %v5284, 0.17677669
    %v5288 = vadd.f32 %v5286, %v353
    %v5289 = vadd.f32 %v5287, %v354
    %v5290 = vsel %vm539, %v5288, -inf
    %5291 = vmax.xlane.f32.xlu0 %v5290
    %v5292 = vpop.xlane.xlu0 %5291
    %v5293 = vsel %vm539, %v5289, -inf
    %5294 = vmax.xlane.f32.xlu0 %v5293
    %v5295 = vpop.xlane.xlu0 %5294
    %v5296 = vsub.f32 %v5288, %v5292
    %v5297 = vsub.f32 %v5289, %v5295
    %v5298 = vmul.f32 %v5296, 1.442695
    %v5299 = vpow.pop %v5298
    %v5300 = vmul.f32 %v5297, 1.442695
    %v5301 = vpow.pop %v5300
    %v5302 = vsel %vm539, %v5299, 0.0
    %5303 = vadd.xlane.f32.xlu0 %v5302
    %v5304 = vpop.xlane.xlu0 %5303
    %v5305 = vsel %vm539, %v5301, 0.0
    %5306 = vadd.xlane.f32.xlu0 %v5305
    %v5307 = vpop.xlane.xlu0 %5306
    %v5308 = vrcp.pop %v5304
    %v5309 = vrcp.pop %v5307
    %v5310 = vmul.f32 %v5299, %v5308
    %v5311 = vmul.f32 %v5301, %v5309
    %5312 = vrot.lane.b32.xlu0 %v5050, 64
    %v5313 = vpop.permute.xlu0 %5312
    %5314 = vrot.lane.b32.xlu0 %v5053, 64
    %v5315 = vpop.permute.xlu0 %5314
    %v5319 = vsel %vm539, %v5310, 0
    %v5322 = vsel %vm539, %v5311, 0
    %5324 = vmatpush.msra.mxu0 0.0
    %5325 = vmatpush.msra.mxu0 0.0
    %5326 = vmatpush.msra.mxu0 0.0
    %5327 = vmatpush.msra.mxu0 0.0
    %5328 = vmatpush.msra.mxu0 0.0
    %5329 = vmatpush.msra.mxu0 0.0
    %5330 = vmatpush.msra.mxu0 0.0
    %5331 = vmatpush.msra.mxu0 0.0
    %5332 = vmatpush.msra.mxu0 0.0
    %5333 = vmatpush.msra.mxu0 0.0
    %5334 = vmatpush.msra.mxu0 0.0
    %5335 = vmatpush.msra.mxu0 0.0
    %5336 = vmatpush.msra.mxu0 0.0
    %5337 = vmatpush.msra.mxu0 0.0
    %5338 = vmatpush.msra.mxu0 %v5315
    %5339 = vmatpush.msra.mxu0 %v5313
    %5340 = vmatmul.f32.gmra.mxu0 %v5319
    %v5341 = vpop.f32.mrf.mxu0
    %v5342 = vadd.f32 0.0, %v5341
    %5343 = vmatmul.f32.gmra.mxu0 %v5322
    %v5344 = vpop.f32.mrf.mxu0
    %v5345 = vadd.f32 0.0, %v5344
    %5346 = vdwg.mxu0
    %5347 = vrot.lane.b32.xlu0 %v5004, 32
    %v5348 = vpop.permute.xlu0 %5347
    %5349 = vrot.lane.b32.xlu0 %v5007, 32
    %v5350 = vpop.permute.xlu0 %5349
    %5351 = vrot.lane.b32.xlu0 %v5027, 32
    %v5352 = vpop.permute.xlu0 %5351
    %5353 = vrot.lane.b32.xlu0 %v5030, 32
    %v5354 = vpop.permute.xlu0 %5353
    %v5355 = vsel %vm499, %v5348, 0
    %v5357 = vsel %vm499, %v5350, 0
    %v5359 = vsel %vm499, %v5352, 0
    %v5361 = vsel %vm499, %v5354, 0
    %5363 = vmatpush.xpose.msra.mxu0 0.0
    %5364 = vmatpush.xpose.msra.mxu0 0.0
    %5365 = vmatpush.xpose.msra.mxu0 0.0
    %5366 = vmatpush.xpose.msra.mxu0 0.0
    %5367 = vmatpush.xpose.msra.mxu0 0.0
    %5368 = vmatpush.xpose.msra.mxu0 0.0
    %5369 = vmatpush.xpose.msra.mxu0 0.0
    %5370 = vmatpush.xpose.msra.mxu0 0.0
    %5371 = vmatpush.xpose.msra.mxu0 0.0
    %5372 = vmatpush.xpose.msra.mxu0 0.0
    %5373 = vmatpush.xpose.msra.mxu0 0.0
    %5374 = vmatpush.xpose.msra.mxu0 0.0
    %5375 = vmatpush.xpose.msra.mxu0 0.0
    %5376 = vmatpush.xpose.msra.mxu0 0.0
    %5377 = vmatpush.xpose.msra.mxu0 %v5361
    %5378 = vmatpush.xpose.msra.mxu0 %v5359
    %5379 = vmatmul.f32.gmra.mxu0 %v5355
    %v5380 = vpop.f32.mrf.mxu0
    %v5381 = vadd.f32 0.0, %v5380
    %5382 = vmatmul.f32.gmra.mxu0 %v5357
    %v5383 = vpop.f32.mrf.mxu0
    %v5384 = vadd.f32 0.0, %v5383
    %5385 = vdwg.mxu0
    %v5386 = vmul.f32 %v5381, 0.17677669
    %v5387 = vmul.f32 %v5384, 0.17677669
    %v5388 = vadd.f32 %v5386, %v353
    %v5389 = vadd.f32 %v5387, %v354
    %v5390 = vsel %vm539, %v5388, -inf
    %5391 = vmax.xlane.f32.xlu0 %v5390
    %v5392 = vpop.xlane.xlu0 %5391
    %v5393 = vsel %vm539, %v5389, -inf
    %5394 = vmax.xlane.f32.xlu0 %v5393
    %v5395 = vpop.xlane.xlu0 %5394
    %v5396 = vsub.f32 %v5388, %v5392
    %v5397 = vsub.f32 %v5389, %v5395
    %v5398 = vmul.f32 %v5396, 1.442695
    %v5399 = vpow.pop %v5398
    %v5400 = vmul.f32 %v5397, 1.442695
    %v5401 = vpow.pop %v5400
    %v5402 = vsel %vm539, %v5399, 0.0
    %5403 = vadd.xlane.f32.xlu0 %v5402
    %v5404 = vpop.xlane.xlu0 %5403
    %v5405 = vsel %vm539, %v5401, 0.0
    %5406 = vadd.xlane.f32.xlu0 %v5405
    %v5407 = vpop.xlane.xlu0 %5406
    %v5408 = vrcp.pop %v5404
    %v5409 = vrcp.pop %v5407
    %v5410 = vmul.f32 %v5399, %v5408
    %v5411 = vmul.f32 %v5401, %v5409
    %5412 = vrot.lane.b32.xlu0 %v5050, 32
    %v5413 = vpop.permute.xlu0 %5412
    %5414 = vrot.lane.b32.xlu0 %v5053, 32
    %v5415 = vpop.permute.xlu0 %5414
    %v5419 = vsel %vm539, %v5410, 0
    %v5422 = vsel %vm539, %v5411, 0
    %5424 = vmatpush.msra.mxu0 0.0
    %5425 = vmatpush.msra.mxu0 0.0
    %5426 = vmatpush.msra.mxu0 0.0
    %5427 = vmatpush.msra.mxu0 0.0
    %5428 = vmatpush.msra.mxu0 0.0
    %5429 = vmatpush.msra.mxu0 0.0
    %5430 = vmatpush.msra.mxu0 0.0
    %5431 = vmatpush.msra.mxu0 0.0
    %5432 = vmatpush.msra.mxu0 0.0
    %5433 = vmatpush.msra.mxu0 0.0
    %5434 = vmatpush.msra.mxu0 0.0
    %5435 = vmatpush.msra.mxu0 0.0
    %5436 = vmatpush.msra.mxu0 0.0
    %5437 = vmatpush.msra.mxu0 0.0
    %5438 = vmatpush.msra.mxu0 %v5415
    %5439 = vmatpush.msra.mxu0 %v5413
    %5440 = vmatmul.f32.gmra.mxu0 %v5419
    %v5441 = vpop.f32.mrf.mxu0
    %v5442 = vadd.f32 0.0, %v5441
    %5443 = vmatmul.f32.gmra.mxu0 %v5422
    %v5444 = vpop.f32.mrf.mxu0
    %v5445 = vadd.f32 0.0, %v5444
    %5446 = vdwg.mxu0
    %5449 = vrot.lane.b32.xlu0 %v5242, 32
    %v5450 = vpop.permute.xlu0 %5449
    %5451 = vrot.lane.b32.xlu0 %v5245, 32
    %v5452 = vpop.permute.xlu0 %5451
    %5457 = vrot.lane.b32.xlu0 %v5342, 64
    %v5458 = vpop.permute.xlu0 %5457
    %5459 = vrot.lane.b32.xlu0 %v5345, 64
    %v5460 = vpop.permute.xlu0 %5459
    %5465 = vrot.lane.b32.xlu0 %v5442, 96
    %v5466 = vpop.permute.xlu0 %5465
    %5467 = vrot.lane.b32.xlu0 %v5445, 96
    %v5468 = vpop.permute.xlu0 %5467
    %v5471 = vsel %vm499, %v5140, %v5450
    %v5472 = vsel %vm499, %v5143, %v5452
    %v5473 = vsel %vm919, %v5471, %v5458
    %v5474 = vsel %vm919, %v5472, %v5460
    %v5475 = vsel %vm922, %v5473, %v5466
    %v5476 = vsel %vm922, %v5474, %v5468
    %v5478 = vperm.slane %v4978, 0
    %5480 = vmatpush.msra.mxu0 %v4976
    %5481 = vmatpush.msra.mxu0 %v4975
    %5482 = vmatpush.msra.mxu0 %v4974
    %5483 = vmatpush.msra.mxu0 %v4973
    %5484 = vmatpush.msra.mxu0 %v4972
    %5485 = vmatpush.msra.mxu0 %v4971
    %5486 = vmatpush.msra.mxu0 %v4970
    %5487 = vmatpush.msra.mxu0 %v4969
    %5488 = vmatpush.msra.mxu0 %v4968
    %5489 = vmatpush.msra.mxu0 %v4967
    %5490 = vmatpush.msra.mxu0 %v4966
    %5491 = vmatpush.msra.mxu0 %v4965
    %5492 = vmatpush.msra.mxu0 %v4964
    %5493 = vmatpush.msra.mxu0 %v4963
    %5494 = vmatpush.msra.mxu0 %v4962
    %5495 = vmatpush.msra.mxu0 %v4961
    %5496 = vmatmul.f32.gmra.mxu0 %v5475
    %v5497 = vpop.f32.mrf.mxu0
    %v5498 = vadd.f32 %v5478, %v5497
    %5499 = vmatmul.f32.gmra.mxu0 %v5476
    %v5500 = vpop.f32.mrf.mxu0
    %v5501 = vadd.f32 %v5478, %v5500
    %5502 = vdwg.mxu0
    %v5503 = vadd.f32 %v4907, %v5498
    %v5504 = vadd.f32 %v4908, %v5501
    %s5505 = scalar_lea.vmem %s51, 1
    %v5506 = vld [vmem:[%s5505] sm:$0x1]
    %s5507 = scalar_lea.vmem %s53, 1
    %v5508 = vld [vmem:[%s5507] sm:$0x1]
    %5509 = vadd.xlane.f32.xlu0 %v5503
    %v5510 = vpop.xlane.xlu0 %5509
    %5511 = vadd.xlane.f32.xlu0 %v5504
    %v5512 = vpop.xlane.xlu0 %5511
    %v5513 = vmul.f32 %v5510, %v965
    %v5514 = vmul.f32 %v5512, %v965
    %v5515 = vsub.f32 %v5503, %v5513
    %v5516 = vsub.f32 %v5504, %v5514
    %v5517 = vmul.f32 %v5515, %v5515
    %v5518 = vmul.f32 %v5516, %v5516
    %5519 = vadd.xlane.f32.xlu0 %v5517
    %v5520 = vpop.xlane.xlu0 %5519
    %5521 = vadd.xlane.f32.xlu0 %v5518
    %v5522 = vpop.xlane.xlu0 %5521
    %v5523 = vmul.f32 %v5520, %v965
    %v5524 = vmul.f32 %v5522, %v965
    %v5525 = vadd.f32 %v5523, 0.6
    %v5526 = vadd.f32 %v5524, 0.6
    %v5527 = vrsqrt.pop %v5525
    %v5528 = vmul.f32 %v5527, %v5525
    %v5529 = vmul.f32 %v5528, %v5527
    %v5530 = vmul.f32 0.5, %v5529
    %v5531 = vsub.f32 1.5, %v5530
    %v5532 = vmul.f32 %v5527, %v5531
    %vm5533 = vweird.f32 %v5525
    %vm5534 = vweird.f32 %v5527
    %vm5535 = vmor %vm5533, %vm5534
    %v5536 = vsel %vm5535, %v5527, %v5532
    %v5537 = vrsqrt.pop %v5526
    %v5538 = vmul.f32 %v5537, %v5526
    %v5539 = vmul.f32 %v5538, %v5537
    %v5540 = vmul.f32 0.5, %v5539
    %v5541 = vsub.f32 1.5, %v5540
    %v5542 = vmul.f32 %v5537, %v5541
    %vm5543 = vweird.f32 %v5526
    %vm5544 = vweird.f32 %v5537
    %vm5545 = vmor %vm5543, %vm5544
    %v5546 = vsel %vm5545, %v5537, %v5542
    %v5547 = vmul.f32 %v5515, %v5536
    %v5548 = vmul.f32 %v5516, %v5546
    %v5550 = vperm.slane %v5506, 0
    %v5552 = vmul.f32 %v5547, %v5550
    %v5553 = vmul.f32 %v5548, %v5550
    %v5555 = vperm.slane %v5508, 0
    %v5557 = vadd.f32 %v5552, %v5555
    %v5558 = vadd.f32 %v5553, %v5555
    %s5559 = scalar_lea.vmem [#allocation16], 256
    %v5560 = vld [vmem:[%s5559] sm:$0xff]
    %v5561 = vld [vmem:[%s5559 + $0x8] sm:$0xff]
    %v5562 = vld [vmem:[%s5559 + $0x10] sm:$0xff]
    %v5563 = vld [vmem:[%s5559 + $0x18] sm:$0xff]
    %v5564 = vld [vmem:[%s5559 + $0x20] sm:$0xff]
    %v5565 = vld [vmem:[%s5559 + $0x28] sm:$0xff]
    %v5566 = vld [vmem:[%s5559 + $0x30] sm:$0xff]
    %v5567 = vld [vmem:[%s5559 + $0x38] sm:$0xff]
    %v5568 = vld [vmem:[%s5559 + $0x40] sm:$0xff]
    %v5569 = vld [vmem:[%s5559 + $0x48] sm:$0xff]
    %v5570 = vld [vmem:[%s5559 + $0x50] sm:$0xff]
    %v5571 = vld [vmem:[%s5559 + $0x58] sm:$0xff]
    %v5572 = vld [vmem:[%s5559 + $0x60] sm:$0xff]
    %v5573 = vld [vmem:[%s5559 + $0x68] sm:$0xff]
    %v5574 = vld [vmem:[%s5559 + $0x70] sm:$0xff]
    %v5575 = vld [vmem:[%s5559 + $0x78] sm:$0xff]
    %v5576 = vld [vmem:[%s5559 + $0x80] sm:$0xff]
    %v5577 = vld [vmem:[%s5559 + $0x88] sm:$0xff]
    %v5578 = vld [vmem:[%s5559 + $0x90] sm:$0xff]
    %v5579 = vld [vmem:[%s5559 + $0x98] sm:$0xff]
    %v5580 = vld [vmem:[%s5559 + $0xa0] sm:$0xff]
    %v5581 = vld [vmem:[%s5559 + $0xa8] sm:$0xff]
    %v5582 = vld [vmem:[%s5559 + $0xb0] sm:$0xff]
    %v5583 = vld [vmem:[%s5559 + $0xb8] sm:$0xff]
    %v5584 = vld [vmem:[%s5559 + $0xc0] sm:$0xff]
    %v5585 = vld [vmem:[%s5559 + $0xc8] sm:$0xff]
    %v5586 = vld [vmem:[%s5559 + $0xd0] sm:$0xff]
    %v5587 = vld [vmem:[%s5559 + $0xd8] sm:$0xff]
    %v5588 = vld [vmem:[%s5559 + $0xe0] sm:$0xff]
    %v5589 = vld [vmem:[%s5559 + $0xe8] sm:$0xff]
    %v5590 = vld [vmem:[%s5559 + $0xf0] sm:$0xff]
    %v5591 = vld [vmem:[%s5559 + $0xf8] sm:$0xff]
    %s5592 = scalar_lea.vmem %s57, 2
    %v5593 = vld [vmem:[%s5592] sm:$0x3]
    %s5594 = scalar_lea.vmem [#allocation17], 256
    %v5595 = vld [vmem:[%s5594] sm:$0xff]
    %v5596 = vld [vmem:[%s5594 + $0x8] sm:$0xff]
    %v5597 = vld [vmem:[%s5594 + $0x10] sm:$0xff]
    %v5598 = vld [vmem:[%s5594 + $0x18] sm:$0xff]
    %v5599 = vld [vmem:[%s5594 + $0x20] sm:$0xff]
    %v5600 = vld [vmem:[%s5594 + $0x28] sm:$0xff]
    %v5601 = vld [vmem:[%s5594 + $0x30] sm:$0xff]
    %v5602 = vld [vmem:[%s5594 + $0x38] sm:$0xff]
    %v5603 = vld [vmem:[%s5594 + $0x40] sm:$0xff]
    %v5604 = vld [vmem:[%s5594 + $0x48] sm:$0xff]
    %v5605 = vld [vmem:[%s5594 + $0x50] sm:$0xff]
    %v5606 = vld [vmem:[%s5594 + $0x58] sm:$0xff]
    %v5607 = vld [vmem:[%s5594 + $0x60] sm:$0xff]
    %v5608 = vld [vmem:[%s5594 + $0x68] sm:$0xff]
    %v5609 = vld [vmem:[%s5594 + $0x70] sm:$0xff]
    %v5610 = vld [vmem:[%s5594 + $0x78] sm:$0xff]
    %v5611 = vld [vmem:[%s5594 + $0x80] sm:$0xff]
    %v5612 = vld [vmem:[%s5594 + $0x88] sm:$0xff]
    %v5613 = vld [vmem:[%s5594 + $0x90] sm:$0xff]
    %v5614 = vld [vmem:[%s5594 + $0x98] sm:$0xff]
    %v5615 = vld [vmem:[%s5594 + $0xa0] sm:$0xff]
    %v5616 = vld [vmem:[%s5594 + $0xa8] sm:$0xff]
    %v5617 = vld [vmem:[%s5594 + $0xb0] sm:$0xff]
    %v5618 = vld [vmem:[%s5594 + $0xb8] sm:$0xff]
    %v5619 = vld [vmem:[%s5594 + $0xc0] sm:$0xff]
    %v5620 = vld [vmem:[%s5594 + $0xc8] sm:$0xff]
    %v5621 = vld [vmem:[%s5594 + $0xd0] sm:$0xff]
    %v5622 = vld [vmem:[%s5594 + $0xd8] sm:$0xff]
    %v5623 = vld [vmem:[%s5594 + $0xe0] sm:$0xff]
    %v5624 = vld [vmem:[%s5594 + $0xe8] sm:$0xff]
    %v5625 = vld [vmem:[%s5594 + $0xf0] sm:$0xff]
    %v5626 = vld [vmem:[%s5594 + $0xf8] sm:$0xff]
    %s5627 = scalar_lea.vmem %s61, 1
    %v5628 = vld [vmem:[%s5627] sm:$0x1]
    %v5630 = vperm.slane %v5593, 0
    %v5631 = vperm.slane %v5593, 1
    %5634 = vmatpush.msra.mxu0 %v5590
    %5635 = vmatpush.msra.mxu0 %v5588
    %5636 = vmatpush.msra.mxu0 %v5586
    %5637 = vmatpush.msra.mxu0 %v5584
    %5638 = vmatpush.msra.mxu0 %v5582
    %5639 = vmatpush.msra.mxu0 %v5580
    %5640 = vmatpush.msra.mxu0 %v5578
    %5641 = vmatpush.msra.mxu0 %v5576
    %5642 = vmatpush.msra.mxu0 %v5574
    %5643 = vmatpush.msra.mxu0 %v5572
    %5644 = vmatpush.msra.mxu0 %v5570
    %5645 = vmatpush.msra.mxu0 %v5568
    %5646 = vmatpush.msra.mxu0 %v5566
    %5647 = vmatpush.msra.mxu0 %v5564
    %5648 = vmatpush.msra.mxu0 %v5562
    %5649 = vmatpush.msra.mxu0 %v5560
    %5650 = vmatmul.f32.gmra.mxu0 %v5557
    %v5651 = vpop.f32.mrf.mxu0
    %v5652 = vadd.f32 %v5630, %v5651
    %5653 = vmatmul.f32.gmra.mxu0 %v5558
    %v5654 = vpop.f32.mrf.mxu0
    %v5655 = vadd.f32 %v5630, %v5654
    %5656 = vdwg.mxu0
    %5657 = vmatpush.msra.mxu0 %v5591
    %5658 = vmatpush.msra.mxu0 %v5589
    %5659 = vmatpush.msra.mxu0 %v5587
    %5660 = vmatpush.msra.mxu0 %v5585
    %5661 = vmatpush.msra.mxu0 %v5583
    %5662 = vmatpush.msra.mxu0 %v5581
    %5663 = vmatpush.msra.mxu0 %v5579
    %5664 = vmatpush.msra.mxu0 %v5577
    %5665 = vmatpush.msra.mxu0 %v5575
    %5666 = vmatpush.msra.mxu0 %v5573
    %5667 = vmatpush.msra.mxu0 %v5571
    %5668 = vmatpush.msra.mxu0 %v5569
    %5669 = vmatpush.msra.mxu0 %v5567
    %5670 = vmatpush.msra.mxu0 %v5565
    %5671 = vmatpush.msra.mxu0 %v5563
    %5672 = vmatpush.msra.mxu0 %v5561
    %5673 = vmatmul.f32.gmra.mxu0 %v5557
    %v5674 = vpop.f32.mrf.mxu0
    %v5675 = vadd.f32 %v5631, %v5674
    %5676 = vmatmul.f32.gmra.mxu0 %v5558
    %v5677 = vpop.f32.mrf.mxu0
    %v5678 = vadd.f32 %v5631, %v5677
    %5679 = vdwg.mxu0
    %v5680 = vmax.f32 %v5652, 0.0
    %v5681 = vmax.f32 %v5675, 0.0
    %v5682 = vmax.f32 %v5655, 0.0
    %v5683 = vmax.f32 %v5678, 0.0
    %v5685 = vperm.slane %v5628, 0
    %5687 = vmatpush.msra.mxu0 %v5610
    %5688 = vmatpush.msra.mxu0 %v5609
    %5689 = vmatpush.msra.mxu0 %v5608
    %5690 = vmatpush.msra.mxu0 %v5607
    %5691 = vmatpush.msra.mxu0 %v5606
    %5692 = vmatpush.msra.mxu0 %v5605
    %5693 = vmatpush.msra.mxu0 %v5604
    %5694 = vmatpush.msra.mxu0 %v5603
    %5695 = vmatpush.msra.mxu0 %v5602
    %5696 = vmatpush.msra.mxu0 %v5601
    %5697 = vmatpush.msra.mxu0 %v5600
    %5698 = vmatpush.msra.mxu0 %v5599
    %5699 = vmatpush.msra.mxu0 %v5598
    %5700 = vmatpush.msra.mxu0 %v5597
    %5701 = vmatpush.msra.mxu0 %v5596
    %5702 = vmatpush.msra.mxu0 %v5595
    %5703 = vmatmul.f32.gmra.mxu0 %v5680
    %v5704 = vpop.f32.mrf.mxu0
    %v5705 = vadd.f32 %v5685, %v5704
    %5706 = vmatmul.f32.gmra.mxu0 %v5682
    %v5707 = vpop.f32.mrf.mxu0
    %v5708 = vadd.f32 %v5685, %v5707
    %5709 = vdwg.mxu0
    %5710 = vmatpush.msra.mxu0 %v5626
    %5711 = vmatpush.msra.mxu0 %v5625
    %5712 = vmatpush.msra.mxu0 %v5624
    %5713 = vmatpush.msra.mxu0 %v5623
    %5714 = vmatpush.msra.mxu0 %v5622
    %5715 = vmatpush.msra.mxu0 %v5621
    %5716 = vmatpush.msra.mxu0 %v5620
    %5717 = vmatpush.msra.mxu0 %v5619
    %5718 = vmatpush.msra.mxu0 %v5618
    %5719 = vmatpush.msra.mxu0 %v5617
    %5720 = vmatpush.msra.mxu0 %v5616
    %5721 = vmatpush.msra.mxu0 %v5615
    %5722 = vmatpush.msra.mxu0 %v5614
    %5723 = vmatpush.msra.mxu0 %v5613
    %5724 = vmatpush.msra.mxu0 %v5612
    %5725 = vmatpush.msra.mxu0 %v5611
    %5726 = vmatmul.f32.gmra.mxu0 %v5681
    %v5727 = vpop.f32.mrf.mxu0
    %v5728 = vadd.f32 %v5705, %v5727
    %5729 = vmatmul.f32.gmra.mxu0 %v5683
    %v5730 = vpop.f32.mrf.mxu0
    %v5731 = vadd.f32 %v5708, %v5730
    %5732 = vdwg.mxu0
    %v5733 = vadd.f32 %v5557, %v5728
    %v5734 = vadd.f32 %v5558, %v5731
    %s5735 = scalar_lea.vmem %s63, 1
    %v5736 = vld [vmem:[%s5735] sm:$0x1]
    %s5737 = scalar_lea.vmem %s65, 1
    %v5738 = vld [vmem:[%s5737] sm:$0x1]
    %5739 = vadd.xlane.f32.xlu0 %v5733
    %v5740 = vpop.xlane.xlu0 %5739
    %5741 = vadd.xlane.f32.xlu0 %v5734
    %v5742 = vpop.xlane.xlu0 %5741
    %v5743 = vmul.f32 %v5740, %v965
    %v5744 = vmul.f32 %v5742, %v965
    %v5745 = vsub.f32 %v5733, %v5743
    %v5746 = vsub.f32 %v5734, %v5744
    %v5747 = vmul.f32 %v5745, %v5745
    %v5748 = vmul.f32 %v5746, %v5746
    %5749 = vadd.xlane.f32.xlu0 %v5747
    %v5750 = vpop.xlane.xlu0 %5749
    %5751 = vadd.xlane.f32.xlu0 %v5748
    %v5752 = vpop.xlane.xlu0 %5751
    %v5753 = vmul.f32 %v5750, %v965
    %v5754 = vmul.f32 %v5752, %v965
    %v5755 = vadd.f32 %v5753, 0.6
    %v5756 = vadd.f32 %v5754, 0.6
    %v5757 = vrsqrt.pop %v5755
    %v5758 = vmul.f32 %v5757, %v5755
    %v5759 = vmul.f32 %v5758, %v5757
    %v5760 = vmul.f32 0.5, %v5759
    %v5761 = vsub.f32 1.5, %v5760
    %v5762 = vmul.f32 %v5757, %v5761
    %vm5763 = vweird.f32 %v5755
    %vm5764 = vweird.f32 %v5757
    %vm5765 = vmor %vm5763, %vm5764
    %v5766 = vsel %vm5765, %v5757, %v5762
    %v5767 = vrsqrt.pop %v5756
    %v5768 = vmul.f32 %v5767, %v5756
    %v5769 = vmul.f32 %v5768, %v5767
    %v5770 = vmul.f32 0.5, %v5769
    %v5771 = vsub.f32 1.5, %v5770
    %v5772 = vmul.f32 %v5767, %v5771
    %vm5773 = vweird.f32 %v5756
    %vm5774 = vweird.f32 %v5767
    %vm5775 = vmor %vm5773, %vm5774
    %v5776 = vsel %vm5775, %v5767, %v5772
    %v5777 = vmul.f32 %v5745, %v5766
    %v5778 = vmul.f32 %v5746, %v5776
    %v5780 = vperm.slane %v5736, 0
    %v5782 = vmul.f32 %v5777, %v5780
    %v5783 = vmul.f32 %v5778, %v5780
    %v5785 = vperm.slane %v5738, 0
    %v5787 = vadd.f32 %v5782, %v5785
    %v5788 = vadd.f32 %v5783, %v5785
    %v5789 = vld [vmem:[#allocation20] sm:$0xff]
    %v5790 = vld [vmem:[#allocation20 + $0x8] sm:$0xff]
    %v5791 = vld [vmem:[#allocation20 + $0x10] sm:$0xff]
    %v5792 = vld [vmem:[#allocation20 + $0x18] sm:$0xff]
    %v5793 = vld [vmem:[#allocation20 + $0x20] sm:$0xff]
    %v5794 = vld [vmem:[#allocation20 + $0x28] sm:$0xff]
    %v5795 = vld [vmem:[#allocation20 + $0x30] sm:$0xff]
    %v5796 = vld [vmem:[#allocation20 + $0x38] sm:$0xff]
    %v5797 = vld [vmem:[#allocation20 + $0x40] sm:$0xff]
    %v5798 = vld [vmem:[#allocation20 + $0x48] sm:$0xff]
    %v5799 = vld [vmem:[#allocation20 + $0x50] sm:$0xff]
    %v5800 = vld [vmem:[#allocation20 + $0x58] sm:$0xff]
    %v5801 = vld [vmem:[#allocation20 + $0x60] sm:$0xff]
    %v5802 = vld [vmem:[#allocation20 + $0x68] sm:$0xff]
    %v5803 = vld [vmem:[#allocation20 + $0x70] sm:$0xff]
    %v5804 = vld [vmem:[#allocation20 + $0x78] sm:$0xff]
    %v5805 = vld [vmem:[%s77] sm:$0x1]
    %v5807 = vperm.slane %v5805, 0
    %5809 = vmatpush.msra.mxu0 %v5804
    %5810 = vmatpush.msra.mxu0 %v5803
    %5811 = vmatpush.msra.mxu0 %v5802
    %5812 = vmatpush.msra.mxu0 %v5801
    %5813 = vmatpush.msra.mxu0 %v5800
    %5814 = vmatpush.msra.mxu0 %v5799
    %5815 = vmatpush.msra.mxu0 %v5798
    %5816 = vmatpush.msra.mxu0 %v5797
    %5817 = vmatpush.msra.mxu0 %v5796
    %5818 = vmatpush.msra.mxu0 %v5795
    %5819 = vmatpush.msra.mxu0 %v5794
    %5820 = vmatpush.msra.mxu0 %v5793
    %5821 = vmatpush.msra.mxu0 %v5792
    %5822 = vmatpush.msra.mxu0 %v5791
    %5823 = vmatpush.msra.mxu0 %v5790
    %5824 = vmatpush.msra.mxu0 %v5789
    %5825 = vmatmul.f32.gmra.mxu0 %v5787
    %v5826 = vpop.f32.mrf.mxu0
    %v5827 = vadd.f32 %v5807, %v5826
    %5828 = vmatmul.f32.gmra.mxu0 %v5788
    %v5829 = vpop.f32.mrf.mxu0
    %v5830 = vadd.f32 %v5807, %v5829
    %5831 = vdwg.mxu0
    %5832 = vst [vmem:[%s81] sm:$0xff] %v5827
    %5833 = vst [vmem:[%s81 + $0x8] sm:$0xff] %v5830
    // Predicated region
    $region206: #{_forward_impl.1} parent=1 // pred_check
      _
    $region207: #{_forward_impl.1} parent=1 // pred_check_branch
      %5835 = sbr.rel (0) target = $region209
    $region208: #{_forward_impl.1} parent=1 // pred_region
      %5837 = vsyncadd [#allocation4], 0
      %s5839 = sshll.u32 [#allocation22], 4
      %s5840 = int_to_ptr.vmem [resolvable:$true] %s5839
      %s5841 = sshll.u32 %s79, 4
      %s5842 = int_to_ptr.hbm [resolvable:$true] %s5841
      %5844 = dma.vmem_to_hbm [thread:$0]  %s5840, 32, %s5842, [#allocation4]
    $region209: #{_forward_impl.1} parent=1 // pred_fallthru
      _
    // Predicated region
    $region210: #{_forward_impl.1} parent=1 // pred_check
      _
    $region211: #{_forward_impl.1} parent=1 // pred_check_branch
      %5846 = sbr.rel (0) target = $region213
    $region212: #{_forward_impl.1} parent=1 // pred_region
      _
    $region213: #{_forward_impl.1} parent=1 // pred_fallthru
      _
    // Predicated region
    $region214: #{_forward_impl.1} parent=1 // pred_check
      _
    $region215: #{_forward_impl.1} parent=1 // pred_check_branch
      %5848 = sbr.rel (0) target = $region217
    $region216: #{_forward_impl.1} parent=1 // pred_region
      %5850 = dma.done [#allocation4], 32
    $region217: #{_forward_impl.1} parent=1 // pred_fallthru
      _
    // Predicated region
    $region218: #{_forward_impl.1} parent=1 // pred_check
      _
    $region219: #{_forward_impl.1} parent=1 // pred_check_branch
      %5852 = sbr.rel (0) target = $region221
    $region220: #{_forward_impl.1} parent=1 // pred_region
      _
    $region221: #{_forward_impl.1} parent=1 // pred_fallthru
      _
    %5853 = vsyncpa [#allocation3], 1
    %5854 = vsyncpa [#allocation6], 1
    %5855 = vsyncpa [#allocation9], 1
    %5856 = vsyncpa [#allocation12], 1
    %5857 = vsyncpa [#allocation15], 1
    %5858 = vsyncpa [#allocation18], 1
    %5859 = vsyncpa [#allocation21], 1
    %5860 = vsyncpa [#allocation4], 1

</llo_original>
